<compile_context>
chip_gen: v7x
topology: tpu7x:2x2x1
jax: 0.10.0
libtpu: 0.0.40
codegen_flags: <defaults>
</compile_context>

<pallas_src>
import functools

import jax
import jax.numpy as jnp
from jax.experimental import pallas as pl
from jax.experimental.pallas import tpu as pltpu

EPS = 1e-5


def _pick_vmem_limit():
    # v5e/v6e: 128 MiB physical -> ~96-100 MiB scoped; v7x: 64 MiB -> 48 MiB.
    try:
        cap = pltpu.get_tpu_info().vmem_capacity_bytes
        return int(min(cap * 3 // 4, 100 * 1024 * 1024))
    except Exception:  # pragma: no cover - conservative fallback
        return 48 * 1024 * 1024


VMEM_LIMIT = _pick_vmem_limit()


def _cparams(sem):
    return pltpu.CompilerParams(dimension_semantics=sem,
                                vmem_limit_bytes=VMEM_LIMIT)


# ------------------------------------------------------------------ kernels

def _stats_kernel(x_ref, s_ref, q_ref):
    """Per-program (per batch element) per-channel sum / sum-of-squares over L."""
    x = x_ref[0].astype(jnp.float32)
    s_ref[0] = jnp.sum(x, axis=0, keepdims=True)
    q_ref[0] = jnp.sum(x * x, axis=0, keepdims=True)


def _conv_kernel(*refs, K, padl, relu, affine, shortcut):
    """Fused (input affine [+ReLU]) -> im2col -> one MXU contraction -> stats.

    Optionally also computes the fused 1x1 expand-shortcut conv from the same
    normalized input.

    refs layout (all per-grid-step, grid over batch):
      inputs : x (1, L, Cin), w (K*Cin, Cout) bf16,
               [a (1, Cin), b (1, Cin)]      if affine,
               [w_sc (Cin, Csc) bf16]        if shortcut
      outputs: y (1, Lout, Cout), s (1, 1, Cout), q (1, 1, Cout),
               [y_sc (1, L, Csc), s_sc (1, 1, Csc), q_sc (1, 1, Csc)] if shortcut
      scratch: im2col (Lout, K*Cin) f32
    """
    it = iter(refs)
    x_ref = next(it)
    w_ref = next(it)
    if affine:
        a_ref = next(it)
        b_ref = next(it)
    if shortcut:
        wsc_ref = next(it)
    y_ref = next(it)
    s_ref = next(it)
    q_ref = next(it)
    if shortcut:
        ysc_ref = next(it)
        ssc_ref = next(it)
        qsc_ref = next(it)
    im_ref = next(it)

    L = x_ref.shape[1]
    Cin = x_ref.shape[2]
    Lout = y_ref.shape[1]

    xin = x_ref[0].astype(jnp.float32)
    if affine:
        xin = xin * a_ref[...] + b_ref[...]
    if relu:
        xin = jnp.maximum(xin, 0.0)

    # Build the im2col slab: column block k holds xpad[k : k + Lout, :] where
    # xpad is the (virtually) zero-padded, normalized input.  Only the valid
    # rows are written from xin; the few edge (pad) rows are zeroed explicitly
    # (no full-scratch re-zero per grid step).  All offsets are static.
    for k in range(K):
        dst0 = max(0, padl - k)
        dst1 = min(Lout, padl - k + L)
        src0 = max(0, k - padl)
        c0 = k * Cin
        if dst0 > 0:
            im_ref[pl.ds(0, dst0), pl.ds(c0, Cin)] = jnp.zeros(
                (dst0, Cin), jnp.float32)
        if dst1 < Lout:
            im_ref[pl.ds(dst1, Lout - dst1), pl.ds(c0, Cin)] = jnp.zeros(
                (Lout - dst1, Cin), jnp.float32)
        im_ref[pl.ds(dst0, dst1 - dst0), pl.ds(c0, Cin)] = (
            xin[src0:src0 + (dst1 - dst0), :])

    # One deep contraction on the MXU (bf16 operands, f32 accumulate).
    acc = jnp.dot(im_ref[...].astype(jnp.bfloat16), w_ref[...],
                  preferred_element_type=jnp.float32)
    y_ref[0] = acc.astype(y_ref.dtype)
    # Per-program partial batch statistics of this conv's output (feeds the
    # following BatchNorm for free; reduced over the batch in the wrapper).
    s_ref[0] = jnp.sum(acc, axis=0, keepdims=True)
    q_ref[0] = jnp.sum(acc * acc, axis=0, keepdims=True)

    if shortcut:
        sc = jnp.dot(xin.astype(jnp.bfloat16), wsc_ref[...],
                     preferred_element_type=jnp.float32)
        ysc_ref[0] = sc.astype(ysc_ref.dtype)
        ssc_ref[0] = jnp.sum(sc, axis=0, keepdims=True)
        qsc_ref[0] = jnp.sum(sc * sc, axis=0, keepdims=True)


def _residual_fuse_kernel(*refs, emit_y, emit_stats, emit_gap):
    """Fused bn3(h) + bn_sc(sc) + add + ReLU, plus optional stats / fused GAP."""
    h_ref, sc_ref, ah_ref, bh_ref, asc_ref, bsc_ref = refs[:6]
    idx = 6
    if emit_y:
        y_ref = refs[idx]; idx += 1
    if emit_stats:
        s_ref = refs[idx]; q_ref = refs[idx + 1]; idx += 2
    if emit_gap:
        g_ref = refs[idx]; idx += 1

    y = jnp.maximum(
        h_ref[0].astype(jnp.float32) * ah_ref[...] + bh_ref[...]
        + sc_ref[0].astype(jnp.float32) * asc_ref[...] + bsc_ref[...], 0.0)

    if emit_y:
        y_ref[0] = y.astype(y_ref.dtype)
    if emit_stats:
        s_ref[0] = jnp.sum(y, axis=0, keepdims=True)
        q_ref[0] = jnp.sum(y * y, axis=0, keepdims=True)
    if emit_gap:
        g_ref[0] = jnp.mean(y, axis=0, keepdims=True)   # GAP over L, per sample


def _head_kernel(e_ref, w_ref, b_ref, o_ref):
    """Final Linear over the whole batch in one matmul."""
    o_ref[...] = jnp.dot(e_ref[...], w_ref[...],
                         preferred_element_type=jnp.float32) + b_ref[...]


# --------------------------------------------------------------- wrappers

def batch_stats(x):
    """x: (N, L, C) -> per-channel (sum, sumsq) over (N, L)."""
    N, L, C = x.shape
    s, q = pl.pallas_call(
        _stats_kernel,
        out_shape=(jax.ShapeDtypeStruct((N, 1, C), jnp.float32),) * 2,
        grid=(N,),
        in_specs=[pl.BlockSpec((1, L, C), lambda n: (n, 0, 0))],
        out_specs=(pl.BlockSpec((1, 1, C), lambda n: (n, 0, 0)),) * 2,
        compiler_params=_cparams(("parallel",)),
    )(x)
    return jnp.sum(s[:, 0, :], axis=0), jnp.sum(q[:, 0, :], axis=0)


def conv_fused(x, w, *, padding, lout, relu, affine=None, w_sc=None,
               out_dtype=jnp.bfloat16):
    """Fused conv (no bias, PyTorch weight layout (Cout, Cin, K)).

    Returns ((y, sum, sumsq), shortcut) where shortcut is None or
    (y_sc, sum_sc, sumsq_sc) for the fused 1x1 expand-shortcut conv.
    """
    N, L, Cin = x.shape
    Cout, _, K = w.shape
    wk = jnp.transpose(w, (2, 1, 0)).reshape(K * Cin, Cout).astype(jnp.bfloat16)

    inputs = [x, wk]
    in_specs = [pl.BlockSpec((1, L, Cin), lambda n: (n, 0, 0)),
                pl.BlockSpec((K * Cin, Cout), lambda n: (0, 0))]
    if affine is not None:
        a, b = affine
        inputs += [a.reshape(1, Cin), b.reshape(1, Cin)]
        in_specs += [pl.BlockSpec((1, Cin), lambda n: (0, 0)),
                     pl.BlockSpec((1, Cin), lambda n: (0, 0))]
    shortcut = w_sc is not None
    if shortcut:
        Csc = w_sc.shape[0]
        wsc = jnp.transpose(w_sc, (2, 1, 0)).reshape(Cin, Csc).astype(jnp.bfloat16)
        inputs.append(wsc)
        in_specs.append(pl.BlockSpec((Cin, Csc), lambda n: (0, 0)))

    out_shape = [jax.ShapeDtypeStruct((N, lout, Cout), out_dtype),
                 jax.ShapeDtypeStruct((N, 1, Cout), jnp.float32),
                 jax.ShapeDtypeStruct((N, 1, Cout), jnp.float32)]
    out_specs = [pl.BlockSpec((1, lout, Cout), lambda n: (n, 0, 0)),
                 pl.BlockSpec((1, 1, Cout), lambda n: (n, 0, 0)),
                 pl.BlockSpec((1, 1, Cout), lambda n: (n, 0, 0))]
    if shortcut:
        out_shape += [jax.ShapeDtypeStruct((N, L, Csc), out_dtype),
                      jax.ShapeDtypeStruct((N, 1, Csc), jnp.float32),
                      jax.ShapeDtypeStruct((N, 1, Csc), jnp.float32)]
        out_specs += [pl.BlockSpec((1, L, Csc), lambda n: (n, 0, 0)),
                      pl.BlockSpec((1, 1, Csc), lambda n: (n, 0, 0)),
                      pl.BlockSpec((1, 1, Csc), lambda n: (n, 0, 0))]

    kern = functools.partial(_conv_kernel, K=K, padl=padding, relu=relu,
                             affine=affine is not None, shortcut=shortcut)
    res = pl.pallas_call(
        kern,
        out_shape=tuple(out_shape),
        grid=(N,),
        in_specs=in_specs,
        out_specs=tuple(out_specs),
        scratch_shapes=[pltpu.VMEM((lout, K * Cin), jnp.float32)],
        compiler_params=_cparams(("parallel",)),
    )(*inputs)

    y, s, q = res[0], res[1], res[2]
    main = (y, jnp.sum(s[:, 0, :], axis=0), jnp.sum(q[:, 0, :], axis=0))
    if shortcut:
        ysc, ssc, qsc = res[3], res[4], res[5]
        return main, (ysc, jnp.sum(ssc[:, 0, :], axis=0),
                      jnp.sum(qsc[:, 0, :], axis=0))
    return main, None


def residual_fuse(h, sc, ah, bh, asc, bsc, *, emit_y=True, emit_stats=False,
                  emit_gap=False, out_dtype=jnp.bfloat16):
    """relu(bn3(h) + bn_sc(sc)); optionally also stats and/or fused GAP."""
    N, L, C = h.shape
    out_shape, out_specs = [], []
    if emit_y:
        out_shape.append(jax.ShapeDtypeStruct((N, L, C), out_dtype))
        out_specs.append(pl.BlockSpec((1, L, C), lambda n: (n, 0, 0)))
    if emit_stats:
        out_shape += [jax.ShapeDtypeStruct((N, 1, C), jnp.float32)] * 2
        out_specs += [pl.BlockSpec((1, 1, C), lambda n: (n, 0, 0)),
                      pl.BlockSpec((1, 1, C), lambda n: (n, 0, 0))]
    if emit_gap:
        out_shape.append(jax.ShapeDtypeStruct((N, 1, C), jnp.float32))
        out_specs.append(pl.BlockSpec((1, 1, C), lambda n: (n, 0, 0)))

    kern = functools.partial(_residual_fuse_kernel, emit_y=emit_y,
                             emit_stats=emit_stats, emit_gap=emit_gap)
    res = pl.pallas_call(
        kern,
        out_shape=tuple(out_shape),
        grid=(N,),
        in_specs=[pl.BlockSpec((1, L, C), lambda n: (n, 0, 0)),
                  pl.BlockSpec((1, L, C), lambda n: (n, 0, 0)),
                  pl.BlockSpec((1, C), lambda n: (0, 0)),
                  pl.BlockSpec((1, C), lambda n: (0, 0)),
                  pl.BlockSpec((1, C), lambda n: (0, 0)),
                  pl.BlockSpec((1, C), lambda n: (0, 0))],
        out_specs=tuple(out_specs),
        compiler_params=_cparams(("parallel",)),
    )(h, sc, ah.reshape(1, C), bh.reshape(1, C),
      asc.reshape(1, C), bsc.reshape(1, C))

    i = 0
    y = st = gap = None
    if emit_y:
        y = res[i]; i += 1
    if emit_stats:
        st = (jnp.sum(res[i][:, 0, :], axis=0),
              jnp.sum(res[i + 1][:, 0, :], axis=0)); i += 2
    if emit_gap:
        gap = res[i][:, 0, :]; i += 1
    return y, st, gap


def linear_head(emb, w, b):
    """emb: (N, C) f32, w: (C, nb_classes), b: (nb_classes,) -> logits (N, nb_classes)."""
    N, C = emb.shape
    nc = w.shape[1]
    return pl.pallas_call(
        _head_kernel,
        out_shape=jax.ShapeDtypeStruct((N, nc), jnp.float32),
    )(emb, w.astype(jnp.float32), b.reshape(1, nc).astype(jnp.float32))


# --------------------------------------------------------------- JAX glue

def _bn_affine(s, q, count, gamma, beta):
    """Training-mode BN (biased batch variance) as a per-channel affine (a, b)."""
    mean = s / count
    var = jnp.maximum(q / count - mean * mean, 0.0)   # single-pass, biased
    a = gamma * jax.lax.rsqrt(var + EPS)
    return a, beta - mean * a


def _res_block(x_raw, x_aff, x_stats, p, count, *, emit_stats, emit_gap):
    """One residual block.

    x_raw   : (N, L, Cin) raw block input (before any pending BN affine)
    x_aff   : (a, b) affine mapping x_raw to the block input, or None (identity)
    x_stats : (sum, sumsq) of x_raw — used when the shortcut is a bare BN
    """
    L = x_raw.shape[1]
    expand = "sc_conv_w" in p

    # conv8 (trim-last baked in via lout=L) + fused 1x1 shortcut conv if expanding.
    (h1, s1, q1), sc_pack = conv_fused(
        x_raw, p["conv8_w"], padding=4, lout=L, relu=False, affine=x_aff,
        w_sc=p.get("sc_conv_w"))
    a1, b1 = _bn_affine(s1, q1, count, *p["bn1"])

    (h2, s2, q2), _ = conv_fused(h1, p["conv5_w"], padding=2, lout=L,
                                 relu=True, affine=(a1, b1))
    a2, b2 = _bn_affine(s2, q2, count, *p["bn2"])

    (h3, s3, q3), _ = conv_fused(h2, p["conv3_w"], padding=1, lout=L,
                                 relu=True, affine=(a2, b2))
    a3, b3 = _bn_affine(s3, q3, count, *p["bn3"])

    if expand:
        sc, ssc, qsc = sc_pack
        asc, bsc = _bn_affine(ssc, qsc, count, *p["sc_bn"])
    else:
        # shortcut = BN(affine(x_raw)); derive stats of the affine-mapped input
        # from x_raw's stats and compose the two affines.
        sx, qx = x_stats
        mean_x = sx / count
        var_x = jnp.maximum(qx / count - mean_x * mean_x, 0.0)
        gamma, beta = p["sc_bn"]
        if x_aff is None:
            mean_z, var_z = mean_x, var_x
        else:
            ax, bx = x_aff
            mean_z = ax * mean_x + bx
            var_z = ax * ax * var_x
        a_bn = gamma * jax.lax.rsqrt(var_z + EPS)
        b_bn = beta - mean_z * a_bn
        if x_aff is None:
            asc, bsc = a_bn, b_bn
        else:
            asc, bsc = a_bn * ax, a_bn * bx + b_bn
        sc = x_raw

    return residual_fuse(h3, sc, a3, b3, asc, bsc,
                         emit_y=not emit_gap, emit_stats=emit_stats,
                         emit_gap=emit_gap)


def resnet_mrm2_forward(params, x_ncl):
    """x_ncl: (N, C, L) exactly like the PyTorch module; labels=None path."""
    x = jnp.transpose(x_ncl, (0, 2, 1)).astype(jnp.float32)   # -> (N, L, C)
    N, L, C = x.shape
    count = N * L

    # input_bn is never materialized: its affine is fused into block1's convs.
    s0, q0 = batch_stats(x)
    a0, b0 = _bn_affine(s0, q0, count, *params["input_bn"])

    # block2 is always expanding (F -> 2F), so y1's stats are never needed.
    y1, _, _ = _res_block(x, (a0, b0), (s0, q0), params["block1"], count,
                          emit_stats=False, emit_gap=False)
    y2, st2, _ = _res_block(y1, None, None, params["block2"], count,
                            emit_stats=True, emit_gap=False)
    # block3: y3 is never materialized; GAP is fused into its residual kernel.
    _, _, emb = _res_block(y2, None, st2, params["block3"], count,
                           emit_stats=False, emit_gap=True)

    out = linear_head(emb, params["linear_w"], params["linear_b"])
    # TODO(synk): labels != None kNN branch (boolean-mask indexing produces
    # data-dependent shapes) is not implemented; forward default is labels=None.
    return {"tcrm2_out": out, "x_embeddings": emb, "ttrm2_out": None}


# ----------------------------------------------------------- param init

def init_params(key, input_features_d, n_feature_maps, nb_classes):
    C, F, nc = input_features_d, n_feature_maps, nb_classes
    keys = iter(jax.random.split(key, 64))

    def conv_w(cin, cout, k):
        # Conv biases are omitted: they cancel exactly under the following
        # batch-statistic BatchNorm.
        return 0.1 * jax.random.normal(next(keys), (cout, cin, k), jnp.float32)

    def bn(c):
        return (1.0 + 0.1 * jax.random.normal(next(keys), (c,), jnp.float32),
                0.1 * jax.random.normal(next(keys), (c,), jnp.float32))

    params = {
        "input_bn": bn(C),
        "block1": {
            "conv8_w": conv_w(C, F, 8), "bn1": bn(F),
            "conv5_w": conv_w(F, F, 5), "bn2": bn(F),
            "conv3_w": conv_w(F, F, 3), "bn3": bn(F),
            "sc_bn": bn(F),
        },
        "block2": {
            "conv8_w": conv_w(F, 2 * F, 8), "bn1": bn(2 * F),
            "conv5_w": conv_w(2 * F, 2 * F, 5), "bn2": bn(2 * F),
            "conv3_w": conv_w(2 * F, 2 * F, 3), "bn3": bn(2 * F),
            "sc_conv_w": conv_w(F, 2 * F, 1), "sc_bn": bn(2 * F),
        },
        "block3": {
            "conv8_w": conv_w(2 * F, 2 * F, 8), "bn1": bn(2 * F),
            "conv5_w": conv_w(2 * F, 2 * F, 5), "bn2": bn(2 * F),
            "conv3_w": conv_w(2 * F, 2 * F, 3), "bn3": bn(2 * F),
            "sc_bn": bn(2 * F),
        },
        "linear_w": 0.1 * jax.random.normal(next(keys), (2 * F, nc), jnp.float32),
        "linear_b": 0.1 * jax.random.normal(next(keys), (nc,), jnp.float32),
    }
    if C != F:  # is_expand_channels
        params["block1"]["sc_conv_w"] = conv_w(C, F, 1)
    return params


if __name__ == "__main__":
    N, C, L = 2, 4, 16         # batch, input_features_d, sequence length
    F, NB_CLASSES = 8, 3       # n_feature_maps, nb_classes

    key = jax.random.PRNGKey(0)
    pkey, xkey = jax.random.split(key)
    params = init_params(pkey, C, F, NB_CLASSES)
    x = jax.random.normal(xkey, (N, C, L), jnp.float32)

    fwd = jax.jit(resnet_mrm2_forward)
    out = fwd(params, x)
    jax.block_until_ready(out["tcrm2_out"])
    jax.block_until_ready(out["x_embeddings"])

    assert out["tcrm2_out"].shape == (N, NB_CLASSES)
    assert out["x_embeddings"].shape == (N, 2 * F)
    assert out["ttrm2_out"] is None
    print("KERNEL_OK")
</pallas_src>

<mosaic_0001>
module attributes {stable_mosaic.version = 11 : i64} {
  func.func @_stats_kernel(%arg0: i32, %arg1: memref<1x16x4xf32, #tpu.memory_space<vmem>>, %arg2: memref<1x1x4xf32, #tpu.memory_space<vmem>>, %arg3: memref<1x1x4xf32, #tpu.memory_space<vmem>>) attributes {dimension_semantics = [#tpu.dimension_semantics<parallel>], iteration_bounds = array<i64: 2>, scalar_prefetch = 0 : i64, scratch_operands = 0 : i64, tpu.core_type = #tpu.core_type<tc>, window_params = [{transform_indices = @transform_0, window_bounds = array<i64: 1, 16, 4>}, {transform_indices = @transform_1, window_bounds = array<i64: 1, 1, 4>}, {transform_indices = @transform_2, window_bounds = array<i64: 1, 1, 4>}]} {
    %c0 = arith.constant 0 : index
    %c0_0 = arith.constant 0 : index
    %c0_1 = arith.constant 0 : index
    %0 = vector.load %arg1[%c0, %c0_0, %c0_1] : memref<1x16x4xf32, #tpu.memory_space<vmem>>, vector<1x16x4xf32>
    %1 = vector.shape_cast %0 : vector<1x16x4xf32> to vector<16x4xf32>
    %cst = arith.constant dense<0.000000e+00> : vector<4xf32>
    %2 = vector.multi_reduction <add>, %1, %cst [0] : vector<16x4xf32> to vector<4xf32>
    %3 = vector.shape_cast %2 : vector<4xf32> to vector<1x4xf32>
    %c0_2 = arith.constant 0 : index
    %c0_3 = arith.constant 0 : index
    %c0_4 = arith.constant 0 : index
    %4 = vector.load %arg2[%c0_2, %c0_3, %c0_4] : memref<1x1x4xf32, #tpu.memory_space<vmem>>, vector<1x1x4xf32>
    %5 = vector.shape_cast %4 : vector<1x1x4xf32> to vector<1x4xf32>
    %6 = vector.shape_cast %3 : vector<1x4xf32> to vector<1x1x4xf32>
    tpu.vector_store %arg2[%c0_2, %c0_3, %c0_4], %6 {strides = array<i32>} : memref<1x1x4xf32, #tpu.memory_space<vmem>>, vector<1x1x4xf32>,
    %7 = arith.mulf %1, %1 : vector<16x4xf32>
    %cst_5 = arith.constant dense<0.000000e+00> : vector<4xf32>
    %8 = vector.multi_reduction <add>, %7, %cst_5 [0] : vector<16x4xf32> to vector<4xf32>
    %9 = vector.shape_cast %8 : vector<4xf32> to vector<1x4xf32>
    %c0_6 = arith.constant 0 : index
    %c0_7 = arith.constant 0 : index
    %c0_8 = arith.constant 0 : index
    %10 = vector.load %arg3[%c0_6, %c0_7, %c0_8] : memref<1x1x4xf32, #tpu.memory_space<vmem>>, vector<1x1x4xf32>
    %11 = vector.shape_cast %10 : vector<1x1x4xf32> to vector<1x4xf32>
    %12 = vector.shape_cast %9 : vector<1x4xf32> to vector<1x1x4xf32>
    tpu.vector_store %arg3[%c0_6, %c0_7, %c0_8], %12 {strides = array<i32>} : memref<1x1x4xf32, #tpu.memory_space<vmem>>, vector<1x1x4xf32>,
    return
  }
  func.func @transform_0(%arg0: i32) -> (i32, i32, i32) {
    %c0_i32 = arith.constant 0 : i32
    %c0_i32_0 = arith.constant 0 : i32
    %c0_i32_1 = arith.constant 0 : i32
    return %arg0, %c0_i32, %c0_i32_0 : i32, i32, i32
  }
  func.func @transform_1(%arg0: i32) -> (i32, i32, i32) {
    %c0_i32 = arith.constant 0 : i32
    %c0_i32_0 = arith.constant 0 : i32
    %c0_i32_1 = arith.constant 0 : i32
    return %arg0, %c0_i32, %c0_i32_0 : i32, i32, i32
  }
  func.func @transform_2(%arg0: i32) -> (i32, i32, i32) {
    %c0_i32 = arith.constant 0 : i32
    %c0_i32_0 = arith.constant 0 : i32
    %c0_i32_1 = arith.constant 0 : i32
    return %arg0, %c0_i32, %c0_i32_0 : i32, i32, i32
  }
}

module attributes {stable_mosaic.version = 11 : i64} {
  func.func @_conv_kernel(%arg0: i32, %arg1: memref<1x16x8xbf16, #tpu.memory_space<vmem>>, %arg2: memref<24x8xbf16, #tpu.memory_space<vmem>>, %arg3: memref<1x8xf32, #tpu.memory_space<vmem>>, %arg4: memref<1x8xf32, #tpu.memory_space<vmem>>, %arg5: memref<1x16x8xbf16, #tpu.memory_space<vmem>>, %arg6: memref<1x1x8xf32, #tpu.memory_space<vmem>>, %arg7: memref<1x1x8xf32, #tpu.memory_space<vmem>>, %arg8: memref<16x24xf32, #tpu.memory_space<vmem>>) attributes {dimension_semantics = [#tpu.dimension_semantics<parallel>], iteration_bounds = array<i64: 2>, scalar_prefetch = 0 : i64, scratch_operands = 1 : i64, tpu.core_type = #tpu.core_type<tc>, window_params = [{transform_indices = @transform_0, window_bounds = array<i64: 1, 16, 8>}, {pipeline_mode = #tpu.pipeline_mode<synchronous>, transform_indices = @transform_1, window_bounds = array<i64: 24, 8>}, {pipeline_mode = #tpu.pipeline_mode<synchronous>, transform_indices = @transform_2, window_bounds = array<i64: 1, 8>}, {pipeline_mode = #tpu.pipeline_mode<synchronous>, transform_indices = @transform_3, window_bounds = array<i64: 1, 8>}, {transform_indices = @transform_4, window_bounds = array<i64: 1, 16, 8>}, {transform_indices = @transform_5, window_bounds = array<i64: 1, 1, 8>}, {transform_indices = @transform_6, window_bounds = array<i64: 1, 1, 8>}]} {
    %c0 = arith.constant 0 : index
    %c0_0 = arith.constant 0 : index
    %c0_1 = arith.constant 0 : index
    %0 = vector.load %arg1[%c0, %c0_0, %c0_1] : memref<1x16x8xbf16, #tpu.memory_space<vmem>>, vector<1x16x8xbf16>
    %1 = vector.shape_cast %0 : vector<1x16x8xbf16> to vector<16x8xbf16>
    %2 = arith.extf %1 : vector<16x8xbf16> to vector<16x8xf32>
    %c0_2 = arith.constant 0 : index
    %c0_3 = arith.constant 0 : index
    %3 = vector.load %arg3[%c0_2, %c0_3] : memref<1x8xf32, #tpu.memory_space<vmem>>, vector<1x8xf32>
    %4 = vector.broadcast %3 : vector<1x8xf32> to vector<16x8xf32>
    %5 = arith.mulf %2, %4 : vector<16x8xf32>
    %c0_4 = arith.constant 0 : index
    %c0_5 = arith.constant 0 : index
    %6 = vector.load %arg4[%c0_4, %c0_5] : memref<1x8xf32, #tpu.memory_space<vmem>>, vector<1x8xf32>
    %7 = vector.broadcast %6 : vector<1x8xf32> to vector<16x8xf32>
    %8 = arith.addf %5, %7 : vector<16x8xf32>
    %cst = arith.constant 0.000000e+00 : f32
    %9 = vector.broadcast %cst : f32 to vector<16x8xf32>
    %10 = arith.maximumf %8, %9 : vector<16x8xf32>
    %cst_6 = arith.constant 0.000000e+00 : f32
    %11 = vector.broadcast %cst_6 : f32 to vector<1x8xf32>
    %c0_7 = arith.constant 0 : index
    %c0_8 = arith.constant 0 : index
    %12 = vector.load %arg8[%c0_7, %c0_8] : memref<16x24xf32, #tpu.memory_space<vmem>>, vector<1x8xf32>
    tpu.vector_store %arg8[%c0_7, %c0_8], %11 {strides = array<i32>} : memref<16x24xf32, #tpu.memory_space<vmem>>, vector<1x8xf32>,
    %13 = vector.extract_strided_slice %10 {offsets = [0, 0], sizes = [15, 8], strides = [1, 1]} : vector<16x8xf32> to vector<15x8xf32>
    %c1 = arith.constant 1 : index
    %c0_9 = arith.constant 0 : index
    %14 = vector.load %arg8[%c1, %c0_9] : memref<16x24xf32, #tpu.memory_space<vmem>>, vector<15x8xf32>
    tpu.vector_store %arg8[%c1, %c0_9], %13 {strides = array<i32>} : memref<16x24xf32, #tpu.memory_space<vmem>>, vector<15x8xf32>,
    %c0_10 = arith.constant 0 : index
    %c8 = arith.constant 8 : index
    %15 = vector.load %arg8[%c0_10, %c8] : memref<16x24xf32, #tpu.memory_space<vmem>>, vector<16x8xf32>
    tpu.vector_store %arg8[%c0_10, %c8], %10 {strides = array<i32>} : memref<16x24xf32, #tpu.memory_space<vmem>>, vector<16x8xf32>,
    %cst_11 = arith.constant 0.000000e+00 : f32
    %16 = vector.broadcast %cst_11 : f32 to vector<1x8xf32>
    %c15 = arith.constant 15 : index
    %c16 = arith.constant 16 : index
    %17 = vector.load %arg8[%c15, %c16] : memref<16x24xf32, #tpu.memory_space<vmem>>, vector<1x8xf32>
    tpu.vector_store %arg8[%c15, %c16], %16 {strides = array<i32>} : memref<16x24xf32, #tpu.memory_space<vmem>>, vector<1x8xf32>,
    %18 = vector.extract_strided_slice %10 {offsets = [1, 0], sizes = [15, 8], strides = [1, 1]} : vector<16x8xf32> to vector<15x8xf32>
    %c0_12 = arith.constant 0 : index
    %c16_13 = arith.constant 16 : index
    %19 = vector.load %arg8[%c0_12, %c16_13] : memref<16x24xf32, #tpu.memory_space<vmem>>, vector<15x8xf32>
    tpu.vector_store %arg8[%c0_12, %c16_13], %18 {strides = array<i32>} : memref<16x24xf32, #tpu.memory_space<vmem>>, vector<15x8xf32>,
    %c0_14 = arith.constant 0 : index
    %c0_15 = arith.constant 0 : index
    %20 = vector.load %arg8[%c0_14, %c0_15] : memref<16x24xf32, #tpu.memory_space<vmem>>, vector<16x24xf32>
    %21 = arith.truncf %20 : vector<16x24xf32> to vector<16x24xbf16>
    %c0_16 = arith.constant 0 : index
    %c0_17 = arith.constant 0 : index
    %22 = vector.load %arg2[%c0_16, %c0_17] : memref<24x8xbf16, #tpu.memory_space<vmem>>, vector<24x8xbf16>
    %cst_18 = arith.constant dense<0.000000e+00> : vector<16x8xf32>
    %23 = tpu.matmul %21, %22, %cst_18 {dimension_numbers = #tpu.dot_dimension_numbers<[1], [0], [0], [1], [0, 0, 1, 1], [], []>} : vector<16x24xbf16>, vector<24x8xbf16>, vector<16x8xf32> -> vector<16x8xf32>
    %24 = arith.truncf %23 : vector<16x8xf32> to vector<16x8xbf16>
    %c0_19 = arith.constant 0 : index
    %c0_20 = arith.constant 0 : index
    %c0_21 = arith.constant 0 : index
    %25 = vector.load %arg5[%c0_19, %c0_20, %c0_21] : memref<1x16x8xbf16, #tpu.memory_space<vmem>>, vector<1x16x8xbf16>
    %26 = vector.shape_cast %25 : vector<1x16x8xbf16> to vector<16x8xbf16>
    %27 = vector.shape_cast %24 : vector<16x8xbf16> to vector<1x16x8xbf16>
    tpu.vector_store %arg5[%c0_19, %c0_20, %c0_21], %27 {strides = array<i32>} : memref<1x16x8xbf16, #tpu.memory_space<vmem>>, vector<1x16x8xbf16>,
    %cst_22 = arith.constant dense<0.000000e+00> : vector<8xf32>
    %28 = vector.multi_reduction <add>, %23, %cst_22 [0] : vector<16x8xf32> to vector<8xf32>
    %29 = vector.shape_cast %28 : vector<8xf32> to vector<1x8xf32>
    %c0_23 = arith.constant 0 : index
    %c0_24 = arith.constant 0 : index
    %c0_25 = arith.constant 0 : index
    %30 = vector.load %arg6[%c0_23, %c0_24, %c0_25] : memref<1x1x8xf32, #tpu.memory_space<vmem>>, vector<1x1x8xf32>
    %31 = vector.shape_cast %30 : vector<1x1x8xf32> to vector<1x8xf32>
    %32 = vector.shape_cast %29 : vector<1x8xf32> to vector<1x1x8xf32>
    tpu.vector_store %arg6[%c0_23, %c0_24, %c0_25], %32 {strides = array<i32>} : memref<1x1x8xf32, #tpu.memory_space<vmem>>, vector<1x1x8xf32>,
    %33 = arith.mulf %23, %23 : vector<16x8xf32>
    %cst_26 = arith.constant dense<0.000000e+00> : vector<8xf32>
    %34 = vector.multi_reduction <add>, %33, %cst_26 [0] : vector<16x8xf32> to vector<8xf32>
    %35 = vector.shape_cast %34 : vector<8xf32> to vector<1x8xf32>
    %c0_27 = arith.constant 0 : index
    %c0_28 = arith.constant 0 : index
    %c0_29 = arith.constant 0 : index
    %36 = vector.load %arg7[%c0_27, %c0_28, %c0_29] : memref<1x1x8xf32, #tpu.memory_space<vmem>>, vector<1x1x8xf32>
    %37 = vector.shape_cast %36 : vector<1x1x8xf32> to vector<1x8xf32>
    %38 = vector.shape_cast %35 : vector<1x8xf32> to vector<1x1x8xf32>
    tpu.vector_store %arg7[%c0_27, %c0_28, %c0_29], %38 {strides = array<i32>} : memref<1x1x8xf32, #tpu.memory_space<vmem>>, vector<1x1x8xf32>,
    return
  }
  func.func @transform_0(%arg0: i32) -> (i32, i32, i32) {
    %c0_i32 = arith.constant 0 : i32
    %c0_i32_0 = arith.constant 0 : i32
    %c0_i32_1 = arith.constant 0 : i32
    return %arg0, %c0_i32, %c0_i32_0 : i32, i32, i32
  }
  func.func @transform_1(%arg0: i32) -> (i32, i32) {
    %c0_i32 = arith.constant 0 : i32
    %c0_i32_0 = arith.constant 0 : i32
    %c0_i32_1 = arith.constant 0 : i32
    return %c0_i32, %c0_i32_0 : i32, i32
  }
  func.func @transform_2(%arg0: i32) -> (i32, i32) {
    %c0_i32 = arith.constant 0 : i32
    %c0_i32_0 = arith.constant 0 : i32
    %c0_i32_1 = arith.constant 0 : i32
    return %c0_i32, %c0_i32_0 : i32, i32
  }
  func.func @transform_3(%arg0: i32) -> (i32, i32) {
    %c0_i32 = arith.constant 0 : i32
    %c0_i32_0 = arith.constant 0 : i32
    %c0_i32_1 = arith.constant 0 : i32
    return %c0_i32, %c0_i32_0 : i32, i32
  }
  func.func @transform_4(%arg0: i32) -> (i32, i32, i32) {
    %c0_i32 = arith.constant 0 : i32
    %c0_i32_0 = arith.constant 0 : i32
    %c0_i32_1 = arith.constant 0 : i32
    return %arg0, %c0_i32, %c0_i32_0 : i32, i32, i32
  }
  func.func @transform_5(%arg0: i32) -> (i32, i32, i32) {
    %c0_i32 = arith.constant 0 : i32
    %c0_i32_0 = arith.constant 0 : i32
    %c0_i32_1 = arith.constant 0 : i32
    return %arg0, %c0_i32, %c0_i32_0 : i32, i32, i32
  }
  func.func @transform_6(%arg0: i32) -> (i32, i32, i32) {
    %c0_i32 = arith.constant 0 : i32
    %c0_i32_0 = arith.constant 0 : i32
    %c0_i32_1 = arith.constant 0 : i32
    return %arg0, %c0_i32, %c0_i32_0 : i32, i32, i32
  }
}

module attributes {stable_mosaic.version = 11 : i64} {
  func.func @_conv_kernel(%arg0: i32, %arg1: memref<1x16x4xf32, #tpu.memory_space<vmem>>, %arg2: memref<32x8xbf16, #tpu.memory_space<vmem>>, %arg3: memref<1x4xf32, #tpu.memory_space<vmem>>, %arg4: memref<1x4xf32, #tpu.memory_space<vmem>>, %arg5: memref<4x8xbf16, #tpu.memory_space<vmem>>, %arg6: memref<1x16x8xbf16, #tpu.memory_space<vmem>>, %arg7: memref<1x1x8xf32, #tpu.memory_space<vmem>>, %arg8: memref<1x1x8xf32, #tpu.memory_space<vmem>>, %arg9: memref<1x16x8xbf16, #tpu.memory_space<vmem>>, %arg10: memref<1x1x8xf32, #tpu.memory_space<vmem>>, %arg11: memref<1x1x8xf32, #tpu.memory_space<vmem>>, %arg12: memref<16x32xf32, #tpu.memory_space<vmem>>) attributes {dimension_semantics = [#tpu.dimension_semantics<parallel>], iteration_bounds = array<i64: 2>, scalar_prefetch = 0 : i64, scratch_operands = 1 : i64, tpu.core_type = #tpu.core_type<tc>, window_params = [{transform_indices = @transform_0, window_bounds = array<i64: 1, 16, 4>}, {pipeline_mode = #tpu.pipeline_mode<synchronous>, transform_indices = @transform_1, window_bounds = array<i64: 32, 8>}, {pipeline_mode = #tpu.pipeline_mode<synchronous>, transform_indices = @transform_2, window_bounds = array<i64: 1, 4>}, {pipeline_mode = #tpu.pipeline_mode<synchronous>, transform_indices = @transform_3, window_bounds = array<i64: 1, 4>}, {pipeline_mode = #tpu.pipeline_mode<synchronous>, transform_indices = @transform_4, window_bounds = array<i64: 4, 8>}, {transform_indices = @transform_5, window_bounds = array<i64: 1, 16, 8>}, {transform_indices = @transform_6, window_bounds = array<i64: 1, 1, 8>}, {transform_indices = @transform_7, window_bounds = array<i64: 1, 1, 8>}, {transform_indices = @transform_8, window_bounds = array<i64: 1, 16, 8>}, {transform_indices = @transform_9, window_bounds = array<i64: 1, 1, 8>}, {transform_indices = @transform_10, window_bounds = array<i64: 1, 1, 8>}]} {
    %c0 = arith.constant 0 : index
    %c0_0 = arith.constant 0 : index
    %c0_1 = arith.constant 0 : index
    %0 = vector.load %arg1[%c0, %c0_0, %c0_1] : memref<1x16x4xf32, #tpu.memory_space<vmem>>, vector<1x16x4xf32>
    %1 = vector.shape_cast %0 : vector<1x16x4xf32> to vector<16x4xf32>
    %c0_2 = arith.constant 0 : index
    %c0_3 = arith.constant 0 : index
    %2 = vector.load %arg3[%c0_2, %c0_3] : memref<1x4xf32, #tpu.memory_space<vmem>>, vector<1x4xf32>
    %3 = vector.broadcast %2 : vector<1x4xf32> to vector<16x4xf32>
    %4 = arith.mulf %1, %3 : vector<16x4xf32>
    %c0_4 = arith.constant 0 : index
    %c0_5 = arith.constant 0 : index
    %5 = vector.load %arg4[%c0_4, %c0_5] : memref<1x4xf32, #tpu.memory_space<vmem>>, vector<1x4xf32>
    %6 = vector.broadcast %5 : vector<1x4xf32> to vector<16x4xf32>
    %7 = arith.addf %4, %6 : vector<16x4xf32>
    %cst = arith.constant 0.000000e+00 : f32
    %8 = vector.broadcast %cst : f32 to vector<4x4xf32>
    %c0_6 = arith.constant 0 : index
    %c0_7 = arith.constant 0 : index
    %9 = vector.load %arg12[%c0_6, %c0_7] : memref<16x32xf32, #tpu.memory_space<vmem>>, vector<4x4xf32>
    tpu.vector_store %arg12[%c0_6, %c0_7], %8 {strides = array<i32>} : memref<16x32xf32, #tpu.memory_space<vmem>>, vector<4x4xf32>,
    %10 = vector.extract_strided_slice %7 {offsets = [0, 0], sizes = [12, 4], strides = [1, 1]} : vector<16x4xf32> to vector<12x4xf32>
    %c4 = arith.constant 4 : index
    %c0_8 = arith.constant 0 : index
    %11 = vector.load %arg12[%c4, %c0_8] : memref<16x32xf32, #tpu.memory_space<vmem>>, vector<12x4xf32>
    tpu.vector_store %arg12[%c4, %c0_8], %10 {strides = array<i32>} : memref<16x32xf32, #tpu.memory_space<vmem>>, vector<12x4xf32>,
    %cst_9 = arith.constant 0.000000e+00 : f32
    %12 = vector.broadcast %cst_9 : f32 to vector<3x4xf32>
    %c0_10 = arith.constant 0 : index
    %c4_11 = arith.constant 4 : index
    %13 = vector.load %arg12[%c0_10, %c4_11] : memref<16x32xf32, #tpu.memory_space<vmem>>, vector<3x4xf32>
    tpu.vector_store %arg12[%c0_10, %c4_11], %12 {strides = array<i32>} : memref<16x32xf32, #tpu.memory_space<vmem>>, vector<3x4xf32>,
    %14 = vector.extract_strided_slice %7 {offsets = [0, 0], sizes = [13, 4], strides = [1, 1]} : vector<16x4xf32> to vector<13x4xf32>
    %c3 = arith.constant 3 : index
    %c4_12 = arith.constant 4 : index
    %15 = vector.load %arg12[%c3, %c4_12] : memref<16x32xf32, #tpu.memory_space<vmem>>, vector<13x4xf32>
    tpu.vector_store %arg12[%c3, %c4_12], %14 {strides = array<i32>} : memref<16x32xf32, #tpu.memory_space<vmem>>, vector<13x4xf32>,
    %cst_13 = arith.constant 0.000000e+00 : f32
    %16 = vector.broadcast %cst_13 : f32 to vector<2x4xf32>
    %c0_14 = arith.constant 0 : index
    %c8 = arith.constant 8 : index
    %17 = vector.load %arg12[%c0_14, %c8] : memref<16x32xf32, #tpu.memory_space<vmem>>, vector<2x4xf32>
    tpu.vector_store %arg12[%c0_14, %c8], %16 {strides = array<i32>} : memref<16x32xf32, #tpu.memory_space<vmem>>, vector<2x4xf32>,
    %18 = vector.extract_strided_slice %7 {offsets = [0, 0], sizes = [14, 4], strides = [1, 1]} : vector<16x4xf32> to vector<14x4xf32>
    %c2 = arith.constant 2 : index
    %c8_15 = arith.constant 8 : index
    %19 = vector.load %arg12[%c2, %c8_15] : memref<16x32xf32, #tpu.memory_space<vmem>>, vector<14x4xf32>
    tpu.vector_store %arg12[%c2, %c8_15], %18 {strides = array<i32>} : memref<16x32xf32, #tpu.memory_space<vmem>>, vector<14x4xf32>,
    %cst_16 = arith.constant 0.000000e+00 : f32
    %20 = vector.broadcast %cst_16 : f32 to vector<1x4xf32>
    %c0_17 = arith.constant 0 : index
    %c12 = arith.constant 12 : index
    %21 = vector.load %arg12[%c0_17, %c12] : memref<16x32xf32, #tpu.memory_space<vmem>>, vector<1x4xf32>
    tpu.vector_store %arg12[%c0_17, %c12], %20 {strides = array<i32>} : memref<16x32xf32, #tpu.memory_space<vmem>>, vector<1x4xf32>,
    %22 = vector.extract_strided_slice %7 {offsets = [0, 0], sizes = [15, 4], strides = [1, 1]} : vector<16x4xf32> to vector<15x4xf32>
    %c1 = arith.constant 1 : index
    %c12_18 = arith.constant 12 : index
    %23 = vector.load %arg12[%c1, %c12_18] : memref<16x32xf32, #tpu.memory_space<vmem>>, vector<15x4xf32>
    tpu.vector_store %arg12[%c1, %c12_18], %22 {strides = array<i32>} : memref<16x32xf32, #tpu.memory_space<vmem>>, vector<15x4xf32>,
    %c0_19 = arith.constant 0 : index
    %c16 = arith.constant 16 : index
    %24 = vector.load %arg12[%c0_19, %c16] : memref<16x32xf32, #tpu.memory_space<vmem>>, vector<16x4xf32>
    tpu.vector_store %arg12[%c0_19, %c16], %7 {strides = array<i32>} : memref<16x32xf32, #tpu.memory_space<vmem>>, vector<16x4xf32>,
    %cst_20 = arith.constant 0.000000e+00 : f32
    %25 = vector.broadcast %cst_20 : f32 to vector<1x4xf32>
    %c15 = arith.constant 15 : index
    %c20 = arith.constant 20 : index
    %26 = vector.load %arg12[%c15, %c20] : memref<16x32xf32, #tpu.memory_space<vmem>>, vector<1x4xf32>
    tpu.vector_store %arg12[%c15, %c20], %25 {strides = array<i32>} : memref<16x32xf32, #tpu.memory_space<vmem>>, vector<1x4xf32>,
    %27 = vector.extract_strided_slice %7 {offsets = [1, 0], sizes = [15, 4], strides = [1, 1]} : vector<16x4xf32> to vector<15x4xf32>
    %c0_21 = arith.constant 0 : index
    %c20_22 = arith.constant 20 : index
    %28 = vector.load %arg12[%c0_21, %c20_22] : memref<16x32xf32, #tpu.memory_space<vmem>>, vector<15x4xf32>
    tpu.vector_store %arg12[%c0_21, %c20_22], %27 {strides = array<i32>} : memref<16x32xf32, #tpu.memory_space<vmem>>, vector<15x4xf32>,
    %cst_23 = arith.constant 0.000000e+00 : f32
    %29 = vector.broadcast %cst_23 : f32 to vector<2x4xf32>
    %c14 = arith.constant 14 : index
    %c24 = arith.constant 24 : index
    %30 = vector.load %arg12[%c14, %c24] : memref<16x32xf32, #tpu.memory_space<vmem>>, vector<2x4xf32>
    tpu.vector_store %arg12[%c14, %c24], %29 {strides = array<i32>} : memref<16x32xf32, #tpu.memory_space<vmem>>, vector<2x4xf32>,
    %31 = vector.extract_strided_slice %7 {offsets = [2, 0], sizes = [14, 4], strides = [1, 1]} : vector<16x4xf32> to vector<14x4xf32>
    %c0_24 = arith.constant 0 : index
    %c24_25 = arith.constant 24 : index
    %32 = vector.load %arg12[%c0_24, %c24_25] : memref<16x32xf32, #tpu.memory_space<vmem>>, vector<14x4xf32>
    tpu.vector_store %arg12[%c0_24, %c24_25], %31 {strides = array<i32>} : memref<16x32xf32, #tpu.memory_space<vmem>>, vector<14x4xf32>,
    %cst_26 = arith.constant 0.000000e+00 : f32
    %33 = vector.broadcast %cst_26 : f32 to vector<3x4xf32>
    %c13 = arith.constant 13 : index
    %c28 = arith.constant 28 : index
    %34 = vector.load %arg12[%c13, %c28] : memref<16x32xf32, #tpu.memory_space<vmem>>, vector<3x4xf32>
    tpu.vector_store %arg12[%c13, %c28], %33 {strides = array<i32>} : memref<16x32xf32, #tpu.memory_space<vmem>>, vector<3x4xf32>,
    %35 = vector.extract_strided_slice %7 {offsets = [3, 0], sizes = [13, 4], strides = [1, 1]} : vector<16x4xf32> to vector<13x4xf32>
    %c0_27 = arith.constant 0 : index
    %c28_28 = arith.constant 28 : index
    %36 = vector.load %arg12[%c0_27, %c28_28] : memref<16x32xf32, #tpu.memory_space<vmem>>, vector<13x4xf32>
    tpu.vector_store %arg12[%c0_27, %c28_28], %35 {strides = array<i32>} : memref<16x32xf32, #tpu.memory_space<vmem>>, vector<13x4xf32>,
    %c0_29 = arith.constant 0 : index
    %c0_30 = arith.constant 0 : index
    %37 = vector.load %arg12[%c0_29, %c0_30] : memref<16x32xf32, #tpu.memory_space<vmem>>, vector<16x32xf32>
    %38 = arith.truncf %37 : vector<16x32xf32> to vector<16x32xbf16>
    %c0_31 = arith.constant 0 : index
    %c0_32 = arith.constant 0 : index
    %39 = vector.load %arg2[%c0_31, %c0_32] : memref<32x8xbf16, #tpu.memory_space<vmem>>, vector<32x8xbf16>
    %cst_33 = arith.constant dense<0.000000e+00> : vector<16x8xf32>
    %40 = tpu.matmul %38, %39, %cst_33 {dimension_numbers = #tpu.dot_dimension_numbers<[1], [0], [0], [1], [0, 0, 1, 1], [], []>} : vector<16x32xbf16>, vector<32x8xbf16>, vector<16x8xf32> -> vector<16x8xf32>
    %41 = arith.truncf %40 : vector<16x8xf32> to vector<16x8xbf16>
    %c0_34 = arith.constant 0 : index
    %c0_35 = arith.constant 0 : index
    %c0_36 = arith.constant 0 : index
    %42 = vector.load %arg6[%c0_34, %c0_35, %c0_36] : memref<1x16x8xbf16, #tpu.memory_space<vmem>>, vector<1x16x8xbf16>
    %43 = vector.shape_cast %42 : vector<1x16x8xbf16> to vector<16x8xbf16>
    %44 = vector.shape_cast %41 : vector<16x8xbf16> to vector<1x16x8xbf16>
    tpu.vector_store %arg6[%c0_34, %c0_35, %c0_36], %44 {strides = array<i32>} : memref<1x16x8xbf16, #tpu.memory_space<vmem>>, vector<1x16x8xbf16>,
    %cst_37 = arith.constant dense<0.000000e+00> : vector<8xf32>
    %45 = vector.multi_reduction <add>, %40, %cst_37 [0] : vector<16x8xf32> to vector<8xf32>
    %46 = vector.shape_cast %45 : vector<8xf32> to vector<1x8xf32>
    %c0_38 = arith.constant 0 : index
    %c0_39 = arith.constant 0 : index
    %c0_40 = arith.constant 0 : index
    %47 = vector.load %arg7[%c0_38, %c0_39, %c0_40] : memref<1x1x8xf32, #tpu.memory_space<vmem>>, vector<1x1x8xf32>
    %48 = vector.shape_cast %47 : vector<1x1x8xf32> to vector<1x8xf32>
    %49 = vector.shape_cast %46 : vector<1x8xf32> to vector<1x1x8xf32>
    tpu.vector_store %arg7[%c0_38, %c0_39, %c0_40], %49 {strides = array<i32>} : memref<1x1x8xf32, #tpu.memory_space<vmem>>, vector<1x1x8xf32>,
    %50 = arith.mulf %40, %40 : vector<16x8xf32>
    %cst_41 = arith.constant dense<0.000000e+00> : vector<8xf32>
    %51 = vector.multi_reduction <add>, %50, %cst_41 [0] : vector<16x8xf32> to vector<8xf32>
    %52 = vector.shape_cast %51 : vector<8xf32> to vector<1x8xf32>
    %c0_42 = arith.constant 0 : index
    %c0_43 = arith.constant 0 : index
    %c0_44 = arith.constant 0 : index
    %53 = vector.load %arg8[%c0_42, %c0_43, %c0_44] : memref<1x1x8xf32, #tpu.memory_space<vmem>>, vector<1x1x8xf32>
    %54 = vector.shape_cast %53 : vector<1x1x8xf32> to vector<1x8xf32>
    %55 = vector.shape_cast %52 : vector<1x8xf32> to vector<1x1x8xf32>
    tpu.vector_store %arg8[%c0_42, %c0_43, %c0_44], %55 {strides = array<i32>} : memref<1x1x8xf32, #tpu.memory_space<vmem>>, vector<1x1x8xf32>,
    %56 = arith.truncf %7 : vector<16x4xf32> to vector<16x4xbf16>
    %c0_45 = arith.constant 0 : index
    %c0_46 = arith.constant 0 : index
    %57 = vector.load %arg5[%c0_45, %c0_46] : memref<4x8xbf16, #tpu.memory_space<vmem>>, vector<4x8xbf16>
    %cst_47 = arith.constant dense<0.000000e+00> : vector<16x8xf32>
    %58 = tpu.matmul %56, %57, %cst_47 {dimension_numbers = #tpu.dot_dimension_numbers<[1], [0], [0], [1], [0, 0, 1, 1], [], []>} : vector<16x4xbf16>, vector<4x8xbf16>, vector<16x8xf32> -> vector<16x8xf32>
    %59 = arith.truncf %58 : vector<16x8xf32> to vector<16x8xbf16>
    %c0_48 = arith.constant 0 : index
    %c0_49 = arith.constant 0 : index
    %c0_50 = arith.constant 0 : index
    %60 = vector.load %arg9[%c0_48, %c0_49, %c0_50] : memref<1x16x8xbf16, #tpu.memory_space<vmem>>, vector<1x16x8xbf16>
    %61 = vector.shape_cast %60 : vector<1x16x8xbf16> to vector<16x8xbf16>
    %62 = vector.shape_cast %59 : vector<16x8xbf16> to vector<1x16x8xbf16>
    tpu.vector_store %arg9[%c0_48, %c0_49, %c0_50], %62 {strides = array<i32>} : memref<1x16x8xbf16, #tpu.memory_space<vmem>>, vector<1x16x8xbf16>,
    %cst_51 = arith.constant dense<0.000000e+00> : vector<8xf32>
    %63 = vector.multi_reduction <add>, %58, %cst_51 [0] : vector<16x8xf32> to vector<8xf32>
    %64 = vector.shape_cast %63 : vector<8xf32> to vector<1x8xf32>
    %c0_52 = arith.constant 0 : index
    %c0_53 = arith.constant 0 : index
    %c0_54 = arith.constant 0 : index
    %65 = vector.load %arg10[%c0_52, %c0_53, %c0_54] : memref<1x1x8xf32, #tpu.memory_space<vmem>>, vector<1x1x8xf32>
    %66 = vector.shape_cast %65 : vector<1x1x8xf32> to vector<1x8xf32>
    %67 = vector.shape_cast %64 : vector<1x8xf32> to vector<1x1x8xf32>
    tpu.vector_store %arg10[%c0_52, %c0_53, %c0_54], %67 {strides = array<i32>} : memref<1x1x8xf32, #tpu.memory_space<vmem>>, vector<1x1x8xf32>,
    %68 = arith.mulf %58, %58 : vector<16x8xf32>
    %cst_55 = arith.constant dense<0.000000e+00> : vector<8xf32>
    %69 = vector.multi_reduction <add>, %68, %cst_55 [0] : vector<16x8xf32> to vector<8xf32>
    %70 = vector.shape_cast %69 : vector<8xf32> to vector<1x8xf32>
    %c0_56 = arith.constant 0 : index
    %c0_57 = arith.constant 0 : index
    %c0_58 = arith.constant 0 : index
    %71 = vector.load %arg11[%c0_56, %c0_57, %c0_58] : memref<1x1x8xf32, #tpu.memory_space<vmem>>, vector<1x1x8xf32>
    %72 = vector.shape_cast %71 : vector<1x1x8xf32> to vector<1x8xf32>
    %73 = vector.shape_cast %70 : vector<1x8xf32> to vector<1x1x8xf32>
    tpu.vector_store %arg11[%c0_56, %c0_57, %c0_58], %73 {strides = array<i32>} : memref<1x1x8xf32, #tpu.memory_space<vmem>>, vector<1x1x8xf32>,
    return
  }
  func.func @transform_0(%arg0: i32) -> (i32, i32, i32) {
    %c0_i32 = arith.constant 0 : i32
    %c0_i32_0 = arith.constant 0 : i32
    %c0_i32_1 = arith.constant 0 : i32
    return %arg0, %c0_i32, %c0_i32_0 : i32, i32, i32
  }
  func.func @transform_1(%arg0: i32) -> (i32, i32) {
    %c0_i32 = arith.constant 0 : i32
    %c0_i32_0 = arith.constant 0 : i32
    %c0_i32_1 = arith.constant 0 : i32
    return %c0_i32, %c0_i32_0 : i32, i32
  }
  func.func @transform_2(%arg0: i32) -> (i32, i32) {
    %c0_i32 = arith.constant 0 : i32
    %c0_i32_0 = arith.constant 0 : i32
    %c0_i32_1 = arith.constant 0 : i32
    return %c0_i32, %c0_i32_0 : i32, i32
  }
  func.func @transform_3(%arg0: i32) -> (i32, i32) {
    %c0_i32 = arith.constant 0 : i32
    %c0_i32_0 = arith.constant 0 : i32
    %c0_i32_1 = arith.constant 0 : i32
    return %c0_i32, %c0_i32_0 : i32, i32
  }
  func.func @transform_4(%arg0: i32) -> (i32, i32) {
    %c0_i32 = arith.constant 0 : i32
    %c0_i32_0 = arith.constant 0 : i32
    %c0_i32_1 = arith.constant 0 : i32
    return %c0_i32, %c0_i32_0 : i32, i32
  }
  func.func @transform_5(%arg0: i32) -> (i32, i32, i32) {
    %c0_i32 = arith.constant 0 : i32
    %c0_i32_0 = arith.constant 0 : i32
    %c0_i32_1 = arith.constant 0 : i32
    return %arg0, %c0_i32, %c0_i32_0 : i32, i32, i32
  }
  func.func @transform_6(%arg0: i32) -> (i32, i32, i32) {
    %c0_i32 = arith.constant 0 : i32
    %c0_i32_0 = arith.constant 0 : i32
    %c0_i32_1 = arith.constant 0 : i32
    return %arg0, %c0_i32, %c0_i32_0 : i32, i32, i32
  }
  func.func @transform_7(%arg0: i32) -> (i32, i32, i32) {
    %c0_i32 = arith.constant 0 : i32
    %c0_i32_0 = arith.constant 0 : i32
    %c0_i32_1 = arith.constant 0 : i32
    return %arg0, %c0_i32, %c0_i32_0 : i32, i32, i32
  }
  func.func @transform_8(%arg0: i32) -> (i32, i32, i32) {
    %c0_i32 = arith.constant 0 : i32
    %c0_i32_0 = arith.constant 0 : i32
    %c0_i32_1 = arith.constant 0 : i32
    return %arg0, %c0_i32, %c0_i32_0 : i32, i32, i32
  }
  func.func @transform_9(%arg0: i32) -> (i32, i32, i32) {
    %c0_i32 = arith.constant 0 : i32
    %c0_i32_0 = arith.constant 0 : i32
    %c0_i32_1 = arith.constant 0 : i32
    return %arg0, %c0_i32, %c0_i32_0 : i32, i32, i32
  }
  func.func @transform_10(%arg0: i32) -> (i32, i32, i32) {
    %c0_i32 = arith.constant 0 : i32
    %c0_i32_0 = arith.constant 0 : i32
    %c0_i32_1 = arith.constant 0 : i32
    return %arg0, %c0_i32, %c0_i32_0 : i32, i32, i32
  }
}

module attributes {stable_mosaic.version = 11 : i64} {
  func.func @_residual_fuse_kernel(%arg0: i32, %arg1: memref<1x16x8xbf16, #tpu.memory_space<vmem>>, %arg2: memref<1x16x8xbf16, #tpu.memory_space<vmem>>, %arg3: memref<1x8xf32, #tpu.memory_space<vmem>>, %arg4: memref<1x8xf32, #tpu.memory_space<vmem>>, %arg5: memref<1x8xf32, #tpu.memory_space<vmem>>, %arg6: memref<1x8xf32, #tpu.memory_space<vmem>>, %arg7: memref<1x16x8xbf16, #tpu.memory_space<vmem>>) attributes {dimension_semantics = [#tpu.dimension_semantics<parallel>], iteration_bounds = array<i64: 2>, scalar_prefetch = 0 : i64, scratch_operands = 0 : i64, tpu.core_type = #tpu.core_type<tc>, window_params = [{transform_indices = @transform_0, window_bounds = array<i64: 1, 16, 8>}, {transform_indices = @transform_1, window_bounds = array<i64: 1, 16, 8>}, {pipeline_mode = #tpu.pipeline_mode<synchronous>, transform_indices = @transform_2, window_bounds = array<i64: 1, 8>}, {pipeline_mode = #tpu.pipeline_mode<synchronous>, transform_indices = @transform_3, window_bounds = array<i64: 1, 8>}, {pipeline_mode = #tpu.pipeline_mode<synchronous>, transform_indices = @transform_4, window_bounds = array<i64: 1, 8>}, {pipeline_mode = #tpu.pipeline_mode<synchronous>, transform_indices = @transform_5, window_bounds = array<i64: 1, 8>}, {transform_indices = @transform_6, window_bounds = array<i64: 1, 16, 8>}]} {
    %c0 = arith.constant 0 : index
    %c0_0 = arith.constant 0 : index
    %c0_1 = arith.constant 0 : index
    %0 = vector.load %arg1[%c0, %c0_0, %c0_1] : memref<1x16x8xbf16, #tpu.memory_space<vmem>>, vector<1x16x8xbf16>
    %1 = vector.shape_cast %0 : vector<1x16x8xbf16> to vector<16x8xbf16>
    %2 = arith.extf %1 : vector<16x8xbf16> to vector<16x8xf32>
    %c0_2 = arith.constant 0 : index
    %c0_3 = arith.constant 0 : index
    %3 = vector.load %arg3[%c0_2, %c0_3] : memref<1x8xf32, #tpu.memory_space<vmem>>, vector<1x8xf32>
    %4 = vector.broadcast %3 : vector<1x8xf32> to vector<16x8xf32>
    %5 = arith.mulf %2, %4 : vector<16x8xf32>
    %c0_4 = arith.constant 0 : index
    %c0_5 = arith.constant 0 : index
    %6 = vector.load %arg4[%c0_4, %c0_5] : memref<1x8xf32, #tpu.memory_space<vmem>>, vector<1x8xf32>
    %7 = vector.broadcast %6 : vector<1x8xf32> to vector<16x8xf32>
    %8 = arith.addf %5, %7 : vector<16x8xf32>
    %c0_6 = arith.constant 0 : index
    %c0_7 = arith.constant 0 : index
    %c0_8 = arith.constant 0 : index
    %9 = vector.load %arg2[%c0_6, %c0_7, %c0_8] : memref<1x16x8xbf16, #tpu.memory_space<vmem>>, vector<1x16x8xbf16>
    %10 = vector.shape_cast %9 : vector<1x16x8xbf16> to vector<16x8xbf16>
    %11 = arith.extf %10 : vector<16x8xbf16> to vector<16x8xf32>
    %c0_9 = arith.constant 0 : index
    %c0_10 = arith.constant 0 : index
    %12 = vector.load %arg5[%c0_9, %c0_10] : memref<1x8xf32, #tpu.memory_space<vmem>>, vector<1x8xf32>
    %13 = vector.broadcast %12 : vector<1x8xf32> to vector<16x8xf32>
    %14 = arith.mulf %11, %13 : vector<16x8xf32>
    %15 = arith.addf %8, %14 : vector<16x8xf32>
    %c0_11 = arith.constant 0 : index
    %c0_12 = arith.constant 0 : index
    %16 = vector.load %arg6[%c0_11, %c0_12] : memref<1x8xf32, #tpu.memory_space<vmem>>, vector<1x8xf32>
    %17 = vector.broadcast %16 : vector<1x8xf32> to vector<16x8xf32>
    %18 = arith.addf %15, %17 : vector<16x8xf32>
    %cst = arith.constant 0.000000e+00 : f32
    %19 = vector.broadcast %cst : f32 to vector<16x8xf32>
    %20 = arith.maximumf %18, %19 : vector<16x8xf32>
    %21 = arith.truncf %20 : vector<16x8xf32> to vector<16x8xbf16>
    %c0_13 = arith.constant 0 : index
    %c0_14 = arith.constant 0 : index
    %c0_15 = arith.constant 0 : index
    %22 = vector.load %arg7[%c0_13, %c0_14, %c0_15] : memref<1x16x8xbf16, #tpu.memory_space<vmem>>, vector<1x16x8xbf16>
    %23 = vector.shape_cast %22 : vector<1x16x8xbf16> to vector<16x8xbf16>
    %24 = vector.shape_cast %21 : vector<16x8xbf16> to vector<1x16x8xbf16>
    tpu.vector_store %arg7[%c0_13, %c0_14, %c0_15], %24 {strides = array<i32>} : memref<1x16x8xbf16, #tpu.memory_space<vmem>>, vector<1x16x8xbf16>,
    return
  }
  func.func @transform_0(%arg0: i32) -> (i32, i32, i32) {
    %c0_i32 = arith.constant 0 : i32
    %c0_i32_0 = arith.constant 0 : i32
    %c0_i32_1 = arith.constant 0 : i32
    return %arg0, %c0_i32, %c0_i32_0 : i32, i32, i32
  }
  func.func @transform_1(%arg0: i32) -> (i32, i32, i32) {
    %c0_i32 = arith.constant 0 : i32
    %c0_i32_0 = arith.constant 0 : i32
    %c0_i32_1 = arith.constant 0 : i32
    return %arg0, %c0_i32, %c0_i32_0 : i32, i32, i32
  }
  func.func @transform_2(%arg0: i32) -> (i32, i32) {
    %c0_i32 = arith.constant 0 : i32
    %c0_i32_0 = arith.constant 0 : i32
    %c0_i32_1 = arith.constant 0 : i32
    return %c0_i32, %c0_i32_0 : i32, i32
  }
  func.func @transform_3(%arg0: i32) -> (i32, i32) {
    %c0_i32 = arith.constant 0 : i32
    %c0_i32_0 = arith.constant 0 : i32
    %c0_i32_1 = arith.constant 0 : i32
    return %c0_i32, %c0_i32_0 : i32, i32
  }
  func.func @transform_4(%arg0: i32) -> (i32, i32) {
    %c0_i32 = arith.constant 0 : i32
    %c0_i32_0 = arith.constant 0 : i32
    %c0_i32_1 = arith.constant 0 : i32
    return %c0_i32, %c0_i32_0 : i32, i32
  }
  func.func @transform_5(%arg0: i32) -> (i32, i32) {
    %c0_i32 = arith.constant 0 : i32
    %c0_i32_0 = arith.constant 0 : i32
    %c0_i32_1 = arith.constant 0 : i32
    return %c0_i32, %c0_i32_0 : i32, i32
  }
  func.func @transform_6(%arg0: i32) -> (i32, i32, i32) {
    %c0_i32 = arith.constant 0 : i32
    %c0_i32_0 = arith.constant 0 : i32
    %c0_i32_1 = arith.constant 0 : i32
    return %arg0, %c0_i32, %c0_i32_0 : i32, i32, i32
  }
}

module attributes {stable_mosaic.version = 11 : i64} {
  func.func @_conv_kernel(%arg0: i32, %arg1: memref<1x16x8xbf16, #tpu.memory_space<vmem>>, %arg2: memref<40x8xbf16, #tpu.memory_space<vmem>>, %arg3: memref<1x8xf32, #tpu.memory_space<vmem>>, %arg4: memref<1x8xf32, #tpu.memory_space<vmem>>, %arg5: memref<1x16x8xbf16, #tpu.memory_space<vmem>>, %arg6: memref<1x1x8xf32, #tpu.memory_space<vmem>>, %arg7: memref<1x1x8xf32, #tpu.memory_space<vmem>>, %arg8: memref<16x40xf32, #tpu.memory_space<vmem>>) attributes {dimension_semantics = [#tpu.dimension_semantics<parallel>], iteration_bounds = array<i64: 2>, scalar_prefetch = 0 : i64, scratch_operands = 1 : i64, tpu.core_type = #tpu.core_type<tc>, window_params = [{transform_indices = @transform_0, window_bounds = array<i64: 1, 16, 8>}, {pipeline_mode = #tpu.pipeline_mode<synchronous>, transform_indices = @transform_1, window_bounds = array<i64: 40, 8>}, {pipeline_mode = #tpu.pipeline_mode<synchronous>, transform_indices = @transform_2, window_bounds = array<i64: 1, 8>}, {pipeline_mode = #tpu.pipeline_mode<synchronous>, transform_indices = @transform_3, window_bounds = array<i64: 1, 8>}, {transform_indices = @transform_4, window_bounds = array<i64: 1, 16, 8>}, {transform_indices = @transform_5, window_bounds = array<i64: 1, 1, 8>}, {transform_indices = @transform_6, window_bounds = array<i64: 1, 1, 8>}]} {
    %c0 = arith.constant 0 : index
    %c0_0 = arith.constant 0 : index
    %c0_1 = arith.constant 0 : index
    %0 = vector.load %arg1[%c0, %c0_0, %c0_1] : memref<1x16x8xbf16, #tpu.memory_space<vmem>>, vector<1x16x8xbf16>
    %1 = vector.shape_cast %0 : vector<1x16x8xbf16> to vector<16x8xbf16>
    %2 = arith.extf %1 : vector<16x8xbf16> to vector<16x8xf32>
    %c0_2 = arith.constant 0 : index
    %c0_3 = arith.constant 0 : index
    %3 = vector.load %arg3[%c0_2, %c0_3] : memref<1x8xf32, #tpu.memory_space<vmem>>, vector<1x8xf32>
    %4 = vector.broadcast %3 : vector<1x8xf32> to vector<16x8xf32>
    %5 = arith.mulf %2, %4 : vector<16x8xf32>
    %c0_4 = arith.constant 0 : index
    %c0_5 = arith.constant 0 : index
    %6 = vector.load %arg4[%c0_4, %c0_5] : memref<1x8xf32, #tpu.memory_space<vmem>>, vector<1x8xf32>
    %7 = vector.broadcast %6 : vector<1x8xf32> to vector<16x8xf32>
    %8 = arith.addf %5, %7 : vector<16x8xf32>
    %cst = arith.constant 0.000000e+00 : f32
    %9 = vector.broadcast %cst : f32 to vector<16x8xf32>
    %10 = arith.maximumf %8, %9 : vector<16x8xf32>
    %cst_6 = arith.constant 0.000000e+00 : f32
    %11 = vector.broadcast %cst_6 : f32 to vector<2x8xf32>
    %c0_7 = arith.constant 0 : index
    %c0_8 = arith.constant 0 : index
    %12 = vector.load %arg8[%c0_7, %c0_8] : memref<16x40xf32, #tpu.memory_space<vmem>>, vector<2x8xf32>
    tpu.vector_store %arg8[%c0_7, %c0_8], %11 {strides = array<i32>} : memref<16x40xf32, #tpu.memory_space<vmem>>, vector<2x8xf32>,
    %13 = vector.extract_strided_slice %10 {offsets = [0, 0], sizes = [14, 8], strides = [1, 1]} : vector<16x8xf32> to vector<14x8xf32>
    %c2 = arith.constant 2 : index
    %c0_9 = arith.constant 0 : index
    %14 = vector.load %arg8[%c2, %c0_9] : memref<16x40xf32, #tpu.memory_space<vmem>>, vector<14x8xf32>
    tpu.vector_store %arg8[%c2, %c0_9], %13 {strides = array<i32>} : memref<16x40xf32, #tpu.memory_space<vmem>>, vector<14x8xf32>,
    %cst_10 = arith.constant 0.000000e+00 : f32
    %15 = vector.broadcast %cst_10 : f32 to vector<1x8xf32>
    %c0_11 = arith.constant 0 : index
    %c8 = arith.constant 8 : index
    %16 = vector.load %arg8[%c0_11, %c8] : memref<16x40xf32, #tpu.memory_space<vmem>>, vector<1x8xf32>
    tpu.vector_store %arg8[%c0_11, %c8], %15 {strides = array<i32>} : memref<16x40xf32, #tpu.memory_space<vmem>>, vector<1x8xf32>,
    %17 = vector.extract_strided_slice %10 {offsets = [0, 0], sizes = [15, 8], strides = [1, 1]} : vector<16x8xf32> to vector<15x8xf32>
    %c1 = arith.constant 1 : index
    %c8_12 = arith.constant 8 : index
    %18 = vector.load %arg8[%c1, %c8_12] : memref<16x40xf32, #tpu.memory_space<vmem>>, vector<15x8xf32>
    tpu.vector_store %arg8[%c1, %c8_12], %17 {strides = array<i32>} : memref<16x40xf32, #tpu.memory_space<vmem>>, vector<15x8xf32>,
    %c0_13 = arith.constant 0 : index
    %c16 = arith.constant 16 : index
    %19 = vector.load %arg8[%c0_13, %c16] : memref<16x40xf32, #tpu.memory_space<vmem>>, vector<16x8xf32>
    tpu.vector_store %arg8[%c0_13, %c16], %10 {strides = array<i32>} : memref<16x40xf32, #tpu.memory_space<vmem>>, vector<16x8xf32>,
    %cst_14 = arith.constant 0.000000e+00 : f32
    %20 = vector.broadcast %cst_14 : f32 to vector<1x8xf32>
    %c15 = arith.constant 15 : index
    %c24 = arith.constant 24 : index
    %21 = vector.load %arg8[%c15, %c24] : memref<16x40xf32, #tpu.memory_space<vmem>>, vector<1x8xf32>
    tpu.vector_store %arg8[%c15, %c24], %20 {strides = array<i32>} : memref<16x40xf32, #tpu.memory_space<vmem>>, vector<1x8xf32>,
    %22 = vector.extract_strided_slice %10 {offsets = [1, 0], sizes = [15, 8], strides = [1, 1]} : vector<16x8xf32> to vector<15x8xf32>
    %c0_15 = arith.constant 0 : index
    %c24_16 = arith.constant 24 : index
    %23 = vector.load %arg8[%c0_15, %c24_16] : memref<16x40xf32, #tpu.memory_space<vmem>>, vector<15x8xf32>
    tpu.vector_store %arg8[%c0_15, %c24_16], %22 {strides = array<i32>} : memref<16x40xf32, #tpu.memory_space<vmem>>, vector<15x8xf32>,
    %cst_17 = arith.constant 0.000000e+00 : f32
    %24 = vector.broadcast %cst_17 : f32 to vector<2x8xf32>
    %c14 = arith.constant 14 : index
    %c32 = arith.constant 32 : index
    %25 = vector.load %arg8[%c14, %c32] : memref<16x40xf32, #tpu.memory_space<vmem>>, vector<2x8xf32>
    tpu.vector_store %arg8[%c14, %c32], %24 {strides = array<i32>} : memref<16x40xf32, #tpu.memory_space<vmem>>, vector<2x8xf32>,
    %26 = vector.extract_strided_slice %10 {offsets = [2, 0], sizes = [14, 8], strides = [1, 1]} : vector<16x8xf32> to vector<14x8xf32>
    %c0_18 = arith.constant 0 : index
    %c32_19 = arith.constant 32 : index
    %27 = vector.load %arg8[%c0_18, %c32_19] : memref<16x40xf32, #tpu.memory_space<vmem>>, vector<14x8xf32>
    tpu.vector_store %arg8[%c0_18, %c32_19], %26 {strides = array<i32>} : memref<16x40xf32, #tpu.memory_space<vmem>>, vector<14x8xf32>,
    %c0_20 = arith.constant 0 : index
    %c0_21 = arith.constant 0 : index
    %28 = vector.load %arg8[%c0_20, %c0_21] : memref<16x40xf32, #tpu.memory_space<vmem>>, vector<16x40xf32>
    %29 = arith.truncf %28 : vector<16x40xf32> to vector<16x40xbf16>
    %c0_22 = arith.constant 0 : index
    %c0_23 = arith.constant 0 : index
    %30 = vector.load %arg2[%c0_22, %c0_23] : memref<40x8xbf16, #tpu.memory_space<vmem>>, vector<40x8xbf16>
    %cst_24 = arith.constant dense<0.000000e+00> : vector<16x8xf32>
    %31 = tpu.matmul %29, %30, %cst_24 {dimension_numbers = #tpu.dot_dimension_numbers<[1], [0], [0], [1], [0, 0, 1, 1], [], []>} : vector<16x40xbf16>, vector<40x8xbf16>, vector<16x8xf32> -> vector<16x8xf32>
    %32 = arith.truncf %31 : vector<16x8xf32> to vector<16x8xbf16>
    %c0_25 = arith.constant 0 : index
    %c0_26 = arith.constant 0 : index
    %c0_27 = arith.constant 0 : index
    %33 = vector.load %arg5[%c0_25, %c0_26, %c0_27] : memref<1x16x8xbf16, #tpu.memory_space<vmem>>, vector<1x16x8xbf16>
    %34 = vector.shape_cast %33 : vector<1x16x8xbf16> to vector<16x8xbf16>
    %35 = vector.shape_cast %32 : vector<16x8xbf16> to vector<1x16x8xbf16>
    tpu.vector_store %arg5[%c0_25, %c0_26, %c0_27], %35 {strides = array<i32>} : memref<1x16x8xbf16, #tpu.memory_space<vmem>>, vector<1x16x8xbf16>,
    %cst_28 = arith.constant dense<0.000000e+00> : vector<8xf32>
    %36 = vector.multi_reduction <add>, %31, %cst_28 [0] : vector<16x8xf32> to vector<8xf32>
    %37 = vector.shape_cast %36 : vector<8xf32> to vector<1x8xf32>
    %c0_29 = arith.constant 0 : index
    %c0_30 = arith.constant 0 : index
    %c0_31 = arith.constant 0 : index
    %38 = vector.load %arg6[%c0_29, %c0_30, %c0_31] : memref<1x1x8xf32, #tpu.memory_space<vmem>>, vector<1x1x8xf32>
    %39 = vector.shape_cast %38 : vector<1x1x8xf32> to vector<1x8xf32>
    %40 = vector.shape_cast %37 : vector<1x8xf32> to vector<1x1x8xf32>
    tpu.vector_store %arg6[%c0_29, %c0_30, %c0_31], %40 {strides = array<i32>} : memref<1x1x8xf32, #tpu.memory_space<vmem>>, vector<1x1x8xf32>,
    %41 = arith.mulf %31, %31 : vector<16x8xf32>
    %cst_32 = arith.constant dense<0.000000e+00> : vector<8xf32>
    %42 = vector.multi_reduction <add>, %41, %cst_32 [0] : vector<16x8xf32> to vector<8xf32>
    %43 = vector.shape_cast %42 : vector<8xf32> to vector<1x8xf32>
    %c0_33 = arith.constant 0 : index
    %c0_34 = arith.constant 0 : index
    %c0_35 = arith.constant 0 : index
    %44 = vector.load %arg7[%c0_33, %c0_34, %c0_35] : memref<1x1x8xf32, #tpu.memory_space<vmem>>, vector<1x1x8xf32>
    %45 = vector.shape_cast %44 : vector<1x1x8xf32> to vector<1x8xf32>
    %46 = vector.shape_cast %43 : vector<1x8xf32> to vector<1x1x8xf32>
    tpu.vector_store %arg7[%c0_33, %c0_34, %c0_35], %46 {strides = array<i32>} : memref<1x1x8xf32, #tpu.memory_space<vmem>>, vector<1x1x8xf32>,
    return
  }
  func.func @transform_0(%arg0: i32) -> (i32, i32, i32) {
    %c0_i32 = arith.constant 0 : i32
    %c0_i32_0 = arith.constant 0 : i32
    %c0_i32_1 = arith.constant 0 : i32
    return %arg0, %c0_i32, %c0_i32_0 : i32, i32, i32
  }
  func.func @transform_1(%arg0: i32) -> (i32, i32) {
    %c0_i32 = arith.constant 0 : i32
    %c0_i32_0 = arith.constant 0 : i32
    %c0_i32_1 = arith.constant 0 : i32
    return %c0_i32, %c0_i32_0 : i32, i32
  }
  func.func @transform_2(%arg0: i32) -> (i32, i32) {
    %c0_i32 = arith.constant 0 : i32
    %c0_i32_0 = arith.constant 0 : i32
    %c0_i32_1 = arith.constant 0 : i32
    return %c0_i32, %c0_i32_0 : i32, i32
  }
  func.func @transform_3(%arg0: i32) -> (i32, i32) {
    %c0_i32 = arith.constant 0 : i32
    %c0_i32_0 = arith.constant 0 : i32
    %c0_i32_1 = arith.constant 0 : i32
    return %c0_i32, %c0_i32_0 : i32, i32
  }
  func.func @transform_4(%arg0: i32) -> (i32, i32, i32) {
    %c0_i32 = arith.constant 0 : i32
    %c0_i32_0 = arith.constant 0 : i32
    %c0_i32_1 = arith.constant 0 : i32
    return %arg0, %c0_i32, %c0_i32_0 : i32, i32, i32
  }
  func.func @transform_5(%arg0: i32) -> (i32, i32, i32) {
    %c0_i32 = arith.constant 0 : i32
    %c0_i32_0 = arith.constant 0 : i32
    %c0_i32_1 = arith.constant 0 : i32
    return %arg0, %c0_i32, %c0_i32_0 : i32, i32, i32
  }
  func.func @transform_6(%arg0: i32) -> (i32, i32, i32) {
    %c0_i32 = arith.constant 0 : i32
    %c0_i32_0 = arith.constant 0 : i32
    %c0_i32_1 = arith.constant 0 : i32
    return %arg0, %c0_i32, %c0_i32_0 : i32, i32, i32
  }
}

module attributes {stable_mosaic.version = 11 : i64} {
  func.func @_conv_kernel(%arg0: i32, %arg1: memref<1x16x8xbf16, #tpu.memory_space<vmem>>, %arg2: memref<64x16xbf16, #tpu.memory_space<vmem>>, %arg3: memref<8x16xbf16, #tpu.memory_space<vmem>>, %arg4: memref<1x16x16xbf16, #tpu.memory_space<vmem>>, %arg5: memref<1x1x16xf32, #tpu.memory_space<vmem>>, %arg6: memref<1x1x16xf32, #tpu.memory_space<vmem>>, %arg7: memref<1x16x16xbf16, #tpu.memory_space<vmem>>, %arg8: memref<1x1x16xf32, #tpu.memory_space<vmem>>, %arg9: memref<1x1x16xf32, #tpu.memory_space<vmem>>, %arg10: memref<16x64xf32, #tpu.memory_space<vmem>>) attributes {dimension_semantics = [#tpu.dimension_semantics<parallel>], iteration_bounds = array<i64: 2>, scalar_prefetch = 0 : i64, scratch_operands = 1 : i64, tpu.core_type = #tpu.core_type<tc>, window_params = [{transform_indices = @transform_0, window_bounds = array<i64: 1, 16, 8>}, {pipeline_mode = #tpu.pipeline_mode<synchronous>, transform_indices = @transform_1, window_bounds = array<i64: 64, 16>}, {pipeline_mode = #tpu.pipeline_mode<synchronous>, transform_indices = @transform_2, window_bounds = array<i64: 8, 16>}, {transform_indices = @transform_3, window_bounds = array<i64: 1, 16, 16>}, {transform_indices = @transform_4, window_bounds = array<i64: 1, 1, 16>}, {transform_indices = @transform_5, window_bounds = array<i64: 1, 1, 16>}, {transform_indices = @transform_6, window_bounds = array<i64: 1, 16, 16>}, {transform_indices = @transform_7, window_bounds = array<i64: 1, 1, 16>}, {transform_indices = @transform_8, window_bounds = array<i64: 1, 1, 16>}]} {
    %c0 = arith.constant 0 : index
    %c0_0 = arith.constant 0 : index
    %c0_1 = arith.constant 0 : index
    %0 = vector.load %arg1[%c0, %c0_0, %c0_1] : memref<1x16x8xbf16, #tpu.memory_space<vmem>>, vector<1x16x8xbf16>
    %1 = vector.shape_cast %0 : vector<1x16x8xbf16> to vector<16x8xbf16>
    %2 = arith.extf %1 : vector<16x8xbf16> to vector<16x8xf32>
    %cst = arith.constant 0.000000e+00 : f32
    %3 = vector.broadcast %cst : f32 to vector<4x8xf32>
    %c0_2 = arith.constant 0 : index
    %c0_3 = arith.constant 0 : index
    %4 = vector.load %arg10[%c0_2, %c0_3] : memref<16x64xf32, #tpu.memory_space<vmem>>, vector<4x8xf32>
    tpu.vector_store %arg10[%c0_2, %c0_3], %3 {strides = array<i32>} : memref<16x64xf32, #tpu.memory_space<vmem>>, vector<4x8xf32>,
    %5 = vector.extract_strided_slice %2 {offsets = [0, 0], sizes = [12, 8], strides = [1, 1]} : vector<16x8xf32> to vector<12x8xf32>
    %c4 = arith.constant 4 : index
    %c0_4 = arith.constant 0 : index
    %6 = vector.load %arg10[%c4, %c0_4] : memref<16x64xf32, #tpu.memory_space<vmem>>, vector<12x8xf32>
    tpu.vector_store %arg10[%c4, %c0_4], %5 {strides = array<i32>} : memref<16x64xf32, #tpu.memory_space<vmem>>, vector<12x8xf32>,
    %cst_5 = arith.constant 0.000000e+00 : f32
    %7 = vector.broadcast %cst_5 : f32 to vector<3x8xf32>
    %c0_6 = arith.constant 0 : index
    %c8 = arith.constant 8 : index
    %8 = vector.load %arg10[%c0_6, %c8] : memref<16x64xf32, #tpu.memory_space<vmem>>, vector<3x8xf32>
    tpu.vector_store %arg10[%c0_6, %c8], %7 {strides = array<i32>} : memref<16x64xf32, #tpu.memory_space<vmem>>, vector<3x8xf32>,
    %9 = vector.extract_strided_slice %2 {offsets = [0, 0], sizes = [13, 8], strides = [1, 1]} : vector<16x8xf32> to vector<13x8xf32>
    %c3 = arith.constant 3 : index
    %c8_7 = arith.constant 8 : index
    %10 = vector.load %arg10[%c3, %c8_7] : memref<16x64xf32, #tpu.memory_space<vmem>>, vector<13x8xf32>
    tpu.vector_store %arg10[%c3, %c8_7], %9 {strides = array<i32>} : memref<16x64xf32, #tpu.memory_space<vmem>>, vector<13x8xf32>,
    %cst_8 = arith.constant 0.000000e+00 : f32
    %11 = vector.broadcast %cst_8 : f32 to vector<2x8xf32>
    %c0_9 = arith.constant 0 : index
    %c16 = arith.constant 16 : index
    %12 = vector.load %arg10[%c0_9, %c16] : memref<16x64xf32, #tpu.memory_space<vmem>>, vector<2x8xf32>
    tpu.vector_store %arg10[%c0_9, %c16], %11 {strides = array<i32>} : memref<16x64xf32, #tpu.memory_space<vmem>>, vector<2x8xf32>,
    %13 = vector.extract_strided_slice %2 {offsets = [0, 0], sizes = [14, 8], strides = [1, 1]} : vector<16x8xf32> to vector<14x8xf32>
    %c2 = arith.constant 2 : index
    %c16_10 = arith.constant 16 : index
    %14 = vector.load %arg10[%c2, %c16_10] : memref<16x64xf32, #tpu.memory_space<vmem>>, vector<14x8xf32>
    tpu.vector_store %arg10[%c2, %c16_10], %13 {strides = array<i32>} : memref<16x64xf32, #tpu.memory_space<vmem>>, vector<14x8xf32>,
    %cst_11 = arith.constant 0.000000e+00 : f32
    %15 = vector.broadcast %cst_11 : f32 to vector<1x8xf32>
    %c0_12 = arith.constant 0 : index
    %c24 = arith.constant 24 : index
    %16 = vector.load %arg10[%c0_12, %c24] : memref<16x64xf32, #tpu.memory_space<vmem>>, vector<1x8xf32>
    tpu.vector_store %arg10[%c0_12, %c24], %15 {strides = array<i32>} : memref<16x64xf32, #tpu.memory_space<vmem>>, vector<1x8xf32>,
    %17 = vector.extract_strided_slice %2 {offsets = [0, 0], sizes = [15, 8], strides = [1, 1]} : vector<16x8xf32> to vector<15x8xf32>
    %c1 = arith.constant 1 : index
    %c24_13 = arith.constant 24 : index
    %18 = vector.load %arg10[%c1, %c24_13] : memref<16x64xf32, #tpu.memory_space<vmem>>, vector<15x8xf32>
    tpu.vector_store %arg10[%c1, %c24_13], %17 {strides = array<i32>} : memref<16x64xf32, #tpu.memory_space<vmem>>, vector<15x8xf32>,
    %c0_14 = arith.constant 0 : index
    %c32 = arith.constant 32 : index
    %19 = vector.load %arg10[%c0_14, %c32] : memref<16x64xf32, #tpu.memory_space<vmem>>, vector<16x8xf32>
    tpu.vector_store %arg10[%c0_14, %c32], %2 {strides = array<i32>} : memref<16x64xf32, #tpu.memory_space<vmem>>, vector<16x8xf32>,
    %cst_15 = arith.constant 0.000000e+00 : f32
    %20 = vector.broadcast %cst_15 : f32 to vector<1x8xf32>
    %c15 = arith.constant 15 : index
    %c40 = arith.constant 40 : index
    %21 = vector.load %arg10[%c15, %c40] : memref<16x64xf32, #tpu.memory_space<vmem>>, vector<1x8xf32>
    tpu.vector_store %arg10[%c15, %c40], %20 {strides = array<i32>} : memref<16x64xf32, #tpu.memory_space<vmem>>, vector<1x8xf32>,
    %22 = vector.extract_strided_slice %2 {offsets = [1, 0], sizes = [15, 8], strides = [1, 1]} : vector<16x8xf32> to vector<15x8xf32>
    %c0_16 = arith.constant 0 : index
    %c40_17 = arith.constant 40 : index
    %23 = vector.load %arg10[%c0_16, %c40_17] : memref<16x64xf32, #tpu.memory_space<vmem>>, vector<15x8xf32>
    tpu.vector_store %arg10[%c0_16, %c40_17], %22 {strides = array<i32>} : memref<16x64xf32, #tpu.memory_space<vmem>>, vector<15x8xf32>,
    %cst_18 = arith.constant 0.000000e+00 : f32
    %24 = vector.broadcast %cst_18 : f32 to vector<2x8xf32>
    %c14 = arith.constant 14 : index
    %c48 = arith.constant 48 : index
    %25 = vector.load %arg10[%c14, %c48] : memref<16x64xf32, #tpu.memory_space<vmem>>, vector<2x8xf32>
    tpu.vector_store %arg10[%c14, %c48], %24 {strides = array<i32>} : memref<16x64xf32, #tpu.memory_space<vmem>>, vector<2x8xf32>,
    %26 = vector.extract_strided_slice %2 {offsets = [2, 0], sizes = [14, 8], strides = [1, 1]} : vector<16x8xf32> to vector<14x8xf32>
    %c0_19 = arith.constant 0 : index
    %c48_20 = arith.constant 48 : index
    %27 = vector.load %arg10[%c0_19, %c48_20] : memref<16x64xf32, #tpu.memory_space<vmem>>, vector<14x8xf32>
    tpu.vector_store %arg10[%c0_19, %c48_20], %26 {strides = array<i32>} : memref<16x64xf32, #tpu.memory_space<vmem>>, vector<14x8xf32>,
    %cst_21 = arith.constant 0.000000e+00 : f32
    %28 = vector.broadcast %cst_21 : f32 to vector<3x8xf32>
    %c13 = arith.constant 13 : index
    %c56 = arith.constant 56 : index
    %29 = vector.load %arg10[%c13, %c56] : memref<16x64xf32, #tpu.memory_space<vmem>>, vector<3x8xf32>
    tpu.vector_store %arg10[%c13, %c56], %28 {strides = array<i32>} : memref<16x64xf32, #tpu.memory_space<vmem>>, vector<3x8xf32>,
    %30 = vector.extract_strided_slice %2 {offsets = [3, 0], sizes = [13, 8], strides = [1, 1]} : vector<16x8xf32> to vector<13x8xf32>
    %c0_22 = arith.constant 0 : index
    %c56_23 = arith.constant 56 : index
    %31 = vector.load %arg10[%c0_22, %c56_23] : memref<16x64xf32, #tpu.memory_space<vmem>>, vector<13x8xf32>
    tpu.vector_store %arg10[%c0_22, %c56_23], %30 {strides = array<i32>} : memref<16x64xf32, #tpu.memory_space<vmem>>, vector<13x8xf32>,
    %c0_24 = arith.constant 0 : index
    %c0_25 = arith.constant 0 : index
    %32 = vector.load %arg10[%c0_24, %c0_25] : memref<16x64xf32, #tpu.memory_space<vmem>>, vector<16x64xf32>
    %33 = arith.truncf %32 : vector<16x64xf32> to vector<16x64xbf16>
    %c0_26 = arith.constant 0 : index
    %c0_27 = arith.constant 0 : index
    %34 = vector.load %arg2[%c0_26, %c0_27] : memref<64x16xbf16, #tpu.memory_space<vmem>>, vector<64x16xbf16>
    %cst_28 = arith.constant dense<0.000000e+00> : vector<16x16xf32>
    %35 = tpu.matmul %33, %34, %cst_28 {dimension_numbers = #tpu.dot_dimension_numbers<[1], [0], [0], [1], [0, 0, 1, 1], [], []>} : vector<16x64xbf16>, vector<64x16xbf16>, vector<16x16xf32> -> vector<16x16xf32>
    %36 = arith.truncf %35 : vector<16x16xf32> to vector<16x16xbf16>
    %c0_29 = arith.constant 0 : index
    %c0_30 = arith.constant 0 : index
    %c0_31 = arith.constant 0 : index
    %37 = vector.load %arg4[%c0_29, %c0_30, %c0_31] : memref<1x16x16xbf16, #tpu.memory_space<vmem>>, vector<1x16x16xbf16>
    %38 = vector.shape_cast %37 : vector<1x16x16xbf16> to vector<16x16xbf16>
    %39 = vector.shape_cast %36 : vector<16x16xbf16> to vector<1x16x16xbf16>
    tpu.vector_store %arg4[%c0_29, %c0_30, %c0_31], %39 {strides = array<i32>} : memref<1x16x16xbf16, #tpu.memory_space<vmem>>, vector<1x16x16xbf16>,
    %cst_32 = arith.constant dense<0.000000e+00> : vector<16xf32>
    %40 = vector.multi_reduction <add>, %35, %cst_32 [0] : vector<16x16xf32> to vector<16xf32>
    %41 = vector.shape_cast %40 : vector<16xf32> to vector<1x16xf32>
    %c0_33 = arith.constant 0 : index
    %c0_34 = arith.constant 0 : index
    %c0_35 = arith.constant 0 : index
    %42 = vector.load %arg5[%c0_33, %c0_34, %c0_35] : memref<1x1x16xf32, #tpu.memory_space<vmem>>, vector<1x1x16xf32>
    %43 = vector.shape_cast %42 : vector<1x1x16xf32> to vector<1x16xf32>
    %44 = vector.shape_cast %41 : vector<1x16xf32> to vector<1x1x16xf32>
    tpu.vector_store %arg5[%c0_33, %c0_34, %c0_35], %44 {strides = array<i32>} : memref<1x1x16xf32, #tpu.memory_space<vmem>>, vector<1x1x16xf32>,
    %45 = arith.mulf %35, %35 : vector<16x16xf32>
    %cst_36 = arith.constant dense<0.000000e+00> : vector<16xf32>
    %46 = vector.multi_reduction <add>, %45, %cst_36 [0] : vector<16x16xf32> to vector<16xf32>
    %47 = vector.shape_cast %46 : vector<16xf32> to vector<1x16xf32>
    %c0_37 = arith.constant 0 : index
    %c0_38 = arith.constant 0 : index
    %c0_39 = arith.constant 0 : index
    %48 = vector.load %arg6[%c0_37, %c0_38, %c0_39] : memref<1x1x16xf32, #tpu.memory_space<vmem>>, vector<1x1x16xf32>
    %49 = vector.shape_cast %48 : vector<1x1x16xf32> to vector<1x16xf32>
    %50 = vector.shape_cast %47 : vector<1x16xf32> to vector<1x1x16xf32>
    tpu.vector_store %arg6[%c0_37, %c0_38, %c0_39], %50 {strides = array<i32>} : memref<1x1x16xf32, #tpu.memory_space<vmem>>, vector<1x1x16xf32>,
    %51 = arith.truncf %2 : vector<16x8xf32> to vector<16x8xbf16>
    %c0_40 = arith.constant 0 : index
    %c0_41 = arith.constant 0 : index
    %52 = vector.load %arg3[%c0_40, %c0_41] : memref<8x16xbf16, #tpu.memory_space<vmem>>, vector<8x16xbf16>
    %cst_42 = arith.constant dense<0.000000e+00> : vector<16x16xf32>
    %53 = tpu.matmul %51, %52, %cst_42 {dimension_numbers = #tpu.dot_dimension_numbers<[1], [0], [0], [1], [0, 0, 1, 1], [], []>} : vector<16x8xbf16>, vector<8x16xbf16>, vector<16x16xf32> -> vector<16x16xf32>
    %54 = arith.truncf %53 : vector<16x16xf32> to vector<16x16xbf16>
    %c0_43 = arith.constant 0 : index
    %c0_44 = arith.constant 0 : index
    %c0_45 = arith.constant 0 : index
    %55 = vector.load %arg7[%c0_43, %c0_44, %c0_45] : memref<1x16x16xbf16, #tpu.memory_space<vmem>>, vector<1x16x16xbf16>
    %56 = vector.shape_cast %55 : vector<1x16x16xbf16> to vector<16x16xbf16>
    %57 = vector.shape_cast %54 : vector<16x16xbf16> to vector<1x16x16xbf16>
    tpu.vector_store %arg7[%c0_43, %c0_44, %c0_45], %57 {strides = array<i32>} : memref<1x16x16xbf16, #tpu.memory_space<vmem>>, vector<1x16x16xbf16>,
    %cst_46 = arith.constant dense<0.000000e+00> : vector<16xf32>
    %58 = vector.multi_reduction <add>, %53, %cst_46 [0] : vector<16x16xf32> to vector<16xf32>
    %59 = vector.shape_cast %58 : vector<16xf32> to vector<1x16xf32>
    %c0_47 = arith.constant 0 : index
    %c0_48 = arith.constant 0 : index
    %c0_49 = arith.constant 0 : index
    %60 = vector.load %arg8[%c0_47, %c0_48, %c0_49] : memref<1x1x16xf32, #tpu.memory_space<vmem>>, vector<1x1x16xf32>
    %61 = vector.shape_cast %60 : vector<1x1x16xf32> to vector<1x16xf32>
    %62 = vector.shape_cast %59 : vector<1x16xf32> to vector<1x1x16xf32>
    tpu.vector_store %arg8[%c0_47, %c0_48, %c0_49], %62 {strides = array<i32>} : memref<1x1x16xf32, #tpu.memory_space<vmem>>, vector<1x1x16xf32>,
    %63 = arith.mulf %53, %53 : vector<16x16xf32>
    %cst_50 = arith.constant dense<0.000000e+00> : vector<16xf32>
    %64 = vector.multi_reduction <add>, %63, %cst_50 [0] : vector<16x16xf32> to vector<16xf32>
    %65 = vector.shape_cast %64 : vector<16xf32> to vector<1x16xf32>
    %c0_51 = arith.constant 0 : index
    %c0_52 = arith.constant 0 : index
    %c0_53 = arith.constant 0 : index
    %66 = vector.load %arg9[%c0_51, %c0_52, %c0_53] : memref<1x1x16xf32, #tpu.memory_space<vmem>>, vector<1x1x16xf32>
    %67 = vector.shape_cast %66 : vector<1x1x16xf32> to vector<1x16xf32>
    %68 = vector.shape_cast %65 : vector<1x16xf32> to vector<1x1x16xf32>
    tpu.vector_store %arg9[%c0_51, %c0_52, %c0_53], %68 {strides = array<i32>} : memref<1x1x16xf32, #tpu.memory_space<vmem>>, vector<1x1x16xf32>,
    return
  }
  func.func @transform_0(%arg0: i32) -> (i32, i32, i32) {
    %c0_i32 = arith.constant 0 : i32
    %c0_i32_0 = arith.constant 0 : i32
    %c0_i32_1 = arith.constant 0 : i32
    return %arg0, %c0_i32, %c0_i32_0 : i32, i32, i32
  }
  func.func @transform_1(%arg0: i32) -> (i32, i32) {
    %c0_i32 = arith.constant 0 : i32
    %c0_i32_0 = arith.constant 0 : i32
    %c0_i32_1 = arith.constant 0 : i32
    return %c0_i32, %c0_i32_0 : i32, i32
  }
  func.func @transform_2(%arg0: i32) -> (i32, i32) {
    %c0_i32 = arith.constant 0 : i32
    %c0_i32_0 = arith.constant 0 : i32
    %c0_i32_1 = arith.constant 0 : i32
    return %c0_i32, %c0_i32_0 : i32, i32
  }
  func.func @transform_3(%arg0: i32) -> (i32, i32, i32) {
    %c0_i32 = arith.constant 0 : i32
    %c0_i32_0 = arith.constant 0 : i32
    %c0_i32_1 = arith.constant 0 : i32
    return %arg0, %c0_i32, %c0_i32_0 : i32, i32, i32
  }
  func.func @transform_4(%arg0: i32) -> (i32, i32, i32) {
    %c0_i32 = arith.constant 0 : i32
    %c0_i32_0 = arith.constant 0 : i32
    %c0_i32_1 = arith.constant 0 : i32
    return %arg0, %c0_i32, %c0_i32_0 : i32, i32, i32
  }
  func.func @transform_5(%arg0: i32) -> (i32, i32, i32) {
    %c0_i32 = arith.constant 0 : i32
    %c0_i32_0 = arith.constant 0 : i32
    %c0_i32_1 = arith.constant 0 : i32
    return %arg0, %c0_i32, %c0_i32_0 : i32, i32, i32
  }
  func.func @transform_6(%arg0: i32) -> (i32, i32, i32) {
    %c0_i32 = arith.constant 0 : i32
    %c0_i32_0 = arith.constant 0 : i32
    %c0_i32_1 = arith.constant 0 : i32
    return %arg0, %c0_i32, %c0_i32_0 : i32, i32, i32
  }
  func.func @transform_7(%arg0: i32) -> (i32, i32, i32) {
    %c0_i32 = arith.constant 0 : i32
    %c0_i32_0 = arith.constant 0 : i32
    %c0_i32_1 = arith.constant 0 : i32
    return %arg0, %c0_i32, %c0_i32_0 : i32, i32, i32
  }
  func.func @transform_8(%arg0: i32) -> (i32, i32, i32) {
    %c0_i32 = arith.constant 0 : i32
    %c0_i32_0 = arith.constant 0 : i32
    %c0_i32_1 = arith.constant 0 : i32
    return %arg0, %c0_i32, %c0_i32_0 : i32, i32, i32
  }
}

module attributes {stable_mosaic.version = 11 : i64} {
  func.func @_conv_kernel(%arg0: i32, %arg1: memref<1x16x16xbf16, #tpu.memory_space<vmem>>, %arg2: memref<80x16xbf16, #tpu.memory_space<vmem>>, %arg3: memref<1x16xf32, #tpu.memory_space<vmem>>, %arg4: memref<1x16xf32, #tpu.memory_space<vmem>>, %arg5: memref<1x16x16xbf16, #tpu.memory_space<vmem>>, %arg6: memref<1x1x16xf32, #tpu.memory_space<vmem>>, %arg7: memref<1x1x16xf32, #tpu.memory_space<vmem>>, %arg8: memref<16x80xf32, #tpu.memory_space<vmem>>) attributes {dimension_semantics = [#tpu.dimension_semantics<parallel>], iteration_bounds = array<i64: 2>, scalar_prefetch = 0 : i64, scratch_operands = 1 : i64, tpu.core_type = #tpu.core_type<tc>, window_params = [{transform_indices = @transform_0, window_bounds = array<i64: 1, 16, 16>}, {pipeline_mode = #tpu.pipeline_mode<synchronous>, transform_indices = @transform_1, window_bounds = array<i64: 80, 16>}, {pipeline_mode = #tpu.pipeline_mode<synchronous>, transform_indices = @transform_2, window_bounds = array<i64: 1, 16>}, {pipeline_mode = #tpu.pipeline_mode<synchronous>, transform_indices = @transform_3, window_bounds = array<i64: 1, 16>}, {transform_indices = @transform_4, window_bounds = array<i64: 1, 16, 16>}, {transform_indices = @transform_5, window_bounds = array<i64: 1, 1, 16>}, {transform_indices = @transform_6, window_bounds = array<i64: 1, 1, 16>}]} {
    %c0 = arith.constant 0 : index
    %c0_0 = arith.constant 0 : index
    %c0_1 = arith.constant 0 : index
    %0 = vector.load %arg1[%c0, %c0_0, %c0_1] : memref<1x16x16xbf16, #tpu.memory_space<vmem>>, vector<1x16x16xbf16>
    %1 = vector.shape_cast %0 : vector<1x16x16xbf16> to vector<16x16xbf16>
    %2 = arith.extf %1 : vector<16x16xbf16> to vector<16x16xf32>
    %c0_2 = arith.constant 0 : index
    %c0_3 = arith.constant 0 : index
    %3 = vector.load %arg3[%c0_2, %c0_3] : memref<1x16xf32, #tpu.memory_space<vmem>>, vector<1x16xf32>
    %4 = vector.broadcast %3 : vector<1x16xf32> to vector<16x16xf32>
    %5 = arith.mulf %2, %4 : vector<16x16xf32>
    %c0_4 = arith.constant 0 : index
    %c0_5 = arith.constant 0 : index
    %6 = vector.load %arg4[%c0_4, %c0_5] : memref<1x16xf32, #tpu.memory_space<vmem>>, vector<1x16xf32>
    %7 = vector.broadcast %6 : vector<1x16xf32> to vector<16x16xf32>
    %8 = arith.addf %5, %7 : vector<16x16xf32>
    %cst = arith.constant 0.000000e+00 : f32
    %9 = vector.broadcast %cst : f32 to vector<16x16xf32>
    %10 = arith.maximumf %8, %9 : vector<16x16xf32>
    %cst_6 = arith.constant 0.000000e+00 : f32
    %11 = vector.broadcast %cst_6 : f32 to vector<2x16xf32>
    %c0_7 = arith.constant 0 : index
    %c0_8 = arith.constant 0 : index
    %12 = vector.load %arg8[%c0_7, %c0_8] : memref<16x80xf32, #tpu.memory_space<vmem>>, vector<2x16xf32>
    tpu.vector_store %arg8[%c0_7, %c0_8], %11 {strides = array<i32>} : memref<16x80xf32, #tpu.memory_space<vmem>>, vector<2x16xf32>,
    %13 = vector.extract_strided_slice %10 {offsets = [0, 0], sizes = [14, 16], strides = [1, 1]} : vector<16x16xf32> to vector<14x16xf32>
    %c2 = arith.constant 2 : index
    %c0_9 = arith.constant 0 : index
    %14 = vector.load %arg8[%c2, %c0_9] : memref<16x80xf32, #tpu.memory_space<vmem>>, vector<14x16xf32>
    tpu.vector_store %arg8[%c2, %c0_9], %13 {strides = array<i32>} : memref<16x80xf32, #tpu.memory_space<vmem>>, vector<14x16xf32>,
    %cst_10 = arith.constant 0.000000e+00 : f32
    %15 = vector.broadcast %cst_10 : f32 to vector<1x16xf32>
    %c0_11 = arith.constant 0 : index
    %c16 = arith.constant 16 : index
    %16 = vector.load %arg8[%c0_11, %c16] : memref<16x80xf32, #tpu.memory_space<vmem>>, vector<1x16xf32>
    tpu.vector_store %arg8[%c0_11, %c16], %15 {strides = array<i32>} : memref<16x80xf32, #tpu.memory_space<vmem>>, vector<1x16xf32>,
    %17 = vector.extract_strided_slice %10 {offsets = [0, 0], sizes = [15, 16], strides = [1, 1]} : vector<16x16xf32> to vector<15x16xf32>
    %c1 = arith.constant 1 : index
    %c16_12 = arith.constant 16 : index
    %18 = vector.load %arg8[%c1, %c16_12] : memref<16x80xf32, #tpu.memory_space<vmem>>, vector<15x16xf32>
    tpu.vector_store %arg8[%c1, %c16_12], %17 {strides = array<i32>} : memref<16x80xf32, #tpu.memory_space<vmem>>, vector<15x16xf32>,
    %c0_13 = arith.constant 0 : index
    %c32 = arith.constant 32 : index
    %19 = vector.load %arg8[%c0_13, %c32] : memref<16x80xf32, #tpu.memory_space<vmem>>, vector<16x16xf32>
    tpu.vector_store %arg8[%c0_13, %c32], %10 {strides = array<i32>} : memref<16x80xf32, #tpu.memory_space<vmem>>, vector<16x16xf32>,
    %cst_14 = arith.constant 0.000000e+00 : f32
    %20 = vector.broadcast %cst_14 : f32 to vector<1x16xf32>
    %c15 = arith.constant 15 : index
    %c48 = arith.constant 48 : index
    %21 = vector.load %arg8[%c15, %c48] : memref<16x80xf32, #tpu.memory_space<vmem>>, vector<1x16xf32>
    tpu.vector_store %arg8[%c15, %c48], %20 {strides = array<i32>} : memref<16x80xf32, #tpu.memory_space<vmem>>, vector<1x16xf32>,
    %22 = vector.extract_strided_slice %10 {offsets = [1, 0], sizes = [15, 16], strides = [1, 1]} : vector<16x16xf32> to vector<15x16xf32>
    %c0_15 = arith.constant 0 : index
    %c48_16 = arith.constant 48 : index
    %23 = vector.load %arg8[%c0_15, %c48_16] : memref<16x80xf32, #tpu.memory_space<vmem>>, vector<15x16xf32>
    tpu.vector_store %arg8[%c0_15, %c48_16], %22 {strides = array<i32>} : memref<16x80xf32, #tpu.memory_space<vmem>>, vector<15x16xf32>,
    %cst_17 = arith.constant 0.000000e+00 : f32
    %24 = vector.broadcast %cst_17 : f32 to vector<2x16xf32>
    %c14 = arith.constant 14 : index
    %c64 = arith.constant 64 : index
    %25 = vector.load %arg8[%c14, %c64] : memref<16x80xf32, #tpu.memory_space<vmem>>, vector<2x16xf32>
    tpu.vector_store %arg8[%c14, %c64], %24 {strides = array<i32>} : memref<16x80xf32, #tpu.memory_space<vmem>>, vector<2x16xf32>,
    %26 = vector.extract_strided_slice %10 {offsets = [2, 0], sizes = [14, 16], strides = [1, 1]} : vector<16x16xf32> to vector<14x16xf32>
    %c0_18 = arith.constant 0 : index
    %c64_19 = arith.constant 64 : index
    %27 = vector.load %arg8[%c0_18, %c64_19] : memref<16x80xf32, #tpu.memory_space<vmem>>, vector<14x16xf32>
    tpu.vector_store %arg8[%c0_18, %c64_19], %26 {strides = array<i32>} : memref<16x80xf32, #tpu.memory_space<vmem>>, vector<14x16xf32>,
    %c0_20 = arith.constant 0 : index
    %c0_21 = arith.constant 0 : index
    %28 = vector.load %arg8[%c0_20, %c0_21] : memref<16x80xf32, #tpu.memory_space<vmem>>, vector<16x80xf32>
    %29 = arith.truncf %28 : vector<16x80xf32> to vector<16x80xbf16>
    %c0_22 = arith.constant 0 : index
    %c0_23 = arith.constant 0 : index
    %30 = vector.load %arg2[%c0_22, %c0_23] : memref<80x16xbf16, #tpu.memory_space<vmem>>, vector<80x16xbf16>
    %cst_24 = arith.constant dense<0.000000e+00> : vector<16x16xf32>
    %31 = tpu.matmul %29, %30, %cst_24 {dimension_numbers = #tpu.dot_dimension_numbers<[1], [0], [0], [1], [0, 0, 1, 1], [], []>} : vector<16x80xbf16>, vector<80x16xbf16>, vector<16x16xf32> -> vector<16x16xf32>
    %32 = arith.truncf %31 : vector<16x16xf32> to vector<16x16xbf16>
    %c0_25 = arith.constant 0 : index
    %c0_26 = arith.constant 0 : index
    %c0_27 = arith.constant 0 : index
    %33 = vector.load %arg5[%c0_25, %c0_26, %c0_27] : memref<1x16x16xbf16, #tpu.memory_space<vmem>>, vector<1x16x16xbf16>
    %34 = vector.shape_cast %33 : vector<1x16x16xbf16> to vector<16x16xbf16>
    %35 = vector.shape_cast %32 : vector<16x16xbf16> to vector<1x16x16xbf16>
    tpu.vector_store %arg5[%c0_25, %c0_26, %c0_27], %35 {strides = array<i32>} : memref<1x16x16xbf16, #tpu.memory_space<vmem>>, vector<1x16x16xbf16>,
    %cst_28 = arith.constant dense<0.000000e+00> : vector<16xf32>
    %36 = vector.multi_reduction <add>, %31, %cst_28 [0] : vector<16x16xf32> to vector<16xf32>
    %37 = vector.shape_cast %36 : vector<16xf32> to vector<1x16xf32>
    %c0_29 = arith.constant 0 : index
    %c0_30 = arith.constant 0 : index
    %c0_31 = arith.constant 0 : index
    %38 = vector.load %arg6[%c0_29, %c0_30, %c0_31] : memref<1x1x16xf32, #tpu.memory_space<vmem>>, vector<1x1x16xf32>
    %39 = vector.shape_cast %38 : vector<1x1x16xf32> to vector<1x16xf32>
    %40 = vector.shape_cast %37 : vector<1x16xf32> to vector<1x1x16xf32>
    tpu.vector_store %arg6[%c0_29, %c0_30, %c0_31], %40 {strides = array<i32>} : memref<1x1x16xf32, #tpu.memory_space<vmem>>, vector<1x1x16xf32>,
    %41 = arith.mulf %31, %31 : vector<16x16xf32>
    %cst_32 = arith.constant dense<0.000000e+00> : vector<16xf32>
    %42 = vector.multi_reduction <add>, %41, %cst_32 [0] : vector<16x16xf32> to vector<16xf32>
    %43 = vector.shape_cast %42 : vector<16xf32> to vector<1x16xf32>
    %c0_33 = arith.constant 0 : index
    %c0_34 = arith.constant 0 : index
    %c0_35 = arith.constant 0 : index
    %44 = vector.load %arg7[%c0_33, %c0_34, %c0_35] : memref<1x1x16xf32, #tpu.memory_space<vmem>>, vector<1x1x16xf32>
    %45 = vector.shape_cast %44 : vector<1x1x16xf32> to vector<1x16xf32>
    %46 = vector.shape_cast %43 : vector<1x16xf32> to vector<1x1x16xf32>
    tpu.vector_store %arg7[%c0_33, %c0_34, %c0_35], %46 {strides = array<i32>} : memref<1x1x16xf32, #tpu.memory_space<vmem>>, vector<1x1x16xf32>,
    return
  }
  func.func @transform_0(%arg0: i32) -> (i32, i32, i32) {
    %c0_i32 = arith.constant 0 : i32
    %c0_i32_0 = arith.constant 0 : i32
    %c0_i32_1 = arith.constant 0 : i32
    return %arg0, %c0_i32, %c0_i32_0 : i32, i32, i32
  }
  func.func @transform_1(%arg0: i32) -> (i32, i32) {
    %c0_i32 = arith.constant 0 : i32
    %c0_i32_0 = arith.constant 0 : i32
    %c0_i32_1 = arith.constant 0 : i32
    return %c0_i32, %c0_i32_0 : i32, i32
  }
  func.func @transform_2(%arg0: i32) -> (i32, i32) {
    %c0_i32 = arith.constant 0 : i32
    %c0_i32_0 = arith.constant 0 : i32
    %c0_i32_1 = arith.constant 0 : i32
    return %c0_i32, %c0_i32_0 : i32, i32
  }
  func.func @transform_3(%arg0: i32) -> (i32, i32) {
    %c0_i32 = arith.constant 0 : i32
    %c0_i32_0 = arith.constant 0 : i32
    %c0_i32_1 = arith.constant 0 : i32
    return %c0_i32, %c0_i32_0 : i32, i32
  }
  func.func @transform_4(%arg0: i32) -> (i32, i32, i32) {
    %c0_i32 = arith.constant 0 : i32
    %c0_i32_0 = arith.constant 0 : i32
    %c0_i32_1 = arith.constant 0 : i32
    return %arg0, %c0_i32, %c0_i32_0 : i32, i32, i32
  }
  func.func @transform_5(%arg0: i32) -> (i32, i32, i32) {
    %c0_i32 = arith.constant 0 : i32
    %c0_i32_0 = arith.constant 0 : i32
    %c0_i32_1 = arith.constant 0 : i32
    return %arg0, %c0_i32, %c0_i32_0 : i32, i32, i32
  }
  func.func @transform_6(%arg0: i32) -> (i32, i32, i32) {
    %c0_i32 = arith.constant 0 : i32
    %c0_i32_0 = arith.constant 0 : i32
    %c0_i32_1 = arith.constant 0 : i32
    return %arg0, %c0_i32, %c0_i32_0 : i32, i32, i32
  }
}

module attributes {stable_mosaic.version = 11 : i64} {
  func.func @_residual_fuse_kernel(%arg0: i32, %arg1: memref<1x16x16xbf16, #tpu.memory_space<vmem>>, %arg2: memref<1x16x16xbf16, #tpu.memory_space<vmem>>, %arg3: memref<1x16xf32, #tpu.memory_space<vmem>>, %arg4: memref<1x16xf32, #tpu.memory_space<vmem>>, %arg5: memref<1x16xf32, #tpu.memory_space<vmem>>, %arg6: memref<1x16xf32, #tpu.memory_space<vmem>>, %arg7: memref<1x16x16xbf16, #tpu.memory_space<vmem>>, %arg8: memref<1x1x16xf32, #tpu.memory_space<vmem>>, %arg9: memref<1x1x16xf32, #tpu.memory_space<vmem>>) attributes {dimension_semantics = [#tpu.dimension_semantics<parallel>], iteration_bounds = array<i64: 2>, scalar_prefetch = 0 : i64, scratch_operands = 0 : i64, tpu.core_type = #tpu.core_type<tc>, window_params = [{transform_indices = @transform_0, window_bounds = array<i64: 1, 16, 16>}, {transform_indices = @transform_1, window_bounds = array<i64: 1, 16, 16>}, {pipeline_mode = #tpu.pipeline_mode<synchronous>, transform_indices = @transform_2, window_bounds = array<i64: 1, 16>}, {pipeline_mode = #tpu.pipeline_mode<synchronous>, transform_indices = @transform_3, window_bounds = array<i64: 1, 16>}, {pipeline_mode = #tpu.pipeline_mode<synchronous>, transform_indices = @transform_4, window_bounds = array<i64: 1, 16>}, {pipeline_mode = #tpu.pipeline_mode<synchronous>, transform_indices = @transform_5, window_bounds = array<i64: 1, 16>}, {transform_indices = @transform_6, window_bounds = array<i64: 1, 16, 16>}, {transform_indices = @transform_7, window_bounds = array<i64: 1, 1, 16>}, {transform_indices = @transform_8, window_bounds = array<i64: 1, 1, 16>}]} {
    %c0 = arith.constant 0 : index
    %c0_0 = arith.constant 0 : index
    %c0_1 = arith.constant 0 : index
    %0 = vector.load %arg1[%c0, %c0_0, %c0_1] : memref<1x16x16xbf16, #tpu.memory_space<vmem>>, vector<1x16x16xbf16>
    %1 = vector.shape_cast %0 : vector<1x16x16xbf16> to vector<16x16xbf16>
    %2 = arith.extf %1 : vector<16x16xbf16> to vector<16x16xf32>
    %c0_2 = arith.constant 0 : index
    %c0_3 = arith.constant 0 : index
    %3 = vector.load %arg3[%c0_2, %c0_3] : memref<1x16xf32, #tpu.memory_space<vmem>>, vector<1x16xf32>
    %4 = vector.broadcast %3 : vector<1x16xf32> to vector<16x16xf32>
    %5 = arith.mulf %2, %4 : vector<16x16xf32>
    %c0_4 = arith.constant 0 : index
    %c0_5 = arith.constant 0 : index
    %6 = vector.load %arg4[%c0_4, %c0_5] : memref<1x16xf32, #tpu.memory_space<vmem>>, vector<1x16xf32>
    %7 = vector.broadcast %6 : vector<1x16xf32> to vector<16x16xf32>
    %8 = arith.addf %5, %7 : vector<16x16xf32>
    %c0_6 = arith.constant 0 : index
    %c0_7 = arith.constant 0 : index
    %c0_8 = arith.constant 0 : index
    %9 = vector.load %arg2[%c0_6, %c0_7, %c0_8] : memref<1x16x16xbf16, #tpu.memory_space<vmem>>, vector<1x16x16xbf16>
    %10 = vector.shape_cast %9 : vector<1x16x16xbf16> to vector<16x16xbf16>
    %11 = arith.extf %10 : vector<16x16xbf16> to vector<16x16xf32>
    %c0_9 = arith.constant 0 : index
    %c0_10 = arith.constant 0 : index
    %12 = vector.load %arg5[%c0_9, %c0_10] : memref<1x16xf32, #tpu.memory_space<vmem>>, vector<1x16xf32>
    %13 = vector.broadcast %12 : vector<1x16xf32> to vector<16x16xf32>
    %14 = arith.mulf %11, %13 : vector<16x16xf32>
    %15 = arith.addf %8, %14 : vector<16x16xf32>
    %c0_11 = arith.constant 0 : index
    %c0_12 = arith.constant 0 : index
    %16 = vector.load %arg6[%c0_11, %c0_12] : memref<1x16xf32, #tpu.memory_space<vmem>>, vector<1x16xf32>
    %17 = vector.broadcast %16 : vector<1x16xf32> to vector<16x16xf32>
    %18 = arith.addf %15, %17 : vector<16x16xf32>
    %cst = arith.constant 0.000000e+00 : f32
    %19 = vector.broadcast %cst : f32 to vector<16x16xf32>
    %20 = arith.maximumf %18, %19 : vector<16x16xf32>
    %21 = arith.truncf %20 : vector<16x16xf32> to vector<16x16xbf16>
    %c0_13 = arith.constant 0 : index
    %c0_14 = arith.constant 0 : index
    %c0_15 = arith.constant 0 : index
    %22 = vector.load %arg7[%c0_13, %c0_14, %c0_15] : memref<1x16x16xbf16, #tpu.memory_space<vmem>>, vector<1x16x16xbf16>
    %23 = vector.shape_cast %22 : vector<1x16x16xbf16> to vector<16x16xbf16>
    %24 = vector.shape_cast %21 : vector<16x16xbf16> to vector<1x16x16xbf16>
    tpu.vector_store %arg7[%c0_13, %c0_14, %c0_15], %24 {strides = array<i32>} : memref<1x16x16xbf16, #tpu.memory_space<vmem>>, vector<1x16x16xbf16>,
    %cst_16 = arith.constant dense<0.000000e+00> : vector<16xf32>
    %25 = vector.multi_reduction <add>, %20, %cst_16 [0] : vector<16x16xf32> to vector<16xf32>
    %26 = vector.shape_cast %25 : vector<16xf32> to vector<1x16xf32>
    %c0_17 = arith.constant 0 : index
    %c0_18 = arith.constant 0 : index
    %c0_19 = arith.constant 0 : index
    %27 = vector.load %arg8[%c0_17, %c0_18, %c0_19] : memref<1x1x16xf32, #tpu.memory_space<vmem>>, vector<1x1x16xf32>
    %28 = vector.shape_cast %27 : vector<1x1x16xf32> to vector<1x16xf32>
    %29 = vector.shape_cast %26 : vector<1x16xf32> to vector<1x1x16xf32>
    tpu.vector_store %arg8[%c0_17, %c0_18, %c0_19], %29 {strides = array<i32>} : memref<1x1x16xf32, #tpu.memory_space<vmem>>, vector<1x1x16xf32>,
    %30 = arith.mulf %20, %20 : vector<16x16xf32>
    %cst_20 = arith.constant dense<0.000000e+00> : vector<16xf32>
    %31 = vector.multi_reduction <add>, %30, %cst_20 [0] : vector<16x16xf32> to vector<16xf32>
    %32 = vector.shape_cast %31 : vector<16xf32> to vector<1x16xf32>
    %c0_21 = arith.constant 0 : index
    %c0_22 = arith.constant 0 : index
    %c0_23 = arith.constant 0 : index
    %33 = vector.load %arg9[%c0_21, %c0_22, %c0_23] : memref<1x1x16xf32, #tpu.memory_space<vmem>>, vector<1x1x16xf32>
    %34 = vector.shape_cast %33 : vector<1x1x16xf32> to vector<1x16xf32>
    %35 = vector.shape_cast %32 : vector<1x16xf32> to vector<1x1x16xf32>
    tpu.vector_store %arg9[%c0_21, %c0_22, %c0_23], %35 {strides = array<i32>} : memref<1x1x16xf32, #tpu.memory_space<vmem>>, vector<1x1x16xf32>,
    return
  }
  func.func @transform_0(%arg0: i32) -> (i32, i32, i32) {
    %c0_i32 = arith.constant 0 : i32
    %c0_i32_0 = arith.constant 0 : i32
    %c0_i32_1 = arith.constant 0 : i32
    return %arg0, %c0_i32, %c0_i32_0 : i32, i32, i32
  }
  func.func @transform_1(%arg0: i32) -> (i32, i32, i32) {
    %c0_i32 = arith.constant 0 : i32
    %c0_i32_0 = arith.constant 0 : i32
    %c0_i32_1 = arith.constant 0 : i32
    return %arg0, %c0_i32, %c0_i32_0 : i32, i32, i32
  }
  func.func @transform_2(%arg0: i32) -> (i32, i32) {
    %c0_i32 = arith.constant 0 : i32
    %c0_i32_0 = arith.constant 0 : i32
    %c0_i32_1 = arith.constant 0 : i32
    return %c0_i32, %c0_i32_0 : i32, i32
  }
  func.func @transform_3(%arg0: i32) -> (i32, i32) {
    %c0_i32 = arith.constant 0 : i32
    %c0_i32_0 = arith.constant 0 : i32
    %c0_i32_1 = arith.constant 0 : i32
    return %c0_i32, %c0_i32_0 : i32, i32
  }
  func.func @transform_4(%arg0: i32) -> (i32, i32) {
    %c0_i32 = arith.constant 0 : i32
    %c0_i32_0 = arith.constant 0 : i32
    %c0_i32_1 = arith.constant 0 : i32
    return %c0_i32, %c0_i32_0 : i32, i32
  }
  func.func @transform_5(%arg0: i32) -> (i32, i32) {
    %c0_i32 = arith.constant 0 : i32
    %c0_i32_0 = arith.constant 0 : i32
    %c0_i32_1 = arith.constant 0 : i32
    return %c0_i32, %c0_i32_0 : i32, i32
  }
  func.func @transform_6(%arg0: i32) -> (i32, i32, i32) {
    %c0_i32 = arith.constant 0 : i32
    %c0_i32_0 = arith.constant 0 : i32
    %c0_i32_1 = arith.constant 0 : i32
    return %arg0, %c0_i32, %c0_i32_0 : i32, i32, i32
  }
  func.func @transform_7(%arg0: i32) -> (i32, i32, i32) {
    %c0_i32 = arith.constant 0 : i32
    %c0_i32_0 = arith.constant 0 : i32
    %c0_i32_1 = arith.constant 0 : i32
    return %arg0, %c0_i32, %c0_i32_0 : i32, i32, i32
  }
  func.func @transform_8(%arg0: i32) -> (i32, i32, i32) {
    %c0_i32 = arith.constant 0 : i32
    %c0_i32_0 = arith.constant 0 : i32
    %c0_i32_1 = arith.constant 0 : i32
    return %arg0, %c0_i32, %c0_i32_0 : i32, i32, i32
  }
}

module attributes {stable_mosaic.version = 11 : i64} {
  func.func @_conv_kernel(%arg0: i32, %arg1: memref<1x16x16xbf16, #tpu.memory_space<vmem>>, %arg2: memref<48x16xbf16, #tpu.memory_space<vmem>>, %arg3: memref<1x16xf32, #tpu.memory_space<vmem>>, %arg4: memref<1x16xf32, #tpu.memory_space<vmem>>, %arg5: memref<1x16x16xbf16, #tpu.memory_space<vmem>>, %arg6: memref<1x1x16xf32, #tpu.memory_space<vmem>>, %arg7: memref<1x1x16xf32, #tpu.memory_space<vmem>>, %arg8: memref<16x48xf32, #tpu.memory_space<vmem>>) attributes {dimension_semantics = [#tpu.dimension_semantics<parallel>], iteration_bounds = array<i64: 2>, scalar_prefetch = 0 : i64, scratch_operands = 1 : i64, tpu.core_type = #tpu.core_type<tc>, window_params = [{transform_indices = @transform_0, window_bounds = array<i64: 1, 16, 16>}, {pipeline_mode = #tpu.pipeline_mode<synchronous>, transform_indices = @transform_1, window_bounds = array<i64: 48, 16>}, {pipeline_mode = #tpu.pipeline_mode<synchronous>, transform_indices = @transform_2, window_bounds = array<i64: 1, 16>}, {pipeline_mode = #tpu.pipeline_mode<synchronous>, transform_indices = @transform_3, window_bounds = array<i64: 1, 16>}, {transform_indices = @transform_4, window_bounds = array<i64: 1, 16, 16>}, {transform_indices = @transform_5, window_bounds = array<i64: 1, 1, 16>}, {transform_indices = @transform_6, window_bounds = array<i64: 1, 1, 16>}]} {
    %c0 = arith.constant 0 : index
    %c0_0 = arith.constant 0 : index
    %c0_1 = arith.constant 0 : index
    %0 = vector.load %arg1[%c0, %c0_0, %c0_1] : memref<1x16x16xbf16, #tpu.memory_space<vmem>>, vector<1x16x16xbf16>
    %1 = vector.shape_cast %0 : vector<1x16x16xbf16> to vector<16x16xbf16>
    %2 = arith.extf %1 : vector<16x16xbf16> to vector<16x16xf32>
    %c0_2 = arith.constant 0 : index
    %c0_3 = arith.constant 0 : index
    %3 = vector.load %arg3[%c0_2, %c0_3] : memref<1x16xf32, #tpu.memory_space<vmem>>, vector<1x16xf32>
    %4 = vector.broadcast %3 : vector<1x16xf32> to vector<16x16xf32>
    %5 = arith.mulf %2, %4 : vector<16x16xf32>
    %c0_4 = arith.constant 0 : index
    %c0_5 = arith.constant 0 : index
    %6 = vector.load %arg4[%c0_4, %c0_5] : memref<1x16xf32, #tpu.memory_space<vmem>>, vector<1x16xf32>
    %7 = vector.broadcast %6 : vector<1x16xf32> to vector<16x16xf32>
    %8 = arith.addf %5, %7 : vector<16x16xf32>
    %cst = arith.constant 0.000000e+00 : f32
    %9 = vector.broadcast %cst : f32 to vector<16x16xf32>
    %10 = arith.maximumf %8, %9 : vector<16x16xf32>
    %cst_6 = arith.constant 0.000000e+00 : f32
    %11 = vector.broadcast %cst_6 : f32 to vector<1x16xf32>
    %c0_7 = arith.constant 0 : index
    %c0_8 = arith.constant 0 : index
    %12 = vector.load %arg8[%c0_7, %c0_8] : memref<16x48xf32, #tpu.memory_space<vmem>>, vector<1x16xf32>
    tpu.vector_store %arg8[%c0_7, %c0_8], %11 {strides = array<i32>} : memref<16x48xf32, #tpu.memory_space<vmem>>, vector<1x16xf32>,
    %13 = vector.extract_strided_slice %10 {offsets = [0, 0], sizes = [15, 16], strides = [1, 1]} : vector<16x16xf32> to vector<15x16xf32>
    %c1 = arith.constant 1 : index
    %c0_9 = arith.constant 0 : index
    %14 = vector.load %arg8[%c1, %c0_9] : memref<16x48xf32, #tpu.memory_space<vmem>>, vector<15x16xf32>
    tpu.vector_store %arg8[%c1, %c0_9], %13 {strides = array<i32>} : memref<16x48xf32, #tpu.memory_space<vmem>>, vector<15x16xf32>,
    %c0_10 = arith.constant 0 : index
    %c16 = arith.constant 16 : index
    %15 = vector.load %arg8[%c0_10, %c16] : memref<16x48xf32, #tpu.memory_space<vmem>>, vector<16x16xf32>
    tpu.vector_store %arg8[%c0_10, %c16], %10 {strides = array<i32>} : memref<16x48xf32, #tpu.memory_space<vmem>>, vector<16x16xf32>,
    %cst_11 = arith.constant 0.000000e+00 : f32
    %16 = vector.broadcast %cst_11 : f32 to vector<1x16xf32>
    %c15 = arith.constant 15 : index
    %c32 = arith.constant 32 : index
    %17 = vector.load %arg8[%c15, %c32] : memref<16x48xf32, #tpu.memory_space<vmem>>, vector<1x16xf32>
    tpu.vector_store %arg8[%c15, %c32], %16 {strides = array<i32>} : memref<16x48xf32, #tpu.memory_space<vmem>>, vector<1x16xf32>,
    %18 = vector.extract_strided_slice %10 {offsets = [1, 0], sizes = [15, 16], strides = [1, 1]} : vector<16x16xf32> to vector<15x16xf32>
    %c0_12 = arith.constant 0 : index
    %c32_13 = arith.constant 32 : index
    %19 = vector.load %arg8[%c0_12, %c32_13] : memref<16x48xf32, #tpu.memory_space<vmem>>, vector<15x16xf32>
    tpu.vector_store %arg8[%c0_12, %c32_13], %18 {strides = array<i32>} : memref<16x48xf32, #tpu.memory_space<vmem>>, vector<15x16xf32>,
    %c0_14 = arith.constant 0 : index
    %c0_15 = arith.constant 0 : index
    %20 = vector.load %arg8[%c0_14, %c0_15] : memref<16x48xf32, #tpu.memory_space<vmem>>, vector<16x48xf32>
    %21 = arith.truncf %20 : vector<16x48xf32> to vector<16x48xbf16>
    %c0_16 = arith.constant 0 : index
    %c0_17 = arith.constant 0 : index
    %22 = vector.load %arg2[%c0_16, %c0_17] : memref<48x16xbf16, #tpu.memory_space<vmem>>, vector<48x16xbf16>
    %cst_18 = arith.constant dense<0.000000e+00> : vector<16x16xf32>
    %23 = tpu.matmul %21, %22, %cst_18 {dimension_numbers = #tpu.dot_dimension_numbers<[1], [0], [0], [1], [0, 0, 1, 1], [], []>} : vector<16x48xbf16>, vector<48x16xbf16>, vector<16x16xf32> -> vector<16x16xf32>
    %24 = arith.truncf %23 : vector<16x16xf32> to vector<16x16xbf16>
    %c0_19 = arith.constant 0 : index
    %c0_20 = arith.constant 0 : index
    %c0_21 = arith.constant 0 : index
    %25 = vector.load %arg5[%c0_19, %c0_20, %c0_21] : memref<1x16x16xbf16, #tpu.memory_space<vmem>>, vector<1x16x16xbf16>
    %26 = vector.shape_cast %25 : vector<1x16x16xbf16> to vector<16x16xbf16>
    %27 = vector.shape_cast %24 : vector<16x16xbf16> to vector<1x16x16xbf16>
    tpu.vector_store %arg5[%c0_19, %c0_20, %c0_21], %27 {strides = array<i32>} : memref<1x16x16xbf16, #tpu.memory_space<vmem>>, vector<1x16x16xbf16>,
    %cst_22 = arith.constant dense<0.000000e+00> : vector<16xf32>
    %28 = vector.multi_reduction <add>, %23, %cst_22 [0] : vector<16x16xf32> to vector<16xf32>
    %29 = vector.shape_cast %28 : vector<16xf32> to vector<1x16xf32>
    %c0_23 = arith.constant 0 : index
    %c0_24 = arith.constant 0 : index
    %c0_25 = arith.constant 0 : index
    %30 = vector.load %arg6[%c0_23, %c0_24, %c0_25] : memref<1x1x16xf32, #tpu.memory_space<vmem>>, vector<1x1x16xf32>
    %31 = vector.shape_cast %30 : vector<1x1x16xf32> to vector<1x16xf32>
    %32 = vector.shape_cast %29 : vector<1x16xf32> to vector<1x1x16xf32>
    tpu.vector_store %arg6[%c0_23, %c0_24, %c0_25], %32 {strides = array<i32>} : memref<1x1x16xf32, #tpu.memory_space<vmem>>, vector<1x1x16xf32>,
    %33 = arith.mulf %23, %23 : vector<16x16xf32>
    %cst_26 = arith.constant dense<0.000000e+00> : vector<16xf32>
    %34 = vector.multi_reduction <add>, %33, %cst_26 [0] : vector<16x16xf32> to vector<16xf32>
    %35 = vector.shape_cast %34 : vector<16xf32> to vector<1x16xf32>
    %c0_27 = arith.constant 0 : index
    %c0_28 = arith.constant 0 : index
    %c0_29 = arith.constant 0 : index
    %36 = vector.load %arg7[%c0_27, %c0_28, %c0_29] : memref<1x1x16xf32, #tpu.memory_space<vmem>>, vector<1x1x16xf32>
    %37 = vector.shape_cast %36 : vector<1x1x16xf32> to vector<1x16xf32>
    %38 = vector.shape_cast %35 : vector<1x16xf32> to vector<1x1x16xf32>
    tpu.vector_store %arg7[%c0_27, %c0_28, %c0_29], %38 {strides = array<i32>} : memref<1x1x16xf32, #tpu.memory_space<vmem>>, vector<1x1x16xf32>,
    return
  }
  func.func @transform_0(%arg0: i32) -> (i32, i32, i32) {
    %c0_i32 = arith.constant 0 : i32
    %c0_i32_0 = arith.constant 0 : i32
    %c0_i32_1 = arith.constant 0 : i32
    return %arg0, %c0_i32, %c0_i32_0 : i32, i32, i32
  }
  func.func @transform_1(%arg0: i32) -> (i32, i32) {
    %c0_i32 = arith.constant 0 : i32
    %c0_i32_0 = arith.constant 0 : i32
    %c0_i32_1 = arith.constant 0 : i32
    return %c0_i32, %c0_i32_0 : i32, i32
  }
  func.func @transform_2(%arg0: i32) -> (i32, i32) {
    %c0_i32 = arith.constant 0 : i32
    %c0_i32_0 = arith.constant 0 : i32
    %c0_i32_1 = arith.constant 0 : i32
    return %c0_i32, %c0_i32_0 : i32, i32
  }
  func.func @transform_3(%arg0: i32) -> (i32, i32) {
    %c0_i32 = arith.constant 0 : i32
    %c0_i32_0 = arith.constant 0 : i32
    %c0_i32_1 = arith.constant 0 : i32
    return %c0_i32, %c0_i32_0 : i32, i32
  }
  func.func @transform_4(%arg0: i32) -> (i32, i32, i32) {
    %c0_i32 = arith.constant 0 : i32
    %c0_i32_0 = arith.constant 0 : i32
    %c0_i32_1 = arith.constant 0 : i32
    return %arg0, %c0_i32, %c0_i32_0 : i32, i32, i32
  }
  func.func @transform_5(%arg0: i32) -> (i32, i32, i32) {
    %c0_i32 = arith.constant 0 : i32
    %c0_i32_0 = arith.constant 0 : i32
    %c0_i32_1 = arith.constant 0 : i32
    return %arg0, %c0_i32, %c0_i32_0 : i32, i32, i32
  }
  func.func @transform_6(%arg0: i32) -> (i32, i32, i32) {
    %c0_i32 = arith.constant 0 : i32
    %c0_i32_0 = arith.constant 0 : i32
    %c0_i32_1 = arith.constant 0 : i32
    return %arg0, %c0_i32, %c0_i32_0 : i32, i32, i32
  }
}

module attributes {stable_mosaic.version = 11 : i64} {
  func.func @_conv_kernel(%arg0: i32, %arg1: memref<1x16x16xbf16, #tpu.memory_space<vmem>>, %arg2: memref<128x16xbf16, #tpu.memory_space<vmem>>, %arg3: memref<1x16x16xbf16, #tpu.memory_space<vmem>>, %arg4: memref<1x1x16xf32, #tpu.memory_space<vmem>>, %arg5: memref<1x1x16xf32, #tpu.memory_space<vmem>>, %arg6: memref<16x128xf32, #tpu.memory_space<vmem>>) attributes {dimension_semantics = [#tpu.dimension_semantics<parallel>], iteration_bounds = array<i64: 2>, scalar_prefetch = 0 : i64, scratch_operands = 1 : i64, tpu.core_type = #tpu.core_type<tc>, window_params = [{transform_indices = @transform_0, window_bounds = array<i64: 1, 16, 16>}, {pipeline_mode = #tpu.pipeline_mode<synchronous>, transform_indices = @transform_1, window_bounds = array<i64: 128, 16>}, {transform_indices = @transform_2, window_bounds = array<i64: 1, 16, 16>}, {transform_indices = @transform_3, window_bounds = array<i64: 1, 1, 16>}, {transform_indices = @transform_4, window_bounds = array<i64: 1, 1, 16>}]} {
    %c0 = arith.constant 0 : index
    %c0_0 = arith.constant 0 : index
    %c0_1 = arith.constant 0 : index
    %0 = vector.load %arg1[%c0, %c0_0, %c0_1] : memref<1x16x16xbf16, #tpu.memory_space<vmem>>, vector<1x16x16xbf16>
    %1 = vector.shape_cast %0 : vector<1x16x16xbf16> to vector<16x16xbf16>
    %2 = arith.extf %1 : vector<16x16xbf16> to vector<16x16xf32>
    %cst = arith.constant 0.000000e+00 : f32
    %3 = vector.broadcast %cst : f32 to vector<4x16xf32>
    %c0_2 = arith.constant 0 : index
    %c0_3 = arith.constant 0 : index
    %4 = vector.load %arg6[%c0_2, %c0_3] : memref<16x128xf32, #tpu.memory_space<vmem>>, vector<4x16xf32>
    tpu.vector_store %arg6[%c0_2, %c0_3], %3 {strides = array<i32>} : memref<16x128xf32, #tpu.memory_space<vmem>>, vector<4x16xf32>,
    %5 = vector.extract_strided_slice %2 {offsets = [0, 0], sizes = [12, 16], strides = [1, 1]} : vector<16x16xf32> to vector<12x16xf32>
    %c4 = arith.constant 4 : index
    %c0_4 = arith.constant 0 : index
    %6 = vector.load %arg6[%c4, %c0_4] : memref<16x128xf32, #tpu.memory_space<vmem>>, vector<12x16xf32>
    tpu.vector_store %arg6[%c4, %c0_4], %5 {strides = array<i32>} : memref<16x128xf32, #tpu.memory_space<vmem>>, vector<12x16xf32>,
    %cst_5 = arith.constant 0.000000e+00 : f32
    %7 = vector.broadcast %cst_5 : f32 to vector<3x16xf32>
    %c0_6 = arith.constant 0 : index
    %c16 = arith.constant 16 : index
    %8 = vector.load %arg6[%c0_6, %c16] : memref<16x128xf32, #tpu.memory_space<vmem>>, vector<3x16xf32>
    tpu.vector_store %arg6[%c0_6, %c16], %7 {strides = array<i32>} : memref<16x128xf32, #tpu.memory_space<vmem>>, vector<3x16xf32>,
    %9 = vector.extract_strided_slice %2 {offsets = [0, 0], sizes = [13, 16], strides = [1, 1]} : vector<16x16xf32> to vector<13x16xf32>
    %c3 = arith.constant 3 : index
    %c16_7 = arith.constant 16 : index
    %10 = vector.load %arg6[%c3, %c16_7] : memref<16x128xf32, #tpu.memory_space<vmem>>, vector<13x16xf32>
    tpu.vector_store %arg6[%c3, %c16_7], %9 {strides = array<i32>} : memref<16x128xf32, #tpu.memory_space<vmem>>, vector<13x16xf32>,
    %cst_8 = arith.constant 0.000000e+00 : f32
    %11 = vector.broadcast %cst_8 : f32 to vector<2x16xf32>
    %c0_9 = arith.constant 0 : index
    %c32 = arith.constant 32 : index
    %12 = vector.load %arg6[%c0_9, %c32] : memref<16x128xf32, #tpu.memory_space<vmem>>, vector<2x16xf32>
    tpu.vector_store %arg6[%c0_9, %c32], %11 {strides = array<i32>} : memref<16x128xf32, #tpu.memory_space<vmem>>, vector<2x16xf32>,
    %13 = vector.extract_strided_slice %2 {offsets = [0, 0], sizes = [14, 16], strides = [1, 1]} : vector<16x16xf32> to vector<14x16xf32>
    %c2 = arith.constant 2 : index
    %c32_10 = arith.constant 32 : index
    %14 = vector.load %arg6[%c2, %c32_10] : memref<16x128xf32, #tpu.memory_space<vmem>>, vector<14x16xf32>
    tpu.vector_store %arg6[%c2, %c32_10], %13 {strides = array<i32>} : memref<16x128xf32, #tpu.memory_space<vmem>>, vector<14x16xf32>,
    %cst_11 = arith.constant 0.000000e+00 : f32
    %15 = vector.broadcast %cst_11 : f32 to vector<1x16xf32>
    %c0_12 = arith.constant 0 : index
    %c48 = arith.constant 48 : index
    %16 = vector.load %arg6[%c0_12, %c48] : memref<16x128xf32, #tpu.memory_space<vmem>>, vector<1x16xf32>
    tpu.vector_store %arg6[%c0_12, %c48], %15 {strides = array<i32>} : memref<16x128xf32, #tpu.memory_space<vmem>>, vector<1x16xf32>,
    %17 = vector.extract_strided_slice %2 {offsets = [0, 0], sizes = [15, 16], strides = [1, 1]} : vector<16x16xf32> to vector<15x16xf32>
    %c1 = arith.constant 1 : index
    %c48_13 = arith.constant 48 : index
    %18 = vector.load %arg6[%c1, %c48_13] : memref<16x128xf32, #tpu.memory_space<vmem>>, vector<15x16xf32>
    tpu.vector_store %arg6[%c1, %c48_13], %17 {strides = array<i32>} : memref<16x128xf32, #tpu.memory_space<vmem>>, vector<15x16xf32>,
    %c0_14 = arith.constant 0 : index
    %c64 = arith.constant 64 : index
    %19 = vector.load %arg6[%c0_14, %c64] : memref<16x128xf32, #tpu.memory_space<vmem>>, vector<16x16xf32>
    tpu.vector_store %arg6[%c0_14, %c64], %2 {strides = array<i32>} : memref<16x128xf32, #tpu.memory_space<vmem>>, vector<16x16xf32>,
    %cst_15 = arith.constant 0.000000e+00 : f32
    %20 = vector.broadcast %cst_15 : f32 to vector<1x16xf32>
    %c15 = arith.constant 15 : index
    %c80 = arith.constant 80 : index
    %21 = vector.load %arg6[%c15, %c80] : memref<16x128xf32, #tpu.memory_space<vmem>>, vector<1x16xf32>
    tpu.vector_store %arg6[%c15, %c80], %20 {strides = array<i32>} : memref<16x128xf32, #tpu.memory_space<vmem>>, vector<1x16xf32>,
    %22 = vector.extract_strided_slice %2 {offsets = [1, 0], sizes = [15, 16], strides = [1, 1]} : vector<16x16xf32> to vector<15x16xf32>
    %c0_16 = arith.constant 0 : index
    %c80_17 = arith.constant 80 : index
    %23 = vector.load %arg6[%c0_16, %c80_17] : memref<16x128xf32, #tpu.memory_space<vmem>>, vector<15x16xf32>
    tpu.vector_store %arg6[%c0_16, %c80_17], %22 {strides = array<i32>} : memref<16x128xf32, #tpu.memory_space<vmem>>, vector<15x16xf32>,
    %cst_18 = arith.constant 0.000000e+00 : f32
    %24 = vector.broadcast %cst_18 : f32 to vector<2x16xf32>
    %c14 = arith.constant 14 : index
    %c96 = arith.constant 96 : index
    %25 = vector.load %arg6[%c14, %c96] : memref<16x128xf32, #tpu.memory_space<vmem>>, vector<2x16xf32>
    tpu.vector_store %arg6[%c14, %c96], %24 {strides = array<i32>} : memref<16x128xf32, #tpu.memory_space<vmem>>, vector<2x16xf32>,
    %26 = vector.extract_strided_slice %2 {offsets = [2, 0], sizes = [14, 16], strides = [1, 1]} : vector<16x16xf32> to vector<14x16xf32>
    %c0_19 = arith.constant 0 : index
    %c96_20 = arith.constant 96 : index
    %27 = vector.load %arg6[%c0_19, %c96_20] : memref<16x128xf32, #tpu.memory_space<vmem>>, vector<14x16xf32>
    tpu.vector_store %arg6[%c0_19, %c96_20], %26 {strides = array<i32>} : memref<16x128xf32, #tpu.memory_space<vmem>>, vector<14x16xf32>,
    %cst_21 = arith.constant 0.000000e+00 : f32
    %28 = vector.broadcast %cst_21 : f32 to vector<3x16xf32>
    %c13 = arith.constant 13 : index
    %c112 = arith.constant 112 : index
    %29 = vector.load %arg6[%c13, %c112] : memref<16x128xf32, #tpu.memory_space<vmem>>, vector<3x16xf32>
    tpu.vector_store %arg6[%c13, %c112], %28 {strides = array<i32>} : memref<16x128xf32, #tpu.memory_space<vmem>>, vector<3x16xf32>,
    %30 = vector.extract_strided_slice %2 {offsets = [3, 0], sizes = [13, 16], strides = [1, 1]} : vector<16x16xf32> to vector<13x16xf32>
    %c0_22 = arith.constant 0 : index
    %c112_23 = arith.constant 112 : index
    %31 = vector.load %arg6[%c0_22, %c112_23] : memref<16x128xf32, #tpu.memory_space<vmem>>, vector<13x16xf32>
    tpu.vector_store %arg6[%c0_22, %c112_23], %30 {strides = array<i32>} : memref<16x128xf32, #tpu.memory_space<vmem>>, vector<13x16xf32>,
    %c0_24 = arith.constant 0 : index
    %c0_25 = arith.constant 0 : index
    %32 = vector.load %arg6[%c0_24, %c0_25] : memref<16x128xf32, #tpu.memory_space<vmem>>, vector<16x128xf32>
    %33 = arith.truncf %32 : vector<16x128xf32> to vector<16x128xbf16>
    %c0_26 = arith.constant 0 : index
    %c0_27 = arith.constant 0 : index
    %34 = vector.load %arg2[%c0_26, %c0_27] : memref<128x16xbf16, #tpu.memory_space<vmem>>, vector<128x16xbf16>
    %cst_28 = arith.constant dense<0.000000e+00> : vector<16x16xf32>
    %35 = tpu.matmul %33, %34, %cst_28 {dimension_numbers = #tpu.dot_dimension_numbers<[1], [0], [0], [1], [0, 0, 1, 1], [], []>} : vector<16x128xbf16>, vector<128x16xbf16>, vector<16x16xf32> -> vector<16x16xf32>
    %36 = arith.truncf %35 : vector<16x16xf32> to vector<16x16xbf16>
    %c0_29 = arith.constant 0 : index
    %c0_30 = arith.constant 0 : index
    %c0_31 = arith.constant 0 : index
    %37 = vector.load %arg3[%c0_29, %c0_30, %c0_31] : memref<1x16x16xbf16, #tpu.memory_space<vmem>>, vector<1x16x16xbf16>
    %38 = vector.shape_cast %37 : vector<1x16x16xbf16> to vector<16x16xbf16>
    %39 = vector.shape_cast %36 : vector<16x16xbf16> to vector<1x16x16xbf16>
    tpu.vector_store %arg3[%c0_29, %c0_30, %c0_31], %39 {strides = array<i32>} : memref<1x16x16xbf16, #tpu.memory_space<vmem>>, vector<1x16x16xbf16>,
    %cst_32 = arith.constant dense<0.000000e+00> : vector<16xf32>
    %40 = vector.multi_reduction <add>, %35, %cst_32 [0] : vector<16x16xf32> to vector<16xf32>
    %41 = vector.shape_cast %40 : vector<16xf32> to vector<1x16xf32>
    %c0_33 = arith.constant 0 : index
    %c0_34 = arith.constant 0 : index
    %c0_35 = arith.constant 0 : index
    %42 = vector.load %arg4[%c0_33, %c0_34, %c0_35] : memref<1x1x16xf32, #tpu.memory_space<vmem>>, vector<1x1x16xf32>
    %43 = vector.shape_cast %42 : vector<1x1x16xf32> to vector<1x16xf32>
    %44 = vector.shape_cast %41 : vector<1x16xf32> to vector<1x1x16xf32>
    tpu.vector_store %arg4[%c0_33, %c0_34, %c0_35], %44 {strides = array<i32>} : memref<1x1x16xf32, #tpu.memory_space<vmem>>, vector<1x1x16xf32>,
    %45 = arith.mulf %35, %35 : vector<16x16xf32>
    %cst_36 = arith.constant dense<0.000000e+00> : vector<16xf32>
    %46 = vector.multi_reduction <add>, %45, %cst_36 [0] : vector<16x16xf32> to vector<16xf32>
    %47 = vector.shape_cast %46 : vector<16xf32> to vector<1x16xf32>
    %c0_37 = arith.constant 0 : index
    %c0_38 = arith.constant 0 : index
    %c0_39 = arith.constant 0 : index
    %48 = vector.load %arg5[%c0_37, %c0_38, %c0_39] : memref<1x1x16xf32, #tpu.memory_space<vmem>>, vector<1x1x16xf32>
    %49 = vector.shape_cast %48 : vector<1x1x16xf32> to vector<1x16xf32>
    %50 = vector.shape_cast %47 : vector<1x16xf32> to vector<1x1x16xf32>
    tpu.vector_store %arg5[%c0_37, %c0_38, %c0_39], %50 {strides = array<i32>} : memref<1x1x16xf32, #tpu.memory_space<vmem>>, vector<1x1x16xf32>,
    return
  }
  func.func @transform_0(%arg0: i32) -> (i32, i32, i32) {
    %c0_i32 = arith.constant 0 : i32
    %c0_i32_0 = arith.constant 0 : i32
    %c0_i32_1 = arith.constant 0 : i32
    return %arg0, %c0_i32, %c0_i32_0 : i32, i32, i32
  }
  func.func @transform_1(%arg0: i32) -> (i32, i32) {
    %c0_i32 = arith.constant 0 : i32
    %c0_i32_0 = arith.constant 0 : i32
    %c0_i32_1 = arith.constant 0 : i32
    return %c0_i32, %c0_i32_0 : i32, i32
  }
  func.func @transform_2(%arg0: i32) -> (i32, i32, i32) {
    %c0_i32 = arith.constant 0 : i32
    %c0_i32_0 = arith.constant 0 : i32
    %c0_i32_1 = arith.constant 0 : i32
    return %arg0, %c0_i32, %c0_i32_0 : i32, i32, i32
  }
  func.func @transform_3(%arg0: i32) -> (i32, i32, i32) {
    %c0_i32 = arith.constant 0 : i32
    %c0_i32_0 = arith.constant 0 : i32
    %c0_i32_1 = arith.constant 0 : i32
    return %arg0, %c0_i32, %c0_i32_0 : i32, i32, i32
  }
  func.func @transform_4(%arg0: i32) -> (i32, i32, i32) {
    %c0_i32 = arith.constant 0 : i32
    %c0_i32_0 = arith.constant 0 : i32
    %c0_i32_1 = arith.constant 0 : i32
    return %arg0, %c0_i32, %c0_i32_0 : i32, i32, i32
  }
}

module attributes {stable_mosaic.version = 11 : i64} {
  func.func @_residual_fuse_kernel(%arg0: i32, %arg1: memref<1x16x16xbf16, #tpu.memory_space<vmem>>, %arg2: memref<1x16x16xbf16, #tpu.memory_space<vmem>>, %arg3: memref<1x16xf32, #tpu.memory_space<vmem>>, %arg4: memref<1x16xf32, #tpu.memory_space<vmem>>, %arg5: memref<1x16xf32, #tpu.memory_space<vmem>>, %arg6: memref<1x16xf32, #tpu.memory_space<vmem>>, %arg7: memref<1x1x16xf32, #tpu.memory_space<vmem>>) attributes {dimension_semantics = [#tpu.dimension_semantics<parallel>], iteration_bounds = array<i64: 2>, scalar_prefetch = 0 : i64, scratch_operands = 0 : i64, tpu.core_type = #tpu.core_type<tc>, window_params = [{transform_indices = @transform_0, window_bounds = array<i64: 1, 16, 16>}, {transform_indices = @transform_1, window_bounds = array<i64: 1, 16, 16>}, {pipeline_mode = #tpu.pipeline_mode<synchronous>, transform_indices = @transform_2, window_bounds = array<i64: 1, 16>}, {pipeline_mode = #tpu.pipeline_mode<synchronous>, transform_indices = @transform_3, window_bounds = array<i64: 1, 16>}, {pipeline_mode = #tpu.pipeline_mode<synchronous>, transform_indices = @transform_4, window_bounds = array<i64: 1, 16>}, {pipeline_mode = #tpu.pipeline_mode<synchronous>, transform_indices = @transform_5, window_bounds = array<i64: 1, 16>}, {transform_indices = @transform_6, window_bounds = array<i64: 1, 1, 16>}]} {
    %c0 = arith.constant 0 : index
    %c0_0 = arith.constant 0 : index
    %c0_1 = arith.constant 0 : index
    %0 = vector.load %arg1[%c0, %c0_0, %c0_1] : memref<1x16x16xbf16, #tpu.memory_space<vmem>>, vector<1x16x16xbf16>
    %1 = vector.shape_cast %0 : vector<1x16x16xbf16> to vector<16x16xbf16>
    %2 = arith.extf %1 : vector<16x16xbf16> to vector<16x16xf32>
    %c0_2 = arith.constant 0 : index
    %c0_3 = arith.constant 0 : index
    %3 = vector.load %arg3[%c0_2, %c0_3] : memref<1x16xf32, #tpu.memory_space<vmem>>, vector<1x16xf32>
    %4 = vector.broadcast %3 : vector<1x16xf32> to vector<16x16xf32>
    %5 = arith.mulf %2, %4 : vector<16x16xf32>
    %c0_4 = arith.constant 0 : index
    %c0_5 = arith.constant 0 : index
    %6 = vector.load %arg4[%c0_4, %c0_5] : memref<1x16xf32, #tpu.memory_space<vmem>>, vector<1x16xf32>
    %7 = vector.broadcast %6 : vector<1x16xf32> to vector<16x16xf32>
    %8 = arith.addf %5, %7 : vector<16x16xf32>
    %c0_6 = arith.constant 0 : index
    %c0_7 = arith.constant 0 : index
    %c0_8 = arith.constant 0 : index
    %9 = vector.load %arg2[%c0_6, %c0_7, %c0_8] : memref<1x16x16xbf16, #tpu.memory_space<vmem>>, vector<1x16x16xbf16>
    %10 = vector.shape_cast %9 : vector<1x16x16xbf16> to vector<16x16xbf16>
    %11 = arith.extf %10 : vector<16x16xbf16> to vector<16x16xf32>
    %c0_9 = arith.constant 0 : index
    %c0_10 = arith.constant 0 : index
    %12 = vector.load %arg5[%c0_9, %c0_10] : memref<1x16xf32, #tpu.memory_space<vmem>>, vector<1x16xf32>
    %13 = vector.broadcast %12 : vector<1x16xf32> to vector<16x16xf32>
    %14 = arith.mulf %11, %13 : vector<16x16xf32>
    %15 = arith.addf %8, %14 : vector<16x16xf32>
    %c0_11 = arith.constant 0 : index
    %c0_12 = arith.constant 0 : index
    %16 = vector.load %arg6[%c0_11, %c0_12] : memref<1x16xf32, #tpu.memory_space<vmem>>, vector<1x16xf32>
    %17 = vector.broadcast %16 : vector<1x16xf32> to vector<16x16xf32>
    %18 = arith.addf %15, %17 : vector<16x16xf32>
    %cst = arith.constant 0.000000e+00 : f32
    %19 = vector.broadcast %cst : f32 to vector<16x16xf32>
    %20 = arith.maximumf %18, %19 : vector<16x16xf32>
    %cst_13 = arith.constant dense<0.000000e+00> : vector<16xf32>
    %21 = vector.multi_reduction <add>, %20, %cst_13 [0] : vector<16x16xf32> to vector<16xf32>
    %22 = vector.shape_cast %21 : vector<16xf32> to vector<1x16xf32>
    %cst_14 = arith.constant 1.600000e+01 : f32
    %23 = vector.broadcast %cst_14 : f32 to vector<1x16xf32>
    %24 = arith.divf %22, %23 : vector<1x16xf32>
    %c0_15 = arith.constant 0 : index
    %c0_16 = arith.constant 0 : index
    %c0_17 = arith.constant 0 : index
    %25 = vector.load %arg7[%c0_15, %c0_16, %c0_17] : memref<1x1x16xf32, #tpu.memory_space<vmem>>, vector<1x1x16xf32>
    %26 = vector.shape_cast %25 : vector<1x1x16xf32> to vector<1x16xf32>
    %27 = vector.shape_cast %24 : vector<1x16xf32> to vector<1x1x16xf32>
    tpu.vector_store %arg7[%c0_15, %c0_16, %c0_17], %27 {strides = array<i32>} : memref<1x1x16xf32, #tpu.memory_space<vmem>>, vector<1x1x16xf32>,
    return
  }
  func.func @transform_0(%arg0: i32) -> (i32, i32, i32) {
    %c0_i32 = arith.constant 0 : i32
    %c0_i32_0 = arith.constant 0 : i32
    %c0_i32_1 = arith.constant 0 : i32
    return %arg0, %c0_i32, %c0_i32_0 : i32, i32, i32
  }
  func.func @transform_1(%arg0: i32) -> (i32, i32, i32) {
    %c0_i32 = arith.constant 0 : i32
    %c0_i32_0 = arith.constant 0 : i32
    %c0_i32_1 = arith.constant 0 : i32
    return %arg0, %c0_i32, %c0_i32_0 : i32, i32, i32
  }
  func.func @transform_2(%arg0: i32) -> (i32, i32) {
    %c0_i32 = arith.constant 0 : i32
    %c0_i32_0 = arith.constant 0 : i32
    %c0_i32_1 = arith.constant 0 : i32
    return %c0_i32, %c0_i32_0 : i32, i32
  }
  func.func @transform_3(%arg0: i32) -> (i32, i32) {
    %c0_i32 = arith.constant 0 : i32
    %c0_i32_0 = arith.constant 0 : i32
    %c0_i32_1 = arith.constant 0 : i32
    return %c0_i32, %c0_i32_0 : i32, i32
  }
  func.func @transform_4(%arg0: i32) -> (i32, i32) {
    %c0_i32 = arith.constant 0 : i32
    %c0_i32_0 = arith.constant 0 : i32
    %c0_i32_1 = arith.constant 0 : i32
    return %c0_i32, %c0_i32_0 : i32, i32
  }
  func.func @transform_5(%arg0: i32) -> (i32, i32) {
    %c0_i32 = arith.constant 0 : i32
    %c0_i32_0 = arith.constant 0 : i32
    %c0_i32_1 = arith.constant 0 : i32
    return %c0_i32, %c0_i32_0 : i32, i32
  }
  func.func @transform_6(%arg0: i32) -> (i32, i32, i32) {
    %c0_i32 = arith.constant 0 : i32
    %c0_i32_0 = arith.constant 0 : i32
    %c0_i32_1 = arith.constant 0 : i32
    return %arg0, %c0_i32, %c0_i32_0 : i32, i32, i32
  }
}

module attributes {stable_mosaic.version = 11 : i64} {
  func.func @_head_kernel(%arg0: memref<2x16xf32, #tpu.memory_space<vmem>>, %arg1: memref<16x3xf32, #tpu.memory_space<vmem>>, %arg2: memref<1x3xf32, #tpu.memory_space<vmem>>, %arg3: memref<2x3xf32, #tpu.memory_space<vmem>>) attributes {dimension_semantics = [], scalar_prefetch = 0 : i64, scratch_operands = 0 : i64, tpu.core_type = #tpu.core_type<tc>} {
    %c0 = arith.constant 0 : index
    %c0_0 = arith.constant 0 : index
    %0 = vector.load %arg0[%c0, %c0_0] : memref<2x16xf32, #tpu.memory_space<vmem>>, vector<2x16xf32>
    %c0_1 = arith.constant 0 : index
    %c0_2 = arith.constant 0 : index
    %1 = vector.load %arg1[%c0_1, %c0_2] : memref<16x3xf32, #tpu.memory_space<vmem>>, vector<16x3xf32>
    %cst = arith.constant dense<0.000000e+00> : vector<2x3xf32>
    %2 = tpu.matmul %0, %1, %cst {dimension_numbers = #tpu.dot_dimension_numbers<[1], [0], [0], [1], [0, 0, 1, 1], [], []>} : vector<2x16xf32>, vector<16x3xf32>, vector<2x3xf32> -> vector<2x3xf32>
    %c0_3 = arith.constant 0 : index
    %c0_4 = arith.constant 0 : index
    %3 = vector.load %arg2[%c0_3, %c0_4] : memref<1x3xf32, #tpu.memory_space<vmem>>, vector<1x3xf32>
    %4 = vector.broadcast %3 : vector<1x3xf32> to vector<2x3xf32>
    %5 = arith.addf %2, %4 : vector<2x3xf32>
    %c0_5 = arith.constant 0 : index
    %c0_6 = arith.constant 0 : index
    %6 = vector.load %arg3[%c0_5, %c0_6] : memref<2x3xf32, #tpu.memory_space<vmem>>, vector<2x3xf32>
    tpu.vector_store %arg3[%c0_5, %c0_6], %5 {strides = array<i32>} : memref<2x3xf32, #tpu.memory_space<vmem>>, vector<2x3xf32>,
    return
  }
}

</mosaic_0001>

<llo_original>
// kernel: resnet_mrm2_forward.14
$region0: #{resnet_mrm2_forward.14}
  #allocation0 [shape = 'u32[]', space=smem, size = 0x4, offset = 0x4, fixed_abs, tag = 'smem constant byte address 0x4 - core index']
  #allocation1 [shape = 'u32[144,128]{1,0:T(1,128)}', space=vmem, size = 0x12000, scoped, tag = 'internal scratch']
  %s0 = inlined_call_operand.vmem [shape: f32[2,16,4], index: 0, kind: input, shape index: {}]
  %s1 = inlined_call_operand.vmem [shape: f32[2,1,4], index: 1, kind: output, shape index: {0}]
  %s2 = inlined_call_operand.vmem [shape: f32[2,1,4], index: 2, kind: output, shape index: {1}]
  %3 = xla_tuple %s1, %s2
  %s4 = sld [smem:[#allocation0]]
  $region45: #{resnet_mrm2_forward.14} parent=0
    _
  %s6 = ssub.s32 1, %s4
  %s7 = scalar_select 0, %s6, %s4
  loop: start=0, step=1, limit=4
  $region2: #{resnet_mrm2_forward.14} parent=0 // loop_pre_header
    _
  $region3: #{resnet_mrm2_forward.14} parent=0 // loop_header
    %s9 = sphi 0, %s13
    %p10 = scmp.ge.s32.totalorder %s9, 4
    %s19 = sphi 0, %s21
    %s22 = sphi 0, %s19
    %s23 = sphi 0, %s22
    %s39 = sphi 0, %s23
    %s45 = sphi 0, %s47
    %s48 = sphi 0, %s45
    %s49 = sphi 0, %s48
    %s65 = sphi 0, %s49
    %s71 = sphi 0, %s73
    %s74 = sphi 0, %s71
    %s75 = sphi 0, %s74
    %s91 = sphi 0, %s75
  $region4: #{resnet_mrm2_forward.14} parent=0 // loop_header_branch
    %12 = sbr.rel (%p10) target = $region8
  $region5: #{resnet_mrm2_forward.14} parent=0 // loop_body
    %s14 = ssub.s32 %s9, 1
    %s15 = ssub.s32 %s9, 2
    %s16 = sadd.s32 %s9, 1
    %s17 = ssub.s32 %s9, %s16
    %p18 = scmp.eq.s32.totalorder %s17, 0
    %s20 = sadd.s32 %s19, 1
    %s21 = scalar_select %p18, %s19, %s20
    %p24 = pneg %p18
    %p25 = scmp.eq.s32.totalorder %s9, 1
    %p26 = por %p24, %p25
    %p27 = scmp.ne.s32.totalorder %s19, %s22
    %p28 = scmp.eq.s32.totalorder %s9, 0
    %p29 = por %p27, %p28
    %p30 = scmp.ne.s32.totalorder %s19, %s22
    %p31 = scmp.eq.s32.totalorder %s14, 1
    %p32 = por %p30, %p31
    %p33 = scmp.ne.s32.totalorder %s22, %s23
    %p34 = scmp.eq.s32.totalorder %s14, 0
    %p35 = por %p33, %p34
    %p36 = scmp.ne.s32.totalorder %s22, %s23
    %p37 = scmp.eq.s32.totalorder %s15, 1
    %p38 = por %p36, %p37
    %p40 = scmp.ne.s32.totalorder %s23, %s39
    %p41 = scmp.eq.s32.totalorder %s15, 0
    %p42 = por %p40, %p41
    %s43 = ssub.s32 %s9, %s16
    %p44 = scmp.eq.s32.totalorder %s43, 0
    %s46 = sadd.s32 %s45, 1
    %s47 = scalar_select %p44, %s45, %s46
    %p50 = pneg %p44
    %p51 = scmp.eq.s32.totalorder %s9, 1
    %p52 = por %p50, %p51
    %p53 = scmp.ne.s32.totalorder %s45, %s48
    %p54 = scmp.eq.s32.totalorder %s9, 0
    %p55 = por %p53, %p54
    %p56 = scmp.ne.s32.totalorder %s45, %s48
    %p57 = scmp.eq.s32.totalorder %s14, 1
    %p58 = por %p56, %p57
    %p59 = scmp.ne.s32.totalorder %s48, %s49
    %p60 = scmp.eq.s32.totalorder %s14, 0
    %p61 = por %p59, %p60
    %p62 = scmp.ne.s32.totalorder %s48, %s49
    %p63 = scmp.eq.s32.totalorder %s15, 1
    %p64 = por %p62, %p63
    %p66 = scmp.ne.s32.totalorder %s49, %s65
    %p67 = scmp.eq.s32.totalorder %s15, 0
    %p68 = por %p66, %p67
    %s69 = ssub.s32 %s9, %s16
    %p70 = scmp.eq.s32.totalorder %s69, 0
    %s72 = sadd.s32 %s71, 1
    %s73 = scalar_select %p70, %s71, %s72
    %p76 = pneg %p70
    %p77 = scmp.eq.s32.totalorder %s9, 1
    %p78 = por %p76, %p77
    %p79 = scmp.ne.s32.totalorder %s71, %s74
    %p80 = scmp.eq.s32.totalorder %s9, 0
    %p81 = por %p79, %p80
    %p82 = scmp.ne.s32.totalorder %s71, %s74
    %p83 = scmp.eq.s32.totalorder %s14, 1
    %p84 = por %p82, %p83
    %p85 = scmp.ne.s32.totalorder %s74, %s75
    %p86 = scmp.eq.s32.totalorder %s14, 0
    %p87 = por %p85, %p86
    %p88 = scmp.ne.s32.totalorder %s74, %s75
    %p89 = scmp.eq.s32.totalorder %s15, 1
    %p90 = por %p88, %p89
    %p92 = scmp.ne.s32.totalorder %s75, %s91
    %p93 = scmp.eq.s32.totalorder %s15, 0
    %p94 = por %p92, %p93
    %p95 = scmp.le.s32.totalorder 1, %s9
    %p96 = scmp.lt.s32.totalorder %s9, 3
    %p97 = pnand %p95, %p96
    %p98 = pneg %p97
    // Predicated region
    $region9: #{resnet_mrm2_forward.14} parent=5 // pred_check
      _
    $region10: #{resnet_mrm2_forward.14} parent=5 // pred_check_branch
      %100 = sbr.rel (%p97) target = $region12
    $region11: #{resnet_mrm2_forward.14} parent=5 // pred_region
      %s101 = ssub.s32 %s9, 1
    $region12: #{resnet_mrm2_forward.14} parent=5 // pred_fallthru
      _
    %p102 = scmp.lt.s32.totalorder %s9, 2
    // Predicated region
    $region13: #{resnet_mrm2_forward.14} parent=5 // pred_check
      %p103 = pneg %p102
    $region14: #{resnet_mrm2_forward.14} parent=5 // pred_check_branch
      %105 = sbr.rel (%p103) target = $region16
    $region15: #{resnet_mrm2_forward.14} parent=5 // pred_region
      // Predicated region
      $region17: #{resnet_mrm2_forward.14} parent=15 // pred_check
        %p106 = pneg %p29
      $region18: #{resnet_mrm2_forward.14} parent=15 // pred_check_branch
        %108 = sbr.rel (%p106) target = $region20
      $region19: #{resnet_mrm2_forward.14} parent=15 // pred_region
        %p109 = scmp.lt.s32.totalorder %s9, 1
        %s110 = scalar_select %p109, %s9, 1
        %s111 = smul.addr %s110, 2
        %s112 = smul.addr %s111, 8
        %s113 = scalar_lea.vmem %s0, %s112
      $region20: #{resnet_mrm2_forward.14} parent=15 // pred_fallthru
        _
    $region16: #{resnet_mrm2_forward.14} parent=5 // pred_fallthru
      _
    %p114 = scmp.le.s32.totalorder 1, %s9
    %p115 = scmp.lt.s32.totalorder %s9, 3
    %p116 = pnand %p114, %p115
    %p117 = pneg %p116
    // Predicated region
    $region21: #{resnet_mrm2_forward.14} parent=5 // pred_check
      _
    $region22: #{resnet_mrm2_forward.14} parent=5 // pred_check_branch
      %119 = sbr.rel (%p116) target = $region24
    $region23: #{resnet_mrm2_forward.14} parent=5 // pred_region
      %s120 = ssub.s32 %s9, 1
      %p121 = scmp.lt.s32.totalorder %s14, 1
      %s122 = scalar_select %p121, %s14, 1
      %s123 = smul.addr %s122, 2
      %s124 = smul.addr %s123, 8
      %s125 = scalar_lea.vmem %s0, %s124
      %p126 = pneg %p35
      %p127 = pneg %p32
      %p128 = pneg %p61
      %p129 = pneg %p58
      %p130 = scmp.lt.s32.totalorder %s14, 1
      %s131 = scalar_select %p130, %s14, 1
      %s132 = scalar_lea.vmem %s1, %s131
      %p133 = pneg %p87
      %p134 = pneg %p84
      %p135 = scmp.lt.s32.totalorder %s14, 1
      %s136 = scalar_select %p135, %s14, 1
      %s137 = scalar_lea.vmem %s2, %s136
      %p138 = scmp.lt.s32.totalorder %s14, 1
      %s139 = scalar_select %p138, %s14, 1
      %s140 = smul.addr %s139, 2
      %s141 = smul.addr %s140, 8
      %s142 = scalar_lea.vmem %s0, %s141
      %p143 = scmp.lt.s32.totalorder %s14, 1
      %s144 = scalar_select %p143, %s14, 1
      %s145 = scalar_lea.vmem %s1, %s144
      %p146 = scmp.lt.s32.totalorder %s14, 1
      %s147 = scalar_select %p146, %s14, 1
      %s148 = scalar_lea.vmem %s2, %s147
      %v149 = vld [vmem:[%s142] sm:$0xff]
      %v150 = vld [vmem:[%s142 + $0x8] sm:$0xff]
      %vm151 = vcmask 31744
      %v152 = vsel %vm151, %v149, 0.0
      %v153 = vsel %vm151, %v150, 0.0
      %v154 = vadd.f32 %v152, %v153
      %v155 = vrot.slane %v154, 4
      %v156 = vadd.f32 %v154, %v155
      %v157 = vrot.slane %v156, 2
      %v158 = vadd.f32 %v156, %v157
      %v159 = vrot.slane %v158, 1
      %v160 = vadd.f32 %v158, %v159
      %vm161 = vcmask 24576
      %162 = vst.msk [vmem:[%s145] sm:$0x1] %vm161, %v160
      %v163 = vmul.f32 %v149, %v149
      %v164 = vmul.f32 %v150, %v150
      %v165 = vsel %vm151, %v163, 0.0
      %v166 = vsel %vm151, %v164, 0.0
      %v167 = vadd.f32 %v165, %v166
      %v168 = vrot.slane %v167, 4
      %v169 = vadd.f32 %v167, %v168
      %v170 = vrot.slane %v169, 2
      %v171 = vadd.f32 %v169, %v170
      %v172 = vrot.slane %v171, 1
      %v173 = vadd.f32 %v171, %v172
      %174 = vst.msk [vmem:[%s148] sm:$0x1] %vm161, %v173
      %p175 = scmp.lt.s32.totalorder %s14, 1
      %s176 = scalar_select %p175, %s14, 1
      %s177 = scalar_lea.vmem %s1, %s176
      %p178 = scmp.lt.s32.totalorder %s14, 1
      %s179 = scalar_select %p178, %s14, 1
      %s180 = scalar_lea.vmem %s2, %s179
      // Predicated region
      $region25: #{resnet_mrm2_forward.14} parent=23 // pred_check
        %p181 = pneg %p58
      $region26: #{resnet_mrm2_forward.14} parent=23 // pred_check_branch
        %183 = sbr.rel (%p181) target = $region28
      $region27: #{resnet_mrm2_forward.14} parent=23 // pred_region
        _
      $region28: #{resnet_mrm2_forward.14} parent=23 // pred_fallthru
        _
      // Predicated region
      $region29: #{resnet_mrm2_forward.14} parent=23 // pred_check
        %p184 = pneg %p84
      $region30: #{resnet_mrm2_forward.14} parent=23 // pred_check_branch
        %186 = sbr.rel (%p184) target = $region32
      $region31: #{resnet_mrm2_forward.14} parent=23 // pred_region
        _
      $region32: #{resnet_mrm2_forward.14} parent=23 // pred_fallthru
        _
    $region24: #{resnet_mrm2_forward.14} parent=5 // pred_fallthru
      _
    %p187 = scmp.le.s32.totalorder 2, %s9
    // Predicated region
    $region33: #{resnet_mrm2_forward.14} parent=5 // pred_check
      %p188 = pneg %p187
    $region34: #{resnet_mrm2_forward.14} parent=5 // pred_check_branch
      %190 = sbr.rel (%p188) target = $region36
    $region35: #{resnet_mrm2_forward.14} parent=5 // pred_region
      %s191 = ssub.s32 %s9, 2
      // Predicated region
      $region37: #{resnet_mrm2_forward.14} parent=35 // pred_check
        %p192 = pneg %p64
      $region38: #{resnet_mrm2_forward.14} parent=35 // pred_check_branch
        %194 = sbr.rel (%p192) target = $region40
      $region39: #{resnet_mrm2_forward.14} parent=35 // pred_region
        %p195 = scmp.lt.s32.totalorder %s15, 1
        %s196 = scalar_select %p195, %s15, 1
        %s197 = scalar_lea.vmem %s1, %s196
      $region40: #{resnet_mrm2_forward.14} parent=35 // pred_fallthru
        _
      // Predicated region
      $region41: #{resnet_mrm2_forward.14} parent=35 // pred_check
        %p198 = pneg %p90
      $region42: #{resnet_mrm2_forward.14} parent=35 // pred_check_branch
        %200 = sbr.rel (%p198) target = $region44
      $region43: #{resnet_mrm2_forward.14} parent=35 // pred_region
        %p201 = scmp.lt.s32.totalorder %s15, 1
        %s202 = scalar_select %p201, %s15, 1
        %s203 = scalar_lea.vmem %s2, %s202
      $region44: #{resnet_mrm2_forward.14} parent=35 // pred_fallthru
        _
    $region36: #{resnet_mrm2_forward.14} parent=5 // pred_fallthru
      _
  $region6: #{resnet_mrm2_forward.14} parent=0 // loop_footer
    %s13 = sadd.s32 1, %s9
  $region7: #{resnet_mrm2_forward.14} parent=0 // loop_footer_branch
    %8 = sbr.rel target = $region3
  $region8: #{resnet_mrm2_forward.14} parent=0 // loop_exit
    _

// kernel: resnet_mrm2_forward.17
$region0: #{resnet_mrm2_forward.17}
  #allocation0 [shape = 'u32[]', space=smem, size = 0x4, offset = 0x4, fixed_abs, tag = 'smem constant byte address 0x4 - core index']
  #allocation1 [shape = 'u32[144,128]{1,0:T(1,128)}', space=vmem, size = 0x12000, scoped, tag = 'internal scratch']
  #allocation2 [shape = 'f32[16,24]{1,0:T(8,128)}', space=vmem, size = 0x2000, scoped, tag = 'scratch operand']
  %s0 = inlined_call_operand.vmem [shape: bf16[2,16,8], index: 0, kind: input, shape index: {}]
  %s1 = inlined_call_operand.vmem [shape: bf16[24,8], index: 1, kind: input, shape index: {}]
  %s2 = inlined_call_operand.vmem [shape: f32[1,8], index: 2, kind: input, shape index: {}]
  %s3 = inlined_call_operand.vmem [shape: f32[1,8], index: 3, kind: input, shape index: {}]
  %s4 = inlined_call_operand.vmem [shape: bf16[2,16,8], index: 4, kind: output, shape index: {0}]
  %s5 = inlined_call_operand.vmem [shape: f32[2,1,8], index: 5, kind: output, shape index: {1}]
  %s6 = inlined_call_operand.vmem [shape: f32[2,1,8], index: 6, kind: output, shape index: {2}]
  %7 = xla_tuple %s4, %s5, %s6
  %s8 = sld [smem:[#allocation0]]
  $region65: #{resnet_mrm2_forward.17} parent=0
    _
  %s10 = ssub.s32 1, %s8
  %s11 = scalar_select 0, %s10, %s8
  loop: start=0, step=1, limit=4
  $region2: #{resnet_mrm2_forward.17} parent=0 // loop_pre_header
    _
  $region3: #{resnet_mrm2_forward.17} parent=0 // loop_header
    %s13 = sphi 0, %s17
    %p14 = scmp.ge.s32.totalorder %s13, 4
    %s23 = sphi 0, %s25
    %s26 = sphi 0, %s23
    %s27 = sphi 0, %s26
    %s43 = sphi 0, %s27
    %s47 = sphi 0, %s47
    %s49 = sphi 0, %s47
    %s50 = sphi 0, %s49
    %s64 = sphi 0, %s50
    %s68 = sphi 0, %s68
    %s70 = sphi 0, %s68
    %s71 = sphi 0, %s70
    %s85 = sphi 0, %s71
    %s89 = sphi 0, %s89
    %s91 = sphi 0, %s89
    %s92 = sphi 0, %s91
    %s106 = sphi 0, %s92
    %s112 = sphi 0, %s114
    %s115 = sphi 0, %s112
    %s116 = sphi 0, %s115
    %s132 = sphi 0, %s116
    %s138 = sphi 0, %s140
    %s141 = sphi 0, %s138
    %s142 = sphi 0, %s141
    %s158 = sphi 0, %s142
    %s164 = sphi 0, %s166
    %s167 = sphi 0, %s164
    %s168 = sphi 0, %s167
    %s184 = sphi 0, %s168
  $region4: #{resnet_mrm2_forward.17} parent=0 // loop_header_branch
    %16 = sbr.rel (%p14) target = $region8
  $region5: #{resnet_mrm2_forward.17} parent=0 // loop_body
    %s18 = ssub.s32 %s13, 1
    %s19 = ssub.s32 %s13, 2
    %s20 = sadd.s32 %s13, 1
    %s21 = ssub.s32 %s13, %s20
    %p22 = scmp.eq.s32.totalorder %s21, 0
    %s24 = sadd.s32 %s23, 1
    %s25 = scalar_select %p22, %s23, %s24
    %p28 = pneg %p22
    %p29 = scmp.eq.s32.totalorder %s13, 1
    %p30 = por %p28, %p29
    %p31 = scmp.ne.s32.totalorder %s23, %s26
    %p32 = scmp.eq.s32.totalorder %s13, 0
    %p33 = por %p31, %p32
    %p34 = scmp.ne.s32.totalorder %s23, %s26
    %p35 = scmp.eq.s32.totalorder %s18, 1
    %p36 = por %p34, %p35
    %p37 = scmp.ne.s32.totalorder %s26, %s27
    %p38 = scmp.eq.s32.totalorder %s18, 0
    %p39 = por %p37, %p38
    %p40 = scmp.ne.s32.totalorder %s26, %s27
    %p41 = scmp.eq.s32.totalorder %s19, 1
    %p42 = por %p40, %p41
    %p44 = scmp.ne.s32.totalorder %s27, %s43
    %p45 = scmp.eq.s32.totalorder %s19, 0
    %p46 = por %p44, %p45
    %s48 = sadd.s32 %s47, 1
    %p51 = scmp.eq.s32.totalorder %s13, 1
    %p52 = scmp.ne.s32.totalorder %s47, %s49
    %p53 = scmp.eq.s32.totalorder %s13, 0
    %p54 = por %p52, %p53
    %p55 = scmp.ne.s32.totalorder %s47, %s49
    %p56 = scmp.eq.s32.totalorder %s18, 1
    %p57 = por %p55, %p56
    %p58 = scmp.ne.s32.totalorder %s49, %s50
    %p59 = scmp.eq.s32.totalorder %s18, 0
    %p60 = por %p58, %p59
    %p61 = scmp.ne.s32.totalorder %s49, %s50
    %p62 = scmp.eq.s32.totalorder %s19, 1
    %p63 = por %p61, %p62
    %p65 = scmp.ne.s32.totalorder %s50, %s64
    %p66 = scmp.eq.s32.totalorder %s19, 0
    %p67 = por %p65, %p66
    %s69 = sadd.s32 %s68, 1
    %p72 = scmp.eq.s32.totalorder %s13, 1
    %p73 = scmp.ne.s32.totalorder %s68, %s70
    %p74 = scmp.eq.s32.totalorder %s13, 0
    %p75 = por %p73, %p74
    %p76 = scmp.ne.s32.totalorder %s68, %s70
    %p77 = scmp.eq.s32.totalorder %s18, 1
    %p78 = por %p76, %p77
    %p79 = scmp.ne.s32.totalorder %s70, %s71
    %p80 = scmp.eq.s32.totalorder %s18, 0
    %p81 = por %p79, %p80
    %p82 = scmp.ne.s32.totalorder %s70, %s71
    %p83 = scmp.eq.s32.totalorder %s19, 1
    %p84 = por %p82, %p83
    %p86 = scmp.ne.s32.totalorder %s71, %s85
    %p87 = scmp.eq.s32.totalorder %s19, 0
    %p88 = por %p86, %p87
    %s90 = sadd.s32 %s89, 1
    %p93 = scmp.eq.s32.totalorder %s13, 1
    %p94 = scmp.ne.s32.totalorder %s89, %s91
    %p95 = scmp.eq.s32.totalorder %s13, 0
    %p96 = por %p94, %p95
    %p97 = scmp.ne.s32.totalorder %s89, %s91
    %p98 = scmp.eq.s32.totalorder %s18, 1
    %p99 = por %p97, %p98
    %p100 = scmp.ne.s32.totalorder %s91, %s92
    %p101 = scmp.eq.s32.totalorder %s18, 0
    %p102 = por %p100, %p101
    %p103 = scmp.ne.s32.totalorder %s91, %s92
    %p104 = scmp.eq.s32.totalorder %s19, 1
    %p105 = por %p103, %p104
    %p107 = scmp.ne.s32.totalorder %s92, %s106
    %p108 = scmp.eq.s32.totalorder %s19, 0
    %p109 = por %p107, %p108
    %s110 = ssub.s32 %s13, %s20
    %p111 = scmp.eq.s32.totalorder %s110, 0
    %s113 = sadd.s32 %s112, 1
    %s114 = scalar_select %p111, %s112, %s113
    %p117 = pneg %p111
    %p118 = scmp.eq.s32.totalorder %s13, 1
    %p119 = por %p117, %p118
    %p120 = scmp.ne.s32.totalorder %s112, %s115
    %p121 = scmp.eq.s32.totalorder %s13, 0
    %p122 = por %p120, %p121
    %p123 = scmp.ne.s32.totalorder %s112, %s115
    %p124 = scmp.eq.s32.totalorder %s18, 1
    %p125 = por %p123, %p124
    %p126 = scmp.ne.s32.totalorder %s115, %s116
    %p127 = scmp.eq.s32.totalorder %s18, 0
    %p128 = por %p126, %p127
    %p129 = scmp.ne.s32.totalorder %s115, %s116
    %p130 = scmp.eq.s32.totalorder %s19, 1
    %p131 = por %p129, %p130
    %p133 = scmp.ne.s32.totalorder %s116, %s132
    %p134 = scmp.eq.s32.totalorder %s19, 0
    %p135 = por %p133, %p134
    %s136 = ssub.s32 %s13, %s20
    %p137 = scmp.eq.s32.totalorder %s136, 0
    %s139 = sadd.s32 %s138, 1
    %s140 = scalar_select %p137, %s138, %s139
    %p143 = pneg %p137
    %p144 = scmp.eq.s32.totalorder %s13, 1
    %p145 = por %p143, %p144
    %p146 = scmp.ne.s32.totalorder %s138, %s141
    %p147 = scmp.eq.s32.totalorder %s13, 0
    %p148 = por %p146, %p147
    %p149 = scmp.ne.s32.totalorder %s138, %s141
    %p150 = scmp.eq.s32.totalorder %s18, 1
    %p151 = por %p149, %p150
    %p152 = scmp.ne.s32.totalorder %s141, %s142
    %p153 = scmp.eq.s32.totalorder %s18, 0
    %p154 = por %p152, %p153
    %p155 = scmp.ne.s32.totalorder %s141, %s142
    %p156 = scmp.eq.s32.totalorder %s19, 1
    %p157 = por %p155, %p156
    %p159 = scmp.ne.s32.totalorder %s142, %s158
    %p160 = scmp.eq.s32.totalorder %s19, 0
    %p161 = por %p159, %p160
    %s162 = ssub.s32 %s13, %s20
    %p163 = scmp.eq.s32.totalorder %s162, 0
    %s165 = sadd.s32 %s164, 1
    %s166 = scalar_select %p163, %s164, %s165
    %p169 = pneg %p163
    %p170 = scmp.eq.s32.totalorder %s13, 1
    %p171 = por %p169, %p170
    %p172 = scmp.ne.s32.totalorder %s164, %s167
    %p173 = scmp.eq.s32.totalorder %s13, 0
    %p174 = por %p172, %p173
    %p175 = scmp.ne.s32.totalorder %s164, %s167
    %p176 = scmp.eq.s32.totalorder %s18, 1
    %p177 = por %p175, %p176
    %p178 = scmp.ne.s32.totalorder %s167, %s168
    %p179 = scmp.eq.s32.totalorder %s18, 0
    %p180 = por %p178, %p179
    %p181 = scmp.ne.s32.totalorder %s167, %s168
    %p182 = scmp.eq.s32.totalorder %s19, 1
    %p183 = por %p181, %p182
    %p185 = scmp.ne.s32.totalorder %s168, %s184
    %p186 = scmp.eq.s32.totalorder %s19, 0
    %p187 = por %p185, %p186
    %p188 = scmp.le.s32.totalorder 1, %s13
    %p189 = scmp.lt.s32.totalorder %s13, 3
    %p190 = pnand %p188, %p189
    %p191 = pneg %p190
    // Predicated region
    $region9: #{resnet_mrm2_forward.17} parent=5 // pred_check
      _
    $region10: #{resnet_mrm2_forward.17} parent=5 // pred_check_branch
      %193 = sbr.rel (%p190) target = $region12
    $region11: #{resnet_mrm2_forward.17} parent=5 // pred_region
      %s194 = ssub.s32 %s13, 1
      // Predicated region
      $region13: #{resnet_mrm2_forward.17} parent=11 // pred_check
        %p195 = pneg %p60
      $region14: #{resnet_mrm2_forward.17} parent=11 // pred_check_branch
        %197 = sbr.rel (%p195) target = $region16
      $region15: #{resnet_mrm2_forward.17} parent=11 // pred_region
        _
      $region16: #{resnet_mrm2_forward.17} parent=11 // pred_fallthru
        _
      // Predicated region
      $region17: #{resnet_mrm2_forward.17} parent=11 // pred_check
        %p198 = pneg %p81
      $region18: #{resnet_mrm2_forward.17} parent=11 // pred_check_branch
        %200 = sbr.rel (%p198) target = $region20
      $region19: #{resnet_mrm2_forward.17} parent=11 // pred_region
        _
      $region20: #{resnet_mrm2_forward.17} parent=11 // pred_fallthru
        _
      // Predicated region
      $region21: #{resnet_mrm2_forward.17} parent=11 // pred_check
        %p201 = pneg %p102
      $region22: #{resnet_mrm2_forward.17} parent=11 // pred_check_branch
        %203 = sbr.rel (%p201) target = $region24
      $region23: #{resnet_mrm2_forward.17} parent=11 // pred_region
        _
      $region24: #{resnet_mrm2_forward.17} parent=11 // pred_fallthru
        _
    $region12: #{resnet_mrm2_forward.17} parent=5 // pred_fallthru
      _
    %p204 = scmp.lt.s32.totalorder %s13, 2
    // Predicated region
    $region25: #{resnet_mrm2_forward.17} parent=5 // pred_check
      %p205 = pneg %p204
    $region26: #{resnet_mrm2_forward.17} parent=5 // pred_check_branch
      %207 = sbr.rel (%p205) target = $region28
    $region27: #{resnet_mrm2_forward.17} parent=5 // pred_region
      // Predicated region
      $region29: #{resnet_mrm2_forward.17} parent=27 // pred_check
        %p208 = pneg %p33
      $region30: #{resnet_mrm2_forward.17} parent=27 // pred_check_branch
        %210 = sbr.rel (%p208) target = $region32
      $region31: #{resnet_mrm2_forward.17} parent=27 // pred_region
        %p211 = scmp.lt.s32.totalorder %s13, 1
        %s212 = scalar_select %p211, %s13, 1
        %s213 = smul.addr %s212, 2
        %s214 = smul.addr %s213, 4
        %s215 = scalar_lea.vmem %s0, %s214
      $region32: #{resnet_mrm2_forward.17} parent=27 // pred_fallthru
        _
    $region28: #{resnet_mrm2_forward.17} parent=5 // pred_fallthru
      _
    %p216 = scmp.le.s32.totalorder 1, %s13
    %p217 = scmp.lt.s32.totalorder %s13, 3
    %p218 = pnand %p216, %p217
    %p219 = pneg %p218
    // Predicated region
    $region33: #{resnet_mrm2_forward.17} parent=5 // pred_check
      _
    $region34: #{resnet_mrm2_forward.17} parent=5 // pred_check_branch
      %221 = sbr.rel (%p218) target = $region36
    $region35: #{resnet_mrm2_forward.17} parent=5 // pred_region
      %s222 = ssub.s32 %s13, 1
      %p223 = scmp.lt.s32.totalorder %s18, 1
      %s224 = scalar_select %p223, %s18, 1
      %s225 = smul.addr %s224, 2
      %s226 = smul.addr %s225, 4
      %s227 = scalar_lea.vmem %s0, %s226
      %p228 = pneg %p39
      %p229 = pneg %p36
      %p230 = pneg %p60
      %p231 = pneg %p57
      %p232 = pneg %p81
      %p233 = pneg %p78
      %p234 = pneg %p102
      %p235 = pneg %p99
      %p236 = pneg %p128
      %p237 = pneg %p125
      %p238 = scmp.lt.s32.totalorder %s18, 1
      %s239 = scalar_select %p238, %s18, 1
      %s240 = smul.addr %s239, 2
      %s241 = smul.addr %s240, 4
      %s242 = scalar_lea.vmem %s4, %s241
      %p243 = pneg %p154
      %p244 = pneg %p151
      %p245 = scmp.lt.s32.totalorder %s18, 1
      %s246 = scalar_select %p245, %s18, 1
      %s247 = scalar_lea.vmem %s5, %s246
      %p248 = pneg %p180
      %p249 = pneg %p177
      %p250 = scmp.lt.s32.totalorder %s18, 1
      %s251 = scalar_select %p250, %s18, 1
      %s252 = scalar_lea.vmem %s6, %s251
      %p253 = scmp.lt.s32.totalorder %s18, 1
      %s254 = scalar_select %p253, %s18, 1
      %s255 = smul.addr %s254, 2
      %s256 = smul.addr %s255, 4
      %s257 = scalar_lea.vmem %s0, %s256
      %p258 = scmp.lt.s32.totalorder %s18, 1
      %s259 = scalar_select %p258, %s18, 1
      %s260 = smul.addr %s259, 2
      %s261 = smul.addr %s260, 4
      %s262 = scalar_lea.vmem %s4, %s261
      %p263 = scmp.lt.s32.totalorder %s18, 1
      %s264 = scalar_select %p263, %s18, 1
      %s265 = scalar_lea.vmem %s5, %s264
      %p266 = scmp.lt.s32.totalorder %s18, 1
      %s267 = scalar_select %p266, %s18, 1
      %s268 = scalar_lea.vmem %s6, %s267
      %v270 = vld [vmem:[%s257] sm:$0xf]
      %v271 = vld [vmem:[%s257 + $0x4] sm:$0xf]
      %v272 = vunpack.c.l.bf16 %v270
      %v273 = vunpack.c.l.bf16 %v271
      %v274 = vld [vmem:[%s2] sm:$0x1]
      %v276 = vlaneseq
      %v277 = vshrl.u32 %v276, 7
      %v278 = vsub.s32 0, %v277
      %v279 = vrot.slane %v274, %v278
      %v281 = vmul.f32 %v272, %v279
      %v282 = vmul.f32 %v273, %v279
      %v283 = vld [vmem:[%s3] sm:$0x1]
      %v285 = vlaneseq
      %v286 = vshrl.u32 %v285, 7
      %v287 = vsub.s32 0, %v286
      %v288 = vrot.slane %v283, %v287
      %v290 = vadd.f32 %v281, %v288
      %v291 = vadd.f32 %v282, %v288
      %v292 = vmax.f32 %v290, 0.0
      %v293 = vmax.f32 %v291, 0.0
      %vm294 = vcmask 57344
      %295 = vst.msk [vmem:[#allocation2] sm:$0x1] %vm294, 0.0
      %vm296 = vcmask 64512
      %297 = vst.msk [vmem:[#allocation2 + $0x1] sm:$0xff] %vm296, %v292
      %vm298 = vcmask 63488
      %299 = vst.msk [vmem:[#allocation2 + $0x9] sm:$0x7f] %vm298, %v293
      %302 = vrot.lane.b32.xlu0 %v292, 8
      %v303 = vpop.permute.xlu0 %302
      %304 = vrot.lane.b32.xlu0 %v293, 8
      %v305 = vpop.permute.xlu0 %304
      %vm308 = vcmask 130112
      %309 = vst.msk [vmem:[#allocation2] sm:$0xff] %vm308, %v303
      %310 = vst.msk [vmem:[#allocation2 + $0x8] sm:$0xff] %vm308, %v305
      %vm311 = vcmask 188544
      %312 = vst.msk [vmem:[#allocation2 + $0xf] sm:$0x1] %vm311, 0.0
      %313 = vrot.lane.b32.xlu0 %v292, 16
      %v314 = vpop.permute.xlu0 %313
      %315 = vrot.lane.b32.xlu0 %v293, 16
      %v316 = vpop.permute.xlu0 %315
      %vm319 = vcmask 195713
      %320 = vst.msk [vmem:[#allocation2 - $0x1] sm:$0xfe] %vm319, %v314
      %vm321 = vcmask 195712
      %322 = vst.msk [vmem:[#allocation2 + $0x7] sm:$0xff] %vm321, %v316
      %v323 = vld [vmem:[#allocation2] sm:$0xff]
      %v324 = vld [vmem:[#allocation2 + $0x8] sm:$0xff]
      %v325 = vpack.c.bf16 %v324, %v323
      %v326 = vld [vmem:[%s1] sm:$0xf]
      %v327 = vld [vmem:[%s1 + $0x4] sm:$0xf]
      %v328 = vld [vmem:[%s1 + $0x8] sm:$0xf]
      %v332 = vunpack.c.l.b16 %v326
      %v333 = vunpack.c.l.b16 %v327
      %v334 = vunpack.c.l.b16 %v328
      %v335 = vpack.c.b16 %v333, %v332
      %v336 = vpack.c.b16 %v334, %v334
      %vm338 = vcmask 195584
      %v340 = vsel %vm338, %v325, 0
      %vm342 = vcmask 1043456
      %v344 = vsel %vm342, %v336, 0
      %346 = vmatprep.subr.bf16.mxu0 0
      %347 = vmatpush1.bf16.msra.mxu0 %v335
      %348 = vmatprep.subr.bf16.mxu0 0
      %349 = vmatpush1.bf16.msra.mxu0 %v344
      %350 = vmatprep.subr.bf16.mxu0 0
      %351 = vmatpush1.bf16.msra.mxu0 0
      %352 = vmatprep.subr.bf16.mxu0 0
      %353 = vmatpush1.bf16.msra.mxu0 0
      %354 = vmatprep.subr.bf16.mxu0 0
      %355 = vmatpush1.bf16.msra.mxu0 0
      %356 = vmatprep.subr.bf16.mxu0 0
      %357 = vmatpush1.bf16.msra.mxu0 0
      %358 = vmatprep.subr.bf16.mxu0 0
      %359 = vmatpush1.bf16.msra.mxu0 0
      %360 = vmatprep.subr.bf16.mxu0 0
      %361 = vmatpush1.bf16.msra.mxu0 0
      %362 = vmatprep.subr.bf16.mxu0 0
      %363 = vmatpush1.bf16.msra.mxu0 0
      %364 = vmatprep.subr.bf16.mxu0 0
      %365 = vmatpush1.bf16.msra.mxu0 0
      %366 = vmatprep.subr.bf16.mxu0 0
      %367 = vmatpush1.bf16.msra.mxu0 0
      %368 = vmatprep.subr.bf16.mxu0 0
      %369 = vmatpush1.bf16.msra.mxu0 0
      %370 = vmatprep.subr.bf16.mxu0 0
      %371 = vmatpush1.bf16.msra.mxu0 0
      %372 = vmatprep.subr.bf16.mxu0 0
      %373 = vmatpush1.bf16.msra.mxu0 0
      %374 = vmatprep.subr.bf16.mxu0 0
      %375 = vmatpush1.bf16.msra.mxu0 0
      %376 = vmatprep.subr.bf16.mxu0 0
      %377 = vmatpush1.bf16.msra.mxu0 0
      %378 = vmatprep.mubr.bf16.mxu0 0
      %379 = vmatmul.mubr.bf16.gmra.mrb[0].mxu0 %v340
      %v380 = vpop.f32.mrb[0].mxu0
      %v381 = vadd.f32 0.0, %v380
      %v382 = vpop.f32.mrb[0].mxu0
      %v383 = vpop.f32.mrb[0].mxu0
      %v384 = vadd.f32 0.0, %v383
      %v385 = vpop.f32.mrb[0].mxu0
      %386 = vdwg.mxu0
      %v387 = vpack.c.bf16 %v384, %v381
      %v389 = vunpack.c.l.b16 %v387
      %v390 = vunpack.c.h.b16 %v387
      %v391 = vpack.c.b16 %v389, %v389
      %v392 = vpack.c.b16 %v390, %v390
      %vm395 = vcmask 60416
      %396 = vst.msk [vmem:[%s262] sm:$0xf] %vm395, %v391
      %397 = vst.msk [vmem:[%s262 + $0x4] sm:$0xf] %vm395, %v392
      %v398 = vsel %vm296, %v381, 0.0
      %v399 = vsel %vm296, %v384, 0.0
      %v400 = vadd.f32 %v398, %v399
      %v401 = vrot.slane %v400, 4
      %v402 = vadd.f32 %v400, %v401
      %v403 = vrot.slane %v402, 2
      %v404 = vadd.f32 %v402, %v403
      %v405 = vrot.slane %v404, 1
      %v406 = vadd.f32 %v404, %v405
      %407 = vst.msk [vmem:[%s265] sm:$0x1] %vm294, %v406
      %v408 = vmul.f32 %v381, %v381
      %v409 = vmul.f32 %v384, %v384
      %v410 = vsel %vm296, %v408, 0.0
      %v411 = vsel %vm296, %v409, 0.0
      %v412 = vadd.f32 %v410, %v411
      %v413 = vrot.slane %v412, 4
      %v414 = vadd.f32 %v412, %v413
      %v415 = vrot.slane %v414, 2
      %v416 = vadd.f32 %v414, %v415
      %v417 = vrot.slane %v416, 1
      %v418 = vadd.f32 %v416, %v417
      %419 = vst.msk [vmem:[%s268] sm:$0x1] %vm294, %v418
      %p420 = scmp.lt.s32.totalorder %s18, 1
      %s421 = scalar_select %p420, %s18, 1
      %s422 = smul.addr %s421, 2
      %s423 = smul.addr %s422, 4
      %s424 = scalar_lea.vmem %s4, %s423
      %p425 = scmp.lt.s32.totalorder %s18, 1
      %s426 = scalar_select %p425, %s18, 1
      %s427 = scalar_lea.vmem %s5, %s426
      %p428 = scmp.lt.s32.totalorder %s18, 1
      %s429 = scalar_select %p428, %s18, 1
      %s430 = scalar_lea.vmem %s6, %s429
      // Predicated region
      $region37: #{resnet_mrm2_forward.17} parent=35 // pred_check
        %p431 = pneg %p125
      $region38: #{resnet_mrm2_forward.17} parent=35 // pred_check_branch
        %433 = sbr.rel (%p431) target = $region40
      $region39: #{resnet_mrm2_forward.17} parent=35 // pred_region
        _
      $region40: #{resnet_mrm2_forward.17} parent=35 // pred_fallthru
        _
      // Predicated region
      $region41: #{resnet_mrm2_forward.17} parent=35 // pred_check
        %p434 = pneg %p151
      $region42: #{resnet_mrm2_forward.17} parent=35 // pred_check_branch
        %436 = sbr.rel (%p434) target = $region44
      $region43: #{resnet_mrm2_forward.17} parent=35 // pred_region
        _
      $region44: #{resnet_mrm2_forward.17} parent=35 // pred_fallthru
        _
      // Predicated region
      $region45: #{resnet_mrm2_forward.17} parent=35 // pred_check
        %p437 = pneg %p177
      $region46: #{resnet_mrm2_forward.17} parent=35 // pred_check_branch
        %439 = sbr.rel (%p437) target = $region48
      $region47: #{resnet_mrm2_forward.17} parent=35 // pred_region
        _
      $region48: #{resnet_mrm2_forward.17} parent=35 // pred_fallthru
        _
    $region36: #{resnet_mrm2_forward.17} parent=5 // pred_fallthru
      _
    %p440 = scmp.le.s32.totalorder 2, %s13
    // Predicated region
    $region49: #{resnet_mrm2_forward.17} parent=5 // pred_check
      %p441 = pneg %p440
    $region50: #{resnet_mrm2_forward.17} parent=5 // pred_check_branch
      %443 = sbr.rel (%p441) target = $region52
    $region51: #{resnet_mrm2_forward.17} parent=5 // pred_region
      %s444 = ssub.s32 %s13, 2
      // Predicated region
      $region53: #{resnet_mrm2_forward.17} parent=51 // pred_check
        %p445 = pneg %p131
      $region54: #{resnet_mrm2_forward.17} parent=51 // pred_check_branch
        %447 = sbr.rel (%p445) target = $region56
      $region55: #{resnet_mrm2_forward.17} parent=51 // pred_region
        %p448 = scmp.lt.s32.totalorder %s19, 1
        %s449 = scalar_select %p448, %s19, 1
        %s450 = smul.addr %s449, 2
        %s451 = smul.addr %s450, 4
        %s452 = scalar_lea.vmem %s4, %s451
      $region56: #{resnet_mrm2_forward.17} parent=51 // pred_fallthru
        _
      // Predicated region
      $region57: #{resnet_mrm2_forward.17} parent=51 // pred_check
        %p453 = pneg %p157
      $region58: #{resnet_mrm2_forward.17} parent=51 // pred_check_branch
        %455 = sbr.rel (%p453) target = $region60
      $region59: #{resnet_mrm2_forward.17} parent=51 // pred_region
        %p456 = scmp.lt.s32.totalorder %s19, 1
        %s457 = scalar_select %p456, %s19, 1
        %s458 = scalar_lea.vmem %s5, %s457
      $region60: #{resnet_mrm2_forward.17} parent=51 // pred_fallthru
        _
      // Predicated region
      $region61: #{resnet_mrm2_forward.17} parent=51 // pred_check
        %p459 = pneg %p183
      $region62: #{resnet_mrm2_forward.17} parent=51 // pred_check_branch
        %461 = sbr.rel (%p459) target = $region64
      $region63: #{resnet_mrm2_forward.17} parent=51 // pred_region
        %p462 = scmp.lt.s32.totalorder %s19, 1
        %s463 = scalar_select %p462, %s19, 1
        %s464 = scalar_lea.vmem %s6, %s463
      $region64: #{resnet_mrm2_forward.17} parent=51 // pred_fallthru
        _
    $region52: #{resnet_mrm2_forward.17} parent=5 // pred_fallthru
      _
  $region6: #{resnet_mrm2_forward.17} parent=0 // loop_footer
    %s17 = sadd.s32 1, %s13
  $region7: #{resnet_mrm2_forward.17} parent=0 // loop_footer_branch
    %12 = sbr.rel target = $region3
  $region8: #{resnet_mrm2_forward.17} parent=0 // loop_exit
    _

// kernel: resnet_mrm2_forward.18
$region0: #{resnet_mrm2_forward.18}
  #allocation0 [shape = 'u32[]', space=smem, size = 0x4, offset = 0x4, fixed_abs, tag = 'smem constant byte address 0x4 - core index']
  #allocation1 [shape = 'u32[144,128]{1,0:T(1,128)}', space=vmem, size = 0x12000, scoped, tag = 'internal scratch']
  %s0 = inlined_call_operand.vmem [shape: bf16[2,16,8], index: 0, kind: input, shape index: {}]
  %s1 = inlined_call_operand.vmem [shape: bf16[2,16,8], index: 1, kind: input, shape index: {}]
  %s2 = inlined_call_operand.vmem [shape: f32[1,8], index: 2, kind: input, shape index: {}]
  %s3 = inlined_call_operand.vmem [shape: f32[1,8], index: 3, kind: input, shape index: {}]
  %s4 = inlined_call_operand.vmem [shape: f32[1,8], index: 4, kind: input, shape index: {}]
  %s5 = inlined_call_operand.vmem [shape: f32[1,8], index: 5, kind: input, shape index: {}]
  %s6 = inlined_call_operand.vmem [shape: bf16[2,16,8], index: 6, kind: output, shape index: {}]
  %s7 = sld [smem:[#allocation0]]
  $region57: #{resnet_mrm2_forward.18} parent=0
    _
  %s9 = ssub.s32 1, %s7
  %s10 = scalar_select 0, %s9, %s7
  loop: start=0, step=1, limit=4
  $region2: #{resnet_mrm2_forward.18} parent=0 // loop_pre_header
    _
  $region3: #{resnet_mrm2_forward.18} parent=0 // loop_header
    %s12 = sphi 0, %s16
    %p13 = scmp.ge.s32.totalorder %s12, 4
    %s22 = sphi 0, %s24
    %s25 = sphi 0, %s22
    %s26 = sphi 0, %s25
    %s42 = sphi 0, %s26
    %s48 = sphi 0, %s50
    %s51 = sphi 0, %s48
    %s52 = sphi 0, %s51
    %s68 = sphi 0, %s52
    %s72 = sphi 0, %s72
    %s74 = sphi 0, %s72
    %s75 = sphi 0, %s74
    %s89 = sphi 0, %s75
    %s93 = sphi 0, %s93
    %s95 = sphi 0, %s93
    %s96 = sphi 0, %s95
    %s110 = sphi 0, %s96
    %s114 = sphi 0, %s114
    %s116 = sphi 0, %s114
    %s117 = sphi 0, %s116
    %s131 = sphi 0, %s117
    %s135 = sphi 0, %s135
    %s137 = sphi 0, %s135
    %s138 = sphi 0, %s137
    %s152 = sphi 0, %s138
    %s158 = sphi 0, %s160
    %s161 = sphi 0, %s158
    %s162 = sphi 0, %s161
    %s178 = sphi 0, %s162
  $region4: #{resnet_mrm2_forward.18} parent=0 // loop_header_branch
    %15 = sbr.rel (%p13) target = $region8
  $region5: #{resnet_mrm2_forward.18} parent=0 // loop_body
    %s17 = ssub.s32 %s12, 1
    %s18 = ssub.s32 %s12, 2
    %s19 = sadd.s32 %s12, 1
    %s20 = ssub.s32 %s12, %s19
    %p21 = scmp.eq.s32.totalorder %s20, 0
    %s23 = sadd.s32 %s22, 1
    %s24 = scalar_select %p21, %s22, %s23
    %p27 = pneg %p21
    %p28 = scmp.eq.s32.totalorder %s12, 1
    %p29 = por %p27, %p28
    %p30 = scmp.ne.s32.totalorder %s22, %s25
    %p31 = scmp.eq.s32.totalorder %s12, 0
    %p32 = por %p30, %p31
    %p33 = scmp.ne.s32.totalorder %s22, %s25
    %p34 = scmp.eq.s32.totalorder %s17, 1
    %p35 = por %p33, %p34
    %p36 = scmp.ne.s32.totalorder %s25, %s26
    %p37 = scmp.eq.s32.totalorder %s17, 0
    %p38 = por %p36, %p37
    %p39 = scmp.ne.s32.totalorder %s25, %s26
    %p40 = scmp.eq.s32.totalorder %s18, 1
    %p41 = por %p39, %p40
    %p43 = scmp.ne.s32.totalorder %s26, %s42
    %p44 = scmp.eq.s32.totalorder %s18, 0
    %p45 = por %p43, %p44
    %s46 = ssub.s32 %s12, %s19
    %p47 = scmp.eq.s32.totalorder %s46, 0
    %s49 = sadd.s32 %s48, 1
    %s50 = scalar_select %p47, %s48, %s49
    %p53 = pneg %p47
    %p54 = scmp.eq.s32.totalorder %s12, 1
    %p55 = por %p53, %p54
    %p56 = scmp.ne.s32.totalorder %s48, %s51
    %p57 = scmp.eq.s32.totalorder %s12, 0
    %p58 = por %p56, %p57
    %p59 = scmp.ne.s32.totalorder %s48, %s51
    %p60 = scmp.eq.s32.totalorder %s17, 1
    %p61 = por %p59, %p60
    %p62 = scmp.ne.s32.totalorder %s51, %s52
    %p63 = scmp.eq.s32.totalorder %s17, 0
    %p64 = por %p62, %p63
    %p65 = scmp.ne.s32.totalorder %s51, %s52
    %p66 = scmp.eq.s32.totalorder %s18, 1
    %p67 = por %p65, %p66
    %p69 = scmp.ne.s32.totalorder %s52, %s68
    %p70 = scmp.eq.s32.totalorder %s18, 0
    %p71 = por %p69, %p70
    %s73 = sadd.s32 %s72, 1
    %p76 = scmp.eq.s32.totalorder %s12, 1
    %p77 = scmp.ne.s32.totalorder %s72, %s74
    %p78 = scmp.eq.s32.totalorder %s12, 0
    %p79 = por %p77, %p78
    %p80 = scmp.ne.s32.totalorder %s72, %s74
    %p81 = scmp.eq.s32.totalorder %s17, 1
    %p82 = por %p80, %p81
    %p83 = scmp.ne.s32.totalorder %s74, %s75
    %p84 = scmp.eq.s32.totalorder %s17, 0
    %p85 = por %p83, %p84
    %p86 = scmp.ne.s32.totalorder %s74, %s75
    %p87 = scmp.eq.s32.totalorder %s18, 1
    %p88 = por %p86, %p87
    %p90 = scmp.ne.s32.totalorder %s75, %s89
    %p91 = scmp.eq.s32.totalorder %s18, 0
    %p92 = por %p90, %p91
    %s94 = sadd.s32 %s93, 1
    %p97 = scmp.eq.s32.totalorder %s12, 1
    %p98 = scmp.ne.s32.totalorder %s93, %s95
    %p99 = scmp.eq.s32.totalorder %s12, 0
    %p100 = por %p98, %p99
    %p101 = scmp.ne.s32.totalorder %s93, %s95
    %p102 = scmp.eq.s32.totalorder %s17, 1
    %p103 = por %p101, %p102
    %p104 = scmp.ne.s32.totalorder %s95, %s96
    %p105 = scmp.eq.s32.totalorder %s17, 0
    %p106 = por %p104, %p105
    %p107 = scmp.ne.s32.totalorder %s95, %s96
    %p108 = scmp.eq.s32.totalorder %s18, 1
    %p109 = por %p107, %p108
    %p111 = scmp.ne.s32.totalorder %s96, %s110
    %p112 = scmp.eq.s32.totalorder %s18, 0
    %p113 = por %p111, %p112
    %s115 = sadd.s32 %s114, 1
    %p118 = scmp.eq.s32.totalorder %s12, 1
    %p119 = scmp.ne.s32.totalorder %s114, %s116
    %p120 = scmp.eq.s32.totalorder %s12, 0
    %p121 = por %p119, %p120
    %p122 = scmp.ne.s32.totalorder %s114, %s116
    %p123 = scmp.eq.s32.totalorder %s17, 1
    %p124 = por %p122, %p123
    %p125 = scmp.ne.s32.totalorder %s116, %s117
    %p126 = scmp.eq.s32.totalorder %s17, 0
    %p127 = por %p125, %p126
    %p128 = scmp.ne.s32.totalorder %s116, %s117
    %p129 = scmp.eq.s32.totalorder %s18, 1
    %p130 = por %p128, %p129
    %p132 = scmp.ne.s32.totalorder %s117, %s131
    %p133 = scmp.eq.s32.totalorder %s18, 0
    %p134 = por %p132, %p133
    %s136 = sadd.s32 %s135, 1
    %p139 = scmp.eq.s32.totalorder %s12, 1
    %p140 = scmp.ne.s32.totalorder %s135, %s137
    %p141 = scmp.eq.s32.totalorder %s12, 0
    %p142 = por %p140, %p141
    %p143 = scmp.ne.s32.totalorder %s135, %s137
    %p144 = scmp.eq.s32.totalorder %s17, 1
    %p145 = por %p143, %p144
    %p146 = scmp.ne.s32.totalorder %s137, %s138
    %p147 = scmp.eq.s32.totalorder %s17, 0
    %p148 = por %p146, %p147
    %p149 = scmp.ne.s32.totalorder %s137, %s138
    %p150 = scmp.eq.s32.totalorder %s18, 1
    %p151 = por %p149, %p150
    %p153 = scmp.ne.s32.totalorder %s138, %s152
    %p154 = scmp.eq.s32.totalorder %s18, 0
    %p155 = por %p153, %p154
    %s156 = ssub.s32 %s12, %s19
    %p157 = scmp.eq.s32.totalorder %s156, 0
    %s159 = sadd.s32 %s158, 1
    %s160 = scalar_select %p157, %s158, %s159
    %p163 = pneg %p157
    %p164 = scmp.eq.s32.totalorder %s12, 1
    %p165 = por %p163, %p164
    %p166 = scmp.ne.s32.totalorder %s158, %s161
    %p167 = scmp.eq.s32.totalorder %s12, 0
    %p168 = por %p166, %p167
    %p169 = scmp.ne.s32.totalorder %s158, %s161
    %p170 = scmp.eq.s32.totalorder %s17, 1
    %p171 = por %p169, %p170
    %p172 = scmp.ne.s32.totalorder %s161, %s162
    %p173 = scmp.eq.s32.totalorder %s17, 0
    %p174 = por %p172, %p173
    %p175 = scmp.ne.s32.totalorder %s161, %s162
    %p176 = scmp.eq.s32.totalorder %s18, 1
    %p177 = por %p175, %p176
    %p179 = scmp.ne.s32.totalorder %s162, %s178
    %p180 = scmp.eq.s32.totalorder %s18, 0
    %p181 = por %p179, %p180
    %p182 = scmp.le.s32.totalorder 1, %s12
    %p183 = scmp.lt.s32.totalorder %s12, 3
    %p184 = pnand %p182, %p183
    %p185 = pneg %p184
    // Predicated region
    $region9: #{resnet_mrm2_forward.18} parent=5 // pred_check
      _
    $region10: #{resnet_mrm2_forward.18} parent=5 // pred_check_branch
      %187 = sbr.rel (%p184) target = $region12
    $region11: #{resnet_mrm2_forward.18} parent=5 // pred_region
      %s188 = ssub.s32 %s12, 1
      // Predicated region
      $region13: #{resnet_mrm2_forward.18} parent=11 // pred_check
        %p189 = pneg %p85
      $region14: #{resnet_mrm2_forward.18} parent=11 // pred_check_branch
        %191 = sbr.rel (%p189) target = $region16
      $region15: #{resnet_mrm2_forward.18} parent=11 // pred_region
        _
      $region16: #{resnet_mrm2_forward.18} parent=11 // pred_fallthru
        _
      // Predicated region
      $region17: #{resnet_mrm2_forward.18} parent=11 // pred_check
        %p192 = pneg %p106
      $region18: #{resnet_mrm2_forward.18} parent=11 // pred_check_branch
        %194 = sbr.rel (%p192) target = $region20
      $region19: #{resnet_mrm2_forward.18} parent=11 // pred_region
        _
      $region20: #{resnet_mrm2_forward.18} parent=11 // pred_fallthru
        _
      // Predicated region
      $region21: #{resnet_mrm2_forward.18} parent=11 // pred_check
        %p195 = pneg %p127
      $region22: #{resnet_mrm2_forward.18} parent=11 // pred_check_branch
        %197 = sbr.rel (%p195) target = $region24
      $region23: #{resnet_mrm2_forward.18} parent=11 // pred_region
        _
      $region24: #{resnet_mrm2_forward.18} parent=11 // pred_fallthru
        _
      // Predicated region
      $region25: #{resnet_mrm2_forward.18} parent=11 // pred_check
        %p198 = pneg %p148
      $region26: #{resnet_mrm2_forward.18} parent=11 // pred_check_branch
        %200 = sbr.rel (%p198) target = $region28
      $region27: #{resnet_mrm2_forward.18} parent=11 // pred_region
        _
      $region28: #{resnet_mrm2_forward.18} parent=11 // pred_fallthru
        _
    $region12: #{resnet_mrm2_forward.18} parent=5 // pred_fallthru
      _
    %p201 = scmp.lt.s32.totalorder %s12, 2
    // Predicated region
    $region29: #{resnet_mrm2_forward.18} parent=5 // pred_check
      %p202 = pneg %p201
    $region30: #{resnet_mrm2_forward.18} parent=5 // pred_check_branch
      %204 = sbr.rel (%p202) target = $region32
    $region31: #{resnet_mrm2_forward.18} parent=5 // pred_region
      // Predicated region
      $region33: #{resnet_mrm2_forward.18} parent=31 // pred_check
        %p205 = pneg %p32
      $region34: #{resnet_mrm2_forward.18} parent=31 // pred_check_branch
        %207 = sbr.rel (%p205) target = $region36
      $region35: #{resnet_mrm2_forward.18} parent=31 // pred_region
        %p208 = scmp.lt.s32.totalorder %s12, 1
        %s209 = scalar_select %p208, %s12, 1
        %s210 = smul.addr %s209, 2
        %s211 = smul.addr %s210, 4
        %s212 = scalar_lea.vmem %s0, %s211
      $region36: #{resnet_mrm2_forward.18} parent=31 // pred_fallthru
        _
      // Predicated region
      $region37: #{resnet_mrm2_forward.18} parent=31 // pred_check
        %p213 = pneg %p58
      $region38: #{resnet_mrm2_forward.18} parent=31 // pred_check_branch
        %215 = sbr.rel (%p213) target = $region40
      $region39: #{resnet_mrm2_forward.18} parent=31 // pred_region
        %p216 = scmp.lt.s32.totalorder %s12, 1
        %s217 = scalar_select %p216, %s12, 1
        %s218 = smul.addr %s217, 2
        %s219 = smul.addr %s218, 4
        %s220 = scalar_lea.vmem %s1, %s219
      $region40: #{resnet_mrm2_forward.18} parent=31 // pred_fallthru
        _
    $region32: #{resnet_mrm2_forward.18} parent=5 // pred_fallthru
      _
    %p221 = scmp.le.s32.totalorder 1, %s12
    %p222 = scmp.lt.s32.totalorder %s12, 3
    %p223 = pnand %p221, %p222
    %p224 = pneg %p223
    // Predicated region
    $region41: #{resnet_mrm2_forward.18} parent=5 // pred_check
      _
    $region42: #{resnet_mrm2_forward.18} parent=5 // pred_check_branch
      %226 = sbr.rel (%p223) target = $region44
    $region43: #{resnet_mrm2_forward.18} parent=5 // pred_region
      %s227 = ssub.s32 %s12, 1
      %p228 = scmp.lt.s32.totalorder %s17, 1
      %s229 = scalar_select %p228, %s17, 1
      %s230 = smul.addr %s229, 2
      %s231 = smul.addr %s230, 4
      %s232 = scalar_lea.vmem %s0, %s231
      %p233 = pneg %p38
      %p234 = pneg %p35
      %p235 = scmp.lt.s32.totalorder %s17, 1
      %s236 = scalar_select %p235, %s17, 1
      %s237 = smul.addr %s236, 2
      %s238 = smul.addr %s237, 4
      %s239 = scalar_lea.vmem %s1, %s238
      %p240 = pneg %p64
      %p241 = pneg %p61
      %p242 = pneg %p85
      %p243 = pneg %p82
      %p244 = pneg %p106
      %p245 = pneg %p103
      %p246 = pneg %p127
      %p247 = pneg %p124
      %p248 = pneg %p148
      %p249 = pneg %p145
      %p250 = pneg %p174
      %p251 = pneg %p171
      %p252 = scmp.lt.s32.totalorder %s17, 1
      %s253 = scalar_select %p252, %s17, 1
      %s254 = smul.addr %s253, 2
      %s255 = smul.addr %s254, 4
      %s256 = scalar_lea.vmem %s6, %s255
      %p257 = scmp.lt.s32.totalorder %s17, 1
      %s258 = scalar_select %p257, %s17, 1
      %s259 = smul.addr %s258, 2
      %s260 = smul.addr %s259, 4
      %s261 = scalar_lea.vmem %s0, %s260
      %p262 = scmp.lt.s32.totalorder %s17, 1
      %s263 = scalar_select %p262, %s17, 1
      %s264 = smul.addr %s263, 2
      %s265 = smul.addr %s264, 4
      %s266 = scalar_lea.vmem %s1, %s265
      %p267 = scmp.lt.s32.totalorder %s17, 1
      %s268 = scalar_select %p267, %s17, 1
      %s269 = smul.addr %s268, 2
      %s270 = smul.addr %s269, 4
      %s271 = scalar_lea.vmem %s6, %s270
      %v272 = vld [vmem:[%s261] sm:$0xf]
      %v273 = vld [vmem:[%s261 + $0x4] sm:$0xf]
      %v274 = vunpack.c.l.bf16 %v272
      %v275 = vunpack.c.l.bf16 %v273
      %v276 = vld [vmem:[%s2] sm:$0x1]
      %v278 = vlaneseq
      %v279 = vshrl.u32 %v278, 7
      %v280 = vsub.s32 0, %v279
      %v281 = vrot.slane %v276, %v280
      %v283 = vmul.f32 %v274, %v281
      %v284 = vmul.f32 %v275, %v281
      %v285 = vld [vmem:[%s3] sm:$0x1]
      %v287 = vlaneseq
      %v288 = vshrl.u32 %v287, 7
      %v289 = vsub.s32 0, %v288
      %v290 = vrot.slane %v285, %v289
      %v292 = vadd.f32 %v283, %v290
      %v293 = vadd.f32 %v284, %v290
      %v294 = vld [vmem:[%s266] sm:$0xf]
      %v295 = vld [vmem:[%s266 + $0x4] sm:$0xf]
      %v296 = vunpack.c.l.bf16 %v294
      %v297 = vunpack.c.l.bf16 %v295
      %v298 = vld [vmem:[%s4] sm:$0x1]
      %v300 = vlaneseq
      %v301 = vshrl.u32 %v300, 7
      %v302 = vsub.s32 0, %v301
      %v303 = vrot.slane %v298, %v302
      %v305 = vmul.f32 %v296, %v303
      %v306 = vmul.f32 %v297, %v303
      %v307 = vadd.f32 %v292, %v305
      %v308 = vadd.f32 %v293, %v306
      %v309 = vld [vmem:[%s5] sm:$0x1]
      %v311 = vlaneseq
      %v312 = vshrl.u32 %v311, 7
      %v313 = vsub.s32 0, %v312
      %v314 = vrot.slane %v309, %v313
      %v316 = vadd.f32 %v307, %v314
      %v317 = vadd.f32 %v308, %v314
      %v318 = vmax.f32 %v316, 0.0
      %v319 = vmax.f32 %v317, 0.0
      %v320 = vpack.c.bf16 %v319, %v318
      %v322 = vunpack.c.l.b16 %v320
      %v323 = vunpack.c.h.b16 %v320
      %v324 = vpack.c.b16 %v322, %v322
      %v325 = vpack.c.b16 %v323, %v323
      %vm328 = vcmask 60416
      %329 = vst.msk [vmem:[%s271] sm:$0xf] %vm328, %v324
      %330 = vst.msk [vmem:[%s271 + $0x4] sm:$0xf] %vm328, %v325
      %p331 = scmp.lt.s32.totalorder %s17, 1
      %s332 = scalar_select %p331, %s17, 1
      %s333 = smul.addr %s332, 2
      %s334 = smul.addr %s333, 4
      %s335 = scalar_lea.vmem %s6, %s334
      // Predicated region
      $region45: #{resnet_mrm2_forward.18} parent=43 // pred_check
        %p336 = pneg %p171
      $region46: #{resnet_mrm2_forward.18} parent=43 // pred_check_branch
        %338 = sbr.rel (%p336) target = $region48
      $region47: #{resnet_mrm2_forward.18} parent=43 // pred_region
        _
      $region48: #{resnet_mrm2_forward.18} parent=43 // pred_fallthru
        _
    $region44: #{resnet_mrm2_forward.18} parent=5 // pred_fallthru
      _
    %p339 = scmp.le.s32.totalorder 2, %s12
    // Predicated region
    $region49: #{resnet_mrm2_forward.18} parent=5 // pred_check
      %p340 = pneg %p339
    $region50: #{resnet_mrm2_forward.18} parent=5 // pred_check_branch
      %342 = sbr.rel (%p340) target = $region52
    $region51: #{resnet_mrm2_forward.18} parent=5 // pred_region
      %s343 = ssub.s32 %s12, 2
      // Predicated region
      $region53: #{resnet_mrm2_forward.18} parent=51 // pred_check
        %p344 = pneg %p177
      $region54: #{resnet_mrm2_forward.18} parent=51 // pred_check_branch
        %346 = sbr.rel (%p344) target = $region56
      $region55: #{resnet_mrm2_forward.18} parent=51 // pred_region
        %p347 = scmp.lt.s32.totalorder %s18, 1
        %s348 = scalar_select %p347, %s18, 1
        %s349 = smul.addr %s348, 2
        %s350 = smul.addr %s349, 4
        %s351 = scalar_lea.vmem %s6, %s350
      $region56: #{resnet_mrm2_forward.18} parent=51 // pred_fallthru
        _
    $region52: #{resnet_mrm2_forward.18} parent=5 // pred_fallthru
      _
  $region6: #{resnet_mrm2_forward.18} parent=0 // loop_footer
    %s16 = sadd.s32 1, %s12
  $region7: #{resnet_mrm2_forward.18} parent=0 // loop_footer_branch
    %11 = sbr.rel target = $region3
  $region8: #{resnet_mrm2_forward.18} parent=0 // loop_exit
    _

// kernel: resnet_mrm2_forward.15
$region0: #{resnet_mrm2_forward.15}
  #allocation0 [shape = 'u32[]', space=smem, size = 0x4, offset = 0x4, fixed_abs, tag = 'smem constant byte address 0x4 - core index']
  #allocation1 [shape = 'u32[144,128]{1,0:T(1,128)}', space=vmem, size = 0x12000, scoped, tag = 'internal scratch']
  #allocation2 [shape = 'f32[16,32]{1,0:T(8,128)}', space=vmem, size = 0x2000, scoped, tag = 'scratch operand']
  %s0 = inlined_call_operand.vmem [shape: f32[2,16,4], index: 0, kind: input, shape index: {}]
  %s1 = inlined_call_operand.vmem [shape: bf16[32,8], index: 1, kind: input, shape index: {}]
  %s2 = inlined_call_operand.vmem [shape: f32[1,4], index: 2, kind: input, shape index: {}]
  %s3 = inlined_call_operand.vmem [shape: f32[1,4], index: 3, kind: input, shape index: {}]
  %s4 = inlined_call_operand.vmem [shape: bf16[4,8], index: 4, kind: input, shape index: {}]
  %s5 = inlined_call_operand.vmem [shape: bf16[2,16,8], index: 5, kind: output, shape index: {0}]
  %s6 = inlined_call_operand.vmem [shape: f32[2,1,8], index: 6, kind: output, shape index: {1}]
  %s7 = inlined_call_operand.vmem [shape: f32[2,1,8], index: 7, kind: output, shape index: {2}]
  %s8 = inlined_call_operand.vmem [shape: bf16[2,16,8], index: 8, kind: output, shape index: {3}]
  %s9 = inlined_call_operand.vmem [shape: f32[2,1,8], index: 9, kind: output, shape index: {4}]
  %s10 = inlined_call_operand.vmem [shape: f32[2,1,8], index: 10, kind: output, shape index: {5}]
  %11 = xla_tuple %s5, %s6, %s7, %s8, %s9, %s10
  %s12 = sld [smem:[#allocation0]]
  $region93: #{resnet_mrm2_forward.15} parent=0
    _
  %s14 = ssub.s32 1, %s12
  %s15 = scalar_select 0, %s14, %s12
  loop: start=0, step=1, limit=4
  $region2: #{resnet_mrm2_forward.15} parent=0 // loop_pre_header
    _
  $region3: #{resnet_mrm2_forward.15} parent=0 // loop_header
    %s17 = sphi 0, %s21
    %p18 = scmp.ge.s32.totalorder %s17, 4
    %s27 = sphi 0, %s29
    %s30 = sphi 0, %s27
    %s31 = sphi 0, %s30
    %s47 = sphi 0, %s31
    %s51 = sphi 0, %s51
    %s53 = sphi 0, %s51
    %s54 = sphi 0, %s53
    %s68 = sphi 0, %s54
    %s72 = sphi 0, %s72
    %s74 = sphi 0, %s72
    %s75 = sphi 0, %s74
    %s89 = sphi 0, %s75
    %s93 = sphi 0, %s93
    %s95 = sphi 0, %s93
    %s96 = sphi 0, %s95
    %s110 = sphi 0, %s96
    %s114 = sphi 0, %s114
    %s116 = sphi 0, %s114
    %s117 = sphi 0, %s116
    %s131 = sphi 0, %s117
    %s137 = sphi 0, %s139
    %s140 = sphi 0, %s137
    %s141 = sphi 0, %s140
    %s157 = sphi 0, %s141
    %s163 = sphi 0, %s165
    %s166 = sphi 0, %s163
    %s167 = sphi 0, %s166
    %s183 = sphi 0, %s167
    %s189 = sphi 0, %s191
    %s192 = sphi 0, %s189
    %s193 = sphi 0, %s192
    %s209 = sphi 0, %s193
    %s215 = sphi 0, %s217
    %s218 = sphi 0, %s215
    %s219 = sphi 0, %s218
    %s235 = sphi 0, %s219
    %s241 = sphi 0, %s243
    %s244 = sphi 0, %s241
    %s245 = sphi 0, %s244
    %s261 = sphi 0, %s245
    %s267 = sphi 0, %s269
    %s270 = sphi 0, %s267
    %s271 = sphi 0, %s270
    %s287 = sphi 0, %s271
  $region4: #{resnet_mrm2_forward.15} parent=0 // loop_header_branch
    %20 = sbr.rel (%p18) target = $region8
  $region5: #{resnet_mrm2_forward.15} parent=0 // loop_body
    %s22 = ssub.s32 %s17, 1
    %s23 = ssub.s32 %s17, 2
    %s24 = sadd.s32 %s17, 1
    %s25 = ssub.s32 %s17, %s24
    %p26 = scmp.eq.s32.totalorder %s25, 0
    %s28 = sadd.s32 %s27, 1
    %s29 = scalar_select %p26, %s27, %s28
    %p32 = pneg %p26
    %p33 = scmp.eq.s32.totalorder %s17, 1
    %p34 = por %p32, %p33
    %p35 = scmp.ne.s32.totalorder %s27, %s30
    %p36 = scmp.eq.s32.totalorder %s17, 0
    %p37 = por %p35, %p36
    %p38 = scmp.ne.s32.totalorder %s27, %s30
    %p39 = scmp.eq.s32.totalorder %s22, 1
    %p40 = por %p38, %p39
    %p41 = scmp.ne.s32.totalorder %s30, %s31
    %p42 = scmp.eq.s32.totalorder %s22, 0
    %p43 = por %p41, %p42
    %p44 = scmp.ne.s32.totalorder %s30, %s31
    %p45 = scmp.eq.s32.totalorder %s23, 1
    %p46 = por %p44, %p45
    %p48 = scmp.ne.s32.totalorder %s31, %s47
    %p49 = scmp.eq.s32.totalorder %s23, 0
    %p50 = por %p48, %p49
    %s52 = sadd.s32 %s51, 1
    %p55 = scmp.eq.s32.totalorder %s17, 1
    %p56 = scmp.ne.s32.totalorder %s51, %s53
    %p57 = scmp.eq.s32.totalorder %s17, 0
    %p58 = por %p56, %p57
    %p59 = scmp.ne.s32.totalorder %s51, %s53
    %p60 = scmp.eq.s32.totalorder %s22, 1
    %p61 = por %p59, %p60
    %p62 = scmp.ne.s32.totalorder %s53, %s54
    %p63 = scmp.eq.s32.totalorder %s22, 0
    %p64 = por %p62, %p63
    %p65 = scmp.ne.s32.totalorder %s53, %s54
    %p66 = scmp.eq.s32.totalorder %s23, 1
    %p67 = por %p65, %p66
    %p69 = scmp.ne.s32.totalorder %s54, %s68
    %p70 = scmp.eq.s32.totalorder %s23, 0
    %p71 = por %p69, %p70
    %s73 = sadd.s32 %s72, 1
    %p76 = scmp.eq.s32.totalorder %s17, 1
    %p77 = scmp.ne.s32.totalorder %s72, %s74
    %p78 = scmp.eq.s32.totalorder %s17, 0
    %p79 = por %p77, %p78
    %p80 = scmp.ne.s32.totalorder %s72, %s74
    %p81 = scmp.eq.s32.totalorder %s22, 1
    %p82 = por %p80, %p81
    %p83 = scmp.ne.s32.totalorder %s74, %s75
    %p84 = scmp.eq.s32.totalorder %s22, 0
    %p85 = por %p83, %p84
    %p86 = scmp.ne.s32.totalorder %s74, %s75
    %p87 = scmp.eq.s32.totalorder %s23, 1
    %p88 = por %p86, %p87
    %p90 = scmp.ne.s32.totalorder %s75, %s89
    %p91 = scmp.eq.s32.totalorder %s23, 0
    %p92 = por %p90, %p91
    %s94 = sadd.s32 %s93, 1
    %p97 = scmp.eq.s32.totalorder %s17, 1
    %p98 = scmp.ne.s32.totalorder %s93, %s95
    %p99 = scmp.eq.s32.totalorder %s17, 0
    %p100 = por %p98, %p99
    %p101 = scmp.ne.s32.totalorder %s93, %s95
    %p102 = scmp.eq.s32.totalorder %s22, 1
    %p103 = por %p101, %p102
    %p104 = scmp.ne.s32.totalorder %s95, %s96
    %p105 = scmp.eq.s32.totalorder %s22, 0
    %p106 = por %p104, %p105
    %p107 = scmp.ne.s32.totalorder %s95, %s96
    %p108 = scmp.eq.s32.totalorder %s23, 1
    %p109 = por %p107, %p108
    %p111 = scmp.ne.s32.totalorder %s96, %s110
    %p112 = scmp.eq.s32.totalorder %s23, 0
    %p113 = por %p111, %p112
    %s115 = sadd.s32 %s114, 1
    %p118 = scmp.eq.s32.totalorder %s17, 1
    %p119 = scmp.ne.s32.totalorder %s114, %s116
    %p120 = scmp.eq.s32.totalorder %s17, 0
    %p121 = por %p119, %p120
    %p122 = scmp.ne.s32.totalorder %s114, %s116
    %p123 = scmp.eq.s32.totalorder %s22, 1
    %p124 = por %p122, %p123
    %p125 = scmp.ne.s32.totalorder %s116, %s117
    %p126 = scmp.eq.s32.totalorder %s22, 0
    %p127 = por %p125, %p126
    %p128 = scmp.ne.s32.totalorder %s116, %s117
    %p129 = scmp.eq.s32.totalorder %s23, 1
    %p130 = por %p128, %p129
    %p132 = scmp.ne.s32.totalorder %s117, %s131
    %p133 = scmp.eq.s32.totalorder %s23, 0
    %p134 = por %p132, %p133
    %s135 = ssub.s32 %s17, %s24
    %p136 = scmp.eq.s32.totalorder %s135, 0
    %s138 = sadd.s32 %s137, 1
    %s139 = scalar_select %p136, %s137, %s138
    %p142 = pneg %p136
    %p143 = scmp.eq.s32.totalorder %s17, 1
    %p144 = por %p142, %p143
    %p145 = scmp.ne.s32.totalorder %s137, %s140
    %p146 = scmp.eq.s32.totalorder %s17, 0
    %p147 = por %p145, %p146
    %p148 = scmp.ne.s32.totalorder %s137, %s140
    %p149 = scmp.eq.s32.totalorder %s22, 1
    %p150 = por %p148, %p149
    %p151 = scmp.ne.s32.totalorder %s140, %s141
    %p152 = scmp.eq.s32.totalorder %s22, 0
    %p153 = por %p151, %p152
    %p154 = scmp.ne.s32.totalorder %s140, %s141
    %p155 = scmp.eq.s32.totalorder %s23, 1
    %p156 = por %p154, %p155
    %p158 = scmp.ne.s32.totalorder %s141, %s157
    %p159 = scmp.eq.s32.totalorder %s23, 0
    %p160 = por %p158, %p159
    %s161 = ssub.s32 %s17, %s24
    %p162 = scmp.eq.s32.totalorder %s161, 0
    %s164 = sadd.s32 %s163, 1
    %s165 = scalar_select %p162, %s163, %s164
    %p168 = pneg %p162
    %p169 = scmp.eq.s32.totalorder %s17, 1
    %p170 = por %p168, %p169
    %p171 = scmp.ne.s32.totalorder %s163, %s166
    %p172 = scmp.eq.s32.totalorder %s17, 0
    %p173 = por %p171, %p172
    %p174 = scmp.ne.s32.totalorder %s163, %s166
    %p175 = scmp.eq.s32.totalorder %s22, 1
    %p176 = por %p174, %p175
    %p177 = scmp.ne.s32.totalorder %s166, %s167
    %p178 = scmp.eq.s32.totalorder %s22, 0
    %p179 = por %p177, %p178
    %p180 = scmp.ne.s32.totalorder %s166, %s167
    %p181 = scmp.eq.s32.totalorder %s23, 1
    %p182 = por %p180, %p181
    %p184 = scmp.ne.s32.totalorder %s167, %s183
    %p185 = scmp.eq.s32.totalorder %s23, 0
    %p186 = por %p184, %p185
    %s187 = ssub.s32 %s17, %s24
    %p188 = scmp.eq.s32.totalorder %s187, 0
    %s190 = sadd.s32 %s189, 1
    %s191 = scalar_select %p188, %s189, %s190
    %p194 = pneg %p188
    %p195 = scmp.eq.s32.totalorder %s17, 1
    %p196 = por %p194, %p195
    %p197 = scmp.ne.s32.totalorder %s189, %s192
    %p198 = scmp.eq.s32.totalorder %s17, 0
    %p199 = por %p197, %p198
    %p200 = scmp.ne.s32.totalorder %s189, %s192
    %p201 = scmp.eq.s32.totalorder %s22, 1
    %p202 = por %p200, %p201
    %p203 = scmp.ne.s32.totalorder %s192, %s193
    %p204 = scmp.eq.s32.totalorder %s22, 0
    %p205 = por %p203, %p204
    %p206 = scmp.ne.s32.totalorder %s192, %s193
    %p207 = scmp.eq.s32.totalorder %s23, 1
    %p208 = por %p206, %p207
    %p210 = scmp.ne.s32.totalorder %s193, %s209
    %p211 = scmp.eq.s32.totalorder %s23, 0
    %p212 = por %p210, %p211
    %s213 = ssub.s32 %s17, %s24
    %p214 = scmp.eq.s32.totalorder %s213, 0
    %s216 = sadd.s32 %s215, 1
    %s217 = scalar_select %p214, %s215, %s216
    %p220 = pneg %p214
    %p221 = scmp.eq.s32.totalorder %s17, 1
    %p222 = por %p220, %p221
    %p223 = scmp.ne.s32.totalorder %s215, %s218
    %p224 = scmp.eq.s32.totalorder %s17, 0
    %p225 = por %p223, %p224
    %p226 = scmp.ne.s32.totalorder %s215, %s218
    %p227 = scmp.eq.s32.totalorder %s22, 1
    %p228 = por %p226, %p227
    %p229 = scmp.ne.s32.totalorder %s218, %s219
    %p230 = scmp.eq.s32.totalorder %s22, 0
    %p231 = por %p229, %p230
    %p232 = scmp.ne.s32.totalorder %s218, %s219
    %p233 = scmp.eq.s32.totalorder %s23, 1
    %p234 = por %p232, %p233
    %p236 = scmp.ne.s32.totalorder %s219, %s235
    %p237 = scmp.eq.s32.totalorder %s23, 0
    %p238 = por %p236, %p237
    %s239 = ssub.s32 %s17, %s24
    %p240 = scmp.eq.s32.totalorder %s239, 0
    %s242 = sadd.s32 %s241, 1
    %s243 = scalar_select %p240, %s241, %s242
    %p246 = pneg %p240
    %p247 = scmp.eq.s32.totalorder %s17, 1
    %p248 = por %p246, %p247
    %p249 = scmp.ne.s32.totalorder %s241, %s244
    %p250 = scmp.eq.s32.totalorder %s17, 0
    %p251 = por %p249, %p250
    %p252 = scmp.ne.s32.totalorder %s241, %s244
    %p253 = scmp.eq.s32.totalorder %s22, 1
    %p254 = por %p252, %p253
    %p255 = scmp.ne.s32.totalorder %s244, %s245
    %p256 = scmp.eq.s32.totalorder %s22, 0
    %p257 = por %p255, %p256
    %p258 = scmp.ne.s32.totalorder %s244, %s245
    %p259 = scmp.eq.s32.totalorder %s23, 1
    %p260 = por %p258, %p259
    %p262 = scmp.ne.s32.totalorder %s245, %s261
    %p263 = scmp.eq.s32.totalorder %s23, 0
    %p264 = por %p262, %p263
    %s265 = ssub.s32 %s17, %s24
    %p266 = scmp.eq.s32.totalorder %s265, 0
    %s268 = sadd.s32 %s267, 1
    %s269 = scalar_select %p266, %s267, %s268
    %p272 = pneg %p266
    %p273 = scmp.eq.s32.totalorder %s17, 1
    %p274 = por %p272, %p273
    %p275 = scmp.ne.s32.totalorder %s267, %s270
    %p276 = scmp.eq.s32.totalorder %s17, 0
    %p277 = por %p275, %p276
    %p278 = scmp.ne.s32.totalorder %s267, %s270
    %p279 = scmp.eq.s32.totalorder %s22, 1
    %p280 = por %p278, %p279
    %p281 = scmp.ne.s32.totalorder %s270, %s271
    %p282 = scmp.eq.s32.totalorder %s22, 0
    %p283 = por %p281, %p282
    %p284 = scmp.ne.s32.totalorder %s270, %s271
    %p285 = scmp.eq.s32.totalorder %s23, 1
    %p286 = por %p284, %p285
    %p288 = scmp.ne.s32.totalorder %s271, %s287
    %p289 = scmp.eq.s32.totalorder %s23, 0
    %p290 = por %p288, %p289
    %p291 = scmp.le.s32.totalorder 1, %s17
    %p292 = scmp.lt.s32.totalorder %s17, 3
    %p293 = pnand %p291, %p292
    %p294 = pneg %p293
    // Predicated region
    $region9: #{resnet_mrm2_forward.15} parent=5 // pred_check
      _
    $region10: #{resnet_mrm2_forward.15} parent=5 // pred_check_branch
      %296 = sbr.rel (%p293) target = $region12
    $region11: #{resnet_mrm2_forward.15} parent=5 // pred_region
      %s297 = ssub.s32 %s17, 1
      // Predicated region
      $region13: #{resnet_mrm2_forward.15} parent=11 // pred_check
        %p298 = pneg %p64
      $region14: #{resnet_mrm2_forward.15} parent=11 // pred_check_branch
        %300 = sbr.rel (%p298) target = $region16
      $region15: #{resnet_mrm2_forward.15} parent=11 // pred_region
        _
      $region16: #{resnet_mrm2_forward.15} parent=11 // pred_fallthru
        _
      // Predicated region
      $region17: #{resnet_mrm2_forward.15} parent=11 // pred_check
        %p301 = pneg %p85
      $region18: #{resnet_mrm2_forward.15} parent=11 // pred_check_branch
        %303 = sbr.rel (%p301) target = $region20
      $region19: #{resnet_mrm2_forward.15} parent=11 // pred_region
        _
      $region20: #{resnet_mrm2_forward.15} parent=11 // pred_fallthru
        _
      // Predicated region
      $region21: #{resnet_mrm2_forward.15} parent=11 // pred_check
        %p304 = pneg %p106
      $region22: #{resnet_mrm2_forward.15} parent=11 // pred_check_branch
        %306 = sbr.rel (%p304) target = $region24
      $region23: #{resnet_mrm2_forward.15} parent=11 // pred_region
        _
      $region24: #{resnet_mrm2_forward.15} parent=11 // pred_fallthru
        _
      // Predicated region
      $region25: #{resnet_mrm2_forward.15} parent=11 // pred_check
        %p307 = pneg %p127
      $region26: #{resnet_mrm2_forward.15} parent=11 // pred_check_branch
        %309 = sbr.rel (%p307) target = $region28
      $region27: #{resnet_mrm2_forward.15} parent=11 // pred_region
        _
      $region28: #{resnet_mrm2_forward.15} parent=11 // pred_fallthru
        _
    $region12: #{resnet_mrm2_forward.15} parent=5 // pred_fallthru
      _
    %p310 = scmp.lt.s32.totalorder %s17, 2
    // Predicated region
    $region29: #{resnet_mrm2_forward.15} parent=5 // pred_check
      %p311 = pneg %p310
    $region30: #{resnet_mrm2_forward.15} parent=5 // pred_check_branch
      %313 = sbr.rel (%p311) target = $region32
    $region31: #{resnet_mrm2_forward.15} parent=5 // pred_region
      // Predicated region
      $region33: #{resnet_mrm2_forward.15} parent=31 // pred_check
        %p314 = pneg %p37
      $region34: #{resnet_mrm2_forward.15} parent=31 // pred_check_branch
        %316 = sbr.rel (%p314) target = $region36
      $region35: #{resnet_mrm2_forward.15} parent=31 // pred_region
        %p317 = scmp.lt.s32.totalorder %s17, 1
        %s318 = scalar_select %p317, %s17, 1
        %s319 = smul.addr %s318, 2
        %s320 = smul.addr %s319, 8
        %s321 = scalar_lea.vmem %s0, %s320
      $region36: #{resnet_mrm2_forward.15} parent=31 // pred_fallthru
        _
    $region32: #{resnet_mrm2_forward.15} parent=5 // pred_fallthru
      _
    %p322 = scmp.le.s32.totalorder 1, %s17
    %p323 = scmp.lt.s32.totalorder %s17, 3
    %p324 = pnand %p322, %p323
    %p325 = pneg %p324
    // Predicated region
    $region37: #{resnet_mrm2_forward.15} parent=5 // pred_check
      _
    $region38: #{resnet_mrm2_forward.15} parent=5 // pred_check_branch
      %327 = sbr.rel (%p324) target = $region40
    $region39: #{resnet_mrm2_forward.15} parent=5 // pred_region
      %s328 = ssub.s32 %s17, 1
      %p329 = scmp.lt.s32.totalorder %s22, 1
      %s330 = scalar_select %p329, %s22, 1
      %s331 = smul.addr %s330, 2
      %s332 = smul.addr %s331, 8
      %s333 = scalar_lea.vmem %s0, %s332
      %p334 = pneg %p43
      %p335 = pneg %p40
      %p336 = pneg %p64
      %p337 = pneg %p61
      %p338 = pneg %p85
      %p339 = pneg %p82
      %p340 = pneg %p106
      %p341 = pneg %p103
      %p342 = pneg %p127
      %p343 = pneg %p124
      %p344 = pneg %p153
      %p345 = pneg %p150
      %p346 = scmp.lt.s32.totalorder %s22, 1
      %s347 = scalar_select %p346, %s22, 1
      %s348 = smul.addr %s347, 2
      %s349 = smul.addr %s348, 4
      %s350 = scalar_lea.vmem %s5, %s349
      %p351 = pneg %p179
      %p352 = pneg %p176
      %p353 = scmp.lt.s32.totalorder %s22, 1
      %s354 = scalar_select %p353, %s22, 1
      %s355 = scalar_lea.vmem %s6, %s354
      %p356 = pneg %p205
      %p357 = pneg %p202
      %p358 = scmp.lt.s32.totalorder %s22, 1
      %s359 = scalar_select %p358, %s22, 1
      %s360 = scalar_lea.vmem %s7, %s359
      %p361 = pneg %p231
      %p362 = pneg %p228
      %p363 = scmp.lt.s32.totalorder %s22, 1
      %s364 = scalar_select %p363, %s22, 1
      %s365 = smul.addr %s364, 2
      %s366 = smul.addr %s365, 4
      %s367 = scalar_lea.vmem %s8, %s366
      %p368 = pneg %p257
      %p369 = pneg %p254
      %p370 = scmp.lt.s32.totalorder %s22, 1
      %s371 = scalar_select %p370, %s22, 1
      %s372 = scalar_lea.vmem %s9, %s371
      %p373 = pneg %p283
      %p374 = pneg %p280
      %p375 = scmp.lt.s32.totalorder %s22, 1
      %s376 = scalar_select %p375, %s22, 1
      %s377 = scalar_lea.vmem %s10, %s376
      %p378 = scmp.lt.s32.totalorder %s22, 1
      %s379 = scalar_select %p378, %s22, 1
      %s380 = smul.addr %s379, 2
      %s381 = smul.addr %s380, 8
      %s382 = scalar_lea.vmem %s0, %s381
      %p383 = scmp.lt.s32.totalorder %s22, 1
      %s384 = scalar_select %p383, %s22, 1
      %s385 = smul.addr %s384, 2
      %s386 = smul.addr %s385, 4
      %s387 = scalar_lea.vmem %s5, %s386
      %p388 = scmp.lt.s32.totalorder %s22, 1
      %s389 = scalar_select %p388, %s22, 1
      %s390 = scalar_lea.vmem %s6, %s389
      %p391 = scmp.lt.s32.totalorder %s22, 1
      %s392 = scalar_select %p391, %s22, 1
      %s393 = scalar_lea.vmem %s7, %s392
      %p394 = scmp.lt.s32.totalorder %s22, 1
      %s395 = scalar_select %p394, %s22, 1
      %s396 = smul.addr %s395, 2
      %s397 = smul.addr %s396, 4
      %s398 = scalar_lea.vmem %s8, %s397
      %p399 = scmp.lt.s32.totalorder %s22, 1
      %s400 = scalar_select %p399, %s22, 1
      %s401 = scalar_lea.vmem %s9, %s400
      %p402 = scmp.lt.s32.totalorder %s22, 1
      %s403 = scalar_select %p402, %s22, 1
      %s404 = scalar_lea.vmem %s10, %s403
      %v406 = vld [vmem:[%s382] sm:$0xff]
      %v407 = vld [vmem:[%s382 + $0x8] sm:$0xff]
      %v408 = vld [vmem:[%s2] sm:$0x1]
      %v410 = vlaneseq
      %v411 = vshrl.u32 %v410, 7
      %v412 = vsub.s32 0, %v411
      %v413 = vrot.slane %v408, %v412
      %v415 = vmul.f32 %v406, %v413
      %v416 = vmul.f32 %v407, %v413
      %v417 = vld [vmem:[%s3] sm:$0x1]
      %v419 = vlaneseq
      %v420 = vshrl.u32 %v419, 7
      %v421 = vsub.s32 0, %v420
      %v422 = vrot.slane %v417, %v421
      %v424 = vadd.f32 %v415, %v422
      %v425 = vadd.f32 %v416, %v422
      %vm426 = vcmask 27648
      %427 = vst.msk [vmem:[#allocation2] sm:$0xf] %vm426, 0.0
      %vm428 = vcmask 31744
      %429 = vst.msk [vmem:[#allocation2 + $0x4] sm:$0xff] %vm428, %v424
      %430 = vst.msk [vmem:[#allocation2 + $0xc] sm:$0xf] %vm426, %v425
      %vm431 = vcmask 59424
      %432 = vst.msk [vmem:[#allocation2] sm:$0x7] %vm431, 0.0
      %435 = vrot.lane.b32.xlu0 %v424, 4
      %v436 = vpop.permute.xlu0 %435
      %437 = vrot.lane.b32.xlu0 %v425, 4
      %v438 = vpop.permute.xlu0 %437
      %vm441 = vcmask 64544
      %442 = vst.msk [vmem:[#allocation2 + $0x3] sm:$0xff] %vm441, %v436
      %vm443 = vcmask 61472
      %444 = vst.msk [vmem:[#allocation2 + $0xb] sm:$0x1f] %vm443, %v438
      %vm445 = vcmask 91200
      %446 = vst.msk [vmem:[#allocation2] sm:$0x3] %vm445, 0.0
      %447 = vrot.lane.b32.xlu0 %v424, 8
      %v448 = vpop.permute.xlu0 %447
      %449 = vrot.lane.b32.xlu0 %v425, 8
      %v450 = vpop.permute.xlu0 %449
      %vm453 = vcmask 97344
      %454 = vst.msk [vmem:[#allocation2 + $0x2] sm:$0xff] %vm453, %v448
      %vm455 = vcmask 95296
      %456 = vst.msk [vmem:[#allocation2 + $0xa] sm:$0x3f] %vm455, %v450
      %vm457 = vcmask 122976
      %458 = vst.msk [vmem:[#allocation2] sm:$0x1] %vm457, 0.0
      %459 = vrot.lane.b32.xlu0 %v424, 12
      %v460 = vpop.permute.xlu0 %459
      %461 = vrot.lane.b32.xlu0 %v425, 12
      %v462 = vpop.permute.xlu0 %461
      %vm465 = vcmask 130144
      %466 = vst.msk [vmem:[#allocation2 + $0x1] sm:$0xff] %vm465, %v460
      %vm467 = vcmask 129120
      %468 = vst.msk [vmem:[#allocation2 + $0x9] sm:$0x7f] %vm467, %v462
      %469 = vrot.lane.b32.xlu0 %v424, 16
      %v470 = vpop.permute.xlu0 %469
      %471 = vrot.lane.b32.xlu0 %v425, 16
      %v472 = vpop.permute.xlu0 %471
      %vm475 = vcmask 162944
      %476 = vst.msk [vmem:[#allocation2] sm:$0xff] %vm475, %v470
      %477 = vst.msk [vmem:[#allocation2 + $0x8] sm:$0xff] %vm475, %v472
      %vm478 = vcmask 188576
      %479 = vst.msk [vmem:[#allocation2 + $0xf] sm:$0x1] %vm478, 0.0
      %480 = vrot.lane.b32.xlu0 %v424, 20
      %v481 = vpop.permute.xlu0 %480
      %482 = vrot.lane.b32.xlu0 %v425, 20
      %v483 = vpop.permute.xlu0 %482
      %vm486 = vcmask 195745
      %487 = vst.msk [vmem:[#allocation2 - $0x1] sm:$0xfe] %vm486, %v481
      %vm488 = vcmask 195744
      %489 = vst.msk [vmem:[#allocation2 + $0x7] sm:$0xff] %vm488, %v483
      %vm490 = vcmask 222400
      %491 = vst.msk [vmem:[#allocation2 + $0xe] sm:$0x3] %vm490, 0.0
      %492 = vrot.lane.b32.xlu0 %v424, 24
      %v493 = vpop.permute.xlu0 %492
      %494 = vrot.lane.b32.xlu0 %v425, 24
      %v495 = vpop.permute.xlu0 %494
      %vm498 = vcmask 228546
      %499 = vst.msk [vmem:[#allocation2 - $0x2] sm:$0xfc] %vm498, %v493
      %vm500 = vcmask 228544
      %501 = vst.msk [vmem:[#allocation2 + $0x6] sm:$0xff] %vm500, %v495
      %vm502 = vcmask 256224
      %503 = vst.msk [vmem:[#allocation2 + $0xd] sm:$0x7] %vm502, 0.0
      %504 = vrot.lane.b32.xlu0 %v424, 28
      %v505 = vpop.permute.xlu0 %504
      %506 = vrot.lane.b32.xlu0 %v425, 28
      %v507 = vpop.permute.xlu0 %506
      %vm510 = vcmask 261347
      %511 = vst.msk [vmem:[#allocation2 - $0x3] sm:$0xf8] %vm510, %v505
      %vm512 = vcmask 261344
      %513 = vst.msk [vmem:[#allocation2 + $0x5] sm:$0xff] %vm512, %v507
      %v514 = vld [vmem:[#allocation2] sm:$0xff]
      %v515 = vld [vmem:[#allocation2 + $0x8] sm:$0xff]
      %v516 = vpack.c.bf16 %v515, %v514
      %v517 = vld [vmem:[%s1] sm:$0xf]
      %v518 = vld [vmem:[%s1 + $0x4] sm:$0xf]
      %v519 = vld [vmem:[%s1 + $0x8] sm:$0xf]
      %v520 = vld [vmem:[%s1 + $0xc] sm:$0xf]
      %v525 = vunpack.c.l.b16 %v517
      %v526 = vunpack.c.l.b16 %v518
      %v527 = vunpack.c.l.b16 %v519
      %v528 = vunpack.c.l.b16 %v520
      %v529 = vpack.c.b16 %v526, %v525
      %v530 = vpack.c.b16 %v528, %v527
      %vm533 = vcmask 261120
      %v535 = vsel %vm533, %v516, 0
      %537 = vmatprep.subr.bf16.mxu0 0
      %538 = vmatpush1.bf16.msra.mxu0 %v529
      %539 = vmatprep.subr.bf16.mxu0 0
      %540 = vmatpush1.bf16.msra.mxu0 %v530
      %541 = vmatprep.subr.bf16.mxu0 0
      %542 = vmatpush1.bf16.msra.mxu0 0
      %543 = vmatprep.subr.bf16.mxu0 0
      %544 = vmatpush1.bf16.msra.mxu0 0
      %545 = vmatprep.subr.bf16.mxu0 0
      %546 = vmatpush1.bf16.msra.mxu0 0
      %547 = vmatprep.subr.bf16.mxu0 0
      %548 = vmatpush1.bf16.msra.mxu0 0
      %549 = vmatprep.subr.bf16.mxu0 0
      %550 = vmatpush1.bf16.msra.mxu0 0
      %551 = vmatprep.subr.bf16.mxu0 0
      %552 = vmatpush1.bf16.msra.mxu0 0
      %553 = vmatprep.subr.bf16.mxu0 0
      %554 = vmatpush1.bf16.msra.mxu0 0
      %555 = vmatprep.subr.bf16.mxu0 0
      %556 = vmatpush1.bf16.msra.mxu0 0
      %557 = vmatprep.subr.bf16.mxu0 0
      %558 = vmatpush1.bf16.msra.mxu0 0
      %559 = vmatprep.subr.bf16.mxu0 0
      %560 = vmatpush1.bf16.msra.mxu0 0
      %561 = vmatprep.subr.bf16.mxu0 0
      %562 = vmatpush1.bf16.msra.mxu0 0
      %563 = vmatprep.subr.bf16.mxu0 0
      %564 = vmatpush1.bf16.msra.mxu0 0
      %565 = vmatprep.subr.bf16.mxu0 0
      %566 = vmatpush1.bf16.msra.mxu0 0
      %567 = vmatprep.subr.bf16.mxu0 0
      %568 = vmatpush1.bf16.msra.mxu0 0
      %569 = vmatprep.mubr.bf16.mxu0 0
      %570 = vmatmul.mubr.bf16.gmra.mrb[0].mxu0 %v535
      %v571 = vpop.f32.mrb[0].mxu0
      %v572 = vadd.f32 0.0, %v571
      %v573 = vpop.f32.mrb[0].mxu0
      %v574 = vpop.f32.mrb[0].mxu0
      %v575 = vadd.f32 0.0, %v574
      %v576 = vpop.f32.mrb[0].mxu0
      %577 = vdwg.mxu0
      %v578 = vpack.c.bf16 %v575, %v572
      %v580 = vunpack.c.l.b16 %v578
      %v581 = vunpack.c.h.b16 %v578
      %v582 = vpack.c.b16 %v580, %v580
      %v583 = vpack.c.b16 %v581, %v581
      %vm586 = vcmask 60416
      %587 = vst.msk [vmem:[%s387] sm:$0xf] %vm586, %v582
      %588 = vst.msk [vmem:[%s387 + $0x4] sm:$0xf] %vm586, %v583
      %vm589 = vcmask 64512
      %v590 = vsel %vm589, %v572, 0.0
      %v591 = vsel %vm589, %v575, 0.0
      %v592 = vadd.f32 %v590, %v591
      %v593 = vrot.slane %v592, 4
      %v594 = vadd.f32 %v592, %v593
      %v595 = vrot.slane %v594, 2
      %v596 = vadd.f32 %v594, %v595
      %v597 = vrot.slane %v596, 1
      %v598 = vadd.f32 %v596, %v597
      %vm599 = vcmask 57344
      %600 = vst.msk [vmem:[%s390] sm:$0x1] %vm599, %v598
      %v601 = vmul.f32 %v572, %v572
      %v602 = vmul.f32 %v575, %v575
      %v603 = vsel %vm589, %v601, 0.0
      %v604 = vsel %vm589, %v602, 0.0
      %v605 = vadd.f32 %v603, %v604
      %v606 = vrot.slane %v605, 4
      %v607 = vadd.f32 %v605, %v606
      %v608 = vrot.slane %v607, 2
      %v609 = vadd.f32 %v607, %v608
      %v610 = vrot.slane %v609, 1
      %v611 = vadd.f32 %v609, %v610
      %612 = vst.msk [vmem:[%s393] sm:$0x1] %vm599, %v611
      %v613 = vpack.c.bf16 %v425, %v424
      %v614 = vld [vmem:[%s4] sm:$0x3]
      %v616 = vsel %vm428, %v613, 0
      %vm618 = vcmask 1041408
      %v620 = vsel %vm618, %v614, 0
      %622 = vmatprep.subr.bf16.mxu0 0
      %623 = vmatpush1.bf16.msra.mxu0 %v620
      %624 = vmatprep.subr.bf16.mxu0 0
      %625 = vmatpush1.bf16.msra.mxu0 0
      %626 = vmatprep.subr.bf16.mxu0 0
      %627 = vmatpush1.bf16.msra.mxu0 0
      %628 = vmatprep.subr.bf16.mxu0 0
      %629 = vmatpush1.bf16.msra.mxu0 0
      %630 = vmatprep.subr.bf16.mxu0 0
      %631 = vmatpush1.bf16.msra.mxu0 0
      %632 = vmatprep.subr.bf16.mxu0 0
      %633 = vmatpush1.bf16.msra.mxu0 0
      %634 = vmatprep.subr.bf16.mxu0 0
      %635 = vmatpush1.bf16.msra.mxu0 0
      %636 = vmatprep.subr.bf16.mxu0 0
      %637 = vmatpush1.bf16.msra.mxu0 0
      %638 = vmatprep.subr.bf16.mxu0 0
      %639 = vmatpush1.bf16.msra.mxu0 0
      %640 = vmatprep.subr.bf16.mxu0 0
      %641 = vmatpush1.bf16.msra.mxu0 0
      %642 = vmatprep.subr.bf16.mxu0 0
      %643 = vmatpush1.bf16.msra.mxu0 0
      %644 = vmatprep.subr.bf16.mxu0 0
      %645 = vmatpush1.bf16.msra.mxu0 0
      %646 = vmatprep.subr.bf16.mxu0 0
      %647 = vmatpush1.bf16.msra.mxu0 0
      %648 = vmatprep.subr.bf16.mxu0 0
      %649 = vmatpush1.bf16.msra.mxu0 0
      %650 = vmatprep.subr.bf16.mxu0 0
      %651 = vmatpush1.bf16.msra.mxu0 0
      %652 = vmatprep.subr.bf16.mxu0 0
      %653 = vmatpush1.bf16.msra.mxu0 0
      %654 = vmatprep.mubr.bf16.mxu0 0
      %655 = vmatmul.mubr.bf16.gmra.mrb[0].mxu0 %v616
      %v656 = vpop.f32.mrb[0].mxu0
      %v657 = vadd.f32 0.0, %v656
      %v658 = vpop.f32.mrb[0].mxu0
      %v659 = vpop.f32.mrb[0].mxu0
      %v660 = vadd.f32 0.0, %v659
      %v661 = vpop.f32.mrb[0].mxu0
      %662 = vdwg.mxu0
      %v663 = vpack.c.bf16 %v660, %v657
      %v665 = vunpack.c.l.b16 %v663
      %v666 = vunpack.c.h.b16 %v663
      %v667 = vpack.c.b16 %v665, %v665
      %v668 = vpack.c.b16 %v666, %v666
      %671 = vst.msk [vmem:[%s398] sm:$0xf] %vm586, %v667
      %672 = vst.msk [vmem:[%s398 + $0x4] sm:$0xf] %vm586, %v668
      %v673 = vsel %vm589, %v657, 0.0
      %v674 = vsel %vm589, %v660, 0.0
      %v675 = vadd.f32 %v673, %v674
      %v676 = vrot.slane %v675, 4
      %v677 = vadd.f32 %v675, %v676
      %v678 = vrot.slane %v677, 2
      %v679 = vadd.f32 %v677, %v678
      %v680 = vrot.slane %v679, 1
      %v681 = vadd.f32 %v679, %v680
      %682 = vst.msk [vmem:[%s401] sm:$0x1] %vm599, %v681
      %v683 = vmul.f32 %v657, %v657
      %v684 = vmul.f32 %v660, %v660
      %v685 = vsel %vm589, %v683, 0.0
      %v686 = vsel %vm589, %v684, 0.0
      %v687 = vadd.f32 %v685, %v686
      %v688 = vrot.slane %v687, 4
      %v689 = vadd.f32 %v687, %v688
      %v690 = vrot.slane %v689, 2
      %v691 = vadd.f32 %v689, %v690
      %v692 = vrot.slane %v691, 1
      %v693 = vadd.f32 %v691, %v692
      %694 = vst.msk [vmem:[%s404] sm:$0x1] %vm599, %v693
      %p695 = scmp.lt.s32.totalorder %s22, 1
      %s696 = scalar_select %p695, %s22, 1
      %s697 = smul.addr %s696, 2
      %s698 = smul.addr %s697, 4
      %s699 = scalar_lea.vmem %s5, %s698
      %p700 = scmp.lt.s32.totalorder %s22, 1
      %s701 = scalar_select %p700, %s22, 1
      %s702 = scalar_lea.vmem %s6, %s701
      %p703 = scmp.lt.s32.totalorder %s22, 1
      %s704 = scalar_select %p703, %s22, 1
      %s705 = scalar_lea.vmem %s7, %s704
      %p706 = scmp.lt.s32.totalorder %s22, 1
      %s707 = scalar_select %p706, %s22, 1
      %s708 = smul.addr %s707, 2
      %s709 = smul.addr %s708, 4
      %s710 = scalar_lea.vmem %s8, %s709
      %p711 = scmp.lt.s32.totalorder %s22, 1
      %s712 = scalar_select %p711, %s22, 1
      %s713 = scalar_lea.vmem %s9, %s712
      %p714 = scmp.lt.s32.totalorder %s22, 1
      %s715 = scalar_select %p714, %s22, 1
      %s716 = scalar_lea.vmem %s10, %s715
      // Predicated region
      $region41: #{resnet_mrm2_forward.15} parent=39 // pred_check
        %p717 = pneg %p150
      $region42: #{resnet_mrm2_forward.15} parent=39 // pred_check_branch
        %719 = sbr.rel (%p717) target = $region44
      $region43: #{resnet_mrm2_forward.15} parent=39 // pred_region
        _
      $region44: #{resnet_mrm2_forward.15} parent=39 // pred_fallthru
        _
      // Predicated region
      $region45: #{resnet_mrm2_forward.15} parent=39 // pred_check
        %p720 = pneg %p176
      $region46: #{resnet_mrm2_forward.15} parent=39 // pred_check_branch
        %722 = sbr.rel (%p720) target = $region48
      $region47: #{resnet_mrm2_forward.15} parent=39 // pred_region
        _
      $region48: #{resnet_mrm2_forward.15} parent=39 // pred_fallthru
        _
      // Predicated region
      $region49: #{resnet_mrm2_forward.15} parent=39 // pred_check
        %p723 = pneg %p202
      $region50: #{resnet_mrm2_forward.15} parent=39 // pred_check_branch
        %725 = sbr.rel (%p723) target = $region52
      $region51: #{resnet_mrm2_forward.15} parent=39 // pred_region
        _
      $region52: #{resnet_mrm2_forward.15} parent=39 // pred_fallthru
        _
      // Predicated region
      $region53: #{resnet_mrm2_forward.15} parent=39 // pred_check
        %p726 = pneg %p228
      $region54: #{resnet_mrm2_forward.15} parent=39 // pred_check_branch
        %728 = sbr.rel (%p726) target = $region56
      $region55: #{resnet_mrm2_forward.15} parent=39 // pred_region
        _
      $region56: #{resnet_mrm2_forward.15} parent=39 // pred_fallthru
        _
      // Predicated region
      $region57: #{resnet_mrm2_forward.15} parent=39 // pred_check
        %p729 = pneg %p254
      $region58: #{resnet_mrm2_forward.15} parent=39 // pred_check_branch
        %731 = sbr.rel (%p729) target = $region60
      $region59: #{resnet_mrm2_forward.15} parent=39 // pred_region
        _
      $region60: #{resnet_mrm2_forward.15} parent=39 // pred_fallthru
        _
      // Predicated region
      $region61: #{resnet_mrm2_forward.15} parent=39 // pred_check
        %p732 = pneg %p280
      $region62: #{resnet_mrm2_forward.15} parent=39 // pred_check_branch
        %734 = sbr.rel (%p732) target = $region64
      $region63: #{resnet_mrm2_forward.15} parent=39 // pred_region
        _
      $region64: #{resnet_mrm2_forward.15} parent=39 // pred_fallthru
        _
    $region40: #{resnet_mrm2_forward.15} parent=5 // pred_fallthru
      _
    %p735 = scmp.le.s32.totalorder 2, %s17
    // Predicated region
    $region65: #{resnet_mrm2_forward.15} parent=5 // pred_check
      %p736 = pneg %p735
    $region66: #{resnet_mrm2_forward.15} parent=5 // pred_check_branch
      %738 = sbr.rel (%p736) target = $region68
    $region67: #{resnet_mrm2_forward.15} parent=5 // pred_region
      %s739 = ssub.s32 %s17, 2
      // Predicated region
      $region69: #{resnet_mrm2_forward.15} parent=67 // pred_check
        %p740 = pneg %p156
      $region70: #{resnet_mrm2_forward.15} parent=67 // pred_check_branch
        %742 = sbr.rel (%p740) target = $region72
      $region71: #{resnet_mrm2_forward.15} parent=67 // pred_region
        %p743 = scmp.lt.s32.totalorder %s23, 1
        %s744 = scalar_select %p743, %s23, 1
        %s745 = smul.addr %s744, 2
        %s746 = smul.addr %s745, 4
        %s747 = scalar_lea.vmem %s5, %s746
      $region72: #{resnet_mrm2_forward.15} parent=67 // pred_fallthru
        _
      // Predicated region
      $region73: #{resnet_mrm2_forward.15} parent=67 // pred_check
        %p748 = pneg %p182
      $region74: #{resnet_mrm2_forward.15} parent=67 // pred_check_branch
        %750 = sbr.rel (%p748) target = $region76
      $region75: #{resnet_mrm2_forward.15} parent=67 // pred_region
        %p751 = scmp.lt.s32.totalorder %s23, 1
        %s752 = scalar_select %p751, %s23, 1
        %s753 = scalar_lea.vmem %s6, %s752
      $region76: #{resnet_mrm2_forward.15} parent=67 // pred_fallthru
        _
      // Predicated region
      $region77: #{resnet_mrm2_forward.15} parent=67 // pred_check
        %p754 = pneg %p208
      $region78: #{resnet_mrm2_forward.15} parent=67 // pred_check_branch
        %756 = sbr.rel (%p754) target = $region80
      $region79: #{resnet_mrm2_forward.15} parent=67 // pred_region
        %p757 = scmp.lt.s32.totalorder %s23, 1
        %s758 = scalar_select %p757, %s23, 1
        %s759 = scalar_lea.vmem %s7, %s758
      $region80: #{resnet_mrm2_forward.15} parent=67 // pred_fallthru
        _
      // Predicated region
      $region81: #{resnet_mrm2_forward.15} parent=67 // pred_check
        %p760 = pneg %p234
      $region82: #{resnet_mrm2_forward.15} parent=67 // pred_check_branch
        %762 = sbr.rel (%p760) target = $region84
      $region83: #{resnet_mrm2_forward.15} parent=67 // pred_region
        %p763 = scmp.lt.s32.totalorder %s23, 1
        %s764 = scalar_select %p763, %s23, 1
        %s765 = smul.addr %s764, 2
        %s766 = smul.addr %s765, 4
        %s767 = scalar_lea.vmem %s8, %s766
      $region84: #{resnet_mrm2_forward.15} parent=67 // pred_fallthru
        _
      // Predicated region
      $region85: #{resnet_mrm2_forward.15} parent=67 // pred_check
        %p768 = pneg %p260
      $region86: #{resnet_mrm2_forward.15} parent=67 // pred_check_branch
        %770 = sbr.rel (%p768) target = $region88
      $region87: #{resnet_mrm2_forward.15} parent=67 // pred_region
        %p771 = scmp.lt.s32.totalorder %s23, 1
        %s772 = scalar_select %p771, %s23, 1
        %s773 = scalar_lea.vmem %s9, %s772
      $region88: #{resnet_mrm2_forward.15} parent=67 // pred_fallthru
        _
      // Predicated region
      $region89: #{resnet_mrm2_forward.15} parent=67 // pred_check
        %p774 = pneg %p286
      $region90: #{resnet_mrm2_forward.15} parent=67 // pred_check_branch
        %776 = sbr.rel (%p774) target = $region92
      $region91: #{resnet_mrm2_forward.15} parent=67 // pred_region
        %p777 = scmp.lt.s32.totalorder %s23, 1
        %s778 = scalar_select %p777, %s23, 1
        %s779 = scalar_lea.vmem %s10, %s778
      $region92: #{resnet_mrm2_forward.15} parent=67 // pred_fallthru
        _
    $region68: #{resnet_mrm2_forward.15} parent=5 // pred_fallthru
      _
  $region6: #{resnet_mrm2_forward.15} parent=0 // loop_footer
    %s21 = sadd.s32 1, %s17
  $region7: #{resnet_mrm2_forward.15} parent=0 // loop_footer_branch
    %16 = sbr.rel target = $region3
  $region8: #{resnet_mrm2_forward.15} parent=0 // loop_exit
    _

// kernel: resnet_mrm2_forward.16
$region0: #{resnet_mrm2_forward.16}
  #allocation0 [shape = 'u32[]', space=smem, size = 0x4, offset = 0x4, fixed_abs, tag = 'smem constant byte address 0x4 - core index']
  #allocation1 [shape = 'u32[144,128]{1,0:T(1,128)}', space=vmem, size = 0x12000, scoped, tag = 'internal scratch']
  #allocation2 [shape = 'f32[16,40]{1,0:T(8,128)}', space=vmem, size = 0x2000, scoped, tag = 'scratch operand']
  %s0 = inlined_call_operand.vmem [shape: bf16[2,16,8], index: 0, kind: input, shape index: {}]
  %s1 = inlined_call_operand.vmem [shape: bf16[40,8], index: 1, kind: input, shape index: {}]
  %s2 = inlined_call_operand.vmem [shape: f32[1,8], index: 2, kind: input, shape index: {}]
  %s3 = inlined_call_operand.vmem [shape: f32[1,8], index: 3, kind: input, shape index: {}]
  %s4 = inlined_call_operand.vmem [shape: bf16[2,16,8], index: 4, kind: output, shape index: {0}]
  %s5 = inlined_call_operand.vmem [shape: f32[2,1,8], index: 5, kind: output, shape index: {1}]
  %s6 = inlined_call_operand.vmem [shape: f32[2,1,8], index: 6, kind: output, shape index: {2}]
  %7 = xla_tuple %s4, %s5, %s6
  %s8 = sld [smem:[#allocation0]]
  $region65: #{resnet_mrm2_forward.16} parent=0
    _
  %s10 = ssub.s32 1, %s8
  %s11 = scalar_select 0, %s10, %s8
  loop: start=0, step=1, limit=4
  $region2: #{resnet_mrm2_forward.16} parent=0 // loop_pre_header
    _
  $region3: #{resnet_mrm2_forward.16} parent=0 // loop_header
    %s13 = sphi 0, %s17
    %p14 = scmp.ge.s32.totalorder %s13, 4
    %s23 = sphi 0, %s25
    %s26 = sphi 0, %s23
    %s27 = sphi 0, %s26
    %s43 = sphi 0, %s27
    %s47 = sphi 0, %s47
    %s49 = sphi 0, %s47
    %s50 = sphi 0, %s49
    %s64 = sphi 0, %s50
    %s68 = sphi 0, %s68
    %s70 = sphi 0, %s68
    %s71 = sphi 0, %s70
    %s85 = sphi 0, %s71
    %s89 = sphi 0, %s89
    %s91 = sphi 0, %s89
    %s92 = sphi 0, %s91
    %s106 = sphi 0, %s92
    %s112 = sphi 0, %s114
    %s115 = sphi 0, %s112
    %s116 = sphi 0, %s115
    %s132 = sphi 0, %s116
    %s138 = sphi 0, %s140
    %s141 = sphi 0, %s138
    %s142 = sphi 0, %s141
    %s158 = sphi 0, %s142
    %s164 = sphi 0, %s166
    %s167 = sphi 0, %s164
    %s168 = sphi 0, %s167
    %s184 = sphi 0, %s168
  $region4: #{resnet_mrm2_forward.16} parent=0 // loop_header_branch
    %16 = sbr.rel (%p14) target = $region8
  $region5: #{resnet_mrm2_forward.16} parent=0 // loop_body
    %s18 = ssub.s32 %s13, 1
    %s19 = ssub.s32 %s13, 2
    %s20 = sadd.s32 %s13, 1
    %s21 = ssub.s32 %s13, %s20
    %p22 = scmp.eq.s32.totalorder %s21, 0
    %s24 = sadd.s32 %s23, 1
    %s25 = scalar_select %p22, %s23, %s24
    %p28 = pneg %p22
    %p29 = scmp.eq.s32.totalorder %s13, 1
    %p30 = por %p28, %p29
    %p31 = scmp.ne.s32.totalorder %s23, %s26
    %p32 = scmp.eq.s32.totalorder %s13, 0
    %p33 = por %p31, %p32
    %p34 = scmp.ne.s32.totalorder %s23, %s26
    %p35 = scmp.eq.s32.totalorder %s18, 1
    %p36 = por %p34, %p35
    %p37 = scmp.ne.s32.totalorder %s26, %s27
    %p38 = scmp.eq.s32.totalorder %s18, 0
    %p39 = por %p37, %p38
    %p40 = scmp.ne.s32.totalorder %s26, %s27
    %p41 = scmp.eq.s32.totalorder %s19, 1
    %p42 = por %p40, %p41
    %p44 = scmp.ne.s32.totalorder %s27, %s43
    %p45 = scmp.eq.s32.totalorder %s19, 0
    %p46 = por %p44, %p45
    %s48 = sadd.s32 %s47, 1
    %p51 = scmp.eq.s32.totalorder %s13, 1
    %p52 = scmp.ne.s32.totalorder %s47, %s49
    %p53 = scmp.eq.s32.totalorder %s13, 0
    %p54 = por %p52, %p53
    %p55 = scmp.ne.s32.totalorder %s47, %s49
    %p56 = scmp.eq.s32.totalorder %s18, 1
    %p57 = por %p55, %p56
    %p58 = scmp.ne.s32.totalorder %s49, %s50
    %p59 = scmp.eq.s32.totalorder %s18, 0
    %p60 = por %p58, %p59
    %p61 = scmp.ne.s32.totalorder %s49, %s50
    %p62 = scmp.eq.s32.totalorder %s19, 1
    %p63 = por %p61, %p62
    %p65 = scmp.ne.s32.totalorder %s50, %s64
    %p66 = scmp.eq.s32.totalorder %s19, 0
    %p67 = por %p65, %p66
    %s69 = sadd.s32 %s68, 1
    %p72 = scmp.eq.s32.totalorder %s13, 1
    %p73 = scmp.ne.s32.totalorder %s68, %s70
    %p74 = scmp.eq.s32.totalorder %s13, 0
    %p75 = por %p73, %p74
    %p76 = scmp.ne.s32.totalorder %s68, %s70
    %p77 = scmp.eq.s32.totalorder %s18, 1
    %p78 = por %p76, %p77
    %p79 = scmp.ne.s32.totalorder %s70, %s71
    %p80 = scmp.eq.s32.totalorder %s18, 0
    %p81 = por %p79, %p80
    %p82 = scmp.ne.s32.totalorder %s70, %s71
    %p83 = scmp.eq.s32.totalorder %s19, 1
    %p84 = por %p82, %p83
    %p86 = scmp.ne.s32.totalorder %s71, %s85
    %p87 = scmp.eq.s32.totalorder %s19, 0
    %p88 = por %p86, %p87
    %s90 = sadd.s32 %s89, 1
    %p93 = scmp.eq.s32.totalorder %s13, 1
    %p94 = scmp.ne.s32.totalorder %s89, %s91
    %p95 = scmp.eq.s32.totalorder %s13, 0
    %p96 = por %p94, %p95
    %p97 = scmp.ne.s32.totalorder %s89, %s91
    %p98 = scmp.eq.s32.totalorder %s18, 1
    %p99 = por %p97, %p98
    %p100 = scmp.ne.s32.totalorder %s91, %s92
    %p101 = scmp.eq.s32.totalorder %s18, 0
    %p102 = por %p100, %p101
    %p103 = scmp.ne.s32.totalorder %s91, %s92
    %p104 = scmp.eq.s32.totalorder %s19, 1
    %p105 = por %p103, %p104
    %p107 = scmp.ne.s32.totalorder %s92, %s106
    %p108 = scmp.eq.s32.totalorder %s19, 0
    %p109 = por %p107, %p108
    %s110 = ssub.s32 %s13, %s20
    %p111 = scmp.eq.s32.totalorder %s110, 0
    %s113 = sadd.s32 %s112, 1
    %s114 = scalar_select %p111, %s112, %s113
    %p117 = pneg %p111
    %p118 = scmp.eq.s32.totalorder %s13, 1
    %p119 = por %p117, %p118
    %p120 = scmp.ne.s32.totalorder %s112, %s115
    %p121 = scmp.eq.s32.totalorder %s13, 0
    %p122 = por %p120, %p121
    %p123 = scmp.ne.s32.totalorder %s112, %s115
    %p124 = scmp.eq.s32.totalorder %s18, 1
    %p125 = por %p123, %p124
    %p126 = scmp.ne.s32.totalorder %s115, %s116
    %p127 = scmp.eq.s32.totalorder %s18, 0
    %p128 = por %p126, %p127
    %p129 = scmp.ne.s32.totalorder %s115, %s116
    %p130 = scmp.eq.s32.totalorder %s19, 1
    %p131 = por %p129, %p130
    %p133 = scmp.ne.s32.totalorder %s116, %s132
    %p134 = scmp.eq.s32.totalorder %s19, 0
    %p135 = por %p133, %p134
    %s136 = ssub.s32 %s13, %s20
    %p137 = scmp.eq.s32.totalorder %s136, 0
    %s139 = sadd.s32 %s138, 1
    %s140 = scalar_select %p137, %s138, %s139
    %p143 = pneg %p137
    %p144 = scmp.eq.s32.totalorder %s13, 1
    %p145 = por %p143, %p144
    %p146 = scmp.ne.s32.totalorder %s138, %s141
    %p147 = scmp.eq.s32.totalorder %s13, 0
    %p148 = por %p146, %p147
    %p149 = scmp.ne.s32.totalorder %s138, %s141
    %p150 = scmp.eq.s32.totalorder %s18, 1
    %p151 = por %p149, %p150
    %p152 = scmp.ne.s32.totalorder %s141, %s142
    %p153 = scmp.eq.s32.totalorder %s18, 0
    %p154 = por %p152, %p153
    %p155 = scmp.ne.s32.totalorder %s141, %s142
    %p156 = scmp.eq.s32.totalorder %s19, 1
    %p157 = por %p155, %p156
    %p159 = scmp.ne.s32.totalorder %s142, %s158
    %p160 = scmp.eq.s32.totalorder %s19, 0
    %p161 = por %p159, %p160
    %s162 = ssub.s32 %s13, %s20
    %p163 = scmp.eq.s32.totalorder %s162, 0
    %s165 = sadd.s32 %s164, 1
    %s166 = scalar_select %p163, %s164, %s165
    %p169 = pneg %p163
    %p170 = scmp.eq.s32.totalorder %s13, 1
    %p171 = por %p169, %p170
    %p172 = scmp.ne.s32.totalorder %s164, %s167
    %p173 = scmp.eq.s32.totalorder %s13, 0
    %p174 = por %p172, %p173
    %p175 = scmp.ne.s32.totalorder %s164, %s167
    %p176 = scmp.eq.s32.totalorder %s18, 1
    %p177 = por %p175, %p176
    %p178 = scmp.ne.s32.totalorder %s167, %s168
    %p179 = scmp.eq.s32.totalorder %s18, 0
    %p180 = por %p178, %p179
    %p181 = scmp.ne.s32.totalorder %s167, %s168
    %p182 = scmp.eq.s32.totalorder %s19, 1
    %p183 = por %p181, %p182
    %p185 = scmp.ne.s32.totalorder %s168, %s184
    %p186 = scmp.eq.s32.totalorder %s19, 0
    %p187 = por %p185, %p186
    %p188 = scmp.le.s32.totalorder 1, %s13
    %p189 = scmp.lt.s32.totalorder %s13, 3
    %p190 = pnand %p188, %p189
    %p191 = pneg %p190
    // Predicated region
    $region9: #{resnet_mrm2_forward.16} parent=5 // pred_check
      _
    $region10: #{resnet_mrm2_forward.16} parent=5 // pred_check_branch
      %193 = sbr.rel (%p190) target = $region12
    $region11: #{resnet_mrm2_forward.16} parent=5 // pred_region
      %s194 = ssub.s32 %s13, 1
      // Predicated region
      $region13: #{resnet_mrm2_forward.16} parent=11 // pred_check
        %p195 = pneg %p60
      $region14: #{resnet_mrm2_forward.16} parent=11 // pred_check_branch
        %197 = sbr.rel (%p195) target = $region16
      $region15: #{resnet_mrm2_forward.16} parent=11 // pred_region
        _
      $region16: #{resnet_mrm2_forward.16} parent=11 // pred_fallthru
        _
      // Predicated region
      $region17: #{resnet_mrm2_forward.16} parent=11 // pred_check
        %p198 = pneg %p81
      $region18: #{resnet_mrm2_forward.16} parent=11 // pred_check_branch
        %200 = sbr.rel (%p198) target = $region20
      $region19: #{resnet_mrm2_forward.16} parent=11 // pred_region
        _
      $region20: #{resnet_mrm2_forward.16} parent=11 // pred_fallthru
        _
      // Predicated region
      $region21: #{resnet_mrm2_forward.16} parent=11 // pred_check
        %p201 = pneg %p102
      $region22: #{resnet_mrm2_forward.16} parent=11 // pred_check_branch
        %203 = sbr.rel (%p201) target = $region24
      $region23: #{resnet_mrm2_forward.16} parent=11 // pred_region
        _
      $region24: #{resnet_mrm2_forward.16} parent=11 // pred_fallthru
        _
    $region12: #{resnet_mrm2_forward.16} parent=5 // pred_fallthru
      _
    %p204 = scmp.lt.s32.totalorder %s13, 2
    // Predicated region
    $region25: #{resnet_mrm2_forward.16} parent=5 // pred_check
      %p205 = pneg %p204
    $region26: #{resnet_mrm2_forward.16} parent=5 // pred_check_branch
      %207 = sbr.rel (%p205) target = $region28
    $region27: #{resnet_mrm2_forward.16} parent=5 // pred_region
      // Predicated region
      $region29: #{resnet_mrm2_forward.16} parent=27 // pred_check
        %p208 = pneg %p33
      $region30: #{resnet_mrm2_forward.16} parent=27 // pred_check_branch
        %210 = sbr.rel (%p208) target = $region32
      $region31: #{resnet_mrm2_forward.16} parent=27 // pred_region
        %p211 = scmp.lt.s32.totalorder %s13, 1
        %s212 = scalar_select %p211, %s13, 1
        %s213 = smul.addr %s212, 2
        %s214 = smul.addr %s213, 4
        %s215 = scalar_lea.vmem %s0, %s214
      $region32: #{resnet_mrm2_forward.16} parent=27 // pred_fallthru
        _
    $region28: #{resnet_mrm2_forward.16} parent=5 // pred_fallthru
      _
    %p216 = scmp.le.s32.totalorder 1, %s13
    %p217 = scmp.lt.s32.totalorder %s13, 3
    %p218 = pnand %p216, %p217
    %p219 = pneg %p218
    // Predicated region
    $region33: #{resnet_mrm2_forward.16} parent=5 // pred_check
      _
    $region34: #{resnet_mrm2_forward.16} parent=5 // pred_check_branch
      %221 = sbr.rel (%p218) target = $region36
    $region35: #{resnet_mrm2_forward.16} parent=5 // pred_region
      %s222 = ssub.s32 %s13, 1
      %p223 = scmp.lt.s32.totalorder %s18, 1
      %s224 = scalar_select %p223, %s18, 1
      %s225 = smul.addr %s224, 2
      %s226 = smul.addr %s225, 4
      %s227 = scalar_lea.vmem %s0, %s226
      %p228 = pneg %p39
      %p229 = pneg %p36
      %p230 = pneg %p60
      %p231 = pneg %p57
      %p232 = pneg %p81
      %p233 = pneg %p78
      %p234 = pneg %p102
      %p235 = pneg %p99
      %p236 = pneg %p128
      %p237 = pneg %p125
      %p238 = scmp.lt.s32.totalorder %s18, 1
      %s239 = scalar_select %p238, %s18, 1
      %s240 = smul.addr %s239, 2
      %s241 = smul.addr %s240, 4
      %s242 = scalar_lea.vmem %s4, %s241
      %p243 = pneg %p154
      %p244 = pneg %p151
      %p245 = scmp.lt.s32.totalorder %s18, 1
      %s246 = scalar_select %p245, %s18, 1
      %s247 = scalar_lea.vmem %s5, %s246
      %p248 = pneg %p180
      %p249 = pneg %p177
      %p250 = scmp.lt.s32.totalorder %s18, 1
      %s251 = scalar_select %p250, %s18, 1
      %s252 = scalar_lea.vmem %s6, %s251
      %p253 = scmp.lt.s32.totalorder %s18, 1
      %s254 = scalar_select %p253, %s18, 1
      %s255 = smul.addr %s254, 2
      %s256 = smul.addr %s255, 4
      %s257 = scalar_lea.vmem %s0, %s256
      %p258 = scmp.lt.s32.totalorder %s18, 1
      %s259 = scalar_select %p258, %s18, 1
      %s260 = smul.addr %s259, 2
      %s261 = smul.addr %s260, 4
      %s262 = scalar_lea.vmem %s4, %s261
      %p263 = scmp.lt.s32.totalorder %s18, 1
      %s264 = scalar_select %p263, %s18, 1
      %s265 = scalar_lea.vmem %s5, %s264
      %p266 = scmp.lt.s32.totalorder %s18, 1
      %s267 = scalar_select %p266, %s18, 1
      %s268 = scalar_lea.vmem %s6, %s267
      %v270 = vld [vmem:[%s257] sm:$0xf]
      %v271 = vld [vmem:[%s257 + $0x4] sm:$0xf]
      %v272 = vunpack.c.l.bf16 %v270
      %v273 = vunpack.c.l.bf16 %v271
      %v274 = vld [vmem:[%s2] sm:$0x1]
      %v276 = vlaneseq
      %v277 = vshrl.u32 %v276, 7
      %v278 = vsub.s32 0, %v277
      %v279 = vrot.slane %v274, %v278
      %v281 = vmul.f32 %v272, %v279
      %v282 = vmul.f32 %v273, %v279
      %v283 = vld [vmem:[%s3] sm:$0x1]
      %v285 = vlaneseq
      %v286 = vshrl.u32 %v285, 7
      %v287 = vsub.s32 0, %v286
      %v288 = vrot.slane %v283, %v287
      %v290 = vadd.f32 %v281, %v288
      %v291 = vadd.f32 %v282, %v288
      %v292 = vmax.f32 %v290, 0.0
      %v293 = vmax.f32 %v291, 0.0
      %vm294 = vcmask 58368
      %295 = vst.msk [vmem:[#allocation2] sm:$0x3] %vm294, 0.0
      %vm296 = vcmask 64512
      %297 = vst.msk [vmem:[#allocation2 + $0x2] sm:$0xff] %vm296, %v292
      %vm298 = vcmask 62464
      %299 = vst.msk [vmem:[#allocation2 + $0xa] sm:$0x3f] %vm298, %v293
      %vm300 = vcmask 122944
      %301 = vst.msk [vmem:[#allocation2] sm:$0x1] %vm300, 0.0
      %304 = vrot.lane.b32.xlu0 %v292, 8
      %v305 = vpop.permute.xlu0 %304
      %306 = vrot.lane.b32.xlu0 %v293, 8
      %v307 = vpop.permute.xlu0 %306
      %vm310 = vcmask 130112
      %311 = vst.msk [vmem:[#allocation2 + $0x1] sm:$0xff] %vm310, %v305
      %vm312 = vcmask 129088
      %313 = vst.msk [vmem:[#allocation2 + $0x9] sm:$0x7f] %vm312, %v307
      %314 = vrot.lane.b32.xlu0 %v292, 16
      %v315 = vpop.permute.xlu0 %314
      %316 = vrot.lane.b32.xlu0 %v293, 16
      %v317 = vpop.permute.xlu0 %316
      %vm320 = vcmask 195712
      %321 = vst.msk [vmem:[#allocation2] sm:$0xff] %vm320, %v315
      %322 = vst.msk [vmem:[#allocation2 + $0x8] sm:$0xff] %vm320, %v317
      %vm323 = vcmask 254144
      %324 = vst.msk [vmem:[#allocation2 + $0xf] sm:$0x1] %vm323, 0.0
      %325 = vrot.lane.b32.xlu0 %v292, 24
      %v326 = vpop.permute.xlu0 %325
      %327 = vrot.lane.b32.xlu0 %v293, 24
      %v328 = vpop.permute.xlu0 %327
      %vm331 = vcmask 261313
      %332 = vst.msk [vmem:[#allocation2 - $0x1] sm:$0xfe] %vm331, %v326
      %vm333 = vcmask 261312
      %334 = vst.msk [vmem:[#allocation2 + $0x7] sm:$0xff] %vm333, %v328
      %vm335 = vcmask 320768
      %336 = vst.msk [vmem:[#allocation2 + $0xe] sm:$0x3] %vm335, 0.0
      %337 = vrot.lane.b32.xlu0 %v292, 32
      %v338 = vpop.permute.xlu0 %337
      %339 = vrot.lane.b32.xlu0 %v293, 32
      %v340 = vpop.permute.xlu0 %339
      %vm343 = vcmask 326914
      %344 = vst.msk [vmem:[#allocation2 - $0x2] sm:$0xfc] %vm343, %v338
      %vm345 = vcmask 326912
      %346 = vst.msk [vmem:[#allocation2 + $0x6] sm:$0xff] %vm345, %v340
      %v347 = vld [vmem:[#allocation2] sm:$0xff]
      %v348 = vld [vmem:[#allocation2 + $0x8] sm:$0xff]
      %v349 = vpack.c.bf16 %v348, %v347
      %v350 = vld [vmem:[%s1] sm:$0xf]
      %v351 = vld [vmem:[%s1 + $0x4] sm:$0xf]
      %v352 = vld [vmem:[%s1 + $0x8] sm:$0xf]
      %v353 = vld [vmem:[%s1 + $0xc] sm:$0xf]
      %v354 = vld [vmem:[%s1 + $0x10] sm:$0xf]
      %v360 = vunpack.c.l.b16 %v350
      %v361 = vunpack.c.l.b16 %v351
      %v362 = vunpack.c.l.b16 %v352
      %v363 = vunpack.c.l.b16 %v353
      %v364 = vunpack.c.l.b16 %v354
      %v365 = vpack.c.b16 %v361, %v360
      %v366 = vpack.c.b16 %v363, %v362
      %v367 = vpack.c.b16 %v364, %v364
      %vm370 = vcmask 326656
      %v372 = vsel %vm370, %v349, 0
      %vm374 = vcmask 1043456
      %v376 = vsel %vm374, %v367, 0
      %378 = vmatprep.subr.bf16.mxu0 0
      %379 = vmatpush1.bf16.msra.mxu0 %v365
      %380 = vmatprep.subr.bf16.mxu0 0
      %381 = vmatpush1.bf16.msra.mxu0 %v366
      %382 = vmatprep.subr.bf16.mxu0 0
      %383 = vmatpush1.bf16.msra.mxu0 %v376
      %384 = vmatprep.subr.bf16.mxu0 0
      %385 = vmatpush1.bf16.msra.mxu0 0
      %386 = vmatprep.subr.bf16.mxu0 0
      %387 = vmatpush1.bf16.msra.mxu0 0
      %388 = vmatprep.subr.bf16.mxu0 0
      %389 = vmatpush1.bf16.msra.mxu0 0
      %390 = vmatprep.subr.bf16.mxu0 0
      %391 = vmatpush1.bf16.msra.mxu0 0
      %392 = vmatprep.subr.bf16.mxu0 0
      %393 = vmatpush1.bf16.msra.mxu0 0
      %394 = vmatprep.subr.bf16.mxu0 0
      %395 = vmatpush1.bf16.msra.mxu0 0
      %396 = vmatprep.subr.bf16.mxu0 0
      %397 = vmatpush1.bf16.msra.mxu0 0
      %398 = vmatprep.subr.bf16.mxu0 0
      %399 = vmatpush1.bf16.msra.mxu0 0
      %400 = vmatprep.subr.bf16.mxu0 0
      %401 = vmatpush1.bf16.msra.mxu0 0
      %402 = vmatprep.subr.bf16.mxu0 0
      %403 = vmatpush1.bf16.msra.mxu0 0
      %404 = vmatprep.subr.bf16.mxu0 0
      %405 = vmatpush1.bf16.msra.mxu0 0
      %406 = vmatprep.subr.bf16.mxu0 0
      %407 = vmatpush1.bf16.msra.mxu0 0
      %408 = vmatprep.subr.bf16.mxu0 0
      %409 = vmatpush1.bf16.msra.mxu0 0
      %410 = vmatprep.mubr.bf16.mxu0 0
      %411 = vmatmul.mubr.bf16.gmra.mrb[0].mxu0 %v372
      %v412 = vpop.f32.mrb[0].mxu0
      %v413 = vadd.f32 0.0, %v412
      %v414 = vpop.f32.mrb[0].mxu0
      %v415 = vpop.f32.mrb[0].mxu0
      %v416 = vadd.f32 0.0, %v415
      %v417 = vpop.f32.mrb[0].mxu0
      %418 = vdwg.mxu0
      %v419 = vpack.c.bf16 %v416, %v413
      %v421 = vunpack.c.l.b16 %v419
      %v422 = vunpack.c.h.b16 %v419
      %v423 = vpack.c.b16 %v421, %v421
      %v424 = vpack.c.b16 %v422, %v422
      %vm427 = vcmask 60416
      %428 = vst.msk [vmem:[%s262] sm:$0xf] %vm427, %v423
      %429 = vst.msk [vmem:[%s262 + $0x4] sm:$0xf] %vm427, %v424
      %v430 = vsel %vm296, %v413, 0.0
      %v431 = vsel %vm296, %v416, 0.0
      %v432 = vadd.f32 %v430, %v431
      %v433 = vrot.slane %v432, 4
      %v434 = vadd.f32 %v432, %v433
      %v435 = vrot.slane %v434, 2
      %v436 = vadd.f32 %v434, %v435
      %v437 = vrot.slane %v436, 1
      %v438 = vadd.f32 %v436, %v437
      %vm439 = vcmask 57344
      %440 = vst.msk [vmem:[%s265] sm:$0x1] %vm439, %v438
      %v441 = vmul.f32 %v413, %v413
      %v442 = vmul.f32 %v416, %v416
      %v443 = vsel %vm296, %v441, 0.0
      %v444 = vsel %vm296, %v442, 0.0
      %v445 = vadd.f32 %v443, %v444
      %v446 = vrot.slane %v445, 4
      %v447 = vadd.f32 %v445, %v446
      %v448 = vrot.slane %v447, 2
      %v449 = vadd.f32 %v447, %v448
      %v450 = vrot.slane %v449, 1
      %v451 = vadd.f32 %v449, %v450
      %452 = vst.msk [vmem:[%s268] sm:$0x1] %vm439, %v451
      %p453 = scmp.lt.s32.totalorder %s18, 1
      %s454 = scalar_select %p453, %s18, 1
      %s455 = smul.addr %s454, 2
      %s456 = smul.addr %s455, 4
      %s457 = scalar_lea.vmem %s4, %s456
      %p458 = scmp.lt.s32.totalorder %s18, 1
      %s459 = scalar_select %p458, %s18, 1
      %s460 = scalar_lea.vmem %s5, %s459
      %p461 = scmp.lt.s32.totalorder %s18, 1
      %s462 = scalar_select %p461, %s18, 1
      %s463 = scalar_lea.vmem %s6, %s462
      // Predicated region
      $region37: #{resnet_mrm2_forward.16} parent=35 // pred_check
        %p464 = pneg %p125
      $region38: #{resnet_mrm2_forward.16} parent=35 // pred_check_branch
        %466 = sbr.rel (%p464) target = $region40
      $region39: #{resnet_mrm2_forward.16} parent=35 // pred_region
        _
      $region40: #{resnet_mrm2_forward.16} parent=35 // pred_fallthru
        _
      // Predicated region
      $region41: #{resnet_mrm2_forward.16} parent=35 // pred_check
        %p467 = pneg %p151
      $region42: #{resnet_mrm2_forward.16} parent=35 // pred_check_branch
        %469 = sbr.rel (%p467) target = $region44
      $region43: #{resnet_mrm2_forward.16} parent=35 // pred_region
        _
      $region44: #{resnet_mrm2_forward.16} parent=35 // pred_fallthru
        _
      // Predicated region
      $region45: #{resnet_mrm2_forward.16} parent=35 // pred_check
        %p470 = pneg %p177
      $region46: #{resnet_mrm2_forward.16} parent=35 // pred_check_branch
        %472 = sbr.rel (%p470) target = $region48
      $region47: #{resnet_mrm2_forward.16} parent=35 // pred_region
        _
      $region48: #{resnet_mrm2_forward.16} parent=35 // pred_fallthru
        _
    $region36: #{resnet_mrm2_forward.16} parent=5 // pred_fallthru
      _
    %p473 = scmp.le.s32.totalorder 2, %s13
    // Predicated region
    $region49: #{resnet_mrm2_forward.16} parent=5 // pred_check
      %p474 = pneg %p473
    $region50: #{resnet_mrm2_forward.16} parent=5 // pred_check_branch
      %476 = sbr.rel (%p474) target = $region52
    $region51: #{resnet_mrm2_forward.16} parent=5 // pred_region
      %s477 = ssub.s32 %s13, 2
      // Predicated region
      $region53: #{resnet_mrm2_forward.16} parent=51 // pred_check
        %p478 = pneg %p131
      $region54: #{resnet_mrm2_forward.16} parent=51 // pred_check_branch
        %480 = sbr.rel (%p478) target = $region56
      $region55: #{resnet_mrm2_forward.16} parent=51 // pred_region
        %p481 = scmp.lt.s32.totalorder %s19, 1
        %s482 = scalar_select %p481, %s19, 1
        %s483 = smul.addr %s482, 2
        %s484 = smul.addr %s483, 4
        %s485 = scalar_lea.vmem %s4, %s484
      $region56: #{resnet_mrm2_forward.16} parent=51 // pred_fallthru
        _
      // Predicated region
      $region57: #{resnet_mrm2_forward.16} parent=51 // pred_check
        %p486 = pneg %p157
      $region58: #{resnet_mrm2_forward.16} parent=51 // pred_check_branch
        %488 = sbr.rel (%p486) target = $region60
      $region59: #{resnet_mrm2_forward.16} parent=51 // pred_region
        %p489 = scmp.lt.s32.totalorder %s19, 1
        %s490 = scalar_select %p489, %s19, 1
        %s491 = scalar_lea.vmem %s5, %s490
      $region60: #{resnet_mrm2_forward.16} parent=51 // pred_fallthru
        _
      // Predicated region
      $region61: #{resnet_mrm2_forward.16} parent=51 // pred_check
        %p492 = pneg %p183
      $region62: #{resnet_mrm2_forward.16} parent=51 // pred_check_branch
        %494 = sbr.rel (%p492) target = $region64
      $region63: #{resnet_mrm2_forward.16} parent=51 // pred_region
        %p495 = scmp.lt.s32.totalorder %s19, 1
        %s496 = scalar_select %p495, %s19, 1
        %s497 = scalar_lea.vmem %s6, %s496
      $region64: #{resnet_mrm2_forward.16} parent=51 // pred_fallthru
        _
    $region52: #{resnet_mrm2_forward.16} parent=5 // pred_fallthru
      _
  $region6: #{resnet_mrm2_forward.16} parent=0 // loop_footer
    %s17 = sadd.s32 1, %s13
  $region7: #{resnet_mrm2_forward.16} parent=0 // loop_footer_branch
    %12 = sbr.rel target = $region3
  $region8: #{resnet_mrm2_forward.16} parent=0 // loop_exit
    _

// kernel: resnet_mrm2_forward.20
$region0: #{resnet_mrm2_forward.20}
  #allocation0 [shape = 'u32[]', space=smem, size = 0x4, offset = 0x4, fixed_abs, tag = 'smem constant byte address 0x4 - core index']
  #allocation1 [shape = 'u32[144,128]{1,0:T(1,128)}', space=vmem, size = 0x12000, scoped, tag = 'internal scratch']
  #allocation2 [shape = 'f32[16,80]{1,0:T(8,128)}', space=vmem, size = 0x2000, scoped, tag = 'scratch operand']
  %s0 = inlined_call_operand.vmem [shape: bf16[2,16,16], index: 0, kind: input, shape index: {}]
  %s1 = inlined_call_operand.vmem [shape: bf16[80,16], index: 1, kind: input, shape index: {}]
  %s2 = inlined_call_operand.vmem [shape: f32[1,16], index: 2, kind: input, shape index: {}]
  %s3 = inlined_call_operand.vmem [shape: f32[1,16], index: 3, kind: input, shape index: {}]
  %s4 = inlined_call_operand.vmem [shape: bf16[2,16,16], index: 4, kind: output, shape index: {0}]
  %s5 = inlined_call_operand.vmem [shape: f32[2,1,16], index: 5, kind: output, shape index: {1}]
  %s6 = inlined_call_operand.vmem [shape: f32[2,1,16], index: 6, kind: output, shape index: {2}]
  %7 = xla_tuple %s4, %s5, %s6
  %s8 = sld [smem:[#allocation0]]
  $region65: #{resnet_mrm2_forward.20} parent=0
    _
  %s10 = ssub.s32 1, %s8
  %s11 = scalar_select 0, %s10, %s8
  loop: start=0, step=1, limit=4
  $region2: #{resnet_mrm2_forward.20} parent=0 // loop_pre_header
    _
  $region3: #{resnet_mrm2_forward.20} parent=0 // loop_header
    %s13 = sphi 0, %s17
    %p14 = scmp.ge.s32.totalorder %s13, 4
    %s23 = sphi 0, %s25
    %s26 = sphi 0, %s23
    %s27 = sphi 0, %s26
    %s43 = sphi 0, %s27
    %s47 = sphi 0, %s47
    %s49 = sphi 0, %s47
    %s50 = sphi 0, %s49
    %s64 = sphi 0, %s50
    %s68 = sphi 0, %s68
    %s70 = sphi 0, %s68
    %s71 = sphi 0, %s70
    %s85 = sphi 0, %s71
    %s89 = sphi 0, %s89
    %s91 = sphi 0, %s89
    %s92 = sphi 0, %s91
    %s106 = sphi 0, %s92
    %s112 = sphi 0, %s114
    %s115 = sphi 0, %s112
    %s116 = sphi 0, %s115
    %s132 = sphi 0, %s116
    %s138 = sphi 0, %s140
    %s141 = sphi 0, %s138
    %s142 = sphi 0, %s141
    %s158 = sphi 0, %s142
    %s164 = sphi 0, %s166
    %s167 = sphi 0, %s164
    %s168 = sphi 0, %s167
    %s184 = sphi 0, %s168
  $region4: #{resnet_mrm2_forward.20} parent=0 // loop_header_branch
    %16 = sbr.rel (%p14) target = $region8
  $region5: #{resnet_mrm2_forward.20} parent=0 // loop_body
    %s18 = ssub.s32 %s13, 1
    %s19 = ssub.s32 %s13, 2
    %s20 = sadd.s32 %s13, 1
    %s21 = ssub.s32 %s13, %s20
    %p22 = scmp.eq.s32.totalorder %s21, 0
    %s24 = sadd.s32 %s23, 1
    %s25 = scalar_select %p22, %s23, %s24
    %p28 = pneg %p22
    %p29 = scmp.eq.s32.totalorder %s13, 1
    %p30 = por %p28, %p29
    %p31 = scmp.ne.s32.totalorder %s23, %s26
    %p32 = scmp.eq.s32.totalorder %s13, 0
    %p33 = por %p31, %p32
    %p34 = scmp.ne.s32.totalorder %s23, %s26
    %p35 = scmp.eq.s32.totalorder %s18, 1
    %p36 = por %p34, %p35
    %p37 = scmp.ne.s32.totalorder %s26, %s27
    %p38 = scmp.eq.s32.totalorder %s18, 0
    %p39 = por %p37, %p38
    %p40 = scmp.ne.s32.totalorder %s26, %s27
    %p41 = scmp.eq.s32.totalorder %s19, 1
    %p42 = por %p40, %p41
    %p44 = scmp.ne.s32.totalorder %s27, %s43
    %p45 = scmp.eq.s32.totalorder %s19, 0
    %p46 = por %p44, %p45
    %s48 = sadd.s32 %s47, 1
    %p51 = scmp.eq.s32.totalorder %s13, 1
    %p52 = scmp.ne.s32.totalorder %s47, %s49
    %p53 = scmp.eq.s32.totalorder %s13, 0
    %p54 = por %p52, %p53
    %p55 = scmp.ne.s32.totalorder %s47, %s49
    %p56 = scmp.eq.s32.totalorder %s18, 1
    %p57 = por %p55, %p56
    %p58 = scmp.ne.s32.totalorder %s49, %s50
    %p59 = scmp.eq.s32.totalorder %s18, 0
    %p60 = por %p58, %p59
    %p61 = scmp.ne.s32.totalorder %s49, %s50
    %p62 = scmp.eq.s32.totalorder %s19, 1
    %p63 = por %p61, %p62
    %p65 = scmp.ne.s32.totalorder %s50, %s64
    %p66 = scmp.eq.s32.totalorder %s19, 0
    %p67 = por %p65, %p66
    %s69 = sadd.s32 %s68, 1
    %p72 = scmp.eq.s32.totalorder %s13, 1
    %p73 = scmp.ne.s32.totalorder %s68, %s70
    %p74 = scmp.eq.s32.totalorder %s13, 0
    %p75 = por %p73, %p74
    %p76 = scmp.ne.s32.totalorder %s68, %s70
    %p77 = scmp.eq.s32.totalorder %s18, 1
    %p78 = por %p76, %p77
    %p79 = scmp.ne.s32.totalorder %s70, %s71
    %p80 = scmp.eq.s32.totalorder %s18, 0
    %p81 = por %p79, %p80
    %p82 = scmp.ne.s32.totalorder %s70, %s71
    %p83 = scmp.eq.s32.totalorder %s19, 1
    %p84 = por %p82, %p83
    %p86 = scmp.ne.s32.totalorder %s71, %s85
    %p87 = scmp.eq.s32.totalorder %s19, 0
    %p88 = por %p86, %p87
    %s90 = sadd.s32 %s89, 1
    %p93 = scmp.eq.s32.totalorder %s13, 1
    %p94 = scmp.ne.s32.totalorder %s89, %s91
    %p95 = scmp.eq.s32.totalorder %s13, 0
    %p96 = por %p94, %p95
    %p97 = scmp.ne.s32.totalorder %s89, %s91
    %p98 = scmp.eq.s32.totalorder %s18, 1
    %p99 = por %p97, %p98
    %p100 = scmp.ne.s32.totalorder %s91, %s92
    %p101 = scmp.eq.s32.totalorder %s18, 0
    %p102 = por %p100, %p101
    %p103 = scmp.ne.s32.totalorder %s91, %s92
    %p104 = scmp.eq.s32.totalorder %s19, 1
    %p105 = por %p103, %p104
    %p107 = scmp.ne.s32.totalorder %s92, %s106
    %p108 = scmp.eq.s32.totalorder %s19, 0
    %p109 = por %p107, %p108
    %s110 = ssub.s32 %s13, %s20
    %p111 = scmp.eq.s32.totalorder %s110, 0
    %s113 = sadd.s32 %s112, 1
    %s114 = scalar_select %p111, %s112, %s113
    %p117 = pneg %p111
    %p118 = scmp.eq.s32.totalorder %s13, 1
    %p119 = por %p117, %p118
    %p120 = scmp.ne.s32.totalorder %s112, %s115
    %p121 = scmp.eq.s32.totalorder %s13, 0
    %p122 = por %p120, %p121
    %p123 = scmp.ne.s32.totalorder %s112, %s115
    %p124 = scmp.eq.s32.totalorder %s18, 1
    %p125 = por %p123, %p124
    %p126 = scmp.ne.s32.totalorder %s115, %s116
    %p127 = scmp.eq.s32.totalorder %s18, 0
    %p128 = por %p126, %p127
    %p129 = scmp.ne.s32.totalorder %s115, %s116
    %p130 = scmp.eq.s32.totalorder %s19, 1
    %p131 = por %p129, %p130
    %p133 = scmp.ne.s32.totalorder %s116, %s132
    %p134 = scmp.eq.s32.totalorder %s19, 0
    %p135 = por %p133, %p134
    %s136 = ssub.s32 %s13, %s20
    %p137 = scmp.eq.s32.totalorder %s136, 0
    %s139 = sadd.s32 %s138, 1
    %s140 = scalar_select %p137, %s138, %s139
    %p143 = pneg %p137
    %p144 = scmp.eq.s32.totalorder %s13, 1
    %p145 = por %p143, %p144
    %p146 = scmp.ne.s32.totalorder %s138, %s141
    %p147 = scmp.eq.s32.totalorder %s13, 0
    %p148 = por %p146, %p147
    %p149 = scmp.ne.s32.totalorder %s138, %s141
    %p150 = scmp.eq.s32.totalorder %s18, 1
    %p151 = por %p149, %p150
    %p152 = scmp.ne.s32.totalorder %s141, %s142
    %p153 = scmp.eq.s32.totalorder %s18, 0
    %p154 = por %p152, %p153
    %p155 = scmp.ne.s32.totalorder %s141, %s142
    %p156 = scmp.eq.s32.totalorder %s19, 1
    %p157 = por %p155, %p156
    %p159 = scmp.ne.s32.totalorder %s142, %s158
    %p160 = scmp.eq.s32.totalorder %s19, 0
    %p161 = por %p159, %p160
    %s162 = ssub.s32 %s13, %s20
    %p163 = scmp.eq.s32.totalorder %s162, 0
    %s165 = sadd.s32 %s164, 1
    %s166 = scalar_select %p163, %s164, %s165
    %p169 = pneg %p163
    %p170 = scmp.eq.s32.totalorder %s13, 1
    %p171 = por %p169, %p170
    %p172 = scmp.ne.s32.totalorder %s164, %s167
    %p173 = scmp.eq.s32.totalorder %s13, 0
    %p174 = por %p172, %p173
    %p175 = scmp.ne.s32.totalorder %s164, %s167
    %p176 = scmp.eq.s32.totalorder %s18, 1
    %p177 = por %p175, %p176
    %p178 = scmp.ne.s32.totalorder %s167, %s168
    %p179 = scmp.eq.s32.totalorder %s18, 0
    %p180 = por %p178, %p179
    %p181 = scmp.ne.s32.totalorder %s167, %s168
    %p182 = scmp.eq.s32.totalorder %s19, 1
    %p183 = por %p181, %p182
    %p185 = scmp.ne.s32.totalorder %s168, %s184
    %p186 = scmp.eq.s32.totalorder %s19, 0
    %p187 = por %p185, %p186
    %p188 = scmp.le.s32.totalorder 1, %s13
    %p189 = scmp.lt.s32.totalorder %s13, 3
    %p190 = pnand %p188, %p189
    %p191 = pneg %p190
    // Predicated region
    $region9: #{resnet_mrm2_forward.20} parent=5 // pred_check
      _
    $region10: #{resnet_mrm2_forward.20} parent=5 // pred_check_branch
      %193 = sbr.rel (%p190) target = $region12
    $region11: #{resnet_mrm2_forward.20} parent=5 // pred_region
      %s194 = ssub.s32 %s13, 1
      // Predicated region
      $region13: #{resnet_mrm2_forward.20} parent=11 // pred_check
        %p195 = pneg %p60
      $region14: #{resnet_mrm2_forward.20} parent=11 // pred_check_branch
        %197 = sbr.rel (%p195) target = $region16
      $region15: #{resnet_mrm2_forward.20} parent=11 // pred_region
        _
      $region16: #{resnet_mrm2_forward.20} parent=11 // pred_fallthru
        _
      // Predicated region
      $region17: #{resnet_mrm2_forward.20} parent=11 // pred_check
        %p198 = pneg %p81
      $region18: #{resnet_mrm2_forward.20} parent=11 // pred_check_branch
        %200 = sbr.rel (%p198) target = $region20
      $region19: #{resnet_mrm2_forward.20} parent=11 // pred_region
        _
      $region20: #{resnet_mrm2_forward.20} parent=11 // pred_fallthru
        _
      // Predicated region
      $region21: #{resnet_mrm2_forward.20} parent=11 // pred_check
        %p201 = pneg %p102
      $region22: #{resnet_mrm2_forward.20} parent=11 // pred_check_branch
        %203 = sbr.rel (%p201) target = $region24
      $region23: #{resnet_mrm2_forward.20} parent=11 // pred_region
        _
      $region24: #{resnet_mrm2_forward.20} parent=11 // pred_fallthru
        _
    $region12: #{resnet_mrm2_forward.20} parent=5 // pred_fallthru
      _
    %p204 = scmp.lt.s32.totalorder %s13, 2
    // Predicated region
    $region25: #{resnet_mrm2_forward.20} parent=5 // pred_check
      %p205 = pneg %p204
    $region26: #{resnet_mrm2_forward.20} parent=5 // pred_check_branch
      %207 = sbr.rel (%p205) target = $region28
    $region27: #{resnet_mrm2_forward.20} parent=5 // pred_region
      // Predicated region
      $region29: #{resnet_mrm2_forward.20} parent=27 // pred_check
        %p208 = pneg %p33
      $region30: #{resnet_mrm2_forward.20} parent=27 // pred_check_branch
        %210 = sbr.rel (%p208) target = $region32
      $region31: #{resnet_mrm2_forward.20} parent=27 // pred_region
        %p211 = scmp.lt.s32.totalorder %s13, 1
        %s212 = scalar_select %p211, %s13, 1
        %s213 = smul.addr %s212, 2
        %s214 = smul.addr %s213, 4
        %s215 = scalar_lea.vmem %s0, %s214
      $region32: #{resnet_mrm2_forward.20} parent=27 // pred_fallthru
        _
    $region28: #{resnet_mrm2_forward.20} parent=5 // pred_fallthru
      _
    %p216 = scmp.le.s32.totalorder 1, %s13
    %p217 = scmp.lt.s32.totalorder %s13, 3
    %p218 = pnand %p216, %p217
    %p219 = pneg %p218
    // Predicated region
    $region33: #{resnet_mrm2_forward.20} parent=5 // pred_check
      _
    $region34: #{resnet_mrm2_forward.20} parent=5 // pred_check_branch
      %221 = sbr.rel (%p218) target = $region36
    $region35: #{resnet_mrm2_forward.20} parent=5 // pred_region
      %s222 = ssub.s32 %s13, 1
      %p223 = scmp.lt.s32.totalorder %s18, 1
      %s224 = scalar_select %p223, %s18, 1
      %s225 = smul.addr %s224, 2
      %s226 = smul.addr %s225, 4
      %s227 = scalar_lea.vmem %s0, %s226
      %p228 = pneg %p39
      %p229 = pneg %p36
      %p230 = pneg %p60
      %p231 = pneg %p57
      %p232 = pneg %p81
      %p233 = pneg %p78
      %p234 = pneg %p102
      %p235 = pneg %p99
      %p236 = pneg %p128
      %p237 = pneg %p125
      %p238 = scmp.lt.s32.totalorder %s18, 1
      %s239 = scalar_select %p238, %s18, 1
      %s240 = smul.addr %s239, 2
      %s241 = smul.addr %s240, 4
      %s242 = scalar_lea.vmem %s4, %s241
      %p243 = pneg %p154
      %p244 = pneg %p151
      %p245 = scmp.lt.s32.totalorder %s18, 1
      %s246 = scalar_select %p245, %s18, 1
      %s247 = scalar_lea.vmem %s5, %s246
      %p248 = pneg %p180
      %p249 = pneg %p177
      %p250 = scmp.lt.s32.totalorder %s18, 1
      %s251 = scalar_select %p250, %s18, 1
      %s252 = scalar_lea.vmem %s6, %s251
      %p253 = scmp.lt.s32.totalorder %s18, 1
      %s254 = scalar_select %p253, %s18, 1
      %s255 = smul.addr %s254, 2
      %s256 = smul.addr %s255, 4
      %s257 = scalar_lea.vmem %s0, %s256
      %p258 = scmp.lt.s32.totalorder %s18, 1
      %s259 = scalar_select %p258, %s18, 1
      %s260 = smul.addr %s259, 2
      %s261 = smul.addr %s260, 4
      %s262 = scalar_lea.vmem %s4, %s261
      %p263 = scmp.lt.s32.totalorder %s18, 1
      %s264 = scalar_select %p263, %s18, 1
      %s265 = scalar_lea.vmem %s5, %s264
      %p266 = scmp.lt.s32.totalorder %s18, 1
      %s267 = scalar_select %p266, %s18, 1
      %s268 = scalar_lea.vmem %s6, %s267
      %v270 = vld [vmem:[%s257] sm:$0xf]
      %v271 = vld [vmem:[%s257 + $0x4] sm:$0xf]
      %v272 = vunpack.c.l.bf16 %v270
      %v273 = vunpack.c.l.bf16 %v271
      %v274 = vld [vmem:[%s2] sm:$0x1]
      %v276 = vlaneseq
      %v277 = vshrl.u32 %v276, 7
      %v278 = vsub.s32 0, %v277
      %v279 = vrot.slane %v274, %v278
      %v281 = vmul.f32 %v272, %v279
      %v282 = vmul.f32 %v273, %v279
      %v283 = vld [vmem:[%s3] sm:$0x1]
      %v285 = vlaneseq
      %v286 = vshrl.u32 %v285, 7
      %v287 = vsub.s32 0, %v286
      %v288 = vrot.slane %v283, %v287
      %v290 = vadd.f32 %v281, %v288
      %v291 = vadd.f32 %v282, %v288
      %v292 = vmax.f32 %v290, 0.0
      %v293 = vmax.f32 %v291, 0.0
      %vm294 = vcmask 123904
      %295 = vst.msk [vmem:[#allocation2] sm:$0x3] %vm294, 0.0
      %vm296 = vcmask 130048
      %297 = vst.msk [vmem:[#allocation2 + $0x2] sm:$0xff] %vm296, %v292
      %vm298 = vcmask 128000
      %299 = vst.msk [vmem:[#allocation2 + $0xa] sm:$0x3f] %vm298, %v293
      %vm300 = vcmask 254080
      %301 = vst.msk [vmem:[#allocation2] sm:$0x1] %vm300, 0.0
      %304 = vrot.lane.b32.xlu0 %v292, 16
      %v305 = vpop.permute.xlu0 %304
      %306 = vrot.lane.b32.xlu0 %v293, 16
      %v307 = vpop.permute.xlu0 %306
      %vm310 = vcmask 261248
      %311 = vst.msk [vmem:[#allocation2 + $0x1] sm:$0xff] %vm310, %v305
      %vm312 = vcmask 260224
      %313 = vst.msk [vmem:[#allocation2 + $0x9] sm:$0x7f] %vm312, %v307
      %314 = vrot.lane.b32.xlu0 %v292, 32
      %v315 = vpop.permute.xlu0 %314
      %316 = vrot.lane.b32.xlu0 %v293, 32
      %v317 = vpop.permute.xlu0 %316
      %vm320 = vcmask 392448
      %321 = vst.msk [vmem:[#allocation2] sm:$0xff] %vm320, %v315
      %322 = vst.msk [vmem:[#allocation2 + $0x8] sm:$0xff] %vm320, %v317
      %vm323 = vcmask 516480
      %324 = vst.msk [vmem:[#allocation2 + $0xf] sm:$0x1] %vm323, 0.0
      %325 = vrot.lane.b32.xlu0 %v292, 48
      %v326 = vpop.permute.xlu0 %325
      %327 = vrot.lane.b32.xlu0 %v293, 48
      %v328 = vpop.permute.xlu0 %327
      %vm331 = vcmask 523649
      %332 = vst.msk [vmem:[#allocation2 - $0x1] sm:$0xfe] %vm331, %v326
      %vm333 = vcmask 523648
      %334 = vst.msk [vmem:[#allocation2 + $0x7] sm:$0xff] %vm333, %v328
      %vm335 = vcmask 648704
      %336 = vst.msk [vmem:[#allocation2 + $0xe] sm:$0x3] %vm335, 0.0
      %337 = vrot.lane.b32.xlu0 %v292, 64
      %v338 = vpop.permute.xlu0 %337
      %339 = vrot.lane.b32.xlu0 %v293, 64
      %v340 = vpop.permute.xlu0 %339
      %vm343 = vcmask 654850
      %344 = vst.msk [vmem:[#allocation2 - $0x2] sm:$0xfc] %vm343, %v338
      %vm345 = vcmask 654848
      %346 = vst.msk [vmem:[#allocation2 + $0x6] sm:$0xff] %vm345, %v340
      %v347 = vld [vmem:[#allocation2] sm:$0xff]
      %v348 = vld [vmem:[#allocation2 + $0x8] sm:$0xff]
      %v349 = vpack.c.bf16 %v348, %v347
      %v350 = vld [vmem:[%s1] sm:$0xf]
      %v351 = vld [vmem:[%s1 + $0x4] sm:$0xf]
      %v352 = vld [vmem:[%s1 + $0x8] sm:$0xf]
      %v353 = vld [vmem:[%s1 + $0xc] sm:$0xf]
      %v354 = vld [vmem:[%s1 + $0x10] sm:$0xf]
      %v355 = vld [vmem:[%s1 + $0x14] sm:$0xf]
      %v356 = vld [vmem:[%s1 + $0x18] sm:$0xf]
      %v357 = vld [vmem:[%s1 + $0x1c] sm:$0xf]
      %v358 = vld [vmem:[%s1 + $0x20] sm:$0xf]
      %v359 = vld [vmem:[%s1 + $0x24] sm:$0xf]
      %v370 = vunpack.c.l.b16 %v350
      %v371 = vunpack.c.l.b16 %v351
      %v372 = vunpack.c.l.b16 %v352
      %v373 = vunpack.c.l.b16 %v353
      %v374 = vunpack.c.l.b16 %v354
      %v375 = vunpack.c.l.b16 %v355
      %v376 = vunpack.c.l.b16 %v356
      %v377 = vunpack.c.l.b16 %v357
      %v378 = vunpack.c.l.b16 %v358
      %v379 = vunpack.c.l.b16 %v359
      %v380 = vpack.c.b16 %v371, %v370
      %v381 = vpack.c.b16 %v373, %v372
      %v382 = vpack.c.b16 %v375, %v374
      %v383 = vpack.c.b16 %v377, %v376
      %v384 = vpack.c.b16 %v379, %v378
      %vm390 = vcmask 654336
      %v392 = vsel %vm390, %v349, 0
      %394 = vmatprep.subr.bf16.mxu0 0
      %395 = vmatpush1.bf16.msra.mxu0 %v380
      %396 = vmatprep.subr.bf16.mxu0 0
      %397 = vmatpush1.bf16.msra.mxu0 %v381
      %398 = vmatprep.subr.bf16.mxu0 0
      %399 = vmatpush1.bf16.msra.mxu0 %v382
      %400 = vmatprep.subr.bf16.mxu0 0
      %401 = vmatpush1.bf16.msra.mxu0 %v383
      %402 = vmatprep.subr.bf16.mxu0 0
      %403 = vmatpush1.bf16.msra.mxu0 %v384
      %404 = vmatprep.subr.bf16.mxu0 0
      %405 = vmatpush1.bf16.msra.mxu0 0
      %406 = vmatprep.subr.bf16.mxu0 0
      %407 = vmatpush1.bf16.msra.mxu0 0
      %408 = vmatprep.subr.bf16.mxu0 0
      %409 = vmatpush1.bf16.msra.mxu0 0
      %410 = vmatprep.subr.bf16.mxu0 0
      %411 = vmatpush1.bf16.msra.mxu0 0
      %412 = vmatprep.subr.bf16.mxu0 0
      %413 = vmatpush1.bf16.msra.mxu0 0
      %414 = vmatprep.subr.bf16.mxu0 0
      %415 = vmatpush1.bf16.msra.mxu0 0
      %416 = vmatprep.subr.bf16.mxu0 0
      %417 = vmatpush1.bf16.msra.mxu0 0
      %418 = vmatprep.subr.bf16.mxu0 0
      %419 = vmatpush1.bf16.msra.mxu0 0
      %420 = vmatprep.subr.bf16.mxu0 0
      %421 = vmatpush1.bf16.msra.mxu0 0
      %422 = vmatprep.subr.bf16.mxu0 0
      %423 = vmatpush1.bf16.msra.mxu0 0
      %424 = vmatprep.subr.bf16.mxu0 0
      %425 = vmatpush1.bf16.msra.mxu0 0
      %426 = vmatprep.mubr.bf16.mxu0 0
      %427 = vmatmul.mubr.bf16.gmra.mrb[0].mxu0 %v392
      %v428 = vpop.f32.mrb[0].mxu0
      %v429 = vadd.f32 0.0, %v428
      %v430 = vpop.f32.mrb[0].mxu0
      %v431 = vpop.f32.mrb[0].mxu0
      %v432 = vadd.f32 0.0, %v431
      %v433 = vpop.f32.mrb[0].mxu0
      %434 = vdwg.mxu0
      %v435 = vpack.c.bf16 %v432, %v429
      %v437 = vunpack.c.l.b16 %v435
      %v438 = vunpack.c.h.b16 %v435
      %v439 = vpack.c.b16 %v437, %v437
      %v440 = vpack.c.b16 %v438, %v438
      %vm443 = vcmask 125952
      %444 = vst.msk [vmem:[%s262] sm:$0xf] %vm443, %v439
      %445 = vst.msk [vmem:[%s262 + $0x4] sm:$0xf] %vm443, %v440
      %v446 = vsel %vm296, %v429, 0.0
      %v447 = vsel %vm296, %v432, 0.0
      %v448 = vadd.f32 %v446, %v447
      %v449 = vrot.slane %v448, 4
      %v450 = vadd.f32 %v448, %v449
      %v451 = vrot.slane %v450, 2
      %v452 = vadd.f32 %v450, %v451
      %v453 = vrot.slane %v452, 1
      %v454 = vadd.f32 %v452, %v453
      %vm455 = vcmask 122880
      %456 = vst.msk [vmem:[%s265] sm:$0x1] %vm455, %v454
      %v457 = vmul.f32 %v429, %v429
      %v458 = vmul.f32 %v432, %v432
      %v459 = vsel %vm296, %v457, 0.0
      %v460 = vsel %vm296, %v458, 0.0
      %v461 = vadd.f32 %v459, %v460
      %v462 = vrot.slane %v461, 4
      %v463 = vadd.f32 %v461, %v462
      %v464 = vrot.slane %v463, 2
      %v465 = vadd.f32 %v463, %v464
      %v466 = vrot.slane %v465, 1
      %v467 = vadd.f32 %v465, %v466
      %468 = vst.msk [vmem:[%s268] sm:$0x1] %vm455, %v467
      %p469 = scmp.lt.s32.totalorder %s18, 1
      %s470 = scalar_select %p469, %s18, 1
      %s471 = smul.addr %s470, 2
      %s472 = smul.addr %s471, 4
      %s473 = scalar_lea.vmem %s4, %s472
      %p474 = scmp.lt.s32.totalorder %s18, 1
      %s475 = scalar_select %p474, %s18, 1
      %s476 = scalar_lea.vmem %s5, %s475
      %p477 = scmp.lt.s32.totalorder %s18, 1
      %s478 = scalar_select %p477, %s18, 1
      %s479 = scalar_lea.vmem %s6, %s478
      // Predicated region
      $region37: #{resnet_mrm2_forward.20} parent=35 // pred_check
        %p480 = pneg %p125
      $region38: #{resnet_mrm2_forward.20} parent=35 // pred_check_branch
        %482 = sbr.rel (%p480) target = $region40
      $region39: #{resnet_mrm2_forward.20} parent=35 // pred_region
        _
      $region40: #{resnet_mrm2_forward.20} parent=35 // pred_fallthru
        _
      // Predicated region
      $region41: #{resnet_mrm2_forward.20} parent=35 // pred_check
        %p483 = pneg %p151
      $region42: #{resnet_mrm2_forward.20} parent=35 // pred_check_branch
        %485 = sbr.rel (%p483) target = $region44
      $region43: #{resnet_mrm2_forward.20} parent=35 // pred_region
        _
      $region44: #{resnet_mrm2_forward.20} parent=35 // pred_fallthru
        _
      // Predicated region
      $region45: #{resnet_mrm2_forward.20} parent=35 // pred_check
        %p486 = pneg %p177
      $region46: #{resnet_mrm2_forward.20} parent=35 // pred_check_branch
        %488 = sbr.rel (%p486) target = $region48
      $region47: #{resnet_mrm2_forward.20} parent=35 // pred_region
        _
      $region48: #{resnet_mrm2_forward.20} parent=35 // pred_fallthru
        _
    $region36: #{resnet_mrm2_forward.20} parent=5 // pred_fallthru
      _
    %p489 = scmp.le.s32.totalorder 2, %s13
    // Predicated region
    $region49: #{resnet_mrm2_forward.20} parent=5 // pred_check
      %p490 = pneg %p489
    $region50: #{resnet_mrm2_forward.20} parent=5 // pred_check_branch
      %492 = sbr.rel (%p490) target = $region52
    $region51: #{resnet_mrm2_forward.20} parent=5 // pred_region
      %s493 = ssub.s32 %s13, 2
      // Predicated region
      $region53: #{resnet_mrm2_forward.20} parent=51 // pred_check
        %p494 = pneg %p131
      $region54: #{resnet_mrm2_forward.20} parent=51 // pred_check_branch
        %496 = sbr.rel (%p494) target = $region56
      $region55: #{resnet_mrm2_forward.20} parent=51 // pred_region
        %p497 = scmp.lt.s32.totalorder %s19, 1
        %s498 = scalar_select %p497, %s19, 1
        %s499 = smul.addr %s498, 2
        %s500 = smul.addr %s499, 4
        %s501 = scalar_lea.vmem %s4, %s500
      $region56: #{resnet_mrm2_forward.20} parent=51 // pred_fallthru
        _
      // Predicated region
      $region57: #{resnet_mrm2_forward.20} parent=51 // pred_check
        %p502 = pneg %p157
      $region58: #{resnet_mrm2_forward.20} parent=51 // pred_check_branch
        %504 = sbr.rel (%p502) target = $region60
      $region59: #{resnet_mrm2_forward.20} parent=51 // pred_region
        %p505 = scmp.lt.s32.totalorder %s19, 1
        %s506 = scalar_select %p505, %s19, 1
        %s507 = scalar_lea.vmem %s5, %s506
      $region60: #{resnet_mrm2_forward.20} parent=51 // pred_fallthru
        _
      // Predicated region
      $region61: #{resnet_mrm2_forward.20} parent=51 // pred_check
        %p508 = pneg %p183
      $region62: #{resnet_mrm2_forward.20} parent=51 // pred_check_branch
        %510 = sbr.rel (%p508) target = $region64
      $region63: #{resnet_mrm2_forward.20} parent=51 // pred_region
        %p511 = scmp.lt.s32.totalorder %s19, 1
        %s512 = scalar_select %p511, %s19, 1
        %s513 = scalar_lea.vmem %s6, %s512
      $region64: #{resnet_mrm2_forward.20} parent=51 // pred_fallthru
        _
    $region52: #{resnet_mrm2_forward.20} parent=5 // pred_fallthru
      _
  $region6: #{resnet_mrm2_forward.20} parent=0 // loop_footer
    %s17 = sadd.s32 1, %s13
  $region7: #{resnet_mrm2_forward.20} parent=0 // loop_footer_branch
    %12 = sbr.rel target = $region3
  $region8: #{resnet_mrm2_forward.20} parent=0 // loop_exit
    _

// kernel: resnet_mrm2_forward.19
$region0: #{resnet_mrm2_forward.19}
  #allocation0 [shape = 'u32[]', space=smem, size = 0x4, offset = 0x4, fixed_abs, tag = 'smem constant byte address 0x4 - core index']
  #allocation1 [shape = 'u32[144,128]{1,0:T(1,128)}', space=vmem, size = 0x12000, scoped, tag = 'internal scratch']
  #allocation2 [shape = 'f32[16,64]{1,0:T(8,128)}', space=vmem, size = 0x2000, scoped, tag = 'scratch operand']
  %s0 = inlined_call_operand.vmem [shape: bf16[2,16,8], index: 0, kind: input, shape index: {}]
  %s1 = inlined_call_operand.vmem [shape: bf16[64,16], index: 1, kind: input, shape index: {}]
  %s2 = inlined_call_operand.vmem [shape: bf16[8,16], index: 2, kind: input, shape index: {}]
  %s3 = inlined_call_operand.vmem [shape: bf16[2,16,16], index: 3, kind: output, shape index: {0}]
  %s4 = inlined_call_operand.vmem [shape: f32[2,1,16], index: 4, kind: output, shape index: {1}]
  %s5 = inlined_call_operand.vmem [shape: f32[2,1,16], index: 5, kind: output, shape index: {2}]
  %s6 = inlined_call_operand.vmem [shape: bf16[2,16,16], index: 6, kind: output, shape index: {3}]
  %s7 = inlined_call_operand.vmem [shape: f32[2,1,16], index: 7, kind: output, shape index: {4}]
  %s8 = inlined_call_operand.vmem [shape: f32[2,1,16], index: 8, kind: output, shape index: {5}]
  %9 = xla_tuple %s3, %s4, %s5, %s6, %s7, %s8
  %s10 = sld [smem:[#allocation0]]
  $region85: #{resnet_mrm2_forward.19} parent=0
    _
  %s12 = ssub.s32 1, %s10
  %s13 = scalar_select 0, %s12, %s10
  loop: start=0, step=1, limit=4
  $region2: #{resnet_mrm2_forward.19} parent=0 // loop_pre_header
    _
  $region3: #{resnet_mrm2_forward.19} parent=0 // loop_header
    %s15 = sphi 0, %s19
    %p16 = scmp.ge.s32.totalorder %s15, 4
    %s25 = sphi 0, %s27
    %s28 = sphi 0, %s25
    %s29 = sphi 0, %s28
    %s45 = sphi 0, %s29
    %s49 = sphi 0, %s49
    %s51 = sphi 0, %s49
    %s52 = sphi 0, %s51
    %s66 = sphi 0, %s52
    %s70 = sphi 0, %s70
    %s72 = sphi 0, %s70
    %s73 = sphi 0, %s72
    %s87 = sphi 0, %s73
    %s93 = sphi 0, %s95
    %s96 = sphi 0, %s93
    %s97 = sphi 0, %s96
    %s113 = sphi 0, %s97
    %s119 = sphi 0, %s121
    %s122 = sphi 0, %s119
    %s123 = sphi 0, %s122
    %s139 = sphi 0, %s123
    %s145 = sphi 0, %s147
    %s148 = sphi 0, %s145
    %s149 = sphi 0, %s148
    %s165 = sphi 0, %s149
    %s171 = sphi 0, %s173
    %s174 = sphi 0, %s171
    %s175 = sphi 0, %s174
    %s191 = sphi 0, %s175
    %s197 = sphi 0, %s199
    %s200 = sphi 0, %s197
    %s201 = sphi 0, %s200
    %s217 = sphi 0, %s201
    %s223 = sphi 0, %s225
    %s226 = sphi 0, %s223
    %s227 = sphi 0, %s226
    %s243 = sphi 0, %s227
  $region4: #{resnet_mrm2_forward.19} parent=0 // loop_header_branch
    %18 = sbr.rel (%p16) target = $region8
  $region5: #{resnet_mrm2_forward.19} parent=0 // loop_body
    %s20 = ssub.s32 %s15, 1
    %s21 = ssub.s32 %s15, 2
    %s22 = sadd.s32 %s15, 1
    %s23 = ssub.s32 %s15, %s22
    %p24 = scmp.eq.s32.totalorder %s23, 0
    %s26 = sadd.s32 %s25, 1
    %s27 = scalar_select %p24, %s25, %s26
    %p30 = pneg %p24
    %p31 = scmp.eq.s32.totalorder %s15, 1
    %p32 = por %p30, %p31
    %p33 = scmp.ne.s32.totalorder %s25, %s28
    %p34 = scmp.eq.s32.totalorder %s15, 0
    %p35 = por %p33, %p34
    %p36 = scmp.ne.s32.totalorder %s25, %s28
    %p37 = scmp.eq.s32.totalorder %s20, 1
    %p38 = por %p36, %p37
    %p39 = scmp.ne.s32.totalorder %s28, %s29
    %p40 = scmp.eq.s32.totalorder %s20, 0
    %p41 = por %p39, %p40
    %p42 = scmp.ne.s32.totalorder %s28, %s29
    %p43 = scmp.eq.s32.totalorder %s21, 1
    %p44 = por %p42, %p43
    %p46 = scmp.ne.s32.totalorder %s29, %s45
    %p47 = scmp.eq.s32.totalorder %s21, 0
    %p48 = por %p46, %p47
    %s50 = sadd.s32 %s49, 1
    %p53 = scmp.eq.s32.totalorder %s15, 1
    %p54 = scmp.ne.s32.totalorder %s49, %s51
    %p55 = scmp.eq.s32.totalorder %s15, 0
    %p56 = por %p54, %p55
    %p57 = scmp.ne.s32.totalorder %s49, %s51
    %p58 = scmp.eq.s32.totalorder %s20, 1
    %p59 = por %p57, %p58
    %p60 = scmp.ne.s32.totalorder %s51, %s52
    %p61 = scmp.eq.s32.totalorder %s20, 0
    %p62 = por %p60, %p61
    %p63 = scmp.ne.s32.totalorder %s51, %s52
    %p64 = scmp.eq.s32.totalorder %s21, 1
    %p65 = por %p63, %p64
    %p67 = scmp.ne.s32.totalorder %s52, %s66
    %p68 = scmp.eq.s32.totalorder %s21, 0
    %p69 = por %p67, %p68
    %s71 = sadd.s32 %s70, 1
    %p74 = scmp.eq.s32.totalorder %s15, 1
    %p75 = scmp.ne.s32.totalorder %s70, %s72
    %p76 = scmp.eq.s32.totalorder %s15, 0
    %p77 = por %p75, %p76
    %p78 = scmp.ne.s32.totalorder %s70, %s72
    %p79 = scmp.eq.s32.totalorder %s20, 1
    %p80 = por %p78, %p79
    %p81 = scmp.ne.s32.totalorder %s72, %s73
    %p82 = scmp.eq.s32.totalorder %s20, 0
    %p83 = por %p81, %p82
    %p84 = scmp.ne.s32.totalorder %s72, %s73
    %p85 = scmp.eq.s32.totalorder %s21, 1
    %p86 = por %p84, %p85
    %p88 = scmp.ne.s32.totalorder %s73, %s87
    %p89 = scmp.eq.s32.totalorder %s21, 0
    %p90 = por %p88, %p89
    %s91 = ssub.s32 %s15, %s22
    %p92 = scmp.eq.s32.totalorder %s91, 0
    %s94 = sadd.s32 %s93, 1
    %s95 = scalar_select %p92, %s93, %s94
    %p98 = pneg %p92
    %p99 = scmp.eq.s32.totalorder %s15, 1
    %p100 = por %p98, %p99
    %p101 = scmp.ne.s32.totalorder %s93, %s96
    %p102 = scmp.eq.s32.totalorder %s15, 0
    %p103 = por %p101, %p102
    %p104 = scmp.ne.s32.totalorder %s93, %s96
    %p105 = scmp.eq.s32.totalorder %s20, 1
    %p106 = por %p104, %p105
    %p107 = scmp.ne.s32.totalorder %s96, %s97
    %p108 = scmp.eq.s32.totalorder %s20, 0
    %p109 = por %p107, %p108
    %p110 = scmp.ne.s32.totalorder %s96, %s97
    %p111 = scmp.eq.s32.totalorder %s21, 1
    %p112 = por %p110, %p111
    %p114 = scmp.ne.s32.totalorder %s97, %s113
    %p115 = scmp.eq.s32.totalorder %s21, 0
    %p116 = por %p114, %p115
    %s117 = ssub.s32 %s15, %s22
    %p118 = scmp.eq.s32.totalorder %s117, 0
    %s120 = sadd.s32 %s119, 1
    %s121 = scalar_select %p118, %s119, %s120
    %p124 = pneg %p118
    %p125 = scmp.eq.s32.totalorder %s15, 1
    %p126 = por %p124, %p125
    %p127 = scmp.ne.s32.totalorder %s119, %s122
    %p128 = scmp.eq.s32.totalorder %s15, 0
    %p129 = por %p127, %p128
    %p130 = scmp.ne.s32.totalorder %s119, %s122
    %p131 = scmp.eq.s32.totalorder %s20, 1
    %p132 = por %p130, %p131
    %p133 = scmp.ne.s32.totalorder %s122, %s123
    %p134 = scmp.eq.s32.totalorder %s20, 0
    %p135 = por %p133, %p134
    %p136 = scmp.ne.s32.totalorder %s122, %s123
    %p137 = scmp.eq.s32.totalorder %s21, 1
    %p138 = por %p136, %p137
    %p140 = scmp.ne.s32.totalorder %s123, %s139
    %p141 = scmp.eq.s32.totalorder %s21, 0
    %p142 = por %p140, %p141
    %s143 = ssub.s32 %s15, %s22
    %p144 = scmp.eq.s32.totalorder %s143, 0
    %s146 = sadd.s32 %s145, 1
    %s147 = scalar_select %p144, %s145, %s146
    %p150 = pneg %p144
    %p151 = scmp.eq.s32.totalorder %s15, 1
    %p152 = por %p150, %p151
    %p153 = scmp.ne.s32.totalorder %s145, %s148
    %p154 = scmp.eq.s32.totalorder %s15, 0
    %p155 = por %p153, %p154
    %p156 = scmp.ne.s32.totalorder %s145, %s148
    %p157 = scmp.eq.s32.totalorder %s20, 1
    %p158 = por %p156, %p157
    %p159 = scmp.ne.s32.totalorder %s148, %s149
    %p160 = scmp.eq.s32.totalorder %s20, 0
    %p161 = por %p159, %p160
    %p162 = scmp.ne.s32.totalorder %s148, %s149
    %p163 = scmp.eq.s32.totalorder %s21, 1
    %p164 = por %p162, %p163
    %p166 = scmp.ne.s32.totalorder %s149, %s165
    %p167 = scmp.eq.s32.totalorder %s21, 0
    %p168 = por %p166, %p167
    %s169 = ssub.s32 %s15, %s22
    %p170 = scmp.eq.s32.totalorder %s169, 0
    %s172 = sadd.s32 %s171, 1
    %s173 = scalar_select %p170, %s171, %s172
    %p176 = pneg %p170
    %p177 = scmp.eq.s32.totalorder %s15, 1
    %p178 = por %p176, %p177
    %p179 = scmp.ne.s32.totalorder %s171, %s174
    %p180 = scmp.eq.s32.totalorder %s15, 0
    %p181 = por %p179, %p180
    %p182 = scmp.ne.s32.totalorder %s171, %s174
    %p183 = scmp.eq.s32.totalorder %s20, 1
    %p184 = por %p182, %p183
    %p185 = scmp.ne.s32.totalorder %s174, %s175
    %p186 = scmp.eq.s32.totalorder %s20, 0
    %p187 = por %p185, %p186
    %p188 = scmp.ne.s32.totalorder %s174, %s175
    %p189 = scmp.eq.s32.totalorder %s21, 1
    %p190 = por %p188, %p189
    %p192 = scmp.ne.s32.totalorder %s175, %s191
    %p193 = scmp.eq.s32.totalorder %s21, 0
    %p194 = por %p192, %p193
    %s195 = ssub.s32 %s15, %s22
    %p196 = scmp.eq.s32.totalorder %s195, 0
    %s198 = sadd.s32 %s197, 1
    %s199 = scalar_select %p196, %s197, %s198
    %p202 = pneg %p196
    %p203 = scmp.eq.s32.totalorder %s15, 1
    %p204 = por %p202, %p203
    %p205 = scmp.ne.s32.totalorder %s197, %s200
    %p206 = scmp.eq.s32.totalorder %s15, 0
    %p207 = por %p205, %p206
    %p208 = scmp.ne.s32.totalorder %s197, %s200
    %p209 = scmp.eq.s32.totalorder %s20, 1
    %p210 = por %p208, %p209
    %p211 = scmp.ne.s32.totalorder %s200, %s201
    %p212 = scmp.eq.s32.totalorder %s20, 0
    %p213 = por %p211, %p212
    %p214 = scmp.ne.s32.totalorder %s200, %s201
    %p215 = scmp.eq.s32.totalorder %s21, 1
    %p216 = por %p214, %p215
    %p218 = scmp.ne.s32.totalorder %s201, %s217
    %p219 = scmp.eq.s32.totalorder %s21, 0
    %p220 = por %p218, %p219
    %s221 = ssub.s32 %s15, %s22
    %p222 = scmp.eq.s32.totalorder %s221, 0
    %s224 = sadd.s32 %s223, 1
    %s225 = scalar_select %p222, %s223, %s224
    %p228 = pneg %p222
    %p229 = scmp.eq.s32.totalorder %s15, 1
    %p230 = por %p228, %p229
    %p231 = scmp.ne.s32.totalorder %s223, %s226
    %p232 = scmp.eq.s32.totalorder %s15, 0
    %p233 = por %p231, %p232
    %p234 = scmp.ne.s32.totalorder %s223, %s226
    %p235 = scmp.eq.s32.totalorder %s20, 1
    %p236 = por %p234, %p235
    %p237 = scmp.ne.s32.totalorder %s226, %s227
    %p238 = scmp.eq.s32.totalorder %s20, 0
    %p239 = por %p237, %p238
    %p240 = scmp.ne.s32.totalorder %s226, %s227
    %p241 = scmp.eq.s32.totalorder %s21, 1
    %p242 = por %p240, %p241
    %p244 = scmp.ne.s32.totalorder %s227, %s243
    %p245 = scmp.eq.s32.totalorder %s21, 0
    %p246 = por %p244, %p245
    %p247 = scmp.le.s32.totalorder 1, %s15
    %p248 = scmp.lt.s32.totalorder %s15, 3
    %p249 = pnand %p247, %p248
    %p250 = pneg %p249
    // Predicated region
    $region9: #{resnet_mrm2_forward.19} parent=5 // pred_check
      _
    $region10: #{resnet_mrm2_forward.19} parent=5 // pred_check_branch
      %252 = sbr.rel (%p249) target = $region12
    $region11: #{resnet_mrm2_forward.19} parent=5 // pred_region
      %s253 = ssub.s32 %s15, 1
      // Predicated region
      $region13: #{resnet_mrm2_forward.19} parent=11 // pred_check
        %p254 = pneg %p62
      $region14: #{resnet_mrm2_forward.19} parent=11 // pred_check_branch
        %256 = sbr.rel (%p254) target = $region16
      $region15: #{resnet_mrm2_forward.19} parent=11 // pred_region
        _
      $region16: #{resnet_mrm2_forward.19} parent=11 // pred_fallthru
        _
      // Predicated region
      $region17: #{resnet_mrm2_forward.19} parent=11 // pred_check
        %p257 = pneg %p83
      $region18: #{resnet_mrm2_forward.19} parent=11 // pred_check_branch
        %259 = sbr.rel (%p257) target = $region20
      $region19: #{resnet_mrm2_forward.19} parent=11 // pred_region
        _
      $region20: #{resnet_mrm2_forward.19} parent=11 // pred_fallthru
        _
    $region12: #{resnet_mrm2_forward.19} parent=5 // pred_fallthru
      _
    %p260 = scmp.lt.s32.totalorder %s15, 2
    // Predicated region
    $region21: #{resnet_mrm2_forward.19} parent=5 // pred_check
      %p261 = pneg %p260
    $region22: #{resnet_mrm2_forward.19} parent=5 // pred_check_branch
      %263 = sbr.rel (%p261) target = $region24
    $region23: #{resnet_mrm2_forward.19} parent=5 // pred_region
      // Predicated region
      $region25: #{resnet_mrm2_forward.19} parent=23 // pred_check
        %p264 = pneg %p35
      $region26: #{resnet_mrm2_forward.19} parent=23 // pred_check_branch
        %266 = sbr.rel (%p264) target = $region28
      $region27: #{resnet_mrm2_forward.19} parent=23 // pred_region
        %p267 = scmp.lt.s32.totalorder %s15, 1
        %s268 = scalar_select %p267, %s15, 1
        %s269 = smul.addr %s268, 2
        %s270 = smul.addr %s269, 4
        %s271 = scalar_lea.vmem %s0, %s270
      $region28: #{resnet_mrm2_forward.19} parent=23 // pred_fallthru
        _
    $region24: #{resnet_mrm2_forward.19} parent=5 // pred_fallthru
      _
    %p272 = scmp.le.s32.totalorder 1, %s15
    %p273 = scmp.lt.s32.totalorder %s15, 3
    %p274 = pnand %p272, %p273
    %p275 = pneg %p274
    // Predicated region
    $region29: #{resnet_mrm2_forward.19} parent=5 // pred_check
      _
    $region30: #{resnet_mrm2_forward.19} parent=5 // pred_check_branch
      %277 = sbr.rel (%p274) target = $region32
    $region31: #{resnet_mrm2_forward.19} parent=5 // pred_region
      %s278 = ssub.s32 %s15, 1
      %p279 = scmp.lt.s32.totalorder %s20, 1
      %s280 = scalar_select %p279, %s20, 1
      %s281 = smul.addr %s280, 2
      %s282 = smul.addr %s281, 4
      %s283 = scalar_lea.vmem %s0, %s282
      %p284 = pneg %p41
      %p285 = pneg %p38
      %p286 = pneg %p62
      %p287 = pneg %p59
      %p288 = pneg %p83
      %p289 = pneg %p80
      %p290 = pneg %p109
      %p291 = pneg %p106
      %p292 = scmp.lt.s32.totalorder %s20, 1
      %s293 = scalar_select %p292, %s20, 1
      %s294 = smul.addr %s293, 2
      %s295 = smul.addr %s294, 4
      %s296 = scalar_lea.vmem %s3, %s295
      %p297 = pneg %p135
      %p298 = pneg %p132
      %p299 = scmp.lt.s32.totalorder %s20, 1
      %s300 = scalar_select %p299, %s20, 1
      %s301 = scalar_lea.vmem %s4, %s300
      %p302 = pneg %p161
      %p303 = pneg %p158
      %p304 = scmp.lt.s32.totalorder %s20, 1
      %s305 = scalar_select %p304, %s20, 1
      %s306 = scalar_lea.vmem %s5, %s305
      %p307 = pneg %p187
      %p308 = pneg %p184
      %p309 = scmp.lt.s32.totalorder %s20, 1
      %s310 = scalar_select %p309, %s20, 1
      %s311 = smul.addr %s310, 2
      %s312 = smul.addr %s311, 4
      %s313 = scalar_lea.vmem %s6, %s312
      %p314 = pneg %p213
      %p315 = pneg %p210
      %p316 = scmp.lt.s32.totalorder %s20, 1
      %s317 = scalar_select %p316, %s20, 1
      %s318 = scalar_lea.vmem %s7, %s317
      %p319 = pneg %p239
      %p320 = pneg %p236
      %p321 = scmp.lt.s32.totalorder %s20, 1
      %s322 = scalar_select %p321, %s20, 1
      %s323 = scalar_lea.vmem %s8, %s322
      %p324 = scmp.lt.s32.totalorder %s20, 1
      %s325 = scalar_select %p324, %s20, 1
      %s326 = smul.addr %s325, 2
      %s327 = smul.addr %s326, 4
      %s328 = scalar_lea.vmem %s0, %s327
      %p329 = scmp.lt.s32.totalorder %s20, 1
      %s330 = scalar_select %p329, %s20, 1
      %s331 = smul.addr %s330, 2
      %s332 = smul.addr %s331, 4
      %s333 = scalar_lea.vmem %s3, %s332
      %p334 = scmp.lt.s32.totalorder %s20, 1
      %s335 = scalar_select %p334, %s20, 1
      %s336 = scalar_lea.vmem %s4, %s335
      %p337 = scmp.lt.s32.totalorder %s20, 1
      %s338 = scalar_select %p337, %s20, 1
      %s339 = scalar_lea.vmem %s5, %s338
      %p340 = scmp.lt.s32.totalorder %s20, 1
      %s341 = scalar_select %p340, %s20, 1
      %s342 = smul.addr %s341, 2
      %s343 = smul.addr %s342, 4
      %s344 = scalar_lea.vmem %s6, %s343
      %p345 = scmp.lt.s32.totalorder %s20, 1
      %s346 = scalar_select %p345, %s20, 1
      %s347 = scalar_lea.vmem %s7, %s346
      %p348 = scmp.lt.s32.totalorder %s20, 1
      %s349 = scalar_select %p348, %s20, 1
      %s350 = scalar_lea.vmem %s8, %s349
      %v352 = vld [vmem:[%s328] sm:$0xf]
      %v353 = vld [vmem:[%s328 + $0x4] sm:$0xf]
      %v354 = vunpack.c.l.bf16 %v352
      %v355 = vunpack.c.l.bf16 %v353
      %vm356 = vcmask 60416
      %357 = vst.msk [vmem:[#allocation2] sm:$0xf] %vm356, 0.0
      %vm358 = vcmask 64512
      %359 = vst.msk [vmem:[#allocation2 + $0x4] sm:$0xff] %vm358, %v354
      %360 = vst.msk [vmem:[#allocation2 + $0xc] sm:$0xf] %vm356, %v355
      %vm361 = vcmask 124992
      %362 = vst.msk [vmem:[#allocation2] sm:$0x7] %vm361, 0.0
      %365 = vrot.lane.b32.xlu0 %v354, 8
      %v366 = vpop.permute.xlu0 %365
      %367 = vrot.lane.b32.xlu0 %v355, 8
      %v368 = vpop.permute.xlu0 %367
      %vm371 = vcmask 130112
      %372 = vst.msk [vmem:[#allocation2 + $0x3] sm:$0xff] %vm371, %v366
      %vm373 = vcmask 127040
      %374 = vst.msk [vmem:[#allocation2 + $0xb] sm:$0x1f] %vm373, %v368
      %vm375 = vcmask 189568
      %376 = vst.msk [vmem:[#allocation2] sm:$0x3] %vm375, 0.0
      %377 = vrot.lane.b32.xlu0 %v354, 16
      %v378 = vpop.permute.xlu0 %377
      %379 = vrot.lane.b32.xlu0 %v355, 16
      %v380 = vpop.permute.xlu0 %379
      %vm383 = vcmask 195712
      %384 = vst.msk [vmem:[#allocation2 + $0x2] sm:$0xff] %vm383, %v378
      %vm385 = vcmask 193664
      %386 = vst.msk [vmem:[#allocation2 + $0xa] sm:$0x3f] %vm385, %v380
      %vm387 = vcmask 254144
      %388 = vst.msk [vmem:[#allocation2] sm:$0x1] %vm387, 0.0
      %389 = vrot.lane.b32.xlu0 %v354, 24
      %v390 = vpop.permute.xlu0 %389
      %391 = vrot.lane.b32.xlu0 %v355, 24
      %v392 = vpop.permute.xlu0 %391
      %vm395 = vcmask 261312
      %396 = vst.msk [vmem:[#allocation2 + $0x1] sm:$0xff] %vm395, %v390
      %vm397 = vcmask 260288
      %398 = vst.msk [vmem:[#allocation2 + $0x9] sm:$0x7f] %vm397, %v392
      %399 = vrot.lane.b32.xlu0 %v354, 32
      %v400 = vpop.permute.xlu0 %399
      %401 = vrot.lane.b32.xlu0 %v355, 32
      %v402 = vpop.permute.xlu0 %401
      %vm405 = vcmask 326912
      %406 = vst.msk [vmem:[#allocation2] sm:$0xff] %vm405, %v400
      %407 = vst.msk [vmem:[#allocation2 + $0x8] sm:$0xff] %vm405, %v402
      %vm408 = vcmask 385344
      %409 = vst.msk [vmem:[#allocation2 + $0xf] sm:$0x1] %vm408, 0.0
      %410 = vrot.lane.b32.xlu0 %v354, 40
      %v411 = vpop.permute.xlu0 %410
      %412 = vrot.lane.b32.xlu0 %v355, 40
      %v413 = vpop.permute.xlu0 %412
      %vm416 = vcmask 392513
      %417 = vst.msk [vmem:[#allocation2 - $0x1] sm:$0xfe] %vm416, %v411
      %vm418 = vcmask 392512
      %419 = vst.msk [vmem:[#allocation2 + $0x7] sm:$0xff] %vm418, %v413
      %vm420 = vcmask 451968
      %421 = vst.msk [vmem:[#allocation2 + $0xe] sm:$0x3] %vm420, 0.0
      %422 = vrot.lane.b32.xlu0 %v354, 48
      %v423 = vpop.permute.xlu0 %422
      %424 = vrot.lane.b32.xlu0 %v355, 48
      %v425 = vpop.permute.xlu0 %424
      %vm428 = vcmask 458114
      %429 = vst.msk [vmem:[#allocation2 - $0x2] sm:$0xfc] %vm428, %v423
      %vm430 = vcmask 458112
      %431 = vst.msk [vmem:[#allocation2 + $0x6] sm:$0xff] %vm430, %v425
      %vm432 = vcmask 518592
      %433 = vst.msk [vmem:[#allocation2 + $0xd] sm:$0x7] %vm432, 0.0
      %434 = vrot.lane.b32.xlu0 %v354, 56
      %v435 = vpop.permute.xlu0 %434
      %436 = vrot.lane.b32.xlu0 %v355, 56
      %v437 = vpop.permute.xlu0 %436
      %vm440 = vcmask 523715
      %441 = vst.msk [vmem:[#allocation2 - $0x3] sm:$0xf8] %vm440, %v435
      %vm442 = vcmask 523712
      %443 = vst.msk [vmem:[#allocation2 + $0x5] sm:$0xff] %vm442, %v437
      %v444 = vld [vmem:[#allocation2] sm:$0xff]
      %v445 = vld [vmem:[#allocation2 + $0x8] sm:$0xff]
      %v446 = vpack.c.bf16 %v445, %v444
      %v447 = vld [vmem:[%s1] sm:$0xf]
      %v448 = vld [vmem:[%s1 + $0x4] sm:$0xf]
      %v449 = vld [vmem:[%s1 + $0x8] sm:$0xf]
      %v450 = vld [vmem:[%s1 + $0xc] sm:$0xf]
      %v451 = vld [vmem:[%s1 + $0x10] sm:$0xf]
      %v452 = vld [vmem:[%s1 + $0x14] sm:$0xf]
      %v453 = vld [vmem:[%s1 + $0x18] sm:$0xf]
      %v454 = vld [vmem:[%s1 + $0x1c] sm:$0xf]
      %v463 = vunpack.c.l.b16 %v447
      %v464 = vunpack.c.l.b16 %v448
      %v465 = vunpack.c.l.b16 %v449
      %v466 = vunpack.c.l.b16 %v450
      %v467 = vunpack.c.l.b16 %v451
      %v468 = vunpack.c.l.b16 %v452
      %v469 = vunpack.c.l.b16 %v453
      %v470 = vunpack.c.l.b16 %v454
      %v471 = vpack.c.b16 %v464, %v463
      %v472 = vpack.c.b16 %v466, %v465
      %v473 = vpack.c.b16 %v468, %v467
      %v474 = vpack.c.b16 %v470, %v469
      %vm479 = vcmask 523264
      %v481 = vsel %vm479, %v446, 0
      %483 = vmatprep.subr.bf16.mxu0 0
      %484 = vmatpush1.bf16.msra.mxu0 %v471
      %485 = vmatprep.subr.bf16.mxu0 0
      %486 = vmatpush1.bf16.msra.mxu0 %v472
      %487 = vmatprep.subr.bf16.mxu0 0
      %488 = vmatpush1.bf16.msra.mxu0 %v473
      %489 = vmatprep.subr.bf16.mxu0 0
      %490 = vmatpush1.bf16.msra.mxu0 %v474
      %491 = vmatprep.subr.bf16.mxu0 0
      %492 = vmatpush1.bf16.msra.mxu0 0
      %493 = vmatprep.subr.bf16.mxu0 0
      %494 = vmatpush1.bf16.msra.mxu0 0
      %495 = vmatprep.subr.bf16.mxu0 0
      %496 = vmatpush1.bf16.msra.mxu0 0
      %497 = vmatprep.subr.bf16.mxu0 0
      %498 = vmatpush1.bf16.msra.mxu0 0
      %499 = vmatprep.subr.bf16.mxu0 0
      %500 = vmatpush1.bf16.msra.mxu0 0
      %501 = vmatprep.subr.bf16.mxu0 0
      %502 = vmatpush1.bf16.msra.mxu0 0
      %503 = vmatprep.subr.bf16.mxu0 0
      %504 = vmatpush1.bf16.msra.mxu0 0
      %505 = vmatprep.subr.bf16.mxu0 0
      %506 = vmatpush1.bf16.msra.mxu0 0
      %507 = vmatprep.subr.bf16.mxu0 0
      %508 = vmatpush1.bf16.msra.mxu0 0
      %509 = vmatprep.subr.bf16.mxu0 0
      %510 = vmatpush1.bf16.msra.mxu0 0
      %511 = vmatprep.subr.bf16.mxu0 0
      %512 = vmatpush1.bf16.msra.mxu0 0
      %513 = vmatprep.subr.bf16.mxu0 0
      %514 = vmatpush1.bf16.msra.mxu0 0
      %515 = vmatprep.mubr.bf16.mxu0 0
      %516 = vmatmul.mubr.bf16.gmra.mrb[0].mxu0 %v481
      %v517 = vpop.f32.mrb[0].mxu0
      %v518 = vadd.f32 0.0, %v517
      %v519 = vpop.f32.mrb[0].mxu0
      %v520 = vpop.f32.mrb[0].mxu0
      %v521 = vadd.f32 0.0, %v520
      %v522 = vpop.f32.mrb[0].mxu0
      %523 = vdwg.mxu0
      %v524 = vpack.c.bf16 %v521, %v518
      %v526 = vunpack.c.l.b16 %v524
      %v527 = vunpack.c.h.b16 %v524
      %v528 = vpack.c.b16 %v526, %v526
      %v529 = vpack.c.b16 %v527, %v527
      %vm532 = vcmask 125952
      %533 = vst.msk [vmem:[%s333] sm:$0xf] %vm532, %v528
      %534 = vst.msk [vmem:[%s333 + $0x4] sm:$0xf] %vm532, %v529
      %vm535 = vcmask 130048
      %v536 = vsel %vm535, %v518, 0.0
      %v537 = vsel %vm535, %v521, 0.0
      %v538 = vadd.f32 %v536, %v537
      %v539 = vrot.slane %v538, 4
      %v540 = vadd.f32 %v538, %v539
      %v541 = vrot.slane %v540, 2
      %v542 = vadd.f32 %v540, %v541
      %v543 = vrot.slane %v542, 1
      %v544 = vadd.f32 %v542, %v543
      %vm545 = vcmask 122880
      %546 = vst.msk [vmem:[%s336] sm:$0x1] %vm545, %v544
      %v547 = vmul.f32 %v518, %v518
      %v548 = vmul.f32 %v521, %v521
      %v549 = vsel %vm535, %v547, 0.0
      %v550 = vsel %vm535, %v548, 0.0
      %v551 = vadd.f32 %v549, %v550
      %v552 = vrot.slane %v551, 4
      %v553 = vadd.f32 %v551, %v552
      %v554 = vrot.slane %v553, 2
      %v555 = vadd.f32 %v553, %v554
      %v556 = vrot.slane %v555, 1
      %v557 = vadd.f32 %v555, %v556
      %558 = vst.msk [vmem:[%s339] sm:$0x1] %vm545, %v557
      %v559 = vld [vmem:[%s2] sm:$0xf]
      %v562 = vunpack.c.l.b16 %v352
      %v563 = vunpack.c.l.b16 %v353
      %v564 = vpack.c.b16 %v563, %v562
      %v566 = vsel %vm358, %v564, 0
      %vm568 = vcmask 1043456
      %v570 = vsel %vm568, %v559, 0
      %572 = vmatprep.subr.bf16.mxu0 0
      %573 = vmatpush1.bf16.msra.mxu0 %v570
      %574 = vmatprep.subr.bf16.mxu0 0
      %575 = vmatpush1.bf16.msra.mxu0 0
      %576 = vmatprep.subr.bf16.mxu0 0
      %577 = vmatpush1.bf16.msra.mxu0 0
      %578 = vmatprep.subr.bf16.mxu0 0
      %579 = vmatpush1.bf16.msra.mxu0 0
      %580 = vmatprep.subr.bf16.mxu0 0
      %581 = vmatpush1.bf16.msra.mxu0 0
      %582 = vmatprep.subr.bf16.mxu0 0
      %583 = vmatpush1.bf16.msra.mxu0 0
      %584 = vmatprep.subr.bf16.mxu0 0
      %585 = vmatpush1.bf16.msra.mxu0 0
      %586 = vmatprep.subr.bf16.mxu0 0
      %587 = vmatpush1.bf16.msra.mxu0 0
      %588 = vmatprep.subr.bf16.mxu0 0
      %589 = vmatpush1.bf16.msra.mxu0 0
      %590 = vmatprep.subr.bf16.mxu0 0
      %591 = vmatpush1.bf16.msra.mxu0 0
      %592 = vmatprep.subr.bf16.mxu0 0
      %593 = vmatpush1.bf16.msra.mxu0 0
      %594 = vmatprep.subr.bf16.mxu0 0
      %595 = vmatpush1.bf16.msra.mxu0 0
      %596 = vmatprep.subr.bf16.mxu0 0
      %597 = vmatpush1.bf16.msra.mxu0 0
      %598 = vmatprep.subr.bf16.mxu0 0
      %599 = vmatpush1.bf16.msra.mxu0 0
      %600 = vmatprep.subr.bf16.mxu0 0
      %601 = vmatpush1.bf16.msra.mxu0 0
      %602 = vmatprep.subr.bf16.mxu0 0
      %603 = vmatpush1.bf16.msra.mxu0 0
      %604 = vmatprep.mubr.bf16.mxu0 0
      %605 = vmatmul.mubr.bf16.gmra.mrb[0].mxu0 %v566
      %v606 = vpop.f32.mrb[0].mxu0
      %v607 = vadd.f32 0.0, %v606
      %v608 = vpop.f32.mrb[0].mxu0
      %v609 = vpop.f32.mrb[0].mxu0
      %v610 = vadd.f32 0.0, %v609
      %v611 = vpop.f32.mrb[0].mxu0
      %612 = vdwg.mxu0
      %v613 = vpack.c.bf16 %v610, %v607
      %v615 = vunpack.c.l.b16 %v613
      %v616 = vunpack.c.h.b16 %v613
      %v617 = vpack.c.b16 %v615, %v615
      %v618 = vpack.c.b16 %v616, %v616
      %621 = vst.msk [vmem:[%s344] sm:$0xf] %vm532, %v617
      %622 = vst.msk [vmem:[%s344 + $0x4] sm:$0xf] %vm532, %v618
      %v623 = vsel %vm535, %v607, 0.0
      %v624 = vsel %vm535, %v610, 0.0
      %v625 = vadd.f32 %v623, %v624
      %v626 = vrot.slane %v625, 4
      %v627 = vadd.f32 %v625, %v626
      %v628 = vrot.slane %v627, 2
      %v629 = vadd.f32 %v627, %v628
      %v630 = vrot.slane %v629, 1
      %v631 = vadd.f32 %v629, %v630
      %632 = vst.msk [vmem:[%s347] sm:$0x1] %vm545, %v631
      %v633 = vmul.f32 %v607, %v607
      %v634 = vmul.f32 %v610, %v610
      %v635 = vsel %vm535, %v633, 0.0
      %v636 = vsel %vm535, %v634, 0.0
      %v637 = vadd.f32 %v635, %v636
      %v638 = vrot.slane %v637, 4
      %v639 = vadd.f32 %v637, %v638
      %v640 = vrot.slane %v639, 2
      %v641 = vadd.f32 %v639, %v640
      %v642 = vrot.slane %v641, 1
      %v643 = vadd.f32 %v641, %v642
      %644 = vst.msk [vmem:[%s350] sm:$0x1] %vm545, %v643
      %p645 = scmp.lt.s32.totalorder %s20, 1
      %s646 = scalar_select %p645, %s20, 1
      %s647 = smul.addr %s646, 2
      %s648 = smul.addr %s647, 4
      %s649 = scalar_lea.vmem %s3, %s648
      %p650 = scmp.lt.s32.totalorder %s20, 1
      %s651 = scalar_select %p650, %s20, 1
      %s652 = scalar_lea.vmem %s4, %s651
      %p653 = scmp.lt.s32.totalorder %s20, 1
      %s654 = scalar_select %p653, %s20, 1
      %s655 = scalar_lea.vmem %s5, %s654
      %p656 = scmp.lt.s32.totalorder %s20, 1
      %s657 = scalar_select %p656, %s20, 1
      %s658 = smul.addr %s657, 2
      %s659 = smul.addr %s658, 4
      %s660 = scalar_lea.vmem %s6, %s659
      %p661 = scmp.lt.s32.totalorder %s20, 1
      %s662 = scalar_select %p661, %s20, 1
      %s663 = scalar_lea.vmem %s7, %s662
      %p664 = scmp.lt.s32.totalorder %s20, 1
      %s665 = scalar_select %p664, %s20, 1
      %s666 = scalar_lea.vmem %s8, %s665
      // Predicated region
      $region33: #{resnet_mrm2_forward.19} parent=31 // pred_check
        %p667 = pneg %p106
      $region34: #{resnet_mrm2_forward.19} parent=31 // pred_check_branch
        %669 = sbr.rel (%p667) target = $region36
      $region35: #{resnet_mrm2_forward.19} parent=31 // pred_region
        _
      $region36: #{resnet_mrm2_forward.19} parent=31 // pred_fallthru
        _
      // Predicated region
      $region37: #{resnet_mrm2_forward.19} parent=31 // pred_check
        %p670 = pneg %p132
      $region38: #{resnet_mrm2_forward.19} parent=31 // pred_check_branch
        %672 = sbr.rel (%p670) target = $region40
      $region39: #{resnet_mrm2_forward.19} parent=31 // pred_region
        _
      $region40: #{resnet_mrm2_forward.19} parent=31 // pred_fallthru
        _
      // Predicated region
      $region41: #{resnet_mrm2_forward.19} parent=31 // pred_check
        %p673 = pneg %p158
      $region42: #{resnet_mrm2_forward.19} parent=31 // pred_check_branch
        %675 = sbr.rel (%p673) target = $region44
      $region43: #{resnet_mrm2_forward.19} parent=31 // pred_region
        _
      $region44: #{resnet_mrm2_forward.19} parent=31 // pred_fallthru
        _
      // Predicated region
      $region45: #{resnet_mrm2_forward.19} parent=31 // pred_check
        %p676 = pneg %p184
      $region46: #{resnet_mrm2_forward.19} parent=31 // pred_check_branch
        %678 = sbr.rel (%p676) target = $region48
      $region47: #{resnet_mrm2_forward.19} parent=31 // pred_region
        _
      $region48: #{resnet_mrm2_forward.19} parent=31 // pred_fallthru
        _
      // Predicated region
      $region49: #{resnet_mrm2_forward.19} parent=31 // pred_check
        %p679 = pneg %p210
      $region50: #{resnet_mrm2_forward.19} parent=31 // pred_check_branch
        %681 = sbr.rel (%p679) target = $region52
      $region51: #{resnet_mrm2_forward.19} parent=31 // pred_region
        _
      $region52: #{resnet_mrm2_forward.19} parent=31 // pred_fallthru
        _
      // Predicated region
      $region53: #{resnet_mrm2_forward.19} parent=31 // pred_check
        %p682 = pneg %p236
      $region54: #{resnet_mrm2_forward.19} parent=31 // pred_check_branch
        %684 = sbr.rel (%p682) target = $region56
      $region55: #{resnet_mrm2_forward.19} parent=31 // pred_region
        _
      $region56: #{resnet_mrm2_forward.19} parent=31 // pred_fallthru
        _
    $region32: #{resnet_mrm2_forward.19} parent=5 // pred_fallthru
      _
    %p685 = scmp.le.s32.totalorder 2, %s15
    // Predicated region
    $region57: #{resnet_mrm2_forward.19} parent=5 // pred_check
      %p686 = pneg %p685
    $region58: #{resnet_mrm2_forward.19} parent=5 // pred_check_branch
      %688 = sbr.rel (%p686) target = $region60
    $region59: #{resnet_mrm2_forward.19} parent=5 // pred_region
      %s689 = ssub.s32 %s15, 2
      // Predicated region
      $region61: #{resnet_mrm2_forward.19} parent=59 // pred_check
        %p690 = pneg %p112
      $region62: #{resnet_mrm2_forward.19} parent=59 // pred_check_branch
        %692 = sbr.rel (%p690) target = $region64
      $region63: #{resnet_mrm2_forward.19} parent=59 // pred_region
        %p693 = scmp.lt.s32.totalorder %s21, 1
        %s694 = scalar_select %p693, %s21, 1
        %s695 = smul.addr %s694, 2
        %s696 = smul.addr %s695, 4
        %s697 = scalar_lea.vmem %s3, %s696
      $region64: #{resnet_mrm2_forward.19} parent=59 // pred_fallthru
        _
      // Predicated region
      $region65: #{resnet_mrm2_forward.19} parent=59 // pred_check
        %p698 = pneg %p138
      $region66: #{resnet_mrm2_forward.19} parent=59 // pred_check_branch
        %700 = sbr.rel (%p698) target = $region68
      $region67: #{resnet_mrm2_forward.19} parent=59 // pred_region
        %p701 = scmp.lt.s32.totalorder %s21, 1
        %s702 = scalar_select %p701, %s21, 1
        %s703 = scalar_lea.vmem %s4, %s702
      $region68: #{resnet_mrm2_forward.19} parent=59 // pred_fallthru
        _
      // Predicated region
      $region69: #{resnet_mrm2_forward.19} parent=59 // pred_check
        %p704 = pneg %p164
      $region70: #{resnet_mrm2_forward.19} parent=59 // pred_check_branch
        %706 = sbr.rel (%p704) target = $region72
      $region71: #{resnet_mrm2_forward.19} parent=59 // pred_region
        %p707 = scmp.lt.s32.totalorder %s21, 1
        %s708 = scalar_select %p707, %s21, 1
        %s709 = scalar_lea.vmem %s5, %s708
      $region72: #{resnet_mrm2_forward.19} parent=59 // pred_fallthru
        _
      // Predicated region
      $region73: #{resnet_mrm2_forward.19} parent=59 // pred_check
        %p710 = pneg %p190
      $region74: #{resnet_mrm2_forward.19} parent=59 // pred_check_branch
        %712 = sbr.rel (%p710) target = $region76
      $region75: #{resnet_mrm2_forward.19} parent=59 // pred_region
        %p713 = scmp.lt.s32.totalorder %s21, 1
        %s714 = scalar_select %p713, %s21, 1
        %s715 = smul.addr %s714, 2
        %s716 = smul.addr %s715, 4
        %s717 = scalar_lea.vmem %s6, %s716
      $region76: #{resnet_mrm2_forward.19} parent=59 // pred_fallthru
        _
      // Predicated region
      $region77: #{resnet_mrm2_forward.19} parent=59 // pred_check
        %p718 = pneg %p216
      $region78: #{resnet_mrm2_forward.19} parent=59 // pred_check_branch
        %720 = sbr.rel (%p718) target = $region80
      $region79: #{resnet_mrm2_forward.19} parent=59 // pred_region
        %p721 = scmp.lt.s32.totalorder %s21, 1
        %s722 = scalar_select %p721, %s21, 1
        %s723 = scalar_lea.vmem %s7, %s722
      $region80: #{resnet_mrm2_forward.19} parent=59 // pred_fallthru
        _
      // Predicated region
      $region81: #{resnet_mrm2_forward.19} parent=59 // pred_check
        %p724 = pneg %p242
      $region82: #{resnet_mrm2_forward.19} parent=59 // pred_check_branch
        %726 = sbr.rel (%p724) target = $region84
      $region83: #{resnet_mrm2_forward.19} parent=59 // pred_region
        %p727 = scmp.lt.s32.totalorder %s21, 1
        %s728 = scalar_select %p727, %s21, 1
        %s729 = scalar_lea.vmem %s8, %s728
      $region84: #{resnet_mrm2_forward.19} parent=59 // pred_fallthru
        _
    $region60: #{resnet_mrm2_forward.19} parent=5 // pred_fallthru
      _
  $region6: #{resnet_mrm2_forward.19} parent=0 // loop_footer
    %s19 = sadd.s32 1, %s15
  $region7: #{resnet_mrm2_forward.19} parent=0 // loop_footer_branch
    %14 = sbr.rel target = $region3
  $region8: #{resnet_mrm2_forward.19} parent=0 // loop_exit
    _

// kernel: resnet_mrm2_forward.22
$region0: #{resnet_mrm2_forward.22}
  #allocation0 [shape = 'u32[]', space=smem, size = 0x4, offset = 0x4, fixed_abs, tag = 'smem constant byte address 0x4 - core index']
  #allocation1 [shape = 'u32[144,128]{1,0:T(1,128)}', space=vmem, size = 0x12000, scoped, tag = 'internal scratch']
  %s0 = inlined_call_operand.vmem [shape: bf16[2,16,16], index: 0, kind: input, shape index: {}]
  %s1 = inlined_call_operand.vmem [shape: bf16[2,16,16], index: 1, kind: input, shape index: {}]
  %s2 = inlined_call_operand.vmem [shape: f32[1,16], index: 2, kind: input, shape index: {}]
  %s3 = inlined_call_operand.vmem [shape: f32[1,16], index: 3, kind: input, shape index: {}]
  %s4 = inlined_call_operand.vmem [shape: f32[1,16], index: 4, kind: input, shape index: {}]
  %s5 = inlined_call_operand.vmem [shape: f32[1,16], index: 5, kind: input, shape index: {}]
  %s6 = inlined_call_operand.vmem [shape: bf16[2,16,16], index: 6, kind: output, shape index: {0}]
  %s7 = inlined_call_operand.vmem [shape: f32[2,1,16], index: 7, kind: output, shape index: {1}]
  %s8 = inlined_call_operand.vmem [shape: f32[2,1,16], index: 8, kind: output, shape index: {2}]
  %9 = xla_tuple %s6, %s7, %s8
  %s10 = sld [smem:[#allocation0]]
  $region73: #{resnet_mrm2_forward.22} parent=0
    _
  %s12 = ssub.s32 1, %s10
  %s13 = scalar_select 0, %s12, %s10
  loop: start=0, step=1, limit=4
  $region2: #{resnet_mrm2_forward.22} parent=0 // loop_pre_header
    _
  $region3: #{resnet_mrm2_forward.22} parent=0 // loop_header
    %s15 = sphi 0, %s19
    %p16 = scmp.ge.s32.totalorder %s15, 4
    %s25 = sphi 0, %s27
    %s28 = sphi 0, %s25
    %s29 = sphi 0, %s28
    %s45 = sphi 0, %s29
    %s51 = sphi 0, %s53
    %s54 = sphi 0, %s51
    %s55 = sphi 0, %s54
    %s71 = sphi 0, %s55
    %s75 = sphi 0, %s75
    %s77 = sphi 0, %s75
    %s78 = sphi 0, %s77
    %s92 = sphi 0, %s78
    %s96 = sphi 0, %s96
    %s98 = sphi 0, %s96
    %s99 = sphi 0, %s98
    %s113 = sphi 0, %s99
    %s117 = sphi 0, %s117
    %s119 = sphi 0, %s117
    %s120 = sphi 0, %s119
    %s134 = sphi 0, %s120
    %s138 = sphi 0, %s138
    %s140 = sphi 0, %s138
    %s141 = sphi 0, %s140
    %s155 = sphi 0, %s141
    %s161 = sphi 0, %s163
    %s164 = sphi 0, %s161
    %s165 = sphi 0, %s164
    %s181 = sphi 0, %s165
    %s187 = sphi 0, %s189
    %s190 = sphi 0, %s187
    %s191 = sphi 0, %s190
    %s207 = sphi 0, %s191
    %s213 = sphi 0, %s215
    %s216 = sphi 0, %s213
    %s217 = sphi 0, %s216
    %s233 = sphi 0, %s217
  $region4: #{resnet_mrm2_forward.22} parent=0 // loop_header_branch
    %18 = sbr.rel (%p16) target = $region8
  $region5: #{resnet_mrm2_forward.22} parent=0 // loop_body
    %s20 = ssub.s32 %s15, 1
    %s21 = ssub.s32 %s15, 2
    %s22 = sadd.s32 %s15, 1
    %s23 = ssub.s32 %s15, %s22
    %p24 = scmp.eq.s32.totalorder %s23, 0
    %s26 = sadd.s32 %s25, 1
    %s27 = scalar_select %p24, %s25, %s26
    %p30 = pneg %p24
    %p31 = scmp.eq.s32.totalorder %s15, 1
    %p32 = por %p30, %p31
    %p33 = scmp.ne.s32.totalorder %s25, %s28
    %p34 = scmp.eq.s32.totalorder %s15, 0
    %p35 = por %p33, %p34
    %p36 = scmp.ne.s32.totalorder %s25, %s28
    %p37 = scmp.eq.s32.totalorder %s20, 1
    %p38 = por %p36, %p37
    %p39 = scmp.ne.s32.totalorder %s28, %s29
    %p40 = scmp.eq.s32.totalorder %s20, 0
    %p41 = por %p39, %p40
    %p42 = scmp.ne.s32.totalorder %s28, %s29
    %p43 = scmp.eq.s32.totalorder %s21, 1
    %p44 = por %p42, %p43
    %p46 = scmp.ne.s32.totalorder %s29, %s45
    %p47 = scmp.eq.s32.totalorder %s21, 0
    %p48 = por %p46, %p47
    %s49 = ssub.s32 %s15, %s22
    %p50 = scmp.eq.s32.totalorder %s49, 0
    %s52 = sadd.s32 %s51, 1
    %s53 = scalar_select %p50, %s51, %s52
    %p56 = pneg %p50
    %p57 = scmp.eq.s32.totalorder %s15, 1
    %p58 = por %p56, %p57
    %p59 = scmp.ne.s32.totalorder %s51, %s54
    %p60 = scmp.eq.s32.totalorder %s15, 0
    %p61 = por %p59, %p60
    %p62 = scmp.ne.s32.totalorder %s51, %s54
    %p63 = scmp.eq.s32.totalorder %s20, 1
    %p64 = por %p62, %p63
    %p65 = scmp.ne.s32.totalorder %s54, %s55
    %p66 = scmp.eq.s32.totalorder %s20, 0
    %p67 = por %p65, %p66
    %p68 = scmp.ne.s32.totalorder %s54, %s55
    %p69 = scmp.eq.s32.totalorder %s21, 1
    %p70 = por %p68, %p69
    %p72 = scmp.ne.s32.totalorder %s55, %s71
    %p73 = scmp.eq.s32.totalorder %s21, 0
    %p74 = por %p72, %p73
    %s76 = sadd.s32 %s75, 1
    %p79 = scmp.eq.s32.totalorder %s15, 1
    %p80 = scmp.ne.s32.totalorder %s75, %s77
    %p81 = scmp.eq.s32.totalorder %s15, 0
    %p82 = por %p80, %p81
    %p83 = scmp.ne.s32.totalorder %s75, %s77
    %p84 = scmp.eq.s32.totalorder %s20, 1
    %p85 = por %p83, %p84
    %p86 = scmp.ne.s32.totalorder %s77, %s78
    %p87 = scmp.eq.s32.totalorder %s20, 0
    %p88 = por %p86, %p87
    %p89 = scmp.ne.s32.totalorder %s77, %s78
    %p90 = scmp.eq.s32.totalorder %s21, 1
    %p91 = por %p89, %p90
    %p93 = scmp.ne.s32.totalorder %s78, %s92
    %p94 = scmp.eq.s32.totalorder %s21, 0
    %p95 = por %p93, %p94
    %s97 = sadd.s32 %s96, 1
    %p100 = scmp.eq.s32.totalorder %s15, 1
    %p101 = scmp.ne.s32.totalorder %s96, %s98
    %p102 = scmp.eq.s32.totalorder %s15, 0
    %p103 = por %p101, %p102
    %p104 = scmp.ne.s32.totalorder %s96, %s98
    %p105 = scmp.eq.s32.totalorder %s20, 1
    %p106 = por %p104, %p105
    %p107 = scmp.ne.s32.totalorder %s98, %s99
    %p108 = scmp.eq.s32.totalorder %s20, 0
    %p109 = por %p107, %p108
    %p110 = scmp.ne.s32.totalorder %s98, %s99
    %p111 = scmp.eq.s32.totalorder %s21, 1
    %p112 = por %p110, %p111
    %p114 = scmp.ne.s32.totalorder %s99, %s113
    %p115 = scmp.eq.s32.totalorder %s21, 0
    %p116 = por %p114, %p115
    %s118 = sadd.s32 %s117, 1
    %p121 = scmp.eq.s32.totalorder %s15, 1
    %p122 = scmp.ne.s32.totalorder %s117, %s119
    %p123 = scmp.eq.s32.totalorder %s15, 0
    %p124 = por %p122, %p123
    %p125 = scmp.ne.s32.totalorder %s117, %s119
    %p126 = scmp.eq.s32.totalorder %s20, 1
    %p127 = por %p125, %p126
    %p128 = scmp.ne.s32.totalorder %s119, %s120
    %p129 = scmp.eq.s32.totalorder %s20, 0
    %p130 = por %p128, %p129
    %p131 = scmp.ne.s32.totalorder %s119, %s120
    %p132 = scmp.eq.s32.totalorder %s21, 1
    %p133 = por %p131, %p132
    %p135 = scmp.ne.s32.totalorder %s120, %s134
    %p136 = scmp.eq.s32.totalorder %s21, 0
    %p137 = por %p135, %p136
    %s139 = sadd.s32 %s138, 1
    %p142 = scmp.eq.s32.totalorder %s15, 1
    %p143 = scmp.ne.s32.totalorder %s138, %s140
    %p144 = scmp.eq.s32.totalorder %s15, 0
    %p145 = por %p143, %p144
    %p146 = scmp.ne.s32.totalorder %s138, %s140
    %p147 = scmp.eq.s32.totalorder %s20, 1
    %p148 = por %p146, %p147
    %p149 = scmp.ne.s32.totalorder %s140, %s141
    %p150 = scmp.eq.s32.totalorder %s20, 0
    %p151 = por %p149, %p150
    %p152 = scmp.ne.s32.totalorder %s140, %s141
    %p153 = scmp.eq.s32.totalorder %s21, 1
    %p154 = por %p152, %p153
    %p156 = scmp.ne.s32.totalorder %s141, %s155
    %p157 = scmp.eq.s32.totalorder %s21, 0
    %p158 = por %p156, %p157
    %s159 = ssub.s32 %s15, %s22
    %p160 = scmp.eq.s32.totalorder %s159, 0
    %s162 = sadd.s32 %s161, 1
    %s163 = scalar_select %p160, %s161, %s162
    %p166 = pneg %p160
    %p167 = scmp.eq.s32.totalorder %s15, 1
    %p168 = por %p166, %p167
    %p169 = scmp.ne.s32.totalorder %s161, %s164
    %p170 = scmp.eq.s32.totalorder %s15, 0
    %p171 = por %p169, %p170
    %p172 = scmp.ne.s32.totalorder %s161, %s164
    %p173 = scmp.eq.s32.totalorder %s20, 1
    %p174 = por %p172, %p173
    %p175 = scmp.ne.s32.totalorder %s164, %s165
    %p176 = scmp.eq.s32.totalorder %s20, 0
    %p177 = por %p175, %p176
    %p178 = scmp.ne.s32.totalorder %s164, %s165
    %p179 = scmp.eq.s32.totalorder %s21, 1
    %p180 = por %p178, %p179
    %p182 = scmp.ne.s32.totalorder %s165, %s181
    %p183 = scmp.eq.s32.totalorder %s21, 0
    %p184 = por %p182, %p183
    %s185 = ssub.s32 %s15, %s22
    %p186 = scmp.eq.s32.totalorder %s185, 0
    %s188 = sadd.s32 %s187, 1
    %s189 = scalar_select %p186, %s187, %s188
    %p192 = pneg %p186
    %p193 = scmp.eq.s32.totalorder %s15, 1
    %p194 = por %p192, %p193
    %p195 = scmp.ne.s32.totalorder %s187, %s190
    %p196 = scmp.eq.s32.totalorder %s15, 0
    %p197 = por %p195, %p196
    %p198 = scmp.ne.s32.totalorder %s187, %s190
    %p199 = scmp.eq.s32.totalorder %s20, 1
    %p200 = por %p198, %p199
    %p201 = scmp.ne.s32.totalorder %s190, %s191
    %p202 = scmp.eq.s32.totalorder %s20, 0
    %p203 = por %p201, %p202
    %p204 = scmp.ne.s32.totalorder %s190, %s191
    %p205 = scmp.eq.s32.totalorder %s21, 1
    %p206 = por %p204, %p205
    %p208 = scmp.ne.s32.totalorder %s191, %s207
    %p209 = scmp.eq.s32.totalorder %s21, 0
    %p210 = por %p208, %p209
    %s211 = ssub.s32 %s15, %s22
    %p212 = scmp.eq.s32.totalorder %s211, 0
    %s214 = sadd.s32 %s213, 1
    %s215 = scalar_select %p212, %s213, %s214
    %p218 = pneg %p212
    %p219 = scmp.eq.s32.totalorder %s15, 1
    %p220 = por %p218, %p219
    %p221 = scmp.ne.s32.totalorder %s213, %s216
    %p222 = scmp.eq.s32.totalorder %s15, 0
    %p223 = por %p221, %p222
    %p224 = scmp.ne.s32.totalorder %s213, %s216
    %p225 = scmp.eq.s32.totalorder %s20, 1
    %p226 = por %p224, %p225
    %p227 = scmp.ne.s32.totalorder %s216, %s217
    %p228 = scmp.eq.s32.totalorder %s20, 0
    %p229 = por %p227, %p228
    %p230 = scmp.ne.s32.totalorder %s216, %s217
    %p231 = scmp.eq.s32.totalorder %s21, 1
    %p232 = por %p230, %p231
    %p234 = scmp.ne.s32.totalorder %s217, %s233
    %p235 = scmp.eq.s32.totalorder %s21, 0
    %p236 = por %p234, %p235
    %p237 = scmp.le.s32.totalorder 1, %s15
    %p238 = scmp.lt.s32.totalorder %s15, 3
    %p239 = pnand %p237, %p238
    %p240 = pneg %p239
    // Predicated region
    $region9: #{resnet_mrm2_forward.22} parent=5 // pred_check
      _
    $region10: #{resnet_mrm2_forward.22} parent=5 // pred_check_branch
      %242 = sbr.rel (%p239) target = $region12
    $region11: #{resnet_mrm2_forward.22} parent=5 // pred_region
      %s243 = ssub.s32 %s15, 1
      // Predicated region
      $region13: #{resnet_mrm2_forward.22} parent=11 // pred_check
        %p244 = pneg %p88
      $region14: #{resnet_mrm2_forward.22} parent=11 // pred_check_branch
        %246 = sbr.rel (%p244) target = $region16
      $region15: #{resnet_mrm2_forward.22} parent=11 // pred_region
        _
      $region16: #{resnet_mrm2_forward.22} parent=11 // pred_fallthru
        _
      // Predicated region
      $region17: #{resnet_mrm2_forward.22} parent=11 // pred_check
        %p247 = pneg %p109
      $region18: #{resnet_mrm2_forward.22} parent=11 // pred_check_branch
        %249 = sbr.rel (%p247) target = $region20
      $region19: #{resnet_mrm2_forward.22} parent=11 // pred_region
        _
      $region20: #{resnet_mrm2_forward.22} parent=11 // pred_fallthru
        _
      // Predicated region
      $region21: #{resnet_mrm2_forward.22} parent=11 // pred_check
        %p250 = pneg %p130
      $region22: #{resnet_mrm2_forward.22} parent=11 // pred_check_branch
        %252 = sbr.rel (%p250) target = $region24
      $region23: #{resnet_mrm2_forward.22} parent=11 // pred_region
        _
      $region24: #{resnet_mrm2_forward.22} parent=11 // pred_fallthru
        _
      // Predicated region
      $region25: #{resnet_mrm2_forward.22} parent=11 // pred_check
        %p253 = pneg %p151
      $region26: #{resnet_mrm2_forward.22} parent=11 // pred_check_branch
        %255 = sbr.rel (%p253) target = $region28
      $region27: #{resnet_mrm2_forward.22} parent=11 // pred_region
        _
      $region28: #{resnet_mrm2_forward.22} parent=11 // pred_fallthru
        _
    $region12: #{resnet_mrm2_forward.22} parent=5 // pred_fallthru
      _
    %p256 = scmp.lt.s32.totalorder %s15, 2
    // Predicated region
    $region29: #{resnet_mrm2_forward.22} parent=5 // pred_check
      %p257 = pneg %p256
    $region30: #{resnet_mrm2_forward.22} parent=5 // pred_check_branch
      %259 = sbr.rel (%p257) target = $region32
    $region31: #{resnet_mrm2_forward.22} parent=5 // pred_region
      // Predicated region
      $region33: #{resnet_mrm2_forward.22} parent=31 // pred_check
        %p260 = pneg %p35
      $region34: #{resnet_mrm2_forward.22} parent=31 // pred_check_branch
        %262 = sbr.rel (%p260) target = $region36
      $region35: #{resnet_mrm2_forward.22} parent=31 // pred_region
        %p263 = scmp.lt.s32.totalorder %s15, 1
        %s264 = scalar_select %p263, %s15, 1
        %s265 = smul.addr %s264, 2
        %s266 = smul.addr %s265, 4
        %s267 = scalar_lea.vmem %s0, %s266
      $region36: #{resnet_mrm2_forward.22} parent=31 // pred_fallthru
        _
      // Predicated region
      $region37: #{resnet_mrm2_forward.22} parent=31 // pred_check
        %p268 = pneg %p61
      $region38: #{resnet_mrm2_forward.22} parent=31 // pred_check_branch
        %270 = sbr.rel (%p268) target = $region40
      $region39: #{resnet_mrm2_forward.22} parent=31 // pred_region
        %p271 = scmp.lt.s32.totalorder %s15, 1
        %s272 = scalar_select %p271, %s15, 1
        %s273 = smul.addr %s272, 2
        %s274 = smul.addr %s273, 4
        %s275 = scalar_lea.vmem %s1, %s274
      $region40: #{resnet_mrm2_forward.22} parent=31 // pred_fallthru
        _
    $region32: #{resnet_mrm2_forward.22} parent=5 // pred_fallthru
      _
    %p276 = scmp.le.s32.totalorder 1, %s15
    %p277 = scmp.lt.s32.totalorder %s15, 3
    %p278 = pnand %p276, %p277
    %p279 = pneg %p278
    // Predicated region
    $region41: #{resnet_mrm2_forward.22} parent=5 // pred_check
      _
    $region42: #{resnet_mrm2_forward.22} parent=5 // pred_check_branch
      %281 = sbr.rel (%p278) target = $region44
    $region43: #{resnet_mrm2_forward.22} parent=5 // pred_region
      %s282 = ssub.s32 %s15, 1
      %p283 = scmp.lt.s32.totalorder %s20, 1
      %s284 = scalar_select %p283, %s20, 1
      %s285 = smul.addr %s284, 2
      %s286 = smul.addr %s285, 4
      %s287 = scalar_lea.vmem %s0, %s286
      %p288 = pneg %p41
      %p289 = pneg %p38
      %p290 = scmp.lt.s32.totalorder %s20, 1
      %s291 = scalar_select %p290, %s20, 1
      %s292 = smul.addr %s291, 2
      %s293 = smul.addr %s292, 4
      %s294 = scalar_lea.vmem %s1, %s293
      %p295 = pneg %p67
      %p296 = pneg %p64
      %p297 = pneg %p88
      %p298 = pneg %p85
      %p299 = pneg %p109
      %p300 = pneg %p106
      %p301 = pneg %p130
      %p302 = pneg %p127
      %p303 = pneg %p151
      %p304 = pneg %p148
      %p305 = pneg %p177
      %p306 = pneg %p174
      %p307 = scmp.lt.s32.totalorder %s20, 1
      %s308 = scalar_select %p307, %s20, 1
      %s309 = smul.addr %s308, 2
      %s310 = smul.addr %s309, 4
      %s311 = scalar_lea.vmem %s6, %s310
      %p312 = pneg %p203
      %p313 = pneg %p200
      %p314 = scmp.lt.s32.totalorder %s20, 1
      %s315 = scalar_select %p314, %s20, 1
      %s316 = scalar_lea.vmem %s7, %s315
      %p317 = pneg %p229
      %p318 = pneg %p226
      %p319 = scmp.lt.s32.totalorder %s20, 1
      %s320 = scalar_select %p319, %s20, 1
      %s321 = scalar_lea.vmem %s8, %s320
      %p322 = scmp.lt.s32.totalorder %s20, 1
      %s323 = scalar_select %p322, %s20, 1
      %s324 = smul.addr %s323, 2
      %s325 = smul.addr %s324, 4
      %s326 = scalar_lea.vmem %s0, %s325
      %p327 = scmp.lt.s32.totalorder %s20, 1
      %s328 = scalar_select %p327, %s20, 1
      %s329 = smul.addr %s328, 2
      %s330 = smul.addr %s329, 4
      %s331 = scalar_lea.vmem %s1, %s330
      %p332 = scmp.lt.s32.totalorder %s20, 1
      %s333 = scalar_select %p332, %s20, 1
      %s334 = smul.addr %s333, 2
      %s335 = smul.addr %s334, 4
      %s336 = scalar_lea.vmem %s6, %s335
      %p337 = scmp.lt.s32.totalorder %s20, 1
      %s338 = scalar_select %p337, %s20, 1
      %s339 = scalar_lea.vmem %s7, %s338
      %p340 = scmp.lt.s32.totalorder %s20, 1
      %s341 = scalar_select %p340, %s20, 1
      %s342 = scalar_lea.vmem %s8, %s341
      %v343 = vld [vmem:[%s326] sm:$0xf]
      %v344 = vld [vmem:[%s326 + $0x4] sm:$0xf]
      %v345 = vunpack.c.l.bf16 %v343
      %v346 = vunpack.c.l.bf16 %v344
      %v347 = vld [vmem:[%s2] sm:$0x1]
      %v349 = vlaneseq
      %v350 = vshrl.u32 %v349, 7
      %v351 = vsub.s32 0, %v350
      %v352 = vrot.slane %v347, %v351
      %v354 = vmul.f32 %v345, %v352
      %v355 = vmul.f32 %v346, %v352
      %v356 = vld [vmem:[%s3] sm:$0x1]
      %v358 = vlaneseq
      %v359 = vshrl.u32 %v358, 7
      %v360 = vsub.s32 0, %v359
      %v361 = vrot.slane %v356, %v360
      %v363 = vadd.f32 %v354, %v361
      %v364 = vadd.f32 %v355, %v361
      %v365 = vld [vmem:[%s331] sm:$0xf]
      %v366 = vld [vmem:[%s331 + $0x4] sm:$0xf]
      %v367 = vunpack.c.l.bf16 %v365
      %v368 = vunpack.c.l.bf16 %v366
      %v369 = vld [vmem:[%s4] sm:$0x1]
      %v371 = vlaneseq
      %v372 = vshrl.u32 %v371, 7
      %v373 = vsub.s32 0, %v372
      %v374 = vrot.slane %v369, %v373
      %v376 = vmul.f32 %v367, %v374
      %v377 = vmul.f32 %v368, %v374
      %v378 = vadd.f32 %v363, %v376
      %v379 = vadd.f32 %v364, %v377
      %v380 = vld [vmem:[%s5] sm:$0x1]
      %v382 = vlaneseq
      %v383 = vshrl.u32 %v382, 7
      %v384 = vsub.s32 0, %v383
      %v385 = vrot.slane %v380, %v384
      %v387 = vadd.f32 %v378, %v385
      %v388 = vadd.f32 %v379, %v385
      %v389 = vmax.f32 %v387, 0.0
      %v390 = vmax.f32 %v388, 0.0
      %v391 = vpack.c.bf16 %v390, %v389
      %v393 = vunpack.c.l.b16 %v391
      %v394 = vunpack.c.h.b16 %v391
      %v395 = vpack.c.b16 %v393, %v393
      %v396 = vpack.c.b16 %v394, %v394
      %vm399 = vcmask 125952
      %400 = vst.msk [vmem:[%s336] sm:$0xf] %vm399, %v395
      %401 = vst.msk [vmem:[%s336 + $0x4] sm:$0xf] %vm399, %v396
      %vm402 = vcmask 130048
      %v403 = vsel %vm402, %v389, 0.0
      %v404 = vsel %vm402, %v390, 0.0
      %v405 = vadd.f32 %v403, %v404
      %v406 = vrot.slane %v405, 4
      %v407 = vadd.f32 %v405, %v406
      %v408 = vrot.slane %v407, 2
      %v409 = vadd.f32 %v407, %v408
      %v410 = vrot.slane %v409, 1
      %v411 = vadd.f32 %v409, %v410
      %vm412 = vcmask 122880
      %413 = vst.msk [vmem:[%s339] sm:$0x1] %vm412, %v411
      %v414 = vmul.f32 %v389, %v389
      %v415 = vmul.f32 %v390, %v390
      %v416 = vsel %vm402, %v414, 0.0
      %v417 = vsel %vm402, %v415, 0.0
      %v418 = vadd.f32 %v416, %v417
      %v419 = vrot.slane %v418, 4
      %v420 = vadd.f32 %v418, %v419
      %v421 = vrot.slane %v420, 2
      %v422 = vadd.f32 %v420, %v421
      %v423 = vrot.slane %v422, 1
      %v424 = vadd.f32 %v422, %v423
      %425 = vst.msk [vmem:[%s342] sm:$0x1] %vm412, %v424
      %p426 = scmp.lt.s32.totalorder %s20, 1
      %s427 = scalar_select %p426, %s20, 1
      %s428 = smul.addr %s427, 2
      %s429 = smul.addr %s428, 4
      %s430 = scalar_lea.vmem %s6, %s429
      %p431 = scmp.lt.s32.totalorder %s20, 1
      %s432 = scalar_select %p431, %s20, 1
      %s433 = scalar_lea.vmem %s7, %s432
      %p434 = scmp.lt.s32.totalorder %s20, 1
      %s435 = scalar_select %p434, %s20, 1
      %s436 = scalar_lea.vmem %s8, %s435
      // Predicated region
      $region45: #{resnet_mrm2_forward.22} parent=43 // pred_check
        %p437 = pneg %p174
      $region46: #{resnet_mrm2_forward.22} parent=43 // pred_check_branch
        %439 = sbr.rel (%p437) target = $region48
      $region47: #{resnet_mrm2_forward.22} parent=43 // pred_region
        _
      $region48: #{resnet_mrm2_forward.22} parent=43 // pred_fallthru
        _
      // Predicated region
      $region49: #{resnet_mrm2_forward.22} parent=43 // pred_check
        %p440 = pneg %p200
      $region50: #{resnet_mrm2_forward.22} parent=43 // pred_check_branch
        %442 = sbr.rel (%p440) target = $region52
      $region51: #{resnet_mrm2_forward.22} parent=43 // pred_region
        _
      $region52: #{resnet_mrm2_forward.22} parent=43 // pred_fallthru
        _
      // Predicated region
      $region53: #{resnet_mrm2_forward.22} parent=43 // pred_check
        %p443 = pneg %p226
      $region54: #{resnet_mrm2_forward.22} parent=43 // pred_check_branch
        %445 = sbr.rel (%p443) target = $region56
      $region55: #{resnet_mrm2_forward.22} parent=43 // pred_region
        _
      $region56: #{resnet_mrm2_forward.22} parent=43 // pred_fallthru
        _
    $region44: #{resnet_mrm2_forward.22} parent=5 // pred_fallthru
      _
    %p446 = scmp.le.s32.totalorder 2, %s15
    // Predicated region
    $region57: #{resnet_mrm2_forward.22} parent=5 // pred_check
      %p447 = pneg %p446
    $region58: #{resnet_mrm2_forward.22} parent=5 // pred_check_branch
      %449 = sbr.rel (%p447) target = $region60
    $region59: #{resnet_mrm2_forward.22} parent=5 // pred_region
      %s450 = ssub.s32 %s15, 2
      // Predicated region
      $region61: #{resnet_mrm2_forward.22} parent=59 // pred_check
        %p451 = pneg %p180
      $region62: #{resnet_mrm2_forward.22} parent=59 // pred_check_branch
        %453 = sbr.rel (%p451) target = $region64
      $region63: #{resnet_mrm2_forward.22} parent=59 // pred_region
        %p454 = scmp.lt.s32.totalorder %s21, 1
        %s455 = scalar_select %p454, %s21, 1
        %s456 = smul.addr %s455, 2
        %s457 = smul.addr %s456, 4
        %s458 = scalar_lea.vmem %s6, %s457
      $region64: #{resnet_mrm2_forward.22} parent=59 // pred_fallthru
        _
      // Predicated region
      $region65: #{resnet_mrm2_forward.22} parent=59 // pred_check
        %p459 = pneg %p206
      $region66: #{resnet_mrm2_forward.22} parent=59 // pred_check_branch
        %461 = sbr.rel (%p459) target = $region68
      $region67: #{resnet_mrm2_forward.22} parent=59 // pred_region
        %p462 = scmp.lt.s32.totalorder %s21, 1
        %s463 = scalar_select %p462, %s21, 1
        %s464 = scalar_lea.vmem %s7, %s463
      $region68: #{resnet_mrm2_forward.22} parent=59 // pred_fallthru
        _
      // Predicated region
      $region69: #{resnet_mrm2_forward.22} parent=59 // pred_check
        %p465 = pneg %p232
      $region70: #{resnet_mrm2_forward.22} parent=59 // pred_check_branch
        %467 = sbr.rel (%p465) target = $region72
      $region71: #{resnet_mrm2_forward.22} parent=59 // pred_region
        %p468 = scmp.lt.s32.totalorder %s21, 1
        %s469 = scalar_select %p468, %s21, 1
        %s470 = scalar_lea.vmem %s8, %s469
      $region72: #{resnet_mrm2_forward.22} parent=59 // pred_fallthru
        _
    $region60: #{resnet_mrm2_forward.22} parent=5 // pred_fallthru
      _
  $region6: #{resnet_mrm2_forward.22} parent=0 // loop_footer
    %s19 = sadd.s32 1, %s15
  $region7: #{resnet_mrm2_forward.22} parent=0 // loop_footer_branch
    %14 = sbr.rel target = $region3
  $region8: #{resnet_mrm2_forward.22} parent=0 // loop_exit
    _

// kernel: resnet_mrm2_forward.21
$region0: #{resnet_mrm2_forward.21}
  #allocation0 [shape = 'u32[]', space=smem, size = 0x4, offset = 0x4, fixed_abs, tag = 'smem constant byte address 0x4 - core index']
  #allocation1 [shape = 'u32[144,128]{1,0:T(1,128)}', space=vmem, size = 0x12000, scoped, tag = 'internal scratch']
  #allocation2 [shape = 'f32[16,48]{1,0:T(8,128)}', space=vmem, size = 0x2000, scoped, tag = 'scratch operand']
  %s0 = inlined_call_operand.vmem [shape: bf16[2,16,16], index: 0, kind: input, shape index: {}]
  %s1 = inlined_call_operand.vmem [shape: bf16[48,16], index: 1, kind: input, shape index: {}]
  %s2 = inlined_call_operand.vmem [shape: f32[1,16], index: 2, kind: input, shape index: {}]
  %s3 = inlined_call_operand.vmem [shape: f32[1,16], index: 3, kind: input, shape index: {}]
  %s4 = inlined_call_operand.vmem [shape: bf16[2,16,16], index: 4, kind: output, shape index: {0}]
  %s5 = inlined_call_operand.vmem [shape: f32[2,1,16], index: 5, kind: output, shape index: {1}]
  %s6 = inlined_call_operand.vmem [shape: f32[2,1,16], index: 6, kind: output, shape index: {2}]
  %7 = xla_tuple %s4, %s5, %s6
  %s8 = sld [smem:[#allocation0]]
  $region65: #{resnet_mrm2_forward.21} parent=0
    _
  %s10 = ssub.s32 1, %s8
  %s11 = scalar_select 0, %s10, %s8
  loop: start=0, step=1, limit=4
  $region2: #{resnet_mrm2_forward.21} parent=0 // loop_pre_header
    _
  $region3: #{resnet_mrm2_forward.21} parent=0 // loop_header
    %s13 = sphi 0, %s17
    %p14 = scmp.ge.s32.totalorder %s13, 4
    %s23 = sphi 0, %s25
    %s26 = sphi 0, %s23
    %s27 = sphi 0, %s26
    %s43 = sphi 0, %s27
    %s47 = sphi 0, %s47
    %s49 = sphi 0, %s47
    %s50 = sphi 0, %s49
    %s64 = sphi 0, %s50
    %s68 = sphi 0, %s68
    %s70 = sphi 0, %s68
    %s71 = sphi 0, %s70
    %s85 = sphi 0, %s71
    %s89 = sphi 0, %s89
    %s91 = sphi 0, %s89
    %s92 = sphi 0, %s91
    %s106 = sphi 0, %s92
    %s112 = sphi 0, %s114
    %s115 = sphi 0, %s112
    %s116 = sphi 0, %s115
    %s132 = sphi 0, %s116
    %s138 = sphi 0, %s140
    %s141 = sphi 0, %s138
    %s142 = sphi 0, %s141
    %s158 = sphi 0, %s142
    %s164 = sphi 0, %s166
    %s167 = sphi 0, %s164
    %s168 = sphi 0, %s167
    %s184 = sphi 0, %s168
  $region4: #{resnet_mrm2_forward.21} parent=0 // loop_header_branch
    %16 = sbr.rel (%p14) target = $region8
  $region5: #{resnet_mrm2_forward.21} parent=0 // loop_body
    %s18 = ssub.s32 %s13, 1
    %s19 = ssub.s32 %s13, 2
    %s20 = sadd.s32 %s13, 1
    %s21 = ssub.s32 %s13, %s20
    %p22 = scmp.eq.s32.totalorder %s21, 0
    %s24 = sadd.s32 %s23, 1
    %s25 = scalar_select %p22, %s23, %s24
    %p28 = pneg %p22
    %p29 = scmp.eq.s32.totalorder %s13, 1
    %p30 = por %p28, %p29
    %p31 = scmp.ne.s32.totalorder %s23, %s26
    %p32 = scmp.eq.s32.totalorder %s13, 0
    %p33 = por %p31, %p32
    %p34 = scmp.ne.s32.totalorder %s23, %s26
    %p35 = scmp.eq.s32.totalorder %s18, 1
    %p36 = por %p34, %p35
    %p37 = scmp.ne.s32.totalorder %s26, %s27
    %p38 = scmp.eq.s32.totalorder %s18, 0
    %p39 = por %p37, %p38
    %p40 = scmp.ne.s32.totalorder %s26, %s27
    %p41 = scmp.eq.s32.totalorder %s19, 1
    %p42 = por %p40, %p41
    %p44 = scmp.ne.s32.totalorder %s27, %s43
    %p45 = scmp.eq.s32.totalorder %s19, 0
    %p46 = por %p44, %p45
    %s48 = sadd.s32 %s47, 1
    %p51 = scmp.eq.s32.totalorder %s13, 1
    %p52 = scmp.ne.s32.totalorder %s47, %s49
    %p53 = scmp.eq.s32.totalorder %s13, 0
    %p54 = por %p52, %p53
    %p55 = scmp.ne.s32.totalorder %s47, %s49
    %p56 = scmp.eq.s32.totalorder %s18, 1
    %p57 = por %p55, %p56
    %p58 = scmp.ne.s32.totalorder %s49, %s50
    %p59 = scmp.eq.s32.totalorder %s18, 0
    %p60 = por %p58, %p59
    %p61 = scmp.ne.s32.totalorder %s49, %s50
    %p62 = scmp.eq.s32.totalorder %s19, 1
    %p63 = por %p61, %p62
    %p65 = scmp.ne.s32.totalorder %s50, %s64
    %p66 = scmp.eq.s32.totalorder %s19, 0
    %p67 = por %p65, %p66
    %s69 = sadd.s32 %s68, 1
    %p72 = scmp.eq.s32.totalorder %s13, 1
    %p73 = scmp.ne.s32.totalorder %s68, %s70
    %p74 = scmp.eq.s32.totalorder %s13, 0
    %p75 = por %p73, %p74
    %p76 = scmp.ne.s32.totalorder %s68, %s70
    %p77 = scmp.eq.s32.totalorder %s18, 1
    %p78 = por %p76, %p77
    %p79 = scmp.ne.s32.totalorder %s70, %s71
    %p80 = scmp.eq.s32.totalorder %s18, 0
    %p81 = por %p79, %p80
    %p82 = scmp.ne.s32.totalorder %s70, %s71
    %p83 = scmp.eq.s32.totalorder %s19, 1
    %p84 = por %p82, %p83
    %p86 = scmp.ne.s32.totalorder %s71, %s85
    %p87 = scmp.eq.s32.totalorder %s19, 0
    %p88 = por %p86, %p87
    %s90 = sadd.s32 %s89, 1
    %p93 = scmp.eq.s32.totalorder %s13, 1
    %p94 = scmp.ne.s32.totalorder %s89, %s91
    %p95 = scmp.eq.s32.totalorder %s13, 0
    %p96 = por %p94, %p95
    %p97 = scmp.ne.s32.totalorder %s89, %s91
    %p98 = scmp.eq.s32.totalorder %s18, 1
    %p99 = por %p97, %p98
    %p100 = scmp.ne.s32.totalorder %s91, %s92
    %p101 = scmp.eq.s32.totalorder %s18, 0
    %p102 = por %p100, %p101
    %p103 = scmp.ne.s32.totalorder %s91, %s92
    %p104 = scmp.eq.s32.totalorder %s19, 1
    %p105 = por %p103, %p104
    %p107 = scmp.ne.s32.totalorder %s92, %s106
    %p108 = scmp.eq.s32.totalorder %s19, 0
    %p109 = por %p107, %p108
    %s110 = ssub.s32 %s13, %s20
    %p111 = scmp.eq.s32.totalorder %s110, 0
    %s113 = sadd.s32 %s112, 1
    %s114 = scalar_select %p111, %s112, %s113
    %p117 = pneg %p111
    %p118 = scmp.eq.s32.totalorder %s13, 1
    %p119 = por %p117, %p118
    %p120 = scmp.ne.s32.totalorder %s112, %s115
    %p121 = scmp.eq.s32.totalorder %s13, 0
    %p122 = por %p120, %p121
    %p123 = scmp.ne.s32.totalorder %s112, %s115
    %p124 = scmp.eq.s32.totalorder %s18, 1
    %p125 = por %p123, %p124
    %p126 = scmp.ne.s32.totalorder %s115, %s116
    %p127 = scmp.eq.s32.totalorder %s18, 0
    %p128 = por %p126, %p127
    %p129 = scmp.ne.s32.totalorder %s115, %s116
    %p130 = scmp.eq.s32.totalorder %s19, 1
    %p131 = por %p129, %p130
    %p133 = scmp.ne.s32.totalorder %s116, %s132
    %p134 = scmp.eq.s32.totalorder %s19, 0
    %p135 = por %p133, %p134
    %s136 = ssub.s32 %s13, %s20
    %p137 = scmp.eq.s32.totalorder %s136, 0
    %s139 = sadd.s32 %s138, 1
    %s140 = scalar_select %p137, %s138, %s139
    %p143 = pneg %p137
    %p144 = scmp.eq.s32.totalorder %s13, 1
    %p145 = por %p143, %p144
    %p146 = scmp.ne.s32.totalorder %s138, %s141
    %p147 = scmp.eq.s32.totalorder %s13, 0
    %p148 = por %p146, %p147
    %p149 = scmp.ne.s32.totalorder %s138, %s141
    %p150 = scmp.eq.s32.totalorder %s18, 1
    %p151 = por %p149, %p150
    %p152 = scmp.ne.s32.totalorder %s141, %s142
    %p153 = scmp.eq.s32.totalorder %s18, 0
    %p154 = por %p152, %p153
    %p155 = scmp.ne.s32.totalorder %s141, %s142
    %p156 = scmp.eq.s32.totalorder %s19, 1
    %p157 = por %p155, %p156
    %p159 = scmp.ne.s32.totalorder %s142, %s158
    %p160 = scmp.eq.s32.totalorder %s19, 0
    %p161 = por %p159, %p160
    %s162 = ssub.s32 %s13, %s20
    %p163 = scmp.eq.s32.totalorder %s162, 0
    %s165 = sadd.s32 %s164, 1
    %s166 = scalar_select %p163, %s164, %s165
    %p169 = pneg %p163
    %p170 = scmp.eq.s32.totalorder %s13, 1
    %p171 = por %p169, %p170
    %p172 = scmp.ne.s32.totalorder %s164, %s167
    %p173 = scmp.eq.s32.totalorder %s13, 0
    %p174 = por %p172, %p173
    %p175 = scmp.ne.s32.totalorder %s164, %s167
    %p176 = scmp.eq.s32.totalorder %s18, 1
    %p177 = por %p175, %p176
    %p178 = scmp.ne.s32.totalorder %s167, %s168
    %p179 = scmp.eq.s32.totalorder %s18, 0
    %p180 = por %p178, %p179
    %p181 = scmp.ne.s32.totalorder %s167, %s168
    %p182 = scmp.eq.s32.totalorder %s19, 1
    %p183 = por %p181, %p182
    %p185 = scmp.ne.s32.totalorder %s168, %s184
    %p186 = scmp.eq.s32.totalorder %s19, 0
    %p187 = por %p185, %p186
    %p188 = scmp.le.s32.totalorder 1, %s13
    %p189 = scmp.lt.s32.totalorder %s13, 3
    %p190 = pnand %p188, %p189
    %p191 = pneg %p190
    // Predicated region
    $region9: #{resnet_mrm2_forward.21} parent=5 // pred_check
      _
    $region10: #{resnet_mrm2_forward.21} parent=5 // pred_check_branch
      %193 = sbr.rel (%p190) target = $region12
    $region11: #{resnet_mrm2_forward.21} parent=5 // pred_region
      %s194 = ssub.s32 %s13, 1
      // Predicated region
      $region13: #{resnet_mrm2_forward.21} parent=11 // pred_check
        %p195 = pneg %p60
      $region14: #{resnet_mrm2_forward.21} parent=11 // pred_check_branch
        %197 = sbr.rel (%p195) target = $region16
      $region15: #{resnet_mrm2_forward.21} parent=11 // pred_region
        _
      $region16: #{resnet_mrm2_forward.21} parent=11 // pred_fallthru
        _
      // Predicated region
      $region17: #{resnet_mrm2_forward.21} parent=11 // pred_check
        %p198 = pneg %p81
      $region18: #{resnet_mrm2_forward.21} parent=11 // pred_check_branch
        %200 = sbr.rel (%p198) target = $region20
      $region19: #{resnet_mrm2_forward.21} parent=11 // pred_region
        _
      $region20: #{resnet_mrm2_forward.21} parent=11 // pred_fallthru
        _
      // Predicated region
      $region21: #{resnet_mrm2_forward.21} parent=11 // pred_check
        %p201 = pneg %p102
      $region22: #{resnet_mrm2_forward.21} parent=11 // pred_check_branch
        %203 = sbr.rel (%p201) target = $region24
      $region23: #{resnet_mrm2_forward.21} parent=11 // pred_region
        _
      $region24: #{resnet_mrm2_forward.21} parent=11 // pred_fallthru
        _
    $region12: #{resnet_mrm2_forward.21} parent=5 // pred_fallthru
      _
    %p204 = scmp.lt.s32.totalorder %s13, 2
    // Predicated region
    $region25: #{resnet_mrm2_forward.21} parent=5 // pred_check
      %p205 = pneg %p204
    $region26: #{resnet_mrm2_forward.21} parent=5 // pred_check_branch
      %207 = sbr.rel (%p205) target = $region28
    $region27: #{resnet_mrm2_forward.21} parent=5 // pred_region
      // Predicated region
      $region29: #{resnet_mrm2_forward.21} parent=27 // pred_check
        %p208 = pneg %p33
      $region30: #{resnet_mrm2_forward.21} parent=27 // pred_check_branch
        %210 = sbr.rel (%p208) target = $region32
      $region31: #{resnet_mrm2_forward.21} parent=27 // pred_region
        %p211 = scmp.lt.s32.totalorder %s13, 1
        %s212 = scalar_select %p211, %s13, 1
        %s213 = smul.addr %s212, 2
        %s214 = smul.addr %s213, 4
        %s215 = scalar_lea.vmem %s0, %s214
      $region32: #{resnet_mrm2_forward.21} parent=27 // pred_fallthru
        _
    $region28: #{resnet_mrm2_forward.21} parent=5 // pred_fallthru
      _
    %p216 = scmp.le.s32.totalorder 1, %s13
    %p217 = scmp.lt.s32.totalorder %s13, 3
    %p218 = pnand %p216, %p217
    %p219 = pneg %p218
    // Predicated region
    $region33: #{resnet_mrm2_forward.21} parent=5 // pred_check
      _
    $region34: #{resnet_mrm2_forward.21} parent=5 // pred_check_branch
      %221 = sbr.rel (%p218) target = $region36
    $region35: #{resnet_mrm2_forward.21} parent=5 // pred_region
      %s222 = ssub.s32 %s13, 1
      %p223 = scmp.lt.s32.totalorder %s18, 1
      %s224 = scalar_select %p223, %s18, 1
      %s225 = smul.addr %s224, 2
      %s226 = smul.addr %s225, 4
      %s227 = scalar_lea.vmem %s0, %s226
      %p228 = pneg %p39
      %p229 = pneg %p36
      %p230 = pneg %p60
      %p231 = pneg %p57
      %p232 = pneg %p81
      %p233 = pneg %p78
      %p234 = pneg %p102
      %p235 = pneg %p99
      %p236 = pneg %p128
      %p237 = pneg %p125
      %p238 = scmp.lt.s32.totalorder %s18, 1
      %s239 = scalar_select %p238, %s18, 1
      %s240 = smul.addr %s239, 2
      %s241 = smul.addr %s240, 4
      %s242 = scalar_lea.vmem %s4, %s241
      %p243 = pneg %p154
      %p244 = pneg %p151
      %p245 = scmp.lt.s32.totalorder %s18, 1
      %s246 = scalar_select %p245, %s18, 1
      %s247 = scalar_lea.vmem %s5, %s246
      %p248 = pneg %p180
      %p249 = pneg %p177
      %p250 = scmp.lt.s32.totalorder %s18, 1
      %s251 = scalar_select %p250, %s18, 1
      %s252 = scalar_lea.vmem %s6, %s251
      %p253 = scmp.lt.s32.totalorder %s18, 1
      %s254 = scalar_select %p253, %s18, 1
      %s255 = smul.addr %s254, 2
      %s256 = smul.addr %s255, 4
      %s257 = scalar_lea.vmem %s0, %s256
      %p258 = scmp.lt.s32.totalorder %s18, 1
      %s259 = scalar_select %p258, %s18, 1
      %s260 = smul.addr %s259, 2
      %s261 = smul.addr %s260, 4
      %s262 = scalar_lea.vmem %s4, %s261
      %p263 = scmp.lt.s32.totalorder %s18, 1
      %s264 = scalar_select %p263, %s18, 1
      %s265 = scalar_lea.vmem %s5, %s264
      %p266 = scmp.lt.s32.totalorder %s18, 1
      %s267 = scalar_select %p266, %s18, 1
      %s268 = scalar_lea.vmem %s6, %s267
      %v270 = vld [vmem:[%s257] sm:$0xf]
      %v271 = vld [vmem:[%s257 + $0x4] sm:$0xf]
      %v272 = vunpack.c.l.bf16 %v270
      %v273 = vunpack.c.l.bf16 %v271
      %v274 = vld [vmem:[%s2] sm:$0x1]
      %v276 = vlaneseq
      %v277 = vshrl.u32 %v276, 7
      %v278 = vsub.s32 0, %v277
      %v279 = vrot.slane %v274, %v278
      %v281 = vmul.f32 %v272, %v279
      %v282 = vmul.f32 %v273, %v279
      %v283 = vld [vmem:[%s3] sm:$0x1]
      %v285 = vlaneseq
      %v286 = vshrl.u32 %v285, 7
      %v287 = vsub.s32 0, %v286
      %v288 = vrot.slane %v283, %v287
      %v290 = vadd.f32 %v281, %v288
      %v291 = vadd.f32 %v282, %v288
      %v292 = vmax.f32 %v290, 0.0
      %v293 = vmax.f32 %v291, 0.0
      %vm294 = vcmask 122880
      %295 = vst.msk [vmem:[#allocation2] sm:$0x1] %vm294, 0.0
      %vm296 = vcmask 130048
      %297 = vst.msk [vmem:[#allocation2 + $0x1] sm:$0xff] %vm296, %v292
      %vm298 = vcmask 129024
      %299 = vst.msk [vmem:[#allocation2 + $0x9] sm:$0x7f] %vm298, %v293
      %302 = vrot.lane.b32.xlu0 %v292, 16
      %v303 = vpop.permute.xlu0 %302
      %304 = vrot.lane.b32.xlu0 %v293, 16
      %v305 = vpop.permute.xlu0 %304
      %vm308 = vcmask 261248
      %309 = vst.msk [vmem:[#allocation2] sm:$0xff] %vm308, %v303
      %310 = vst.msk [vmem:[#allocation2 + $0x8] sm:$0xff] %vm308, %v305
      %vm311 = vcmask 385280
      %312 = vst.msk [vmem:[#allocation2 + $0xf] sm:$0x1] %vm311, 0.0
      %313 = vrot.lane.b32.xlu0 %v292, 32
      %v314 = vpop.permute.xlu0 %313
      %315 = vrot.lane.b32.xlu0 %v293, 32
      %v316 = vpop.permute.xlu0 %315
      %vm319 = vcmask 392449
      %320 = vst.msk [vmem:[#allocation2 - $0x1] sm:$0xfe] %vm319, %v314
      %vm321 = vcmask 392448
      %322 = vst.msk [vmem:[#allocation2 + $0x7] sm:$0xff] %vm321, %v316
      %v323 = vld [vmem:[#allocation2] sm:$0xff]
      %v324 = vld [vmem:[#allocation2 + $0x8] sm:$0xff]
      %v325 = vpack.c.bf16 %v324, %v323
      %v326 = vld [vmem:[%s1] sm:$0xf]
      %v327 = vld [vmem:[%s1 + $0x4] sm:$0xf]
      %v328 = vld [vmem:[%s1 + $0x8] sm:$0xf]
      %v329 = vld [vmem:[%s1 + $0xc] sm:$0xf]
      %v330 = vld [vmem:[%s1 + $0x10] sm:$0xf]
      %v331 = vld [vmem:[%s1 + $0x14] sm:$0xf]
      %v338 = vunpack.c.l.b16 %v326
      %v339 = vunpack.c.l.b16 %v327
      %v340 = vunpack.c.l.b16 %v328
      %v341 = vunpack.c.l.b16 %v329
      %v342 = vunpack.c.l.b16 %v330
      %v343 = vunpack.c.l.b16 %v331
      %v344 = vpack.c.b16 %v339, %v338
      %v345 = vpack.c.b16 %v341, %v340
      %v346 = vpack.c.b16 %v343, %v342
      %vm350 = vcmask 392192
      %v352 = vsel %vm350, %v325, 0
      %354 = vmatprep.subr.bf16.mxu0 0
      %355 = vmatpush1.bf16.msra.mxu0 %v344
      %356 = vmatprep.subr.bf16.mxu0 0
      %357 = vmatpush1.bf16.msra.mxu0 %v345
      %358 = vmatprep.subr.bf16.mxu0 0
      %359 = vmatpush1.bf16.msra.mxu0 %v346
      %360 = vmatprep.subr.bf16.mxu0 0
      %361 = vmatpush1.bf16.msra.mxu0 0
      %362 = vmatprep.subr.bf16.mxu0 0
      %363 = vmatpush1.bf16.msra.mxu0 0
      %364 = vmatprep.subr.bf16.mxu0 0
      %365 = vmatpush1.bf16.msra.mxu0 0
      %366 = vmatprep.subr.bf16.mxu0 0
      %367 = vmatpush1.bf16.msra.mxu0 0
      %368 = vmatprep.subr.bf16.mxu0 0
      %369 = vmatpush1.bf16.msra.mxu0 0
      %370 = vmatprep.subr.bf16.mxu0 0
      %371 = vmatpush1.bf16.msra.mxu0 0
      %372 = vmatprep.subr.bf16.mxu0 0
      %373 = vmatpush1.bf16.msra.mxu0 0
      %374 = vmatprep.subr.bf16.mxu0 0
      %375 = vmatpush1.bf16.msra.mxu0 0
      %376 = vmatprep.subr.bf16.mxu0 0
      %377 = vmatpush1.bf16.msra.mxu0 0
      %378 = vmatprep.subr.bf16.mxu0 0
      %379 = vmatpush1.bf16.msra.mxu0 0
      %380 = vmatprep.subr.bf16.mxu0 0
      %381 = vmatpush1.bf16.msra.mxu0 0
      %382 = vmatprep.subr.bf16.mxu0 0
      %383 = vmatpush1.bf16.msra.mxu0 0
      %384 = vmatprep.subr.bf16.mxu0 0
      %385 = vmatpush1.bf16.msra.mxu0 0
      %386 = vmatprep.mubr.bf16.mxu0 0
      %387 = vmatmul.mubr.bf16.gmra.mrb[0].mxu0 %v352
      %v388 = vpop.f32.mrb[0].mxu0
      %v389 = vadd.f32 0.0, %v388
      %v390 = vpop.f32.mrb[0].mxu0
      %v391 = vpop.f32.mrb[0].mxu0
      %v392 = vadd.f32 0.0, %v391
      %v393 = vpop.f32.mrb[0].mxu0
      %394 = vdwg.mxu0
      %v395 = vpack.c.bf16 %v392, %v389
      %v397 = vunpack.c.l.b16 %v395
      %v398 = vunpack.c.h.b16 %v395
      %v399 = vpack.c.b16 %v397, %v397
      %v400 = vpack.c.b16 %v398, %v398
      %vm403 = vcmask 125952
      %404 = vst.msk [vmem:[%s262] sm:$0xf] %vm403, %v399
      %405 = vst.msk [vmem:[%s262 + $0x4] sm:$0xf] %vm403, %v400
      %v406 = vsel %vm296, %v389, 0.0
      %v407 = vsel %vm296, %v392, 0.0
      %v408 = vadd.f32 %v406, %v407
      %v409 = vrot.slane %v408, 4
      %v410 = vadd.f32 %v408, %v409
      %v411 = vrot.slane %v410, 2
      %v412 = vadd.f32 %v410, %v411
      %v413 = vrot.slane %v412, 1
      %v414 = vadd.f32 %v412, %v413
      %415 = vst.msk [vmem:[%s265] sm:$0x1] %vm294, %v414
      %v416 = vmul.f32 %v389, %v389
      %v417 = vmul.f32 %v392, %v392
      %v418 = vsel %vm296, %v416, 0.0
      %v419 = vsel %vm296, %v417, 0.0
      %v420 = vadd.f32 %v418, %v419
      %v421 = vrot.slane %v420, 4
      %v422 = vadd.f32 %v420, %v421
      %v423 = vrot.slane %v422, 2
      %v424 = vadd.f32 %v422, %v423
      %v425 = vrot.slane %v424, 1
      %v426 = vadd.f32 %v424, %v425
      %427 = vst.msk [vmem:[%s268] sm:$0x1] %vm294, %v426
      %p428 = scmp.lt.s32.totalorder %s18, 1
      %s429 = scalar_select %p428, %s18, 1
      %s430 = smul.addr %s429, 2
      %s431 = smul.addr %s430, 4
      %s432 = scalar_lea.vmem %s4, %s431
      %p433 = scmp.lt.s32.totalorder %s18, 1
      %s434 = scalar_select %p433, %s18, 1
      %s435 = scalar_lea.vmem %s5, %s434
      %p436 = scmp.lt.s32.totalorder %s18, 1
      %s437 = scalar_select %p436, %s18, 1
      %s438 = scalar_lea.vmem %s6, %s437
      // Predicated region
      $region37: #{resnet_mrm2_forward.21} parent=35 // pred_check
        %p439 = pneg %p125
      $region38: #{resnet_mrm2_forward.21} parent=35 // pred_check_branch
        %441 = sbr.rel (%p439) target = $region40
      $region39: #{resnet_mrm2_forward.21} parent=35 // pred_region
        _
      $region40: #{resnet_mrm2_forward.21} parent=35 // pred_fallthru
        _
      // Predicated region
      $region41: #{resnet_mrm2_forward.21} parent=35 // pred_check
        %p442 = pneg %p151
      $region42: #{resnet_mrm2_forward.21} parent=35 // pred_check_branch
        %444 = sbr.rel (%p442) target = $region44
      $region43: #{resnet_mrm2_forward.21} parent=35 // pred_region
        _
      $region44: #{resnet_mrm2_forward.21} parent=35 // pred_fallthru
        _
      // Predicated region
      $region45: #{resnet_mrm2_forward.21} parent=35 // pred_check
        %p445 = pneg %p177
      $region46: #{resnet_mrm2_forward.21} parent=35 // pred_check_branch
        %447 = sbr.rel (%p445) target = $region48
      $region47: #{resnet_mrm2_forward.21} parent=35 // pred_region
        _
      $region48: #{resnet_mrm2_forward.21} parent=35 // pred_fallthru
        _
    $region36: #{resnet_mrm2_forward.21} parent=5 // pred_fallthru
      _
    %p448 = scmp.le.s32.totalorder 2, %s13
    // Predicated region
    $region49: #{resnet_mrm2_forward.21} parent=5 // pred_check
      %p449 = pneg %p448
    $region50: #{resnet_mrm2_forward.21} parent=5 // pred_check_branch
      %451 = sbr.rel (%p449) target = $region52
    $region51: #{resnet_mrm2_forward.21} parent=5 // pred_region
      %s452 = ssub.s32 %s13, 2
      // Predicated region
      $region53: #{resnet_mrm2_forward.21} parent=51 // pred_check
        %p453 = pneg %p131
      $region54: #{resnet_mrm2_forward.21} parent=51 // pred_check_branch
        %455 = sbr.rel (%p453) target = $region56
      $region55: #{resnet_mrm2_forward.21} parent=51 // pred_region
        %p456 = scmp.lt.s32.totalorder %s19, 1
        %s457 = scalar_select %p456, %s19, 1
        %s458 = smul.addr %s457, 2
        %s459 = smul.addr %s458, 4
        %s460 = scalar_lea.vmem %s4, %s459
      $region56: #{resnet_mrm2_forward.21} parent=51 // pred_fallthru
        _
      // Predicated region
      $region57: #{resnet_mrm2_forward.21} parent=51 // pred_check
        %p461 = pneg %p157
      $region58: #{resnet_mrm2_forward.21} parent=51 // pred_check_branch
        %463 = sbr.rel (%p461) target = $region60
      $region59: #{resnet_mrm2_forward.21} parent=51 // pred_region
        %p464 = scmp.lt.s32.totalorder %s19, 1
        %s465 = scalar_select %p464, %s19, 1
        %s466 = scalar_lea.vmem %s5, %s465
      $region60: #{resnet_mrm2_forward.21} parent=51 // pred_fallthru
        _
      // Predicated region
      $region61: #{resnet_mrm2_forward.21} parent=51 // pred_check
        %p467 = pneg %p183
      $region62: #{resnet_mrm2_forward.21} parent=51 // pred_check_branch
        %469 = sbr.rel (%p467) target = $region64
      $region63: #{resnet_mrm2_forward.21} parent=51 // pred_region
        %p470 = scmp.lt.s32.totalorder %s19, 1
        %s471 = scalar_select %p470, %s19, 1
        %s472 = scalar_lea.vmem %s6, %s471
      $region64: #{resnet_mrm2_forward.21} parent=51 // pred_fallthru
        _
    $region52: #{resnet_mrm2_forward.21} parent=5 // pred_fallthru
      _
  $region6: #{resnet_mrm2_forward.21} parent=0 // loop_footer
    %s17 = sadd.s32 1, %s13
  $region7: #{resnet_mrm2_forward.21} parent=0 // loop_footer_branch
    %12 = sbr.rel target = $region3
  $region8: #{resnet_mrm2_forward.21} parent=0 // loop_exit
    _

// kernel: resnet_mrm2_forward.27
$region0: #{resnet_mrm2_forward.27}
  #allocation0 [shape = 'u32[]', space=smem, size = 0x4, offset = 0x4, fixed_abs, tag = 'smem constant byte address 0x4 - core index']
  #allocation1 [shape = 'u32[144,128]{1,0:T(1,128)}', space=vmem, size = 0x12000, scoped, tag = 'internal scratch']
  %s0 = inlined_call_operand.vmem [shape: f32[2,16], index: 0, kind: input, shape index: {}]
  %s1 = inlined_call_operand.vmem [shape: f32[16,3], index: 1, kind: input, shape index: {}]
  %s2 = inlined_call_operand.vmem [shape: f32[1,3], index: 2, kind: input, shape index: {}]
  %s3 = inlined_call_operand.hbm [shape: f32[2,3], index: 3, kind: output, shape index: {}]
  %s4 = sld [smem:[#allocation0]]
  $region22: #{resnet_mrm2_forward.27} parent=0
    _
  %s6 = ssub.s32 1, %s4
  %s7 = scalar_select 0, %s6, %s4
  $region1: #{resnet_mrm2_forward.27} parent=0
    #allocation2 [shape = 'u8[1024]{0}', space=vmem, size = 0x400, scoped, tag = 'output window, operand 0, single buffered']
    #allocation3 [shape = 's32[1]{0}', space=sflag, size = 0x4, scoped, tag = 'scoped memory for resnet_mrm2_forward.27']
    %8 = vsyncpa [#allocation3], 0
    // Predicated region
    $region2: #{resnet_mrm2_forward.27} parent=1 // pred_check
      _
    $region3: #{resnet_mrm2_forward.27} parent=1 // pred_check_branch
      %10 = sbr.rel (0) target = $region5
    $region4: #{resnet_mrm2_forward.27} parent=1 // pred_region
      _
    $region5: #{resnet_mrm2_forward.27} parent=1 // pred_fallthru
      _
    // Predicated region
    $region6: #{resnet_mrm2_forward.27} parent=1 // pred_check
      _
    $region7: #{resnet_mrm2_forward.27} parent=1 // pred_check_branch
      %12 = sbr.rel (0) target = $region9
    $region8: #{resnet_mrm2_forward.27} parent=1 // pred_region
      _
    $region9: #{resnet_mrm2_forward.27} parent=1 // pred_fallthru
      _
    // Predicated region
    $region10: #{resnet_mrm2_forward.27} parent=1 // pred_check
      _
    $region11: #{resnet_mrm2_forward.27} parent=1 // pred_check_branch
      %14 = sbr.rel (0) target = $region13
    $region12: #{resnet_mrm2_forward.27} parent=1 // pred_region
      _
    $region13: #{resnet_mrm2_forward.27} parent=1 // pred_fallthru
      _
    %v15 = vld [vmem:[%s0] sm:$0x3]
    %v16 = vld [vmem:[%s1] sm:$0xff]
    %v17 = vld [vmem:[%s1 + $0x8] sm:$0xff]
    %v18 = vld [vmem:[%s2] sm:$0x1]
    %v20 = vlaneseq
    %v21 = vshrl.u32 %v20, 7
    %v22 = vsub.s32 0, %v21
    %v23 = vrot.slane %v18, %v22
    %vm25 = vcmask 130048
    %v27 = vsel %vm25, %v15, 0
    %29 = vmatprep.subr.mxu0 0.0
    %30 = vmatpush1.msra.mxu0 %v16
    %31 = vmatprep.subr.mxu0 0.0
    %32 = vmatpush1.msra.mxu0 %v17
    %33 = vmatprep.subr.mxu0 0.0
    %34 = vmatpush1.msra.mxu0 0.0
    %35 = vmatprep.subr.mxu0 0.0
    %36 = vmatpush1.msra.mxu0 0.0
    %37 = vmatprep.subr.mxu0 0.0
    %38 = vmatpush1.msra.mxu0 0.0
    %39 = vmatprep.subr.mxu0 0.0
    %40 = vmatpush1.msra.mxu0 0.0
    %41 = vmatprep.subr.mxu0 0.0
    %42 = vmatpush1.msra.mxu0 0.0
    %43 = vmatprep.subr.mxu0 0.0
    %44 = vmatpush1.msra.mxu0 0.0
    %45 = vmatprep.subr.mxu0 0.0
    %46 = vmatpush1.msra.mxu0 0.0
    %47 = vmatprep.subr.mxu0 0.0
    %48 = vmatpush1.msra.mxu0 0.0
    %49 = vmatprep.subr.mxu0 0.0
    %50 = vmatpush1.msra.mxu0 0.0
    %51 = vmatprep.subr.mxu0 0.0
    %52 = vmatpush1.msra.mxu0 0.0
    %53 = vmatprep.subr.mxu0 0.0
    %54 = vmatpush1.msra.mxu0 0.0
    %55 = vmatprep.subr.mxu0 0.0
    %56 = vmatpush1.msra.mxu0 0.0
    %57 = vmatprep.subr.mxu0 0.0
    %58 = vmatpush1.msra.mxu0 0.0
    %59 = vmatprep.subr.mxu0 0.0
    %60 = vmatpush1.msra.mxu0 0.0
    %61 = vmatprep.subr.mxu0 0.0
    %62 = vmatpush1.msra.mxu0 0.0
    %63 = vmatprep.subr.mxu0 0.0
    %64 = vmatpush1.msra.mxu0 0.0
    %65 = vmatprep.subr.mxu0 0.0
    %66 = vmatpush1.msra.mxu0 0.0
    %67 = vmatprep.subr.mxu0 0.0
    %68 = vmatpush1.msra.mxu0 0.0
    %69 = vmatprep.subr.mxu0 0.0
    %70 = vmatpush1.msra.mxu0 0.0
    %71 = vmatprep.subr.mxu0 0.0
    %72 = vmatpush1.msra.mxu0 0.0
    %73 = vmatprep.subr.mxu0 0.0
    %74 = vmatpush1.msra.mxu0 0.0
    %75 = vmatprep.subr.mxu0 0.0
    %76 = vmatpush1.msra.mxu0 0.0
    %77 = vmatprep.subr.mxu0 0.0
    %78 = vmatpush1.msra.mxu0 0.0
    %79 = vmatprep.subr.mxu0 0.0
    %80 = vmatpush1.msra.mxu0 0.0
    %81 = vmatprep.subr.mxu0 0.0
    %82 = vmatpush1.msra.mxu0 0.0
    %83 = vmatprep.subr.mxu0 0.0
    %84 = vmatpush1.msra.mxu0 0.0
    %85 = vmatprep.subr.mxu0 0.0
    %86 = vmatpush1.msra.mxu0 0.0
    %87 = vmatprep.subr.mxu0 0.0
    %88 = vmatpush1.msra.mxu0 0.0
    %89 = vmatprep.subr.mxu0 0.0
    %90 = vmatpush1.msra.mxu0 0.0
    %91 = vmatprep.subr.mxu0 0.0
    %92 = vmatpush1.msra.mxu0 0.0
    %93 = vmatprep.mubr.f32.mxu0 0.0
    %94 = vmatmul.mubr.f32.gmra.mrb[0].mxu0 %v27
    %v95 = vpop.f32.mrb[0].mxu0
    %v96 = vadd.f32 %v23, %v95
    %v97 = vpop.f32.mrb[0].mxu0
    %98 = vdwg.mxu0
    %vm99 = vcmask 17408
    %100 = vst.msk [vmem:[#allocation2] sm:$0x3] %vm99, %v96
    // Predicated region
    $region14: #{resnet_mrm2_forward.27} parent=1 // pred_check
      _
    $region15: #{resnet_mrm2_forward.27} parent=1 // pred_check_branch
      %102 = sbr.rel (0) target = $region17
    $region16: #{resnet_mrm2_forward.27} parent=1 // pred_region
      %s104 = ssub.s32 32, 32
      %105 = vsyncadd [#allocation3], %s104
      %s107 = sshll.u32 [#allocation2], 4
      %s108 = int_to_ptr.vmem [resolvable:$true] %s107
      %110 = dma.vmem_to_hbm [thread:$0]  %s108, 32, %s3, [#allocation3]
    $region17: #{resnet_mrm2_forward.27} parent=1 // pred_fallthru
      _
    // Predicated region
    $region18: #{resnet_mrm2_forward.27} parent=1 // pred_check
      _
    $region19: #{resnet_mrm2_forward.27} parent=1 // pred_check_branch
      %112 = sbr.rel (0) target = $region21
    $region20: #{resnet_mrm2_forward.27} parent=1 // pred_region
      %113 = dma.done [#allocation3], 32
    $region21: #{resnet_mrm2_forward.27} parent=1 // pred_fallthru
      _
    %114 = vsyncpa [#allocation3], 1

// kernel: resnet_mrm2_forward.26
$region0: #{resnet_mrm2_forward.26}
  #allocation0 [shape = 'u32[]', space=smem, size = 0x4, offset = 0x4, fixed_abs, tag = 'smem constant byte address 0x4 - core index']
  #allocation1 [shape = 'u32[144,128]{1,0:T(1,128)}', space=vmem, size = 0x12000, scoped, tag = 'internal scratch']
  %s0 = inlined_call_operand.vmem [shape: bf16[2,16,16], index: 0, kind: input, shape index: {}]
  %s1 = inlined_call_operand.vmem [shape: bf16[2,16,16], index: 1, kind: input, shape index: {}]
  %s2 = inlined_call_operand.vmem [shape: f32[1,16], index: 2, kind: input, shape index: {}]
  %s3 = inlined_call_operand.vmem [shape: f32[1,16], index: 3, kind: input, shape index: {}]
  %s4 = inlined_call_operand.vmem [shape: f32[1,16], index: 4, kind: input, shape index: {}]
  %s5 = inlined_call_operand.vmem [shape: f32[1,16], index: 5, kind: input, shape index: {}]
  %s6 = inlined_call_operand.vmem [shape: f32[2,1,16], index: 6, kind: output, shape index: {}]
  %s7 = sld [smem:[#allocation0]]
  $region57: #{resnet_mrm2_forward.26} parent=0
    _
  %s9 = ssub.s32 1, %s7
  %s10 = scalar_select 0, %s9, %s7
  loop: start=0, step=1, limit=4
  $region2: #{resnet_mrm2_forward.26} parent=0 // loop_pre_header
    _
  $region3: #{resnet_mrm2_forward.26} parent=0 // loop_header
    %s12 = sphi 0, %s16
    %p13 = scmp.ge.s32.totalorder %s12, 4
    %s22 = sphi 0, %s24
    %s25 = sphi 0, %s22
    %s26 = sphi 0, %s25
    %s42 = sphi 0, %s26
    %s48 = sphi 0, %s50
    %s51 = sphi 0, %s48
    %s52 = sphi 0, %s51
    %s68 = sphi 0, %s52
    %s72 = sphi 0, %s72
    %s74 = sphi 0, %s72
    %s75 = sphi 0, %s74
    %s89 = sphi 0, %s75
    %s93 = sphi 0, %s93
    %s95 = sphi 0, %s93
    %s96 = sphi 0, %s95
    %s110 = sphi 0, %s96
    %s114 = sphi 0, %s114
    %s116 = sphi 0, %s114
    %s117 = sphi 0, %s116
    %s131 = sphi 0, %s117
    %s135 = sphi 0, %s135
    %s137 = sphi 0, %s135
    %s138 = sphi 0, %s137
    %s152 = sphi 0, %s138
    %s158 = sphi 0, %s160
    %s161 = sphi 0, %s158
    %s162 = sphi 0, %s161
    %s178 = sphi 0, %s162
  $region4: #{resnet_mrm2_forward.26} parent=0 // loop_header_branch
    %15 = sbr.rel (%p13) target = $region8
  $region5: #{resnet_mrm2_forward.26} parent=0 // loop_body
    %s17 = ssub.s32 %s12, 1
    %s18 = ssub.s32 %s12, 2
    %s19 = sadd.s32 %s12, 1
    %s20 = ssub.s32 %s12, %s19
    %p21 = scmp.eq.s32.totalorder %s20, 0
    %s23 = sadd.s32 %s22, 1
    %s24 = scalar_select %p21, %s22, %s23
    %p27 = pneg %p21
    %p28 = scmp.eq.s32.totalorder %s12, 1
    %p29 = por %p27, %p28
    %p30 = scmp.ne.s32.totalorder %s22, %s25
    %p31 = scmp.eq.s32.totalorder %s12, 0
    %p32 = por %p30, %p31
    %p33 = scmp.ne.s32.totalorder %s22, %s25
    %p34 = scmp.eq.s32.totalorder %s17, 1
    %p35 = por %p33, %p34
    %p36 = scmp.ne.s32.totalorder %s25, %s26
    %p37 = scmp.eq.s32.totalorder %s17, 0
    %p38 = por %p36, %p37
    %p39 = scmp.ne.s32.totalorder %s25, %s26
    %p40 = scmp.eq.s32.totalorder %s18, 1
    %p41 = por %p39, %p40
    %p43 = scmp.ne.s32.totalorder %s26, %s42
    %p44 = scmp.eq.s32.totalorder %s18, 0
    %p45 = por %p43, %p44
    %s46 = ssub.s32 %s12, %s19
    %p47 = scmp.eq.s32.totalorder %s46, 0
    %s49 = sadd.s32 %s48, 1
    %s50 = scalar_select %p47, %s48, %s49
    %p53 = pneg %p47
    %p54 = scmp.eq.s32.totalorder %s12, 1
    %p55 = por %p53, %p54
    %p56 = scmp.ne.s32.totalorder %s48, %s51
    %p57 = scmp.eq.s32.totalorder %s12, 0
    %p58 = por %p56, %p57
    %p59 = scmp.ne.s32.totalorder %s48, %s51
    %p60 = scmp.eq.s32.totalorder %s17, 1
    %p61 = por %p59, %p60
    %p62 = scmp.ne.s32.totalorder %s51, %s52
    %p63 = scmp.eq.s32.totalorder %s17, 0
    %p64 = por %p62, %p63
    %p65 = scmp.ne.s32.totalorder %s51, %s52
    %p66 = scmp.eq.s32.totalorder %s18, 1
    %p67 = por %p65, %p66
    %p69 = scmp.ne.s32.totalorder %s52, %s68
    %p70 = scmp.eq.s32.totalorder %s18, 0
    %p71 = por %p69, %p70
    %s73 = sadd.s32 %s72, 1
    %p76 = scmp.eq.s32.totalorder %s12, 1
    %p77 = scmp.ne.s32.totalorder %s72, %s74
    %p78 = scmp.eq.s32.totalorder %s12, 0
    %p79 = por %p77, %p78
    %p80 = scmp.ne.s32.totalorder %s72, %s74
    %p81 = scmp.eq.s32.totalorder %s17, 1
    %p82 = por %p80, %p81
    %p83 = scmp.ne.s32.totalorder %s74, %s75
    %p84 = scmp.eq.s32.totalorder %s17, 0
    %p85 = por %p83, %p84
    %p86 = scmp.ne.s32.totalorder %s74, %s75
    %p87 = scmp.eq.s32.totalorder %s18, 1
    %p88 = por %p86, %p87
    %p90 = scmp.ne.s32.totalorder %s75, %s89
    %p91 = scmp.eq.s32.totalorder %s18, 0
    %p92 = por %p90, %p91
    %s94 = sadd.s32 %s93, 1
    %p97 = scmp.eq.s32.totalorder %s12, 1
    %p98 = scmp.ne.s32.totalorder %s93, %s95
    %p99 = scmp.eq.s32.totalorder %s12, 0
    %p100 = por %p98, %p99
    %p101 = scmp.ne.s32.totalorder %s93, %s95
    %p102 = scmp.eq.s32.totalorder %s17, 1
    %p103 = por %p101, %p102
    %p104 = scmp.ne.s32.totalorder %s95, %s96
    %p105 = scmp.eq.s32.totalorder %s17, 0
    %p106 = por %p104, %p105
    %p107 = scmp.ne.s32.totalorder %s95, %s96
    %p108 = scmp.eq.s32.totalorder %s18, 1
    %p109 = por %p107, %p108
    %p111 = scmp.ne.s32.totalorder %s96, %s110
    %p112 = scmp.eq.s32.totalorder %s18, 0
    %p113 = por %p111, %p112
    %s115 = sadd.s32 %s114, 1
    %p118 = scmp.eq.s32.totalorder %s12, 1
    %p119 = scmp.ne.s32.totalorder %s114, %s116
    %p120 = scmp.eq.s32.totalorder %s12, 0
    %p121 = por %p119, %p120
    %p122 = scmp.ne.s32.totalorder %s114, %s116
    %p123 = scmp.eq.s32.totalorder %s17, 1
    %p124 = por %p122, %p123
    %p125 = scmp.ne.s32.totalorder %s116, %s117
    %p126 = scmp.eq.s32.totalorder %s17, 0
    %p127 = por %p125, %p126
    %p128 = scmp.ne.s32.totalorder %s116, %s117
    %p129 = scmp.eq.s32.totalorder %s18, 1
    %p130 = por %p128, %p129
    %p132 = scmp.ne.s32.totalorder %s117, %s131
    %p133 = scmp.eq.s32.totalorder %s18, 0
    %p134 = por %p132, %p133
    %s136 = sadd.s32 %s135, 1
    %p139 = scmp.eq.s32.totalorder %s12, 1
    %p140 = scmp.ne.s32.totalorder %s135, %s137
    %p141 = scmp.eq.s32.totalorder %s12, 0
    %p142 = por %p140, %p141
    %p143 = scmp.ne.s32.totalorder %s135, %s137
    %p144 = scmp.eq.s32.totalorder %s17, 1
    %p145 = por %p143, %p144
    %p146 = scmp.ne.s32.totalorder %s137, %s138
    %p147 = scmp.eq.s32.totalorder %s17, 0
    %p148 = por %p146, %p147
    %p149 = scmp.ne.s32.totalorder %s137, %s138
    %p150 = scmp.eq.s32.totalorder %s18, 1
    %p151 = por %p149, %p150
    %p153 = scmp.ne.s32.totalorder %s138, %s152
    %p154 = scmp.eq.s32.totalorder %s18, 0
    %p155 = por %p153, %p154
    %s156 = ssub.s32 %s12, %s19
    %p157 = scmp.eq.s32.totalorder %s156, 0
    %s159 = sadd.s32 %s158, 1
    %s160 = scalar_select %p157, %s158, %s159
    %p163 = pneg %p157
    %p164 = scmp.eq.s32.totalorder %s12, 1
    %p165 = por %p163, %p164
    %p166 = scmp.ne.s32.totalorder %s158, %s161
    %p167 = scmp.eq.s32.totalorder %s12, 0
    %p168 = por %p166, %p167
    %p169 = scmp.ne.s32.totalorder %s158, %s161
    %p170 = scmp.eq.s32.totalorder %s17, 1
    %p171 = por %p169, %p170
    %p172 = scmp.ne.s32.totalorder %s161, %s162
    %p173 = scmp.eq.s32.totalorder %s17, 0
    %p174 = por %p172, %p173
    %p175 = scmp.ne.s32.totalorder %s161, %s162
    %p176 = scmp.eq.s32.totalorder %s18, 1
    %p177 = por %p175, %p176
    %p179 = scmp.ne.s32.totalorder %s162, %s178
    %p180 = scmp.eq.s32.totalorder %s18, 0
    %p181 = por %p179, %p180
    %p182 = scmp.le.s32.totalorder 1, %s12
    %p183 = scmp.lt.s32.totalorder %s12, 3
    %p184 = pnand %p182, %p183
    %p185 = pneg %p184
    // Predicated region
    $region9: #{resnet_mrm2_forward.26} parent=5 // pred_check
      _
    $region10: #{resnet_mrm2_forward.26} parent=5 // pred_check_branch
      %187 = sbr.rel (%p184) target = $region12
    $region11: #{resnet_mrm2_forward.26} parent=5 // pred_region
      %s188 = ssub.s32 %s12, 1
      // Predicated region
      $region13: #{resnet_mrm2_forward.26} parent=11 // pred_check
        %p189 = pneg %p85
      $region14: #{resnet_mrm2_forward.26} parent=11 // pred_check_branch
        %191 = sbr.rel (%p189) target = $region16
      $region15: #{resnet_mrm2_forward.26} parent=11 // pred_region
        _
      $region16: #{resnet_mrm2_forward.26} parent=11 // pred_fallthru
        _
      // Predicated region
      $region17: #{resnet_mrm2_forward.26} parent=11 // pred_check
        %p192 = pneg %p106
      $region18: #{resnet_mrm2_forward.26} parent=11 // pred_check_branch
        %194 = sbr.rel (%p192) target = $region20
      $region19: #{resnet_mrm2_forward.26} parent=11 // pred_region
        _
      $region20: #{resnet_mrm2_forward.26} parent=11 // pred_fallthru
        _
      // Predicated region
      $region21: #{resnet_mrm2_forward.26} parent=11 // pred_check
        %p195 = pneg %p127
      $region22: #{resnet_mrm2_forward.26} parent=11 // pred_check_branch
        %197 = sbr.rel (%p195) target = $region24
      $region23: #{resnet_mrm2_forward.26} parent=11 // pred_region
        _
      $region24: #{resnet_mrm2_forward.26} parent=11 // pred_fallthru
        _
      // Predicated region
      $region25: #{resnet_mrm2_forward.26} parent=11 // pred_check
        %p198 = pneg %p148
      $region26: #{resnet_mrm2_forward.26} parent=11 // pred_check_branch
        %200 = sbr.rel (%p198) target = $region28
      $region27: #{resnet_mrm2_forward.26} parent=11 // pred_region
        _
      $region28: #{resnet_mrm2_forward.26} parent=11 // pred_fallthru
        _
    $region12: #{resnet_mrm2_forward.26} parent=5 // pred_fallthru
      _
    %p201 = scmp.lt.s32.totalorder %s12, 2
    // Predicated region
    $region29: #{resnet_mrm2_forward.26} parent=5 // pred_check
      %p202 = pneg %p201
    $region30: #{resnet_mrm2_forward.26} parent=5 // pred_check_branch
      %204 = sbr.rel (%p202) target = $region32
    $region31: #{resnet_mrm2_forward.26} parent=5 // pred_region
      // Predicated region
      $region33: #{resnet_mrm2_forward.26} parent=31 // pred_check
        %p205 = pneg %p32
      $region34: #{resnet_mrm2_forward.26} parent=31 // pred_check_branch
        %207 = sbr.rel (%p205) target = $region36
      $region35: #{resnet_mrm2_forward.26} parent=31 // pred_region
        %p208 = scmp.lt.s32.totalorder %s12, 1
        %s209 = scalar_select %p208, %s12, 1
        %s210 = smul.addr %s209, 2
        %s211 = smul.addr %s210, 4
        %s212 = scalar_lea.vmem %s0, %s211
      $region36: #{resnet_mrm2_forward.26} parent=31 // pred_fallthru
        _
      // Predicated region
      $region37: #{resnet_mrm2_forward.26} parent=31 // pred_check
        %p213 = pneg %p58
      $region38: #{resnet_mrm2_forward.26} parent=31 // pred_check_branch
        %215 = sbr.rel (%p213) target = $region40
      $region39: #{resnet_mrm2_forward.26} parent=31 // pred_region
        %p216 = scmp.lt.s32.totalorder %s12, 1
        %s217 = scalar_select %p216, %s12, 1
        %s218 = smul.addr %s217, 2
        %s219 = smul.addr %s218, 4
        %s220 = scalar_lea.vmem %s1, %s219
      $region40: #{resnet_mrm2_forward.26} parent=31 // pred_fallthru
        _
    $region32: #{resnet_mrm2_forward.26} parent=5 // pred_fallthru
      _
    %p221 = scmp.le.s32.totalorder 1, %s12
    %p222 = scmp.lt.s32.totalorder %s12, 3
    %p223 = pnand %p221, %p222
    %p224 = pneg %p223
    // Predicated region
    $region41: #{resnet_mrm2_forward.26} parent=5 // pred_check
      _
    $region42: #{resnet_mrm2_forward.26} parent=5 // pred_check_branch
      %226 = sbr.rel (%p223) target = $region44
    $region43: #{resnet_mrm2_forward.26} parent=5 // pred_region
      %s227 = ssub.s32 %s12, 1
      %p228 = scmp.lt.s32.totalorder %s17, 1
      %s229 = scalar_select %p228, %s17, 1
      %s230 = smul.addr %s229, 2
      %s231 = smul.addr %s230, 4
      %s232 = scalar_lea.vmem %s0, %s231
      %p233 = pneg %p38
      %p234 = pneg %p35
      %p235 = scmp.lt.s32.totalorder %s17, 1
      %s236 = scalar_select %p235, %s17, 1
      %s237 = smul.addr %s236, 2
      %s238 = smul.addr %s237, 4
      %s239 = scalar_lea.vmem %s1, %s238
      %p240 = pneg %p64
      %p241 = pneg %p61
      %p242 = pneg %p85
      %p243 = pneg %p82
      %p244 = pneg %p106
      %p245 = pneg %p103
      %p246 = pneg %p127
      %p247 = pneg %p124
      %p248 = pneg %p148
      %p249 = pneg %p145
      %p250 = pneg %p174
      %p251 = pneg %p171
      %p252 = scmp.lt.s32.totalorder %s17, 1
      %s253 = scalar_select %p252, %s17, 1
      %s254 = scalar_lea.vmem %s6, %s253
      %p255 = scmp.lt.s32.totalorder %s17, 1
      %s256 = scalar_select %p255, %s17, 1
      %s257 = smul.addr %s256, 2
      %s258 = smul.addr %s257, 4
      %s259 = scalar_lea.vmem %s0, %s258
      %p260 = scmp.lt.s32.totalorder %s17, 1
      %s261 = scalar_select %p260, %s17, 1
      %s262 = smul.addr %s261, 2
      %s263 = smul.addr %s262, 4
      %s264 = scalar_lea.vmem %s1, %s263
      %p265 = scmp.lt.s32.totalorder %s17, 1
      %s266 = scalar_select %p265, %s17, 1
      %s267 = scalar_lea.vmem %s6, %s266
      %v268 = vld [vmem:[%s259] sm:$0xf]
      %v269 = vld [vmem:[%s259 + $0x4] sm:$0xf]
      %v270 = vunpack.c.l.bf16 %v268
      %v271 = vunpack.c.l.bf16 %v269
      %v272 = vld [vmem:[%s2] sm:$0x1]
      %v274 = vlaneseq
      %v275 = vshrl.u32 %v274, 7
      %v276 = vsub.s32 0, %v275
      %v277 = vrot.slane %v272, %v276
      %v279 = vmul.f32 %v270, %v277
      %v280 = vmul.f32 %v271, %v277
      %v281 = vld [vmem:[%s3] sm:$0x1]
      %v283 = vlaneseq
      %v284 = vshrl.u32 %v283, 7
      %v285 = vsub.s32 0, %v284
      %v286 = vrot.slane %v281, %v285
      %v288 = vadd.f32 %v279, %v286
      %v289 = vadd.f32 %v280, %v286
      %v290 = vld [vmem:[%s264] sm:$0xf]
      %v291 = vld [vmem:[%s264 + $0x4] sm:$0xf]
      %v292 = vunpack.c.l.bf16 %v290
      %v293 = vunpack.c.l.bf16 %v291
      %v294 = vld [vmem:[%s4] sm:$0x1]
      %v296 = vlaneseq
      %v297 = vshrl.u32 %v296, 7
      %v298 = vsub.s32 0, %v297
      %v299 = vrot.slane %v294, %v298
      %v301 = vmul.f32 %v292, %v299
      %v302 = vmul.f32 %v293, %v299
      %v303 = vadd.f32 %v288, %v301
      %v304 = vadd.f32 %v289, %v302
      %v305 = vld [vmem:[%s5] sm:$0x1]
      %v307 = vlaneseq
      %v308 = vshrl.u32 %v307, 7
      %v309 = vsub.s32 0, %v308
      %v310 = vrot.slane %v305, %v309
      %v312 = vadd.f32 %v303, %v310
      %v313 = vadd.f32 %v304, %v310
      %v314 = vmax.f32 %v312, 0.0
      %v315 = vmax.f32 %v313, 0.0
      %vm316 = vcmask 130048
      %v317 = vsel %vm316, %v314, 0.0
      %v318 = vsel %vm316, %v315, 0.0
      %v319 = vadd.f32 %v317, %v318
      %v320 = vrot.slane %v319, 4
      %v321 = vadd.f32 %v319, %v320
      %v322 = vrot.slane %v321, 2
      %v323 = vadd.f32 %v321, %v322
      %v324 = vrot.slane %v323, 1
      %v325 = vadd.f32 %v323, %v324
      %v326 = vrcp.pop 16.0
      %v327 = vmul.f32 %v325, %v326
      %vm328 = vcmask 122880
      %329 = vst.msk [vmem:[%s267] sm:$0x1] %vm328, %v327
      %p330 = scmp.lt.s32.totalorder %s17, 1
      %s331 = scalar_select %p330, %s17, 1
      %s332 = scalar_lea.vmem %s6, %s331
      // Predicated region
      $region45: #{resnet_mrm2_forward.26} parent=43 // pred_check
        %p333 = pneg %p171
      $region46: #{resnet_mrm2_forward.26} parent=43 // pred_check_branch
        %335 = sbr.rel (%p333) target = $region48
      $region47: #{resnet_mrm2_forward.26} parent=43 // pred_region
        _
      $region48: #{resnet_mrm2_forward.26} parent=43 // pred_fallthru
        _
    $region44: #{resnet_mrm2_forward.26} parent=5 // pred_fallthru
      _
    %p336 = scmp.le.s32.totalorder 2, %s12
    // Predicated region
    $region49: #{resnet_mrm2_forward.26} parent=5 // pred_check
      %p337 = pneg %p336
    $region50: #{resnet_mrm2_forward.26} parent=5 // pred_check_branch
      %339 = sbr.rel (%p337) target = $region52
    $region51: #{resnet_mrm2_forward.26} parent=5 // pred_region
      %s340 = ssub.s32 %s12, 2
      // Predicated region
      $region53: #{resnet_mrm2_forward.26} parent=51 // pred_check
        %p341 = pneg %p177
      $region54: #{resnet_mrm2_forward.26} parent=51 // pred_check_branch
        %343 = sbr.rel (%p341) target = $region56
      $region55: #{resnet_mrm2_forward.26} parent=51 // pred_region
        %p344 = scmp.lt.s32.totalorder %s18, 1
        %s345 = scalar_select %p344, %s18, 1
        %s346 = scalar_lea.vmem %s6, %s345
      $region56: #{resnet_mrm2_forward.26} parent=51 // pred_fallthru
        _
    $region52: #{resnet_mrm2_forward.26} parent=5 // pred_fallthru
      _
  $region6: #{resnet_mrm2_forward.26} parent=0 // loop_footer
    %s16 = sadd.s32 1, %s12
  $region7: #{resnet_mrm2_forward.26} parent=0 // loop_footer_branch
    %11 = sbr.rel target = $region3
  $region8: #{resnet_mrm2_forward.26} parent=0 // loop_exit
    _

// kernel: resnet_mrm2_forward.23
$region0: #{resnet_mrm2_forward.23}
  #allocation0 [shape = 'u32[]', space=smem, size = 0x4, offset = 0x4, fixed_abs, tag = 'smem constant byte address 0x4 - core index']
  #allocation1 [shape = 'u32[144,128]{1,0:T(1,128)}', space=vmem, size = 0x12000, scoped, tag = 'internal scratch']
  #allocation2 [shape = 'f32[16,128]{1,0:T(8,128)}', space=vmem, size = 0x2000, scoped, tag = 'scratch operand']
  %s0 = inlined_call_operand.vmem [shape: bf16[2,16,16], index: 0, kind: input, shape index: {}]
  %s1 = inlined_call_operand.vmem [shape: bf16[128,16], index: 1, kind: input, shape index: {}]
  %s2 = inlined_call_operand.vmem [shape: bf16[2,16,16], index: 2, kind: output, shape index: {0}]
  %s3 = inlined_call_operand.vmem [shape: f32[2,1,16], index: 3, kind: output, shape index: {1}]
  %s4 = inlined_call_operand.vmem [shape: f32[2,1,16], index: 4, kind: output, shape index: {2}]
  %5 = xla_tuple %s2, %s3, %s4
  %s6 = sld [smem:[#allocation0]]
  $region57: #{resnet_mrm2_forward.23} parent=0
    _
  %s8 = ssub.s32 1, %s6
  %s9 = scalar_select 0, %s8, %s6
  loop: start=0, step=1, limit=4
  $region2: #{resnet_mrm2_forward.23} parent=0 // loop_pre_header
    _
  $region3: #{resnet_mrm2_forward.23} parent=0 // loop_header
    %s11 = sphi 0, %s15
    %p12 = scmp.ge.s32.totalorder %s11, 4
    %s21 = sphi 0, %s23
    %s24 = sphi 0, %s21
    %s25 = sphi 0, %s24
    %s41 = sphi 0, %s25
    %s45 = sphi 0, %s45
    %s47 = sphi 0, %s45
    %s48 = sphi 0, %s47
    %s62 = sphi 0, %s48
    %s68 = sphi 0, %s70
    %s71 = sphi 0, %s68
    %s72 = sphi 0, %s71
    %s88 = sphi 0, %s72
    %s94 = sphi 0, %s96
    %s97 = sphi 0, %s94
    %s98 = sphi 0, %s97
    %s114 = sphi 0, %s98
    %s120 = sphi 0, %s122
    %s123 = sphi 0, %s120
    %s124 = sphi 0, %s123
    %s140 = sphi 0, %s124
  $region4: #{resnet_mrm2_forward.23} parent=0 // loop_header_branch
    %14 = sbr.rel (%p12) target = $region8
  $region5: #{resnet_mrm2_forward.23} parent=0 // loop_body
    %s16 = ssub.s32 %s11, 1
    %s17 = ssub.s32 %s11, 2
    %s18 = sadd.s32 %s11, 1
    %s19 = ssub.s32 %s11, %s18
    %p20 = scmp.eq.s32.totalorder %s19, 0
    %s22 = sadd.s32 %s21, 1
    %s23 = scalar_select %p20, %s21, %s22
    %p26 = pneg %p20
    %p27 = scmp.eq.s32.totalorder %s11, 1
    %p28 = por %p26, %p27
    %p29 = scmp.ne.s32.totalorder %s21, %s24
    %p30 = scmp.eq.s32.totalorder %s11, 0
    %p31 = por %p29, %p30
    %p32 = scmp.ne.s32.totalorder %s21, %s24
    %p33 = scmp.eq.s32.totalorder %s16, 1
    %p34 = por %p32, %p33
    %p35 = scmp.ne.s32.totalorder %s24, %s25
    %p36 = scmp.eq.s32.totalorder %s16, 0
    %p37 = por %p35, %p36
    %p38 = scmp.ne.s32.totalorder %s24, %s25
    %p39 = scmp.eq.s32.totalorder %s17, 1
    %p40 = por %p38, %p39
    %p42 = scmp.ne.s32.totalorder %s25, %s41
    %p43 = scmp.eq.s32.totalorder %s17, 0
    %p44 = por %p42, %p43
    %s46 = sadd.s32 %s45, 1
    %p49 = scmp.eq.s32.totalorder %s11, 1
    %p50 = scmp.ne.s32.totalorder %s45, %s47
    %p51 = scmp.eq.s32.totalorder %s11, 0
    %p52 = por %p50, %p51
    %p53 = scmp.ne.s32.totalorder %s45, %s47
    %p54 = scmp.eq.s32.totalorder %s16, 1
    %p55 = por %p53, %p54
    %p56 = scmp.ne.s32.totalorder %s47, %s48
    %p57 = scmp.eq.s32.totalorder %s16, 0
    %p58 = por %p56, %p57
    %p59 = scmp.ne.s32.totalorder %s47, %s48
    %p60 = scmp.eq.s32.totalorder %s17, 1
    %p61 = por %p59, %p60
    %p63 = scmp.ne.s32.totalorder %s48, %s62
    %p64 = scmp.eq.s32.totalorder %s17, 0
    %p65 = por %p63, %p64
    %s66 = ssub.s32 %s11, %s18
    %p67 = scmp.eq.s32.totalorder %s66, 0
    %s69 = sadd.s32 %s68, 1
    %s70 = scalar_select %p67, %s68, %s69
    %p73 = pneg %p67
    %p74 = scmp.eq.s32.totalorder %s11, 1
    %p75 = por %p73, %p74
    %p76 = scmp.ne.s32.totalorder %s68, %s71
    %p77 = scmp.eq.s32.totalorder %s11, 0
    %p78 = por %p76, %p77
    %p79 = scmp.ne.s32.totalorder %s68, %s71
    %p80 = scmp.eq.s32.totalorder %s16, 1
    %p81 = por %p79, %p80
    %p82 = scmp.ne.s32.totalorder %s71, %s72
    %p83 = scmp.eq.s32.totalorder %s16, 0
    %p84 = por %p82, %p83
    %p85 = scmp.ne.s32.totalorder %s71, %s72
    %p86 = scmp.eq.s32.totalorder %s17, 1
    %p87 = por %p85, %p86
    %p89 = scmp.ne.s32.totalorder %s72, %s88
    %p90 = scmp.eq.s32.totalorder %s17, 0
    %p91 = por %p89, %p90
    %s92 = ssub.s32 %s11, %s18
    %p93 = scmp.eq.s32.totalorder %s92, 0
    %s95 = sadd.s32 %s94, 1
    %s96 = scalar_select %p93, %s94, %s95
    %p99 = pneg %p93
    %p100 = scmp.eq.s32.totalorder %s11, 1
    %p101 = por %p99, %p100
    %p102 = scmp.ne.s32.totalorder %s94, %s97
    %p103 = scmp.eq.s32.totalorder %s11, 0
    %p104 = por %p102, %p103
    %p105 = scmp.ne.s32.totalorder %s94, %s97
    %p106 = scmp.eq.s32.totalorder %s16, 1
    %p107 = por %p105, %p106
    %p108 = scmp.ne.s32.totalorder %s97, %s98
    %p109 = scmp.eq.s32.totalorder %s16, 0
    %p110 = por %p108, %p109
    %p111 = scmp.ne.s32.totalorder %s97, %s98
    %p112 = scmp.eq.s32.totalorder %s17, 1
    %p113 = por %p111, %p112
    %p115 = scmp.ne.s32.totalorder %s98, %s114
    %p116 = scmp.eq.s32.totalorder %s17, 0
    %p117 = por %p115, %p116
    %s118 = ssub.s32 %s11, %s18
    %p119 = scmp.eq.s32.totalorder %s118, 0
    %s121 = sadd.s32 %s120, 1
    %s122 = scalar_select %p119, %s120, %s121
    %p125 = pneg %p119
    %p126 = scmp.eq.s32.totalorder %s11, 1
    %p127 = por %p125, %p126
    %p128 = scmp.ne.s32.totalorder %s120, %s123
    %p129 = scmp.eq.s32.totalorder %s11, 0
    %p130 = por %p128, %p129
    %p131 = scmp.ne.s32.totalorder %s120, %s123
    %p132 = scmp.eq.s32.totalorder %s16, 1
    %p133 = por %p131, %p132
    %p134 = scmp.ne.s32.totalorder %s123, %s124
    %p135 = scmp.eq.s32.totalorder %s16, 0
    %p136 = por %p134, %p135
    %p137 = scmp.ne.s32.totalorder %s123, %s124
    %p138 = scmp.eq.s32.totalorder %s17, 1
    %p139 = por %p137, %p138
    %p141 = scmp.ne.s32.totalorder %s124, %s140
    %p142 = scmp.eq.s32.totalorder %s17, 0
    %p143 = por %p141, %p142
    %p144 = scmp.le.s32.totalorder 1, %s11
    %p145 = scmp.lt.s32.totalorder %s11, 3
    %p146 = pnand %p144, %p145
    %p147 = pneg %p146
    // Predicated region
    $region9: #{resnet_mrm2_forward.23} parent=5 // pred_check
      _
    $region10: #{resnet_mrm2_forward.23} parent=5 // pred_check_branch
      %149 = sbr.rel (%p146) target = $region12
    $region11: #{resnet_mrm2_forward.23} parent=5 // pred_region
      %s150 = ssub.s32 %s11, 1
      // Predicated region
      $region13: #{resnet_mrm2_forward.23} parent=11 // pred_check
        %p151 = pneg %p58
      $region14: #{resnet_mrm2_forward.23} parent=11 // pred_check_branch
        %153 = sbr.rel (%p151) target = $region16
      $region15: #{resnet_mrm2_forward.23} parent=11 // pred_region
        _
      $region16: #{resnet_mrm2_forward.23} parent=11 // pred_fallthru
        _
    $region12: #{resnet_mrm2_forward.23} parent=5 // pred_fallthru
      _
    %p154 = scmp.lt.s32.totalorder %s11, 2
    // Predicated region
    $region17: #{resnet_mrm2_forward.23} parent=5 // pred_check
      %p155 = pneg %p154
    $region18: #{resnet_mrm2_forward.23} parent=5 // pred_check_branch
      %157 = sbr.rel (%p155) target = $region20
    $region19: #{resnet_mrm2_forward.23} parent=5 // pred_region
      // Predicated region
      $region21: #{resnet_mrm2_forward.23} parent=19 // pred_check
        %p158 = pneg %p31
      $region22: #{resnet_mrm2_forward.23} parent=19 // pred_check_branch
        %160 = sbr.rel (%p158) target = $region24
      $region23: #{resnet_mrm2_forward.23} parent=19 // pred_region
        %p161 = scmp.lt.s32.totalorder %s11, 1
        %s162 = scalar_select %p161, %s11, 1
        %s163 = smul.addr %s162, 2
        %s164 = smul.addr %s163, 4
        %s165 = scalar_lea.vmem %s0, %s164
      $region24: #{resnet_mrm2_forward.23} parent=19 // pred_fallthru
        _
    $region20: #{resnet_mrm2_forward.23} parent=5 // pred_fallthru
      _
    %p166 = scmp.le.s32.totalorder 1, %s11
    %p167 = scmp.lt.s32.totalorder %s11, 3
    %p168 = pnand %p166, %p167
    %p169 = pneg %p168
    // Predicated region
    $region25: #{resnet_mrm2_forward.23} parent=5 // pred_check
      _
    $region26: #{resnet_mrm2_forward.23} parent=5 // pred_check_branch
      %171 = sbr.rel (%p168) target = $region28
    $region27: #{resnet_mrm2_forward.23} parent=5 // pred_region
      %s172 = ssub.s32 %s11, 1
      %p173 = scmp.lt.s32.totalorder %s16, 1
      %s174 = scalar_select %p173, %s16, 1
      %s175 = smul.addr %s174, 2
      %s176 = smul.addr %s175, 4
      %s177 = scalar_lea.vmem %s0, %s176
      %p178 = pneg %p37
      %p179 = pneg %p34
      %p180 = pneg %p58
      %p181 = pneg %p55
      %p182 = pneg %p84
      %p183 = pneg %p81
      %p184 = scmp.lt.s32.totalorder %s16, 1
      %s185 = scalar_select %p184, %s16, 1
      %s186 = smul.addr %s185, 2
      %s187 = smul.addr %s186, 4
      %s188 = scalar_lea.vmem %s2, %s187
      %p189 = pneg %p110
      %p190 = pneg %p107
      %p191 = scmp.lt.s32.totalorder %s16, 1
      %s192 = scalar_select %p191, %s16, 1
      %s193 = scalar_lea.vmem %s3, %s192
      %p194 = pneg %p136
      %p195 = pneg %p133
      %p196 = scmp.lt.s32.totalorder %s16, 1
      %s197 = scalar_select %p196, %s16, 1
      %s198 = scalar_lea.vmem %s4, %s197
      %p199 = scmp.lt.s32.totalorder %s16, 1
      %s200 = scalar_select %p199, %s16, 1
      %s201 = smul.addr %s200, 2
      %s202 = smul.addr %s201, 4
      %s203 = scalar_lea.vmem %s0, %s202
      %p204 = scmp.lt.s32.totalorder %s16, 1
      %s205 = scalar_select %p204, %s16, 1
      %s206 = smul.addr %s205, 2
      %s207 = smul.addr %s206, 4
      %s208 = scalar_lea.vmem %s2, %s207
      %p209 = scmp.lt.s32.totalorder %s16, 1
      %s210 = scalar_select %p209, %s16, 1
      %s211 = scalar_lea.vmem %s3, %s210
      %p212 = scmp.lt.s32.totalorder %s16, 1
      %s213 = scalar_select %p212, %s16, 1
      %s214 = scalar_lea.vmem %s4, %s213
      %v216 = vld [vmem:[%s203] sm:$0xf]
      %v217 = vld [vmem:[%s203 + $0x4] sm:$0xf]
      %v218 = vunpack.c.l.bf16 %v216
      %v219 = vunpack.c.l.bf16 %v217
      %vm220 = vcmask 125952
      %221 = vst.msk [vmem:[#allocation2] sm:$0xf] %vm220, 0.0
      %vm222 = vcmask 130048
      %223 = vst.msk [vmem:[#allocation2 + $0x4] sm:$0xff] %vm222, %v218
      %224 = vst.msk [vmem:[#allocation2 + $0xc] sm:$0xf] %vm220, %v219
      %vm225 = vcmask 256128
      %226 = vst.msk [vmem:[#allocation2] sm:$0x7] %vm225, 0.0
      %229 = vrot.lane.b32.xlu0 %v218, 16
      %v230 = vpop.permute.xlu0 %229
      %231 = vrot.lane.b32.xlu0 %v219, 16
      %v232 = vpop.permute.xlu0 %231
      %vm235 = vcmask 261248
      %236 = vst.msk [vmem:[#allocation2 + $0x3] sm:$0xff] %vm235, %v230
      %vm237 = vcmask 258176
      %238 = vst.msk [vmem:[#allocation2 + $0xb] sm:$0x1f] %vm237, %v232
      %vm239 = vcmask 386304
      %240 = vst.msk [vmem:[#allocation2] sm:$0x3] %vm239, 0.0
      %241 = vrot.lane.b32.xlu0 %v218, 32
      %v242 = vpop.permute.xlu0 %241
      %243 = vrot.lane.b32.xlu0 %v219, 32
      %v244 = vpop.permute.xlu0 %243
      %vm247 = vcmask 392448
      %248 = vst.msk [vmem:[#allocation2 + $0x2] sm:$0xff] %vm247, %v242
      %vm249 = vcmask 390400
      %250 = vst.msk [vmem:[#allocation2 + $0xa] sm:$0x3f] %vm249, %v244
      %vm251 = vcmask 516480
      %252 = vst.msk [vmem:[#allocation2] sm:$0x1] %vm251, 0.0
      %253 = vrot.lane.b32.xlu0 %v218, 48
      %v254 = vpop.permute.xlu0 %253
      %255 = vrot.lane.b32.xlu0 %v219, 48
      %v256 = vpop.permute.xlu0 %255
      %vm259 = vcmask 523648
      %260 = vst.msk [vmem:[#allocation2 + $0x1] sm:$0xff] %vm259, %v254
      %vm261 = vcmask 522624
      %262 = vst.msk [vmem:[#allocation2 + $0x9] sm:$0x7f] %vm261, %v256
      %263 = vrot.lane.b32.xlu0 %v218, 64
      %v264 = vpop.permute.xlu0 %263
      %265 = vrot.lane.b32.xlu0 %v219, 64
      %v266 = vpop.permute.xlu0 %265
      %vm269 = vcmask 654848
      %270 = vst.msk [vmem:[#allocation2] sm:$0xff] %vm269, %v264
      %271 = vst.msk [vmem:[#allocation2 + $0x8] sm:$0xff] %vm269, %v266
      %vm272 = vcmask 778880
      %273 = vst.msk [vmem:[#allocation2 + $0xf] sm:$0x1] %vm272, 0.0
      %274 = vrot.lane.b32.xlu0 %v218, 80
      %v275 = vpop.permute.xlu0 %274
      %276 = vrot.lane.b32.xlu0 %v219, 80
      %v277 = vpop.permute.xlu0 %276
      %vm280 = vcmask 786049
      %281 = vst.msk [vmem:[#allocation2 - $0x1] sm:$0xfe] %vm280, %v275
      %vm282 = vcmask 786048
      %283 = vst.msk [vmem:[#allocation2 + $0x7] sm:$0xff] %vm282, %v277
      %vm284 = vcmask 911104
      %285 = vst.msk [vmem:[#allocation2 + $0xe] sm:$0x3] %vm284, 0.0
      %286 = vrot.lane.b32.xlu0 %v218, 96
      %v287 = vpop.permute.xlu0 %286
      %288 = vrot.lane.b32.xlu0 %v219, 96
      %v289 = vpop.permute.xlu0 %288
      %vm292 = vcmask 917250
      %293 = vst.msk [vmem:[#allocation2 - $0x2] sm:$0xfc] %vm292, %v287
      %vm294 = vcmask 917248
      %295 = vst.msk [vmem:[#allocation2 + $0x6] sm:$0xff] %vm294, %v289
      %vm296 = vcmask 1043328
      %297 = vst.msk [vmem:[#allocation2 + $0xd] sm:$0x7] %vm296, 0.0
      %298 = vrot.lane.b32.xlu0 %v218, 112
      %v299 = vpop.permute.xlu0 %298
      %300 = vrot.lane.b32.xlu0 %v219, 112
      %v301 = vpop.permute.xlu0 %300
      %vm304 = vcmask 1048451
      %305 = vst.msk [vmem:[#allocation2 - $0x3] sm:$0xf8] %vm304, %v299
      %vm306 = vcmask 1048448
      %307 = vst.msk [vmem:[#allocation2 + $0x5] sm:$0xff] %vm306, %v301
      %v308 = vld [vmem:[#allocation2] sm:$0xff]
      %v309 = vld [vmem:[#allocation2 + $0x8] sm:$0xff]
      %v310 = vpack.c.bf16 %v309, %v308
      %v311 = vld [vmem:[%s1] sm:$0xf]
      %v312 = vld [vmem:[%s1 + $0x4] sm:$0xf]
      %v313 = vld [vmem:[%s1 + $0x8] sm:$0xf]
      %v314 = vld [vmem:[%s1 + $0xc] sm:$0xf]
      %v315 = vld [vmem:[%s1 + $0x10] sm:$0xf]
      %v316 = vld [vmem:[%s1 + $0x14] sm:$0xf]
      %v317 = vld [vmem:[%s1 + $0x18] sm:$0xf]
      %v318 = vld [vmem:[%s1 + $0x1c] sm:$0xf]
      %v319 = vld [vmem:[%s1 + $0x20] sm:$0xf]
      %v320 = vld [vmem:[%s1 + $0x24] sm:$0xf]
      %v321 = vld [vmem:[%s1 + $0x28] sm:$0xf]
      %v322 = vld [vmem:[%s1 + $0x2c] sm:$0xf]
      %v323 = vld [vmem:[%s1 + $0x30] sm:$0xf]
      %v324 = vld [vmem:[%s1 + $0x34] sm:$0xf]
      %v325 = vld [vmem:[%s1 + $0x38] sm:$0xf]
      %v326 = vld [vmem:[%s1 + $0x3c] sm:$0xf]
      %v343 = vunpack.c.l.b16 %v311
      %v344 = vunpack.c.l.b16 %v312
      %v345 = vunpack.c.l.b16 %v313
      %v346 = vunpack.c.l.b16 %v314
      %v347 = vunpack.c.l.b16 %v315
      %v348 = vunpack.c.l.b16 %v316
      %v349 = vunpack.c.l.b16 %v317
      %v350 = vunpack.c.l.b16 %v318
      %v351 = vunpack.c.l.b16 %v319
      %v352 = vunpack.c.l.b16 %v320
      %v353 = vunpack.c.l.b16 %v321
      %v354 = vunpack.c.l.b16 %v322
      %v355 = vunpack.c.l.b16 %v323
      %v356 = vunpack.c.l.b16 %v324
      %v357 = vunpack.c.l.b16 %v325
      %v358 = vunpack.c.l.b16 %v326
      %v359 = vpack.c.b16 %v344, %v343
      %v360 = vpack.c.b16 %v346, %v345
      %v361 = vpack.c.b16 %v348, %v347
      %v362 = vpack.c.b16 %v350, %v349
      %v363 = vpack.c.b16 %v352, %v351
      %v364 = vpack.c.b16 %v354, %v353
      %v365 = vpack.c.b16 %v356, %v355
      %v366 = vpack.c.b16 %v358, %v357
      %375 = vmatprep.subr.bf16.mxu0 0
      %376 = vmatpush1.bf16.msra.mxu0 %v359
      %377 = vmatprep.subr.bf16.mxu0 0
      %378 = vmatpush1.bf16.msra.mxu0 %v360
      %379 = vmatprep.subr.bf16.mxu0 0
      %380 = vmatpush1.bf16.msra.mxu0 %v361
      %381 = vmatprep.subr.bf16.mxu0 0
      %382 = vmatpush1.bf16.msra.mxu0 %v362
      %383 = vmatprep.subr.bf16.mxu0 0
      %384 = vmatpush1.bf16.msra.mxu0 %v363
      %385 = vmatprep.subr.bf16.mxu0 0
      %386 = vmatpush1.bf16.msra.mxu0 %v364
      %387 = vmatprep.subr.bf16.mxu0 0
      %388 = vmatpush1.bf16.msra.mxu0 %v365
      %389 = vmatprep.subr.bf16.mxu0 0
      %390 = vmatpush1.bf16.msra.mxu0 %v366
      %391 = vmatprep.subr.bf16.mxu0 0
      %392 = vmatpush1.bf16.msra.mxu0 0
      %393 = vmatprep.subr.bf16.mxu0 0
      %394 = vmatpush1.bf16.msra.mxu0 0
      %395 = vmatprep.subr.bf16.mxu0 0
      %396 = vmatpush1.bf16.msra.mxu0 0
      %397 = vmatprep.subr.bf16.mxu0 0
      %398 = vmatpush1.bf16.msra.mxu0 0
      %399 = vmatprep.subr.bf16.mxu0 0
      %400 = vmatpush1.bf16.msra.mxu0 0
      %401 = vmatprep.subr.bf16.mxu0 0
      %402 = vmatpush1.bf16.msra.mxu0 0
      %403 = vmatprep.subr.bf16.mxu0 0
      %404 = vmatpush1.bf16.msra.mxu0 0
      %405 = vmatprep.subr.bf16.mxu0 0
      %406 = vmatpush1.bf16.msra.mxu0 0
      %407 = vmatprep.mubr.bf16.mxu0 0
      %408 = vmatmul.mubr.bf16.gmra.mrb[0].mxu0 %v310
      %v409 = vpop.f32.mrb[0].mxu0
      %v410 = vadd.f32 0.0, %v409
      %v411 = vpop.f32.mrb[0].mxu0
      %v412 = vpop.f32.mrb[0].mxu0
      %v413 = vadd.f32 0.0, %v412
      %v414 = vpop.f32.mrb[0].mxu0
      %415 = vdwg.mxu0
      %v416 = vpack.c.bf16 %v413, %v410
      %v418 = vunpack.c.l.b16 %v416
      %v419 = vunpack.c.h.b16 %v416
      %v420 = vpack.c.b16 %v418, %v418
      %v421 = vpack.c.b16 %v419, %v419
      %424 = vst.msk [vmem:[%s208] sm:$0xf] %vm220, %v420
      %425 = vst.msk [vmem:[%s208 + $0x4] sm:$0xf] %vm220, %v421
      %v426 = vsel %vm222, %v410, 0.0
      %v427 = vsel %vm222, %v413, 0.0
      %v428 = vadd.f32 %v426, %v427
      %v429 = vrot.slane %v428, 4
      %v430 = vadd.f32 %v428, %v429
      %v431 = vrot.slane %v430, 2
      %v432 = vadd.f32 %v430, %v431
      %v433 = vrot.slane %v432, 1
      %v434 = vadd.f32 %v432, %v433
      %vm435 = vcmask 122880
      %436 = vst.msk [vmem:[%s211] sm:$0x1] %vm435, %v434
      %v437 = vmul.f32 %v410, %v410
      %v438 = vmul.f32 %v413, %v413
      %v439 = vsel %vm222, %v437, 0.0
      %v440 = vsel %vm222, %v438, 0.0
      %v441 = vadd.f32 %v439, %v440
      %v442 = vrot.slane %v441, 4
      %v443 = vadd.f32 %v441, %v442
      %v444 = vrot.slane %v443, 2
      %v445 = vadd.f32 %v443, %v444
      %v446 = vrot.slane %v445, 1
      %v447 = vadd.f32 %v445, %v446
      %448 = vst.msk [vmem:[%s214] sm:$0x1] %vm435, %v447
      %p449 = scmp.lt.s32.totalorder %s16, 1
      %s450 = scalar_select %p449, %s16, 1
      %s451 = smul.addr %s450, 2
      %s452 = smul.addr %s451, 4
      %s453 = scalar_lea.vmem %s2, %s452
      %p454 = scmp.lt.s32.totalorder %s16, 1
      %s455 = scalar_select %p454, %s16, 1
      %s456 = scalar_lea.vmem %s3, %s455
      %p457 = scmp.lt.s32.totalorder %s16, 1
      %s458 = scalar_select %p457, %s16, 1
      %s459 = scalar_lea.vmem %s4, %s458
      // Predicated region
      $region29: #{resnet_mrm2_forward.23} parent=27 // pred_check
        %p460 = pneg %p81
      $region30: #{resnet_mrm2_forward.23} parent=27 // pred_check_branch
        %462 = sbr.rel (%p460) target = $region32
      $region31: #{resnet_mrm2_forward.23} parent=27 // pred_region
        _
      $region32: #{resnet_mrm2_forward.23} parent=27 // pred_fallthru
        _
      // Predicated region
      $region33: #{resnet_mrm2_forward.23} parent=27 // pred_check
        %p463 = pneg %p107
      $region34: #{resnet_mrm2_forward.23} parent=27 // pred_check_branch
        %465 = sbr.rel (%p463) target = $region36
      $region35: #{resnet_mrm2_forward.23} parent=27 // pred_region
        _
      $region36: #{resnet_mrm2_forward.23} parent=27 // pred_fallthru
        _
      // Predicated region
      $region37: #{resnet_mrm2_forward.23} parent=27 // pred_check
        %p466 = pneg %p133
      $region38: #{resnet_mrm2_forward.23} parent=27 // pred_check_branch
        %468 = sbr.rel (%p466) target = $region40
      $region39: #{resnet_mrm2_forward.23} parent=27 // pred_region
        _
      $region40: #{resnet_mrm2_forward.23} parent=27 // pred_fallthru
        _
    $region28: #{resnet_mrm2_forward.23} parent=5 // pred_fallthru
      _
    %p469 = scmp.le.s32.totalorder 2, %s11
    // Predicated region
    $region41: #{resnet_mrm2_forward.23} parent=5 // pred_check
      %p470 = pneg %p469
    $region42: #{resnet_mrm2_forward.23} parent=5 // pred_check_branch
      %472 = sbr.rel (%p470) target = $region44
    $region43: #{resnet_mrm2_forward.23} parent=5 // pred_region
      %s473 = ssub.s32 %s11, 2
      // Predicated region
      $region45: #{resnet_mrm2_forward.23} parent=43 // pred_check
        %p474 = pneg %p87
      $region46: #{resnet_mrm2_forward.23} parent=43 // pred_check_branch
        %476 = sbr.rel (%p474) target = $region48
      $region47: #{resnet_mrm2_forward.23} parent=43 // pred_region
        %p477 = scmp.lt.s32.totalorder %s17, 1
        %s478 = scalar_select %p477, %s17, 1
        %s479 = smul.addr %s478, 2
        %s480 = smul.addr %s479, 4
        %s481 = scalar_lea.vmem %s2, %s480
      $region48: #{resnet_mrm2_forward.23} parent=43 // pred_fallthru
        _
      // Predicated region
      $region49: #{resnet_mrm2_forward.23} parent=43 // pred_check
        %p482 = pneg %p113
      $region50: #{resnet_mrm2_forward.23} parent=43 // pred_check_branch
        %484 = sbr.rel (%p482) target = $region52
      $region51: #{resnet_mrm2_forward.23} parent=43 // pred_region
        %p485 = scmp.lt.s32.totalorder %s17, 1
        %s486 = scalar_select %p485, %s17, 1
        %s487 = scalar_lea.vmem %s3, %s486
      $region52: #{resnet_mrm2_forward.23} parent=43 // pred_fallthru
        _
      // Predicated region
      $region53: #{resnet_mrm2_forward.23} parent=43 // pred_check
        %p488 = pneg %p139
      $region54: #{resnet_mrm2_forward.23} parent=43 // pred_check_branch
        %490 = sbr.rel (%p488) target = $region56
      $region55: #{resnet_mrm2_forward.23} parent=43 // pred_region
        %p491 = scmp.lt.s32.totalorder %s17, 1
        %s492 = scalar_select %p491, %s17, 1
        %s493 = scalar_lea.vmem %s4, %s492
      $region56: #{resnet_mrm2_forward.23} parent=43 // pred_fallthru
        _
    $region44: #{resnet_mrm2_forward.23} parent=5 // pred_fallthru
      _
  $region6: #{resnet_mrm2_forward.23} parent=0 // loop_footer
    %s15 = sadd.s32 1, %s11
  $region7: #{resnet_mrm2_forward.23} parent=0 // loop_footer_branch
    %10 = sbr.rel target = $region3
  $region8: #{resnet_mrm2_forward.23} parent=0 // loop_exit
    _

</llo_original>
